<compile_context>
chip_gen: v7x
topology: tpu7x:2x2x1
jax: 0.10.0
libtpu: 0.0.40
codegen_flags: <defaults>
</compile_context>

<pallas_src>
import jax
import jax.numpy as jnp
from jax import lax
from jax.experimental import pallas as pl
from jax.experimental.pallas import tpu as pltpu


HIDDEN = 1024
D1 = 512
D2 = 256
LANE = 128


def _round_up(x, m):
    return (x + m - 1) // m * m


def _classifier_kernel(seq_ref, h_ref, w1_ref, b1_ref, w2_ref, b2_ref,
                       w3_ref, b3_ref, out_ref, acc_ref):
    """Streaming mean-pool over sequence blocks + 3-layer MLP on the last block.

    Grid = (batch tiles, sequence blocks). The sequence axis is a reduction:
    partial sums accumulate into the f32 VMEM scratch `acc_ref` via an MXU
    contraction against a ones vector; the MLP and the output store only run
    on the final sequence block of each batch tile.
    """
    k = pl.program_id(1)
    TB, TS, H = h_ref.shape

    @pl.when(k == 0)
    def _():
        acc_ref[...] = jnp.zeros_like(acc_ref)

    seq_len = seq_ref[0]
    rem = seq_len - k * TS                      # valid sequence rows in block

    # (TB,1,TS) x (TB,TS,H) batched over TB, contracting TS -> (TB,1,H) f32.
    ones = jnp.ones((TB, 1, TS), dtype=h_ref.dtype)
    dims = (((2,), (1,)), ((0,), (0,)))

    @pl.when(rem >= TS)                         # full block: pure MXU path
    def _():
        acc_ref[...] += lax.dot_general(
            ones, h_ref[...], dimension_numbers=dims,
            preferred_element_type=jnp.float32)

    @pl.when(rem < TS)                          # ragged tail: zero OOB rows
    def _():
        h_blk = h_ref[...]
        row = lax.broadcasted_iota(jnp.int32, (TB, TS, H), 1)
        h_z = jnp.where(row < rem, h_blk, jnp.zeros_like(h_blk))
        acc_ref[...] += lax.dot_general(
            ones, h_z, dimension_numbers=dims,
            preferred_element_type=jnp.float32)

    @pl.when(k == pl.num_programs(1) - 1)
    def _():
        # Literal PyTorch semantics: mean over the full sequence length.
        inv_len = 1.0 / seq_len.astype(jnp.float32)
        pooled = acc_ref[...].reshape(TB, H) * inv_len            # [TB, H]

        # Linear(1024, 512) + ReLU
        x1 = jnp.dot(pooled, w1_ref[...], preferred_element_type=jnp.float32)
        x1 = jnp.maximum(x1 + b1_ref[...], 0.0)                   # [TB, 512]

        # Dropout(0.3): identity in inference/eval mode.
        # TODO(synk): training-mode dropout would need pltpu.prng_* in-kernel.

        # Linear(512, 256) + ReLU
        x2 = jnp.dot(x1, w2_ref[...], preferred_element_type=jnp.float32)
        x2 = jnp.maximum(x2 + b2_ref[...], 0.0)                   # [TB, 256]

        # Linear(256, num_classes) -- padded to a lane-dense 128-wide output.
        logits = jnp.dot(x2, w3_ref[...], preferred_element_type=jnp.float32)
        out_ref[...] = (logits + b3_ref[...]).astype(out_ref.dtype)


def prott5_classifier_head(hidden_states, params, *, tb=16, ts=None):
    """Mean-pool over sequence + 3-layer MLP classifier, as one Pallas kernel.

    No wrapper-side pad/cast HBM passes: the kernel streams the encoder's
    output dtype directly, masks ragged sequence tails in-kernel, and relies on
    discarded out-of-bounds writes for ragged batch tiles.
    """
    B, S, H = hidden_states.shape
    assert H == HIDDEN
    num_classes = params["w3"].shape[1]
    n_pad = _round_up(num_classes, LANE)

    # Default sequence block: 16 MiB bf16 / f32 stream per block (32 MiB
    # double-buffered), sized for v7x's 64 MiB VMEM; v5e/v6e have headroom.
    if ts is None:
        ts = 512 if hidden_states.dtype == jnp.bfloat16 else 256

    # Sequence block: a multiple of 8 (sublane) or the full S; ragged tails
    # are masked in-kernel, so no padding of the hidden states is needed.
    TS = S if S <= ts else ts

    # Batch tile: full batch when small; otherwise a multiple of 8, and at
    # least two tiles when B >= 16 so the "parallel" batch axis can shard
    # across both v7x TensorCores (v5e/v6e single-TC: unaffected).
    if B <= 8:
        TB = B
    else:
        TB = min(tb, _round_up(pl.cdiv(B, 2), 8))

    grid = (pl.cdiv(B, TB), pl.cdiv(S, TS))

    w1, b1, w2, b2 = params["w1"], params["b1"], params["w2"], params["b2"]
    # Pad the tiny num_classes dimension to 128 lanes so the final matmul and
    # the output store are full-tile; slice back outside the kernel.
    w3 = jnp.pad(params["w3"], ((0, 0), (0, n_pad - num_classes)))
    b3 = jnp.pad(params["b3"], ((0, 0), (0, n_pad - num_classes)))

    # Sequence length as an SMEM scalar (scalar prefetch): used for the
    # in-kernel tail mask and the mean divisor.
    seq_info = jnp.array([S], dtype=jnp.int32)

    const = lambda i, k, seq: (0, 0)   # weights/biases: DMA once, VMEM-resident

    out_padded = pl.pallas_call(
        _classifier_kernel,
        out_shape=jax.ShapeDtypeStruct((B, n_pad), jnp.float32),
        grid_spec=pltpu.PrefetchScalarGridSpec(
            num_scalar_prefetch=1,
            grid=grid,
            in_specs=[
                pl.BlockSpec((TB, TS, H), lambda i, k, seq: (i, k, 0)),
                pl.BlockSpec((H, D1), const),
                pl.BlockSpec((1, D1), const),
                pl.BlockSpec((D1, D2), const),
                pl.BlockSpec((1, D2), const),
                pl.BlockSpec((D2, n_pad), const),
                pl.BlockSpec((1, n_pad), const),
            ],
            out_specs=pl.BlockSpec((TB, n_pad), lambda i, k, seq: (i, 0)),
            scratch_shapes=[pltpu.VMEM((TB, 1, HIDDEN), jnp.float32)],
        ),
        compiler_params=pltpu.CompilerParams(
            dimension_semantics=("parallel", "arbitrary"),
            vmem_limit_bytes=56 << 20,
        ),
    )(seq_info, hidden_states, w1, b1, w2, b2, w3, b3)

    return out_padded[:, :num_classes]


def synthetic_encoder(input_ids, attention_mask, embed_table):
    # TODO(synk): the real ProtT5 (T5 encoder stack) is an external pretrained
    # model with no clean single-kernel Pallas equivalent; stand in with a
    # deterministic embedding lookup so the classifier-head kernel sees
    # realistic [B, S, 1024] hidden states.  Emitted directly in bf16 so the
    # kernel streams it without an extra wrapper-side cast pass.
    h = embed_table[input_ids]                                     # [B, S, 1024]
    h = h * attention_mask[..., None].astype(h.dtype)
    return h.astype(jnp.bfloat16)


def init_params(key, num_classes):
    ks = jax.random.split(key, 6)

    def lin(kw, fan_in, fan_out):
        scale = 1.0 / jnp.sqrt(fan_in)
        return jax.random.uniform(kw, (fan_in, fan_out), jnp.float32,
                                  -scale, scale)

    return {
        "w1": lin(ks[0], HIDDEN, D1),
        "b1": jax.random.uniform(ks[1], (1, D1), jnp.float32, -0.03, 0.03),
        "w2": lin(ks[2], D1, D2),
        "b2": jax.random.uniform(ks[3], (1, D2), jnp.float32, -0.04, 0.04),
        "w3": lin(ks[4], D2, num_classes),
        "b3": jax.random.uniform(ks[5], (1, num_classes), jnp.float32,
                                 -0.06, 0.06),
    }


if __name__ == "__main__":
    key = jax.random.PRNGKey(0)
    k_tok, k_emb, k_par = jax.random.split(key, 3)

    B, S, VOCAB, NUM_CLASSES = 8, 40, 32, 10

    input_ids = jax.random.randint(k_tok, (B, S), 0, VOCAB, dtype=jnp.int32)
    attention_mask = jnp.ones((B, S), dtype=jnp.int32)
    embed_table = jax.random.normal(k_emb, (VOCAB, HIDDEN), jnp.float32) * 0.02
    params = init_params(k_par, NUM_CLASSES)

    hidden_states = synthetic_encoder(input_ids, attention_mask, embed_table)

    # Small sequence block (ts=16) so the test exercises the multi-step
    # sequence reduction with a ragged tail: grid = (1, cdiv(40,16)=3), the
    # last block has only 8 valid rows -> in-kernel mask path is covered.
    logits = prott5_classifier_head(hidden_states, params, tb=8, ts=16)
    jax.block_until_ready(logits)

    # Reference check in plain JAX (same math, high-precision matmuls).
    hp = jax.lax.Precision.HIGHEST
    h32 = hidden_states.astype(jnp.float32)
    pooled = h32.mean(axis=1)
    ref = jnp.maximum(jnp.dot(pooled, params["w1"], precision=hp) + params["b1"], 0.0)
    ref = jnp.maximum(jnp.dot(ref, params["w2"], precision=hp) + params["b2"], 0.0)
    ref = jnp.dot(ref, params["w3"], precision=hp) + params["b3"]

    assert logits.shape == (B, NUM_CLASSES)
    assert jnp.allclose(logits, ref, atol=2e-3, rtol=2e-3)

    print("KERNEL_OK")
</pallas_src>

<mosaic_0001>
module attributes {stable_mosaic.version = 11 : i64} {
  func.func @_classifier_kernel(%arg0: i32, %arg1: i32, %arg2: memref<1xi32, #tpu.memory_space<smem>>, %arg3: memref<8x16x1024xbf16, #tpu.memory_space<vmem>>, %arg4: memref<1024x512xf32, #tpu.memory_space<vmem>>, %arg5: memref<1x512xf32, #tpu.memory_space<vmem>>, %arg6: memref<512x256xf32, #tpu.memory_space<vmem>>, %arg7: memref<1x256xf32, #tpu.memory_space<vmem>>, %arg8: memref<256x128xf32, #tpu.memory_space<vmem>>, %arg9: memref<1x128xf32, #tpu.memory_space<vmem>>, %arg10: memref<8x128xf32, #tpu.memory_space<vmem>>, %arg11: memref<8x1x1024xf32, #tpu.memory_space<vmem>>) attributes {dimension_semantics = [#tpu.dimension_semantics<parallel>, #tpu.dimension_semantics<arbitrary>], iteration_bounds = array<i64: 1, 3>, scalar_prefetch = 1 : i64, scratch_operands = 1 : i64, tpu.core_type = #tpu.core_type<tc>, window_params = [{transform_indices = @transform_0, window_bounds = array<i64: 8, 16, 1024>}, {pipeline_mode = #tpu.pipeline_mode<synchronous>, transform_indices = @transform_1, window_bounds = array<i64: 1024, 512>}, {pipeline_mode = #tpu.pipeline_mode<synchronous>, transform_indices = @transform_2, window_bounds = array<i64: 1, 512>}, {pipeline_mode = #tpu.pipeline_mode<synchronous>, transform_indices = @transform_3, window_bounds = array<i64: 512, 256>}, {pipeline_mode = #tpu.pipeline_mode<synchronous>, transform_indices = @transform_4, window_bounds = array<i64: 1, 256>}, {pipeline_mode = #tpu.pipeline_mode<synchronous>, transform_indices = @transform_5, window_bounds = array<i64: 256, 128>}, {pipeline_mode = #tpu.pipeline_mode<synchronous>, transform_indices = @transform_6, window_bounds = array<i64: 1, 128>}, {transform_indices = @transform_7, window_bounds = array<i64: 8, 128>}]} {
    %c0_i32 = arith.constant 0 : i32
    %0 = arith.cmpi eq, %arg1, %c0_i32 : i32
    %1 = arith.extui %0 : i1 to i32
    %c0_i32_0 = arith.constant 0 : i32
    %2 = arith.cmpi ne, %1, %c0_i32_0 : i32
    scf.if %2 {
      %cst_6 = arith.constant 0.000000e+00 : f32
      %16 = vector.broadcast %cst_6 : f32 to vector<8x1x1024xf32>
      %c0_7 = arith.constant 0 : index
      %c0_8 = arith.constant 0 : index
      %c0_9 = arith.constant 0 : index
      %17 = vector.load %arg11[%c0_7, %c0_8, %c0_9] : memref<8x1x1024xf32, #tpu.memory_space<vmem>>, vector<8x1x1024xf32>
      tpu.vector_store %arg11[%c0_7, %c0_8, %c0_9], %16 {strides = array<i32>} : memref<8x1x1024xf32, #tpu.memory_space<vmem>>, vector<8x1x1024xf32>,
    } else {
    }
    %c0 = arith.constant 0 : index
    %3 = memref.load %arg2[%c0] : memref<1xi32, #tpu.memory_space<smem>>
    %c16_i32 = arith.constant 16 : i32
    %4 = arith.muli %arg1, %c16_i32 : i32
    %5 = arith.subi %3, %4 : i32
    %cst = arith.constant 1.000000e+00 : bf16
    %6 = vector.broadcast %cst : bf16 to vector<8x1x16xbf16>
    %c16_i32_1 = arith.constant 16 : i32
    %7 = arith.cmpi sge, %5, %c16_i32_1 : i32
    %8 = arith.extui %7 : i1 to i32
    %c0_i32_2 = arith.constant 0 : i32
    %9 = arith.cmpi ne, %8, %c0_i32_2 : i32
    scf.if %9 {
      %c0_6 = arith.constant 0 : index
      %c0_7 = arith.constant 0 : index
      %c0_8 = arith.constant 0 : index
      %16 = vector.load %arg11[%c0_6, %c0_7, %c0_8] : memref<8x1x1024xf32, #tpu.memory_space<vmem>>, vector<8x1x1024xf32>
      %c0_9 = arith.constant 0 : index
      %c0_10 = arith.constant 0 : index
      %c0_11 = arith.constant 0 : index
      %17 = vector.load %arg3[%c0_9, %c0_10, %c0_11] : memref<8x16x1024xbf16, #tpu.memory_space<vmem>>, vector<8x16x1024xbf16>
      %cst_12 = arith.constant dense<0.000000e+00> : vector<8x1x1024xf32>
      %18 = tpu.matmul %6, %17, %cst_12 {dimension_numbers = #tpu.dot_dimension_numbers<[2], [1], [1], [2], [0, 0, 0, 1, 1, 2], [0], [0]>} : vector<8x1x16xbf16>, vector<8x16x1024xbf16>, vector<8x1x1024xf32> -> vector<8x1x1024xf32>
      %19 = arith.addf %16, %18 : vector<8x1x1024xf32>
      %c0_13 = arith.constant 0 : index
      %c0_14 = arith.constant 0 : index
      %c0_15 = arith.constant 0 : index
      %20 = vector.load %arg11[%c0_13, %c0_14, %c0_15] : memref<8x1x1024xf32, #tpu.memory_space<vmem>>, vector<8x1x1024xf32>
      tpu.vector_store %arg11[%c0_13, %c0_14, %c0_15], %19 {strides = array<i32>} : memref<8x1x1024xf32, #tpu.memory_space<vmem>>, vector<8x1x1024xf32>,
    } else {
    }
    %c16_i32_3 = arith.constant 16 : i32
    %10 = arith.cmpi slt, %5, %c16_i32_3 : i32
    %11 = arith.extui %10 : i1 to i32
    %c0_i32_4 = arith.constant 0 : i32
    %12 = arith.cmpi ne, %11, %c0_i32_4 : i32
    scf.if %12 {
      %c0_6 = arith.constant 0 : index
      %c0_7 = arith.constant 0 : index
      %c0_8 = arith.constant 0 : index
      %16 = vector.load %arg3[%c0_6, %c0_7, %c0_8] : memref<8x16x1024xbf16, #tpu.memory_space<vmem>>, vector<8x16x1024xbf16>
      %17 = tpu.iota {dimensions = array<i32: 1>} : vector<8x16x1024xi32>
      %18 = vector.broadcast %5 : i32 to vector<8x16x1024xi32>
      %19 = arith.cmpi slt, %17, %18 : vector<8x16x1024xi32>
      %cst_9 = arith.constant 0.000000e+00 : bf16
      %20 = vector.broadcast %cst_9 : bf16 to vector<8x16x1024xbf16>
      %21 = arith.select %19, %16, %20 : vector<8x16x1024xi1>, vector<8x16x1024xbf16>
      %c0_10 = arith.constant 0 : index
      %c0_11 = arith.constant 0 : index
      %c0_12 = arith.constant 0 : index
      %22 = vector.load %arg11[%c0_10, %c0_11, %c0_12] : memref<8x1x1024xf32, #tpu.memory_space<vmem>>, vector<8x1x1024xf32>
      %cst_13 = arith.constant dense<0.000000e+00> : vector<8x1x1024xf32>
      %23 = tpu.matmul %6, %21, %cst_13 {dimension_numbers = #tpu.dot_dimension_numbers<[2], [1], [1], [2], [0, 0, 0, 1, 1, 2], [0], [0]>} : vector<8x1x16xbf16>, vector<8x16x1024xbf16>, vector<8x1x1024xf32> -> vector<8x1x1024xf32>
      %24 = arith.addf %22, %23 : vector<8x1x1024xf32>
      %c0_14 = arith.constant 0 : index
      %c0_15 = arith.constant 0 : index
      %c0_16 = arith.constant 0 : index
      %25 = vector.load %arg11[%c0_14, %c0_15, %c0_16] : memref<8x1x1024xf32, #tpu.memory_space<vmem>>, vector<8x1x1024xf32>
      tpu.vector_store %arg11[%c0_14, %c0_15, %c0_16], %24 {strides = array<i32>} : memref<8x1x1024xf32, #tpu.memory_space<vmem>>, vector<8x1x1024xf32>,
    } else {
    }
    %c2_i32 = arith.constant 2 : i32
    %13 = arith.cmpi eq, %arg1, %c2_i32 : i32
    %14 = arith.extui %13 : i1 to i32
    %c0_i32_5 = arith.constant 0 : i32
    %15 = arith.cmpi ne, %14, %c0_i32_5 : i32
    scf.if %15 {
      %16 = arith.sitofp %3 : i32 to f32
      %cst_6 = arith.constant 1.000000e+00 : f32
      %17 = arith.divf %cst_6, %16 : f32
      %c0_7 = arith.constant 0 : index
      %c0_8 = arith.constant 0 : index
      %c0_9 = arith.constant 0 : index
      %18 = vector.load %arg11[%c0_7, %c0_8, %c0_9] : memref<8x1x1024xf32, #tpu.memory_space<vmem>>, vector<8x1x1024xf32>
      %19 = vector.shape_cast %18 : vector<8x1x1024xf32> to vector<8x1024xf32>
      %20 = vector.broadcast %17 : f32 to vector<8x1024xf32>
      %21 = arith.mulf %19, %20 : vector<8x1024xf32>
      %c0_10 = arith.constant 0 : index
      %c0_11 = arith.constant 0 : index
      %22 = vector.load %arg4[%c0_10, %c0_11] : memref<1024x512xf32, #tpu.memory_space<vmem>>, vector<1024x512xf32>
      %cst_12 = arith.constant dense<0.000000e+00> : vector<8x512xf32>
      %23 = tpu.matmul %21, %22, %cst_12 {dimension_numbers = #tpu.dot_dimension_numbers<[1], [0], [0], [1], [0, 0, 1, 1], [], []>} : vector<8x1024xf32>, vector<1024x512xf32>, vector<8x512xf32> -> vector<8x512xf32>
      %c0_13 = arith.constant 0 : index
      %c0_14 = arith.constant 0 : index
      %24 = vector.load %arg5[%c0_13, %c0_14] : memref<1x512xf32, #tpu.memory_space<vmem>>, vector<1x512xf32>
      %25 = vector.broadcast %24 : vector<1x512xf32> to vector<8x512xf32>
      %26 = arith.addf %23, %25 : vector<8x512xf32>
      %cst_15 = arith.constant 0.000000e+00 : f32
      %27 = vector.broadcast %cst_15 : f32 to vector<8x512xf32>
      %28 = arith.maximumf %26, %27 : vector<8x512xf32>
      %c0_16 = arith.constant 0 : index
      %c0_17 = arith.constant 0 : index
      %29 = vector.load %arg6[%c0_16, %c0_17] : memref<512x256xf32, #tpu.memory_space<vmem>>, vector<512x256xf32>
      %cst_18 = arith.constant dense<0.000000e+00> : vector<8x256xf32>
      %30 = tpu.matmul %28, %29, %cst_18 {dimension_numbers = #tpu.dot_dimension_numbers<[1], [0], [0], [1], [0, 0, 1, 1], [], []>} : vector<8x512xf32>, vector<512x256xf32>, vector<8x256xf32> -> vector<8x256xf32>
      %c0_19 = arith.constant 0 : index
      %c0_20 = arith.constant 0 : index
      %31 = vector.load %arg7[%c0_19, %c0_20] : memref<1x256xf32, #tpu.memory_space<vmem>>, vector<1x256xf32>
      %32 = vector.broadcast %31 : vector<1x256xf32> to vector<8x256xf32>
      %33 = arith.addf %30, %32 : vector<8x256xf32>
      %cst_21 = arith.constant 0.000000e+00 : f32
      %34 = vector.broadcast %cst_21 : f32 to vector<8x256xf32>
      %35 = arith.maximumf %33, %34 : vector<8x256xf32>
      %c0_22 = arith.constant 0 : index
      %c0_23 = arith.constant 0 : index
      %36 = vector.load %arg8[%c0_22, %c0_23] : memref<256x128xf32, #tpu.memory_space<vmem>>, vector<256x128xf32>
      %cst_24 = arith.constant dense<0.000000e+00> : vector<8x128xf32>
      %37 = tpu.matmul %35, %36, %cst_24 {dimension_numbers = #tpu.dot_dimension_numbers<[1], [0], [0], [1], [0, 0, 1, 1], [], []>} : vector<8x256xf32>, vector<256x128xf32>, vector<8x128xf32> -> vector<8x128xf32>
      %c0_25 = arith.constant 0 : index
      %c0_26 = arith.constant 0 : index
      %38 = vector.load %arg9[%c0_25, %c0_26] : memref<1x128xf32, #tpu.memory_space<vmem>>, vector<1x128xf32>
      %39 = vector.broadcast %38 : vector<1x128xf32> to vector<8x128xf32>
      %40 = arith.addf %37, %39 : vector<8x128xf32>
      %c0_27 = arith.constant 0 : index
      %c0_28 = arith.constant 0 : index
      %41 = vector.load %arg10[%c0_27, %c0_28] : memref<8x128xf32, #tpu.memory_space<vmem>>, vector<8x128xf32>
      tpu.vector_store %arg10[%c0_27, %c0_28], %40 {strides = array<i32>} : memref<8x128xf32, #tpu.memory_space<vmem>>, vector<8x128xf32>,
    } else {
    }
    return
  }
  func.func @transform_0(%arg0: i32, %arg1: i32, %arg2: memref<1xi32, #tpu.memory_space<smem>>) -> (i32, i32, i32) {
    %c0_i32 = arith.constant 0 : i32
    %c0_i32_0 = arith.constant 0 : i32
    return %arg0, %arg1, %c0_i32 : i32, i32, i32
  }
  func.func @transform_1(%arg0: i32, %arg1: i32, %arg2: memref<1xi32, #tpu.memory_space<smem>>) -> (i32, i32) {
    %c0_i32 = arith.constant 0 : i32
    %c0_i32_0 = arith.constant 0 : i32
    %c0_i32_1 = arith.constant 0 : i32
    return %c0_i32, %c0_i32_0 : i32, i32
  }
  func.func @transform_2(%arg0: i32, %arg1: i32, %arg2: memref<1xi32, #tpu.memory_space<smem>>) -> (i32, i32) {
    %c0_i32 = arith.constant 0 : i32
    %c0_i32_0 = arith.constant 0 : i32
    %c0_i32_1 = arith.constant 0 : i32
    return %c0_i32, %c0_i32_0 : i32, i32
  }
  func.func @transform_3(%arg0: i32, %arg1: i32, %arg2: memref<1xi32, #tpu.memory_space<smem>>) -> (i32, i32) {
    %c0_i32 = arith.constant 0 : i32
    %c0_i32_0 = arith.constant 0 : i32
    %c0_i32_1 = arith.constant 0 : i32
    return %c0_i32, %c0_i32_0 : i32, i32
  }
  func.func @transform_4(%arg0: i32, %arg1: i32, %arg2: memref<1xi32, #tpu.memory_space<smem>>) -> (i32, i32) {
    %c0_i32 = arith.constant 0 : i32
    %c0_i32_0 = arith.constant 0 : i32
    %c0_i32_1 = arith.constant 0 : i32
    return %c0_i32, %c0_i32_0 : i32, i32
  }
  func.func @transform_5(%arg0: i32, %arg1: i32, %arg2: memref<1xi32, #tpu.memory_space<smem>>) -> (i32, i32) {
    %c0_i32 = arith.constant 0 : i32
    %c0_i32_0 = arith.constant 0 : i32
    %c0_i32_1 = arith.constant 0 : i32
    return %c0_i32, %c0_i32_0 : i32, i32
  }
  func.func @transform_6(%arg0: i32, %arg1: i32, %arg2: memref<1xi32, #tpu.memory_space<smem>>) -> (i32, i32) {
    %c0_i32 = arith.constant 0 : i32
    %c0_i32_0 = arith.constant 0 : i32
    %c0_i32_1 = arith.constant 0 : i32
    return %c0_i32, %c0_i32_0 : i32, i32
  }
  func.func @transform_7(%arg0: i32, %arg1: i32, %arg2: memref<1xi32, #tpu.memory_space<smem>>) -> (i32, i32) {
    %c0_i32 = arith.constant 0 : i32
    %c0_i32_0 = arith.constant 0 : i32
    return %arg0, %c0_i32 : i32, i32
  }
}

</mosaic_0001>

<llo_original>
// kernel: tpu_custom_call.1
$region0: #{tpu_custom_call.1}
  #allocation0 [shape = 'u32[]', space=smem, size = 0x4, offset = 0x4, fixed_abs, tag = 'smem constant byte address 0x4 - core index']
  #allocation1 [shape = 'u32[144,128]{1,0:T(1,128)}', space=vmem, size = 0x12000, scoped, tag = 'internal scratch']
  #allocation2 [shape = 'f32[8,1,1024]{2,1,0:T(1,128)}', space=vmem, size = 0x8000, scoped, tag = 'scratch operand']
  #allocation3 [shape = 's32[1]{0}', space=sflag, size = 0x4, scoped, tag = 'scoped memory for tpu_custom_call.1']
  #allocation4 [shape = 's32[1]{0:T(128)S(6)}', space=smem, size = 0x200, scoped, tag = 'prefetched SMEM operand 0']
  #allocation18 [shape = 's32[]', space=sflag, size = 0x4, offset = 0, fixed_abs, tag = 'sflag constant byte address 0x0 - dummy sync flag']
  %s0 = inlined_call_operand.<no memory space> [shape: s32[1], index: 0, kind: input, shape index: {}]
  %s1 = inlined_call_operand.hbm [shape: bf16[8,40,1024], index: 1, kind: input, shape index: {}]
  %s2 = inlined_call_operand.hbm [shape: f32[1024,512], index: 2, kind: input, shape index: {}]
  %s3 = inlined_call_operand.hbm [shape: f32[1,512], index: 3, kind: input, shape index: {}]
  %s4 = inlined_call_operand.hbm [shape: f32[512,256], index: 4, kind: input, shape index: {}]
  %s5 = inlined_call_operand.hbm [shape: f32[1,256], index: 5, kind: input, shape index: {}]
  %s6 = inlined_call_operand.hbm [shape: f32[256,128], index: 6, kind: input, shape index: {}]
  %s7 = inlined_call_operand.hbm [shape: f32[1,128], index: 7, kind: input, shape index: {}]
  %s8 = inlined_call_operand.hbm [shape: f32[8,128], index: 8, kind: output, shape index: {}]
  %s9 = sld [smem:[#allocation0]]
  $region105: #{tpu_custom_call.1} parent=0
    _
  %s11 = ssub.s32 1, %s9
  %s12 = scalar_select 0, %s11, %s9
  %13 = sst [smem:[#allocation4]] %s0
  $region1: #{tpu_custom_call.1} parent=0
    #allocation5 [shape = 'u8[524288]{0}', space=vmem, size = 0x80000, scoped, tag = 'input window, operand 1']
    #allocation6 [shape = 's32[2]{0}', space=sflag, size = 0x8, scoped, tag = 'scoped memory for tpu_custom_call.1']
    #allocation7 [shape = 's32[2]{0}', space=sflag, size = 0x8, scoped, tag = 'scoped memory for tpu_custom_call.1']
    #allocation8 [shape = 'u8[2097152]{0}', space=vmem, size = 0x200000, scoped, tag = 'input window, operand 2, single buffered']
    #allocation9 [shape = 's32[1]{0}', space=sflag, size = 0x4, scoped, tag = 'scoped memory for tpu_custom_call.1']
    #allocation10 [shape = 'u8[2048]{0}', space=vmem, size = 0x800, scoped, tag = 'input window, operand 3, single buffered']
    #allocation11 [shape = 'u8[524288]{0}', space=vmem, size = 0x80000, scoped, tag = 'input window, operand 4, single buffered']
    #allocation12 [shape = 's32[1]{0}', space=sflag, size = 0x4, scoped, tag = 'scoped memory for tpu_custom_call.1']
    #allocation13 [shape = 'u8[1024]{0}', space=vmem, size = 0x400, scoped, tag = 'input window, operand 5, single buffered']
    #allocation14 [shape = 'u8[131072]{0}', space=vmem, size = 0x20000, scoped, tag = 'input window, operand 6, single buffered']
    #allocation15 [shape = 's32[1]{0}', space=sflag, size = 0x4, scoped, tag = 'scoped memory for tpu_custom_call.1']
    #allocation16 [shape = 'u8[512]{0}', space=vmem, size = 0x400, scoped, tag = 'input window, operand 7, single buffered']
    #allocation17 [shape = 'u8[4096]{0}', space=vmem, size = 0x1000, scoped, tag = 'output window, operand 0, single buffered']
    %14 = vsyncpa [#allocation6], 0
    %s15 = scalar_lea.sflag [#allocation6], 1
    %16 = vsyncpa %s15, 0
    %17 = vsyncpa [#allocation9], 0
    %18 = vsyncpa [#allocation12], 0
    %19 = vsyncpa [#allocation15], 0
    %20 = vsyncpa [#allocation7], 0
    loop: start=0, step=1, limit=5
    $region2: #{tpu_custom_call.1} parent=1 // loop_pre_header
      _
    $region3: #{tpu_custom_call.1} parent=1 // loop_header
      %s22 = sphi 0, %s26
      %p23 = scmp.ge.s32.totalorder %s22, 5
      %s29 = sphi 0, %s41
      %s30 = sphi 0, %s37
      %s31 = sphi 0, %s29
      %s32 = sphi 0, %s30
      %s33 = sphi 0, %s31
      %s34 = sphi 0, %s32
      %s46 = sphi 0, %s48
      %s49 = sphi 0, %s46
      %s50 = sphi 0, %s49
      %s66 = sphi 0, %s50
      %s70 = sphi 0, %s70
      %s72 = sphi 0, %s70
      %s73 = sphi 0, %s72
      %s87 = sphi 0, %s73
      %s91 = sphi 0, %s91
      %s93 = sphi 0, %s91
      %s94 = sphi 0, %s93
      %s108 = sphi 0, %s94
      %s112 = sphi 0, %s112
      %s114 = sphi 0, %s112
      %s115 = sphi 0, %s114
      %s129 = sphi 0, %s115
      %s133 = sphi 0, %s133
      %s135 = sphi 0, %s133
      %s136 = sphi 0, %s135
      %s150 = sphi 0, %s136
      %s154 = sphi 0, %s154
      %s156 = sphi 0, %s154
      %s157 = sphi 0, %s156
      %s171 = sphi 0, %s157
      %s175 = sphi 0, %s175
      %s177 = sphi 0, %s175
      %s178 = sphi 0, %s177
      %s192 = sphi 0, %s178
      %s198 = sphi 0, %s200
      %s201 = sphi 0, %s198
      %s202 = sphi 0, %s201
      %s218 = sphi 0, %s202
    $region4: #{tpu_custom_call.1} parent=1 // loop_header_branch
      %25 = sbr.rel (%p23) target = $region8
    $region5: #{tpu_custom_call.1} parent=1 // loop_body
      %s27 = ssub.s32 %s22, 1
      %s28 = ssub.s32 %s22, 2
      %s35 = sadd.s32 1, %s30
      %p36 = scmp.ge.s32.totalorder %s35, 3
      %s37 = scalar_select %p36, 0, %s35
      %s38 = sadd.s32 1, %s29
      %s39 = scalar_select %p36, %s38, %s29
      %p40 = scmp.ge.s32.totalorder %s39, 1
      %s41 = scalar_select %p40, 0, %s39
      %s42 = ssub.s32 %s29, %s41
      %s43 = ssub.s32 %s30, %s37
      %s44 = sor.u32 %s42, %s43
      %p45 = scmp.eq.s32.totalorder %s44, 0
      %s47 = sadd.s32 %s46, 1
      %s48 = scalar_select %p45, %s46, %s47
      %p51 = pneg %p45
      %p52 = scmp.eq.s32.totalorder %s22, 2
      %p53 = por %p51, %p52
      %p54 = scmp.ne.s32.totalorder %s46, %s49
      %p55 = scmp.eq.s32.totalorder %s22, 0
      %p56 = por %p54, %p55
      %p57 = scmp.ne.s32.totalorder %s46, %s49
      %p58 = scmp.eq.s32.totalorder %s27, 2
      %p59 = por %p57, %p58
      %p60 = scmp.ne.s32.totalorder %s49, %s50
      %p61 = scmp.eq.s32.totalorder %s27, 0
      %p62 = por %p60, %p61
      %p63 = scmp.ne.s32.totalorder %s49, %s50
      %p64 = scmp.eq.s32.totalorder %s28, 2
      %p65 = por %p63, %p64
      %p67 = scmp.ne.s32.totalorder %s50, %s66
      %p68 = scmp.eq.s32.totalorder %s28, 0
      %p69 = por %p67, %p68
      %s71 = sadd.s32 %s70, 1
      %p74 = scmp.eq.s32.totalorder %s22, 2
      %p75 = scmp.ne.s32.totalorder %s70, %s72
      %p76 = scmp.eq.s32.totalorder %s22, 0
      %p77 = por %p75, %p76
      %p78 = scmp.ne.s32.totalorder %s70, %s72
      %p79 = scmp.eq.s32.totalorder %s27, 2
      %p80 = por %p78, %p79
      %p81 = scmp.ne.s32.totalorder %s72, %s73
      %p82 = scmp.eq.s32.totalorder %s27, 0
      %p83 = por %p81, %p82
      %p84 = scmp.ne.s32.totalorder %s72, %s73
      %p85 = scmp.eq.s32.totalorder %s28, 2
      %p86 = por %p84, %p85
      %p88 = scmp.ne.s32.totalorder %s73, %s87
      %p89 = scmp.eq.s32.totalorder %s28, 0
      %p90 = por %p88, %p89
      %s92 = sadd.s32 %s91, 1
      %p95 = scmp.eq.s32.totalorder %s22, 2
      %p96 = scmp.ne.s32.totalorder %s91, %s93
      %p97 = scmp.eq.s32.totalorder %s22, 0
      %p98 = por %p96, %p97
      %p99 = scmp.ne.s32.totalorder %s91, %s93
      %p100 = scmp.eq.s32.totalorder %s27, 2
      %p101 = por %p99, %p100
      %p102 = scmp.ne.s32.totalorder %s93, %s94
      %p103 = scmp.eq.s32.totalorder %s27, 0
      %p104 = por %p102, %p103
      %p105 = scmp.ne.s32.totalorder %s93, %s94
      %p106 = scmp.eq.s32.totalorder %s28, 2
      %p107 = por %p105, %p106
      %p109 = scmp.ne.s32.totalorder %s94, %s108
      %p110 = scmp.eq.s32.totalorder %s28, 0
      %p111 = por %p109, %p110
      %s113 = sadd.s32 %s112, 1
      %p116 = scmp.eq.s32.totalorder %s22, 2
      %p117 = scmp.ne.s32.totalorder %s112, %s114
      %p118 = scmp.eq.s32.totalorder %s22, 0
      %p119 = por %p117, %p118
      %p120 = scmp.ne.s32.totalorder %s112, %s114
      %p121 = scmp.eq.s32.totalorder %s27, 2
      %p122 = por %p120, %p121
      %p123 = scmp.ne.s32.totalorder %s114, %s115
      %p124 = scmp.eq.s32.totalorder %s27, 0
      %p125 = por %p123, %p124
      %p126 = scmp.ne.s32.totalorder %s114, %s115
      %p127 = scmp.eq.s32.totalorder %s28, 2
      %p128 = por %p126, %p127
      %p130 = scmp.ne.s32.totalorder %s115, %s129
      %p131 = scmp.eq.s32.totalorder %s28, 0
      %p132 = por %p130, %p131
      %s134 = sadd.s32 %s133, 1
      %p137 = scmp.eq.s32.totalorder %s22, 2
      %p138 = scmp.ne.s32.totalorder %s133, %s135
      %p139 = scmp.eq.s32.totalorder %s22, 0
      %p140 = por %p138, %p139
      %p141 = scmp.ne.s32.totalorder %s133, %s135
      %p142 = scmp.eq.s32.totalorder %s27, 2
      %p143 = por %p141, %p142
      %p144 = scmp.ne.s32.totalorder %s135, %s136
      %p145 = scmp.eq.s32.totalorder %s27, 0
      %p146 = por %p144, %p145
      %p147 = scmp.ne.s32.totalorder %s135, %s136
      %p148 = scmp.eq.s32.totalorder %s28, 2
      %p149 = por %p147, %p148
      %p151 = scmp.ne.s32.totalorder %s136, %s150
      %p152 = scmp.eq.s32.totalorder %s28, 0
      %p153 = por %p151, %p152
      %s155 = sadd.s32 %s154, 1
      %p158 = scmp.eq.s32.totalorder %s22, 2
      %p159 = scmp.ne.s32.totalorder %s154, %s156
      %p160 = scmp.eq.s32.totalorder %s22, 0
      %p161 = por %p159, %p160
      %p162 = scmp.ne.s32.totalorder %s154, %s156
      %p163 = scmp.eq.s32.totalorder %s27, 2
      %p164 = por %p162, %p163
      %p165 = scmp.ne.s32.totalorder %s156, %s157
      %p166 = scmp.eq.s32.totalorder %s27, 0
      %p167 = por %p165, %p166
      %p168 = scmp.ne.s32.totalorder %s156, %s157
      %p169 = scmp.eq.s32.totalorder %s28, 2
      %p170 = por %p168, %p169
      %p172 = scmp.ne.s32.totalorder %s157, %s171
      %p173 = scmp.eq.s32.totalorder %s28, 0
      %p174 = por %p172, %p173
      %s176 = sadd.s32 %s175, 1
      %p179 = scmp.eq.s32.totalorder %s22, 2
      %p180 = scmp.ne.s32.totalorder %s175, %s177
      %p181 = scmp.eq.s32.totalorder %s22, 0
      %p182 = por %p180, %p181
      %p183 = scmp.ne.s32.totalorder %s175, %s177
      %p184 = scmp.eq.s32.totalorder %s27, 2
      %p185 = por %p183, %p184
      %p186 = scmp.ne.s32.totalorder %s177, %s178
      %p187 = scmp.eq.s32.totalorder %s27, 0
      %p188 = por %p186, %p187
      %p189 = scmp.ne.s32.totalorder %s177, %s178
      %p190 = scmp.eq.s32.totalorder %s28, 2
      %p191 = por %p189, %p190
      %p193 = scmp.ne.s32.totalorder %s178, %s192
      %p194 = scmp.eq.s32.totalorder %s28, 0
      %p195 = por %p193, %p194
      %s196 = ssub.s32 %s29, %s41
      %p197 = scmp.eq.s32.totalorder %s196, 0
      %s199 = sadd.s32 %s198, 1
      %s200 = scalar_select %p197, %s198, %s199
      %p203 = pneg %p197
      %p204 = scmp.eq.s32.totalorder %s22, 2
      %p205 = por %p203, %p204
      %p206 = scmp.ne.s32.totalorder %s198, %s201
      %p207 = scmp.eq.s32.totalorder %s22, 0
      %p208 = por %p206, %p207
      %p209 = scmp.ne.s32.totalorder %s198, %s201
      %p210 = scmp.eq.s32.totalorder %s27, 2
      %p211 = por %p209, %p210
      %p212 = scmp.ne.s32.totalorder %s201, %s202
      %p213 = scmp.eq.s32.totalorder %s27, 0
      %p214 = por %p212, %p213
      %p215 = scmp.ne.s32.totalorder %s201, %s202
      %p216 = scmp.eq.s32.totalorder %s28, 2
      %p217 = por %p215, %p216
      %p219 = scmp.ne.s32.totalorder %s202, %s218
      %p220 = scmp.eq.s32.totalorder %s28, 0
      %p221 = por %p219, %p220
      %p222 = scmp.le.s32.totalorder 1, %s22
      %p223 = scmp.lt.s32.totalorder %s22, 4
      %p224 = pnand %p222, %p223
      %p225 = pneg %p224
      // Predicated region
      $region9: #{tpu_custom_call.1} parent=5 // pred_check
        _
      $region10: #{tpu_custom_call.1} parent=5 // pred_check_branch
        %227 = sbr.rel (%p224) target = $region12
      $region11: #{tpu_custom_call.1} parent=5 // pred_region
        %s228 = ssub.s32 %s22, 1
        // Predicated region
        $region13: #{tpu_custom_call.1} parent=11 // pred_check
          %p229 = pneg %p83
        $region14: #{tpu_custom_call.1} parent=11 // pred_check_branch
          %231 = sbr.rel (%p229) target = $region16
        $region15: #{tpu_custom_call.1} parent=11 // pred_region
          %s233 = ssub.s32 65536, 65536
          %234 = vsyncadd [#allocation9], %s233
          %s235 = sshll.u32 [#allocation8], 4
          %s236 = int_to_ptr.vmem [resolvable:$true] %s235
          %241 = dma.hbm_to_vmem [thread:$0]  %s2, 65536, %s236, [#allocation9], 512, 512, 32
        $region16: #{tpu_custom_call.1} parent=11 // pred_fallthru
          _
        // Predicated region
        $region17: #{tpu_custom_call.1} parent=11 // pred_check
          %p242 = pneg %p104
        $region18: #{tpu_custom_call.1} parent=11 // pred_check_branch
          %244 = sbr.rel (%p242) target = $region20
        $region19: #{tpu_custom_call.1} parent=11 // pred_region
          %s246 = ssub.s32 64, 64
          %247 = vsyncadd [#allocation9], %s246
          %s249 = sshll.u32 [#allocation10], 4
          %s250 = int_to_ptr.vmem [resolvable:$true] %s249
          %252 = dma.hbm_to_vmem [thread:$0]  %s3, 64, %s250, [#allocation9]
        $region20: #{tpu_custom_call.1} parent=11 // pred_fallthru
          _
        // Predicated region
        $region21: #{tpu_custom_call.1} parent=11 // pred_check
          %p253 = pneg %p125
        $region22: #{tpu_custom_call.1} parent=11 // pred_check_branch
          %255 = sbr.rel (%p253) target = $region24
        $region23: #{tpu_custom_call.1} parent=11 // pred_region
          %s257 = ssub.s32 16384, 16384
          %258 = vsyncadd [#allocation12], %s257
          %s259 = sshll.u32 [#allocation11], 4
          %s260 = int_to_ptr.vmem [resolvable:$true] %s259
          %265 = dma.hbm_to_vmem [thread:$0]  %s4, 16384, %s260, [#allocation12], 256, 256, 16
        $region24: #{tpu_custom_call.1} parent=11 // pred_fallthru
          _
        // Predicated region
        $region25: #{tpu_custom_call.1} parent=11 // pred_check
          %p266 = pneg %p146
        $region26: #{tpu_custom_call.1} parent=11 // pred_check_branch
          %268 = sbr.rel (%p266) target = $region28
        $region27: #{tpu_custom_call.1} parent=11 // pred_region
          %s270 = ssub.s32 32, 32
          %271 = vsyncadd [#allocation12], %s270
          %s273 = sshll.u32 [#allocation13], 4
          %s274 = int_to_ptr.vmem [resolvable:$true] %s273
          %276 = dma.hbm_to_vmem [thread:$0]  %s5, 32, %s274, [#allocation12]
        $region28: #{tpu_custom_call.1} parent=11 // pred_fallthru
          _
        // Predicated region
        $region29: #{tpu_custom_call.1} parent=11 // pred_check
          %p277 = pneg %p167
        $region30: #{tpu_custom_call.1} parent=11 // pred_check_branch
          %279 = sbr.rel (%p277) target = $region32
        $region31: #{tpu_custom_call.1} parent=11 // pred_region
          %s281 = ssub.s32 4096, 4096
          %282 = vsyncadd [#allocation15], %s281
          %s283 = sshll.u32 [#allocation14], 4
          %s284 = int_to_ptr.vmem [resolvable:$true] %s283
          %289 = dma.hbm_to_vmem [thread:$0]  %s6, 4096, %s284, [#allocation15], 128, 128, 8
        $region32: #{tpu_custom_call.1} parent=11 // pred_fallthru
          _
        // Predicated region
        $region33: #{tpu_custom_call.1} parent=11 // pred_check
          %p290 = pneg %p188
        $region34: #{tpu_custom_call.1} parent=11 // pred_check_branch
          %292 = sbr.rel (%p290) target = $region36
        $region35: #{tpu_custom_call.1} parent=11 // pred_region
          %s294 = ssub.s32 16, 16
          %295 = vsyncadd [#allocation15], %s294
          %s297 = sshll.u32 [#allocation16], 4
          %s298 = int_to_ptr.vmem [resolvable:$true] %s297
          %300 = dma.hbm_to_vmem [thread:$0]  %s7, 16, %s298, [#allocation15]
        $region36: #{tpu_custom_call.1} parent=11 // pred_fallthru
          _
      $region12: #{tpu_custom_call.1} parent=5 // pred_fallthru
        _
      %p301 = scmp.lt.s32.totalorder %s22, 3
      // Predicated region
      $region37: #{tpu_custom_call.1} parent=5 // pred_check
        %p302 = pneg %p301
      $region38: #{tpu_custom_call.1} parent=5 // pred_check_branch
        %304 = sbr.rel (%p302) target = $region40
      $region39: #{tpu_custom_call.1} parent=5 // pred_region
        // Predicated region
        $region41: #{tpu_custom_call.1} parent=39 // pred_check
          %p305 = pneg %p56
        $region42: #{tpu_custom_call.1} parent=39 // pred_check_branch
          %307 = sbr.rel (%p305) target = $region44
        $region43: #{tpu_custom_call.1} parent=39 // pred_region
          #allocation19 [shape = 'u32[6]{0}', space=smem, size = 0x18, scoped, tag = 'DMA stride descriptor']
          %s308 = sand.u32 %s46, 1
          %s309 = scalar_lea.sflag [#allocation6], %s308
          %s310 = sand.u32 %s46, 1
          %s311 = smul.addr %s310, 512
          %s312 = scalar_lea.vmem [#allocation5], %s311
          %s313 = smul.u32 8, %s29
          %s314 = smul.u32 2, %s30
          %s315 = ssub.s32 5, %s314
          %p316 = scmp.lt.s32.totalorder %s315, 2
          %s317 = scalar_select %p316, %s315, 2
          %s318 = smul.u32 512, %s317
          %s319 = smul.u32 %s318, 8
          %s321 = ssub.s32 8192, %s319
          %322 = vsyncadd %s309, %s321
          %p323 = scmp.ne.s32.totalorder 0, %s319
          %s324 = smul.addr %s314, 8
          %s325 = smul.addr %s313, 40
          %s326 = sadd.s32 %s324, %s325
          %s327 = smul.addr %s326, 64
          %s328 = scalar_lea.hbm %s1, %s327
          %s329 = smul.u32 32, %s317
          %s330 = smul.u32 %s329, 8
          %s332 = sshll.u32 1, 14
          %s333 = sxor.u32 4294967295, %s332
          %s335 = sld [smem:[#allocation0]]
          %s336 = sadd.s32 2, %s335
          %s338 = sshll.u32 7, 26
          %s339 = sxor.u32 4294967295, %s338
          %s340 = sand.u32 0, %s339
          %s341 = sshll.u32 %s336, 26
          %s342 = sor.u32 %s340, %s341
          %s343 = sshll.u32 %s312, 4
          %s344 = int_to_ptr.vmem [resolvable:$true] %s343
          %s345 = sshll.u32 %s330, 4
          %350 = sst [smem:[#allocation19]] 2560
          %s351 = scalar_lea.smem [#allocation19], 1
          %352 = sst [smem:[%s351]] 1024
          %s353 = scalar_lea.smem [#allocation19], 2
          %354 = sst [smem:[%s353]] %s317
          %s355 = scalar_lea.smem [#allocation19], 3
          %356 = sst [smem:[%s355]] 512
          %s357 = scalar_lea.smem [#allocation19], 4
          %358 = sst [smem:[%s357]] 512
          %s359 = scalar_lea.smem [#allocation19], 5
          %360 = sst [smem:[%s359]] 32
          %362 = dma.general (%p323), %s328, %s345, %s344, %s309, [#allocation18], [#allocation19], %s342, 0
        $region44: #{tpu_custom_call.1} parent=39 // pred_fallthru
          _
      $region40: #{tpu_custom_call.1} parent=5 // pred_fallthru
        _
      %p363 = scmp.le.s32.totalorder 1, %s22
      %p364 = scmp.lt.s32.totalorder %s22, 4
      %p365 = pnand %p363, %p364
      %p366 = pneg %p365
      // Predicated region
      $region45: #{tpu_custom_call.1} parent=5 // pred_check
        _
      $region46: #{tpu_custom_call.1} parent=5 // pred_check_branch
        %368 = sbr.rel (%p365) target = $region48
      $region47: #{tpu_custom_call.1} parent=5 // pred_region
        %s369 = ssub.s32 %s22, 1
        %s370 = sand.u32 %s49, 1
        %s371 = scalar_lea.sflag [#allocation6], %s370
        %s372 = sand.u32 %s49, 1
        %s373 = smul.addr %s372, 512
        %s374 = scalar_lea.vmem [#allocation5], %s373
        // Predicated region
        $region49: #{tpu_custom_call.1} parent=47 // pred_check
          %p375 = pneg %p62
        $region50: #{tpu_custom_call.1} parent=47 // pred_check_branch
          %377 = sbr.rel (%p375) target = $region52
        $region51: #{tpu_custom_call.1} parent=47 // pred_region
          %378 = dma.done %s371, 8192
        $region52: #{tpu_custom_call.1} parent=47 // pred_fallthru
          _
        // Predicated region
        $region53: #{tpu_custom_call.1} parent=47 // pred_check
          %p379 = pneg %p83
        $region54: #{tpu_custom_call.1} parent=47 // pred_check_branch
          %381 = sbr.rel (%p379) target = $region56
        $region55: #{tpu_custom_call.1} parent=47 // pred_region
          %382 = dma.done [#allocation9], 65536
        $region56: #{tpu_custom_call.1} parent=47 // pred_fallthru
          _
        // Predicated region
        $region57: #{tpu_custom_call.1} parent=47 // pred_check
          %p383 = pneg %p104
        $region58: #{tpu_custom_call.1} parent=47 // pred_check_branch
          %385 = sbr.rel (%p383) target = $region60
        $region59: #{tpu_custom_call.1} parent=47 // pred_region
          %386 = dma.done [#allocation9], 64
        $region60: #{tpu_custom_call.1} parent=47 // pred_fallthru
          _
        // Predicated region
        $region61: #{tpu_custom_call.1} parent=47 // pred_check
          %p387 = pneg %p125
        $region62: #{tpu_custom_call.1} parent=47 // pred_check_branch
          %389 = sbr.rel (%p387) target = $region64
        $region63: #{tpu_custom_call.1} parent=47 // pred_region
          %390 = dma.done [#allocation12], 16384
        $region64: #{tpu_custom_call.1} parent=47 // pred_fallthru
          _
        // Predicated region
        $region65: #{tpu_custom_call.1} parent=47 // pred_check
          %p391 = pneg %p146
        $region66: #{tpu_custom_call.1} parent=47 // pred_check_branch
          %393 = sbr.rel (%p391) target = $region68
        $region67: #{tpu_custom_call.1} parent=47 // pred_region
          %394 = dma.done [#allocation12], 32
        $region68: #{tpu_custom_call.1} parent=47 // pred_fallthru
          _
        // Predicated region
        $region69: #{tpu_custom_call.1} parent=47 // pred_check
          %p395 = pneg %p167
        $region70: #{tpu_custom_call.1} parent=47 // pred_check_branch
          %397 = sbr.rel (%p395) target = $region72
        $region71: #{tpu_custom_call.1} parent=47 // pred_region
          %398 = dma.done [#allocation15], 4096
        $region72: #{tpu_custom_call.1} parent=47 // pred_fallthru
          _
        // Predicated region
        $region73: #{tpu_custom_call.1} parent=47 // pred_check
          %p399 = pneg %p188
        $region74: #{tpu_custom_call.1} parent=47 // pred_check_branch
          %401 = sbr.rel (%p399) target = $region76
        $region75: #{tpu_custom_call.1} parent=47 // pred_region
          %402 = dma.done [#allocation15], 16
        $region76: #{tpu_custom_call.1} parent=47 // pred_fallthru
          _
        %s403 = sand.u32 %s49, 1
        %s404 = scalar_lea.sflag [#allocation6], %s403
        %s405 = sand.u32 %s49, 1
        %s406 = smul.addr %s405, 512
        %s407 = scalar_lea.vmem [#allocation5], %s406
        %p408 = pneg %p62
        %p409 = pneg %p59
        %p410 = pneg %p83
        %p411 = pneg %p80
        %p412 = pneg %p104
        %p413 = pneg %p101
        %p414 = pneg %p125
        %p415 = pneg %p122
        %p416 = pneg %p146
        %p417 = pneg %p143
        %p418 = pneg %p167
        %p419 = pneg %p164
        %p420 = pneg %p188
        %p421 = pneg %p185
        %p422 = pneg %p214
        %p423 = pneg %p211
        %s424 = smul.u32 8, %s31
        %s425 = smul.u32 2, %s32
        %s426 = ssub.s32 5, %s425
        %p427 = scmp.lt.s32.totalorder %s426, 2
        %s428 = scalar_select %p427, %s426, 2
        %s429 = smul.u32 512, %s428
        %s430 = smul.u32 %s429, 8
        %p433 = scmp.eq.s32.totalorder %s32, 0
        // Predicated region
        $region77: #{tpu_custom_call.1} parent=47 // pred_check
          %p434 = pneg %p433
        $region78: #{tpu_custom_call.1} parent=47 // pred_check_branch
          %436 = sbr.rel (%p434) target = $region80
        $region79: #{tpu_custom_call.1} parent=47 // pred_region
          %437 = vst [vmem:[#allocation2] sm:$0xff] 0.0
          %438 = vst [vmem:[#allocation2 + $0x8] sm:$0xff] 0.0
          %439 = vst [vmem:[#allocation2 + $0x10] sm:$0xff] 0.0
          %440 = vst [vmem:[#allocation2 + $0x18] sm:$0xff] 0.0
          %441 = vst [vmem:[#allocation2 + $0x20] sm:$0xff] 0.0
          %442 = vst [vmem:[#allocation2 + $0x28] sm:$0xff] 0.0
          %443 = vst [vmem:[#allocation2 + $0x30] sm:$0xff] 0.0
          %444 = vst [vmem:[#allocation2 + $0x38] sm:$0xff] 0.0
        $region80: #{tpu_custom_call.1} parent=47 // pred_fallthru
          _
        %s445 = sld [smem:[#allocation4]]
        %s446 = smul.u32 %s32, 16
        %s447 = ssub.s32 %s445, %s446
        %p448 = scmp.ge.s32.totalorder %s447, 16
        // Predicated region
        $region81: #{tpu_custom_call.1} parent=47 // pred_check
          %p449 = pneg %p448
        $region82: #{tpu_custom_call.1} parent=47 // pred_check_branch
          %451 = sbr.rel (%p449) target = $region84
        $region83: #{tpu_custom_call.1} parent=47 // pred_region
          %v452 = vld [vmem:[#allocation2] sm:$0xff]
          %v453 = vld [vmem:[#allocation2 + $0x8] sm:$0xff]
          %v454 = vld [vmem:[#allocation2 + $0x10] sm:$0xff]
          %v455 = vld [vmem:[#allocation2 + $0x18] sm:$0xff]
          %v456 = vld [vmem:[#allocation2 + $0x20] sm:$0xff]
          %v457 = vld [vmem:[#allocation2 + $0x28] sm:$0xff]
          %v458 = vld [vmem:[#allocation2 + $0x30] sm:$0xff]
          %v459 = vld [vmem:[#allocation2 + $0x38] sm:$0xff]
          %v460 = vld [vmem:[%s374] sm:$0xff]
          %v461 = vld [vmem:[%s374 + $0x8] sm:$0xff]
          %v462 = vld [vmem:[%s374 + $0x10] sm:$0xff]
          %v463 = vld [vmem:[%s374 + $0x18] sm:$0xff]
          %v464 = vld [vmem:[%s374 + $0x20] sm:$0xff]
          %v465 = vld [vmem:[%s374 + $0x28] sm:$0xff]
          %v466 = vld [vmem:[%s374 + $0x30] sm:$0xff]
          %v467 = vld [vmem:[%s374 + $0x38] sm:$0xff]
          %v468 = vld [vmem:[%s374 + $0x40] sm:$0xff]
          %v469 = vld [vmem:[%s374 + $0x48] sm:$0xff]
          %v470 = vld [vmem:[%s374 + $0x50] sm:$0xff]
          %v471 = vld [vmem:[%s374 + $0x58] sm:$0xff]
          %v472 = vld [vmem:[%s374 + $0x60] sm:$0xff]
          %v473 = vld [vmem:[%s374 + $0x68] sm:$0xff]
          %v474 = vld [vmem:[%s374 + $0x70] sm:$0xff]
          %v475 = vld [vmem:[%s374 + $0x78] sm:$0xff]
          %v476 = vld [vmem:[%s374 + $0x80] sm:$0xff]
          %v477 = vld [vmem:[%s374 + $0x88] sm:$0xff]
          %v478 = vld [vmem:[%s374 + $0x90] sm:$0xff]
          %v479 = vld [vmem:[%s374 + $0x98] sm:$0xff]
          %v480 = vld [vmem:[%s374 + $0xa0] sm:$0xff]
          %v481 = vld [vmem:[%s374 + $0xa8] sm:$0xff]
          %v482 = vld [vmem:[%s374 + $0xb0] sm:$0xff]
          %v483 = vld [vmem:[%s374 + $0xb8] sm:$0xff]
          %v484 = vld [vmem:[%s374 + $0xc0] sm:$0xff]
          %v485 = vld [vmem:[%s374 + $0xc8] sm:$0xff]
          %v486 = vld [vmem:[%s374 + $0xd0] sm:$0xff]
          %v487 = vld [vmem:[%s374 + $0xd8] sm:$0xff]
          %v488 = vld [vmem:[%s374 + $0xe0] sm:$0xff]
          %v489 = vld [vmem:[%s374 + $0xe8] sm:$0xff]
          %v490 = vld [vmem:[%s374 + $0xf0] sm:$0xff]
          %v491 = vld [vmem:[%s374 + $0xf8] sm:$0xff]
          %v492 = vld [vmem:[%s374 + $0x100] sm:$0xff]
          %v493 = vld [vmem:[%s374 + $0x108] sm:$0xff]
          %v494 = vld [vmem:[%s374 + $0x110] sm:$0xff]
          %v495 = vld [vmem:[%s374 + $0x118] sm:$0xff]
          %v496 = vld [vmem:[%s374 + $0x120] sm:$0xff]
          %v497 = vld [vmem:[%s374 + $0x128] sm:$0xff]
          %v498 = vld [vmem:[%s374 + $0x130] sm:$0xff]
          %v499 = vld [vmem:[%s374 + $0x138] sm:$0xff]
          %v500 = vld [vmem:[%s374 + $0x140] sm:$0xff]
          %v501 = vld [vmem:[%s374 + $0x148] sm:$0xff]
          %v502 = vld [vmem:[%s374 + $0x150] sm:$0xff]
          %v503 = vld [vmem:[%s374 + $0x158] sm:$0xff]
          %v504 = vld [vmem:[%s374 + $0x160] sm:$0xff]
          %v505 = vld [vmem:[%s374 + $0x168] sm:$0xff]
          %v506 = vld [vmem:[%s374 + $0x170] sm:$0xff]
          %v507 = vld [vmem:[%s374 + $0x178] sm:$0xff]
          %v508 = vld [vmem:[%s374 + $0x180] sm:$0xff]
          %v509 = vld [vmem:[%s374 + $0x188] sm:$0xff]
          %v510 = vld [vmem:[%s374 + $0x190] sm:$0xff]
          %v511 = vld [vmem:[%s374 + $0x198] sm:$0xff]
          %v512 = vld [vmem:[%s374 + $0x1a0] sm:$0xff]
          %v513 = vld [vmem:[%s374 + $0x1a8] sm:$0xff]
          %v514 = vld [vmem:[%s374 + $0x1b0] sm:$0xff]
          %v515 = vld [vmem:[%s374 + $0x1b8] sm:$0xff]
          %v516 = vld [vmem:[%s374 + $0x1c0] sm:$0xff]
          %v517 = vld [vmem:[%s374 + $0x1c8] sm:$0xff]
          %v518 = vld [vmem:[%s374 + $0x1d0] sm:$0xff]
          %v519 = vld [vmem:[%s374 + $0x1d8] sm:$0xff]
          %v520 = vld [vmem:[%s374 + $0x1e0] sm:$0xff]
          %v521 = vld [vmem:[%s374 + $0x1e8] sm:$0xff]
          %v522 = vld [vmem:[%s374 + $0x1f0] sm:$0xff]
          %v523 = vld [vmem:[%s374 + $0x1f8] sm:$0xff]
          %v532 = vunpack.c.l.b16 %v460
          %v533 = vunpack.c.h.b16 %v460
          %v534 = vunpack.c.l.b16 %v461
          %v535 = vunpack.c.h.b16 %v461
          %v536 = vunpack.c.l.b16 %v462
          %v537 = vunpack.c.h.b16 %v462
          %v538 = vunpack.c.l.b16 %v463
          %v539 = vunpack.c.h.b16 %v463
          %v540 = vunpack.c.l.b16 %v464
          %v541 = vunpack.c.h.b16 %v464
          %v542 = vunpack.c.l.b16 %v465
          %v543 = vunpack.c.h.b16 %v465
          %v544 = vunpack.c.l.b16 %v466
          %v545 = vunpack.c.h.b16 %v466
          %v546 = vunpack.c.l.b16 %v467
          %v547 = vunpack.c.h.b16 %v467
          %v548 = vpack.c.b16 %v540, %v532
          %v549 = vpack.c.b16 %v541, %v533
          %v550 = vpack.c.b16 %v542, %v534
          %v551 = vpack.c.b16 %v543, %v535
          %v552 = vpack.c.b16 %v544, %v536
          %v553 = vpack.c.b16 %v545, %v537
          %v554 = vpack.c.b16 %v546, %v538
          %v555 = vpack.c.b16 %v547, %v539
          %vm564 = vcmask 130048
          %v566 = vsel %vm564, 1065369472, 0
          %568 = vmatprep.subr.bf16.mxu0 %v549
          %569 = vmatpush1.bf16.msra.mxu0 %v548
          %570 = vmatprep.subr.bf16.mxu0 0
          %571 = vmatpush1.bf16.msra.mxu0 0
          %572 = vmatprep.subr.bf16.mxu0 0
          %573 = vmatpush1.bf16.msra.mxu0 0
          %574 = vmatprep.subr.bf16.mxu0 0
          %575 = vmatpush1.bf16.msra.mxu0 0
          %576 = vmatprep.subr.bf16.mxu0 0
          %577 = vmatpush1.bf16.msra.mxu0 0
          %578 = vmatprep.subr.bf16.mxu0 0
          %579 = vmatpush1.bf16.msra.mxu0 0
          %580 = vmatprep.subr.bf16.mxu0 0
          %581 = vmatpush1.bf16.msra.mxu0 0
          %582 = vmatprep.subr.bf16.mxu0 0
          %583 = vmatpush1.bf16.msra.mxu0 0
          %584 = vmatprep.subr.bf16.mxu0 0
          %585 = vmatpush1.bf16.msra.mxu0 0
          %586 = vmatprep.subr.bf16.mxu0 0
          %587 = vmatpush1.bf16.msra.mxu0 0
          %588 = vmatprep.subr.bf16.mxu0 0
          %589 = vmatpush1.bf16.msra.mxu0 0
          %590 = vmatprep.subr.bf16.mxu0 0
          %591 = vmatpush1.bf16.msra.mxu0 0
          %592 = vmatprep.subr.bf16.mxu0 0
          %593 = vmatpush1.bf16.msra.mxu0 0
          %594 = vmatprep.subr.bf16.mxu0 0
          %595 = vmatpush1.bf16.msra.mxu0 0
          %596 = vmatprep.subr.bf16.mxu0 0
          %597 = vmatpush1.bf16.msra.mxu0 0
          %598 = vmatprep.subr.bf16.mxu0 0
          %599 = vmatpush1.bf16.msra.mxu0 0
          %600 = vmatprep.mubr.bf16.mxu0 0
          %601 = vmatmul.mubr.bf16.gmra.mrb[0].mxu0 %v566
          %v602 = vpop.f32.mrb[0].mxu0
          %v603 = vadd.f32 0.0, %v602
          %v604 = vpop.f32.mrb[0].mxu0
          %v605 = vadd.f32 0.0, %v604
          %v606 = vpop.f32.mrb[0].mxu0
          %v607 = vpop.f32.mrb[0].mxu0
          %608 = vdwg.mxu0
          %609 = vmatprep.subr.bf16.mxu0 %v551
          %610 = vmatpush1.bf16.msra.mxu0 %v550
          %611 = vmatprep.subr.bf16.mxu0 0
          %612 = vmatpush1.bf16.msra.mxu0 0
          %613 = vmatprep.subr.bf16.mxu0 0
          %614 = vmatpush1.bf16.msra.mxu0 0
          %615 = vmatprep.subr.bf16.mxu0 0
          %616 = vmatpush1.bf16.msra.mxu0 0
          %617 = vmatprep.subr.bf16.mxu0 0
          %618 = vmatpush1.bf16.msra.mxu0 0
          %619 = vmatprep.subr.bf16.mxu0 0
          %620 = vmatpush1.bf16.msra.mxu0 0
          %621 = vmatprep.subr.bf16.mxu0 0
          %622 = vmatpush1.bf16.msra.mxu0 0
          %623 = vmatprep.subr.bf16.mxu0 0
          %624 = vmatpush1.bf16.msra.mxu0 0
          %625 = vmatprep.subr.bf16.mxu0 0
          %626 = vmatpush1.bf16.msra.mxu0 0
          %627 = vmatprep.subr.bf16.mxu0 0
          %628 = vmatpush1.bf16.msra.mxu0 0
          %629 = vmatprep.subr.bf16.mxu0 0
          %630 = vmatpush1.bf16.msra.mxu0 0
          %631 = vmatprep.subr.bf16.mxu0 0
          %632 = vmatpush1.bf16.msra.mxu0 0
          %633 = vmatprep.subr.bf16.mxu0 0
          %634 = vmatpush1.bf16.msra.mxu0 0
          %635 = vmatprep.subr.bf16.mxu0 0
          %636 = vmatpush1.bf16.msra.mxu0 0
          %637 = vmatprep.subr.bf16.mxu0 0
          %638 = vmatpush1.bf16.msra.mxu0 0
          %639 = vmatprep.subr.bf16.mxu0 0
          %640 = vmatpush1.bf16.msra.mxu0 0
          %641 = vmatprep.mubr.bf16.mxu0 0
          %642 = vmatmul.mubr.bf16.gmra.mrb[0].mxu0 %v566
          %v643 = vpop.f32.mrb[0].mxu0
          %v644 = vadd.f32 0.0, %v643
          %v645 = vpop.f32.mrb[0].mxu0
          %v646 = vadd.f32 0.0, %v645
          %v647 = vpop.f32.mrb[0].mxu0
          %v648 = vpop.f32.mrb[0].mxu0
          %649 = vdwg.mxu0
          %650 = vmatprep.subr.bf16.mxu0 %v553
          %651 = vmatpush1.bf16.msra.mxu0 %v552
          %652 = vmatprep.subr.bf16.mxu0 0
          %653 = vmatpush1.bf16.msra.mxu0 0
          %654 = vmatprep.subr.bf16.mxu0 0
          %655 = vmatpush1.bf16.msra.mxu0 0
          %656 = vmatprep.subr.bf16.mxu0 0
          %657 = vmatpush1.bf16.msra.mxu0 0
          %658 = vmatprep.subr.bf16.mxu0 0
          %659 = vmatpush1.bf16.msra.mxu0 0
          %660 = vmatprep.subr.bf16.mxu0 0
          %661 = vmatpush1.bf16.msra.mxu0 0
          %662 = vmatprep.subr.bf16.mxu0 0
          %663 = vmatpush1.bf16.msra.mxu0 0
          %664 = vmatprep.subr.bf16.mxu0 0
          %665 = vmatpush1.bf16.msra.mxu0 0
          %666 = vmatprep.subr.bf16.mxu0 0
          %667 = vmatpush1.bf16.msra.mxu0 0
          %668 = vmatprep.subr.bf16.mxu0 0
          %669 = vmatpush1.bf16.msra.mxu0 0
          %670 = vmatprep.subr.bf16.mxu0 0
          %671 = vmatpush1.bf16.msra.mxu0 0
          %672 = vmatprep.subr.bf16.mxu0 0
          %673 = vmatpush1.bf16.msra.mxu0 0
          %674 = vmatprep.subr.bf16.mxu0 0
          %675 = vmatpush1.bf16.msra.mxu0 0
          %676 = vmatprep.subr.bf16.mxu0 0
          %677 = vmatpush1.bf16.msra.mxu0 0
          %678 = vmatprep.subr.bf16.mxu0 0
          %679 = vmatpush1.bf16.msra.mxu0 0
          %680 = vmatprep.subr.bf16.mxu0 0
          %681 = vmatpush1.bf16.msra.mxu0 0
          %682 = vmatprep.mubr.bf16.mxu0 0
          %683 = vmatmul.mubr.bf16.gmra.mrb[0].mxu0 %v566
          %v684 = vpop.f32.mrb[0].mxu0
          %v685 = vadd.f32 0.0, %v684
          %v686 = vpop.f32.mrb[0].mxu0
          %v687 = vadd.f32 0.0, %v686
          %v688 = vpop.f32.mrb[0].mxu0
          %v689 = vpop.f32.mrb[0].mxu0
          %690 = vdwg.mxu0
          %691 = vmatprep.subr.bf16.mxu0 %v555
          %692 = vmatpush1.bf16.msra.mxu0 %v554
          %693 = vmatprep.subr.bf16.mxu0 0
          %694 = vmatpush1.bf16.msra.mxu0 0
          %695 = vmatprep.subr.bf16.mxu0 0
          %696 = vmatpush1.bf16.msra.mxu0 0
          %697 = vmatprep.subr.bf16.mxu0 0
          %698 = vmatpush1.bf16.msra.mxu0 0
          %699 = vmatprep.subr.bf16.mxu0 0
          %700 = vmatpush1.bf16.msra.mxu0 0
          %701 = vmatprep.subr.bf16.mxu0 0
          %702 = vmatpush1.bf16.msra.mxu0 0
          %703 = vmatprep.subr.bf16.mxu0 0
          %704 = vmatpush1.bf16.msra.mxu0 0
          %705 = vmatprep.subr.bf16.mxu0 0
          %706 = vmatpush1.bf16.msra.mxu0 0
          %707 = vmatprep.subr.bf16.mxu0 0
          %708 = vmatpush1.bf16.msra.mxu0 0
          %709 = vmatprep.subr.bf16.mxu0 0
          %710 = vmatpush1.bf16.msra.mxu0 0
          %711 = vmatprep.subr.bf16.mxu0 0
          %712 = vmatpush1.bf16.msra.mxu0 0
          %713 = vmatprep.subr.bf16.mxu0 0
          %714 = vmatpush1.bf16.msra.mxu0 0
          %715 = vmatprep.subr.bf16.mxu0 0
          %716 = vmatpush1.bf16.msra.mxu0 0
          %717 = vmatprep.subr.bf16.mxu0 0
          %718 = vmatpush1.bf16.msra.mxu0 0
          %719 = vmatprep.subr.bf16.mxu0 0
          %720 = vmatpush1.bf16.msra.mxu0 0
          %721 = vmatprep.subr.bf16.mxu0 0
          %722 = vmatpush1.bf16.msra.mxu0 0
          %723 = vmatprep.mubr.bf16.mxu0 0
          %724 = vmatmul.mubr.bf16.gmra.mrb[0].mxu0 %v566
          %v725 = vpop.f32.mrb[0].mxu0
          %v726 = vadd.f32 0.0, %v725
          %v727 = vpop.f32.mrb[0].mxu0
          %v728 = vadd.f32 0.0, %v727
          %v729 = vpop.f32.mrb[0].mxu0
          %v730 = vpop.f32.mrb[0].mxu0
          %731 = vdwg.mxu0
          %v740 = vunpack.c.l.b16 %v468
          %v741 = vunpack.c.h.b16 %v468
          %v742 = vunpack.c.l.b16 %v469
          %v743 = vunpack.c.h.b16 %v469
          %v744 = vunpack.c.l.b16 %v470
          %v745 = vunpack.c.h.b16 %v470
          %v746 = vunpack.c.l.b16 %v471
          %v747 = vunpack.c.h.b16 %v471
          %v748 = vunpack.c.l.b16 %v472
          %v749 = vunpack.c.h.b16 %v472
          %v750 = vunpack.c.l.b16 %v473
          %v751 = vunpack.c.h.b16 %v473
          %v752 = vunpack.c.l.b16 %v474
          %v753 = vunpack.c.h.b16 %v474
          %v754 = vunpack.c.l.b16 %v475
          %v755 = vunpack.c.h.b16 %v475
          %v756 = vpack.c.b16 %v748, %v740
          %v757 = vpack.c.b16 %v749, %v741
          %v758 = vpack.c.b16 %v750, %v742
          %v759 = vpack.c.b16 %v751, %v743
          %v760 = vpack.c.b16 %v752, %v744
          %v761 = vpack.c.b16 %v753, %v745
          %v762 = vpack.c.b16 %v754, %v746
          %v763 = vpack.c.b16 %v755, %v747
          %772 = vmatprep.subr.bf16.mxu0 %v757
          %773 = vmatpush1.bf16.msra.mxu0 %v756
          %774 = vmatprep.subr.bf16.mxu0 0
          %775 = vmatpush1.bf16.msra.mxu0 0
          %776 = vmatprep.subr.bf16.mxu0 0
          %777 = vmatpush1.bf16.msra.mxu0 0
          %778 = vmatprep.subr.bf16.mxu0 0
          %779 = vmatpush1.bf16.msra.mxu0 0
          %780 = vmatprep.subr.bf16.mxu0 0
          %781 = vmatpush1.bf16.msra.mxu0 0
          %782 = vmatprep.subr.bf16.mxu0 0
          %783 = vmatpush1.bf16.msra.mxu0 0
          %784 = vmatprep.subr.bf16.mxu0 0
          %785 = vmatpush1.bf16.msra.mxu0 0
          %786 = vmatprep.subr.bf16.mxu0 0
          %787 = vmatpush1.bf16.msra.mxu0 0
          %788 = vmatprep.subr.bf16.mxu0 0
          %789 = vmatpush1.bf16.msra.mxu0 0
          %790 = vmatprep.subr.bf16.mxu0 0
          %791 = vmatpush1.bf16.msra.mxu0 0
          %792 = vmatprep.subr.bf16.mxu0 0
          %793 = vmatpush1.bf16.msra.mxu0 0
          %794 = vmatprep.subr.bf16.mxu0 0
          %795 = vmatpush1.bf16.msra.mxu0 0
          %796 = vmatprep.subr.bf16.mxu0 0
          %797 = vmatpush1.bf16.msra.mxu0 0
          %798 = vmatprep.subr.bf16.mxu0 0
          %799 = vmatpush1.bf16.msra.mxu0 0
          %800 = vmatprep.subr.bf16.mxu0 0
          %801 = vmatpush1.bf16.msra.mxu0 0
          %802 = vmatprep.subr.bf16.mxu0 0
          %803 = vmatpush1.bf16.msra.mxu0 0
          %804 = vmatprep.mubr.bf16.mxu0 0
          %805 = vmatmul.mubr.bf16.gmra.mrb[0].mxu0 %v566
          %v806 = vpop.f32.mrb[0].mxu0
          %v807 = vadd.f32 0.0, %v806
          %v808 = vpop.f32.mrb[0].mxu0
          %v809 = vadd.f32 0.0, %v808
          %v810 = vpop.f32.mrb[0].mxu0
          %v811 = vpop.f32.mrb[0].mxu0
          %812 = vdwg.mxu0
          %813 = vmatprep.subr.bf16.mxu0 %v759
          %814 = vmatpush1.bf16.msra.mxu0 %v758
          %815 = vmatprep.subr.bf16.mxu0 0
          %816 = vmatpush1.bf16.msra.mxu0 0
          %817 = vmatprep.subr.bf16.mxu0 0
          %818 = vmatpush1.bf16.msra.mxu0 0
          %819 = vmatprep.subr.bf16.mxu0 0
          %820 = vmatpush1.bf16.msra.mxu0 0
          %821 = vmatprep.subr.bf16.mxu0 0
          %822 = vmatpush1.bf16.msra.mxu0 0
          %823 = vmatprep.subr.bf16.mxu0 0
          %824 = vmatpush1.bf16.msra.mxu0 0
          %825 = vmatprep.subr.bf16.mxu0 0
          %826 = vmatpush1.bf16.msra.mxu0 0
          %827 = vmatprep.subr.bf16.mxu0 0
          %828 = vmatpush1.bf16.msra.mxu0 0
          %829 = vmatprep.subr.bf16.mxu0 0
          %830 = vmatpush1.bf16.msra.mxu0 0
          %831 = vmatprep.subr.bf16.mxu0 0
          %832 = vmatpush1.bf16.msra.mxu0 0
          %833 = vmatprep.subr.bf16.mxu0 0
          %834 = vmatpush1.bf16.msra.mxu0 0
          %835 = vmatprep.subr.bf16.mxu0 0
          %836 = vmatpush1.bf16.msra.mxu0 0
          %837 = vmatprep.subr.bf16.mxu0 0
          %838 = vmatpush1.bf16.msra.mxu0 0
          %839 = vmatprep.subr.bf16.mxu0 0
          %840 = vmatpush1.bf16.msra.mxu0 0
          %841 = vmatprep.subr.bf16.mxu0 0
          %842 = vmatpush1.bf16.msra.mxu0 0
          %843 = vmatprep.subr.bf16.mxu0 0
          %844 = vmatpush1.bf16.msra.mxu0 0
          %845 = vmatprep.mubr.bf16.mxu0 0
          %846 = vmatmul.mubr.bf16.gmra.mrb[0].mxu0 %v566
          %v847 = vpop.f32.mrb[0].mxu0
          %v848 = vadd.f32 0.0, %v847
          %v849 = vpop.f32.mrb[0].mxu0
          %v850 = vadd.f32 0.0, %v849
          %v851 = vpop.f32.mrb[0].mxu0
          %v852 = vpop.f32.mrb[0].mxu0
          %853 = vdwg.mxu0
          %854 = vmatprep.subr.bf16.mxu0 %v761
          %855 = vmatpush1.bf16.msra.mxu0 %v760
          %856 = vmatprep.subr.bf16.mxu0 0
          %857 = vmatpush1.bf16.msra.mxu0 0
          %858 = vmatprep.subr.bf16.mxu0 0
          %859 = vmatpush1.bf16.msra.mxu0 0
          %860 = vmatprep.subr.bf16.mxu0 0
          %861 = vmatpush1.bf16.msra.mxu0 0
          %862 = vmatprep.subr.bf16.mxu0 0
          %863 = vmatpush1.bf16.msra.mxu0 0
          %864 = vmatprep.subr.bf16.mxu0 0
          %865 = vmatpush1.bf16.msra.mxu0 0
          %866 = vmatprep.subr.bf16.mxu0 0
          %867 = vmatpush1.bf16.msra.mxu0 0
          %868 = vmatprep.subr.bf16.mxu0 0
          %869 = vmatpush1.bf16.msra.mxu0 0
          %870 = vmatprep.subr.bf16.mxu0 0
          %871 = vmatpush1.bf16.msra.mxu0 0
          %872 = vmatprep.subr.bf16.mxu0 0
          %873 = vmatpush1.bf16.msra.mxu0 0
          %874 = vmatprep.subr.bf16.mxu0 0
          %875 = vmatpush1.bf16.msra.mxu0 0
          %876 = vmatprep.subr.bf16.mxu0 0
          %877 = vmatpush1.bf16.msra.mxu0 0
          %878 = vmatprep.subr.bf16.mxu0 0
          %879 = vmatpush1.bf16.msra.mxu0 0
          %880 = vmatprep.subr.bf16.mxu0 0
          %881 = vmatpush1.bf16.msra.mxu0 0
          %882 = vmatprep.subr.bf16.mxu0 0
          %883 = vmatpush1.bf16.msra.mxu0 0
          %884 = vmatprep.subr.bf16.mxu0 0
          %885 = vmatpush1.bf16.msra.mxu0 0
          %886 = vmatprep.mubr.bf16.mxu0 0
          %887 = vmatmul.mubr.bf16.gmra.mrb[0].mxu0 %v566
          %v888 = vpop.f32.mrb[0].mxu0
          %v889 = vadd.f32 0.0, %v888
          %v890 = vpop.f32.mrb[0].mxu0
          %v891 = vadd.f32 0.0, %v890
          %v892 = vpop.f32.mrb[0].mxu0
          %v893 = vpop.f32.mrb[0].mxu0
          %894 = vdwg.mxu0
          %895 = vmatprep.subr.bf16.mxu0 %v763
          %896 = vmatpush1.bf16.msra.mxu0 %v762
          %897 = vmatprep.subr.bf16.mxu0 0
          %898 = vmatpush1.bf16.msra.mxu0 0
          %899 = vmatprep.subr.bf16.mxu0 0
          %900 = vmatpush1.bf16.msra.mxu0 0
          %901 = vmatprep.subr.bf16.mxu0 0
          %902 = vmatpush1.bf16.msra.mxu0 0
          %903 = vmatprep.subr.bf16.mxu0 0
          %904 = vmatpush1.bf16.msra.mxu0 0
          %905 = vmatprep.subr.bf16.mxu0 0
          %906 = vmatpush1.bf16.msra.mxu0 0
          %907 = vmatprep.subr.bf16.mxu0 0
          %908 = vmatpush1.bf16.msra.mxu0 0
          %909 = vmatprep.subr.bf16.mxu0 0
          %910 = vmatpush1.bf16.msra.mxu0 0
          %911 = vmatprep.subr.bf16.mxu0 0
          %912 = vmatpush1.bf16.msra.mxu0 0
          %913 = vmatprep.subr.bf16.mxu0 0
          %914 = vmatpush1.bf16.msra.mxu0 0
          %915 = vmatprep.subr.bf16.mxu0 0
          %916 = vmatpush1.bf16.msra.mxu0 0
          %917 = vmatprep.subr.bf16.mxu0 0
          %918 = vmatpush1.bf16.msra.mxu0 0
          %919 = vmatprep.subr.bf16.mxu0 0
          %920 = vmatpush1.bf16.msra.mxu0 0
          %921 = vmatprep.subr.bf16.mxu0 0
          %922 = vmatpush1.bf16.msra.mxu0 0
          %923 = vmatprep.subr.bf16.mxu0 0
          %924 = vmatpush1.bf16.msra.mxu0 0
          %925 = vmatprep.subr.bf16.mxu0 0
          %926 = vmatpush1.bf16.msra.mxu0 0
          %927 = vmatprep.mubr.bf16.mxu0 0
          %928 = vmatmul.mubr.bf16.gmra.mrb[0].mxu0 %v566
          %v929 = vpop.f32.mrb[0].mxu0
          %v930 = vadd.f32 0.0, %v929
          %v931 = vpop.f32.mrb[0].mxu0
          %v932 = vadd.f32 0.0, %v931
          %v933 = vpop.f32.mrb[0].mxu0
          %v934 = vpop.f32.mrb[0].mxu0
          %935 = vdwg.mxu0
          %v944 = vunpack.c.l.b16 %v476
          %v945 = vunpack.c.h.b16 %v476
          %v946 = vunpack.c.l.b16 %v477
          %v947 = vunpack.c.h.b16 %v477
          %v948 = vunpack.c.l.b16 %v478
          %v949 = vunpack.c.h.b16 %v478
          %v950 = vunpack.c.l.b16 %v479
          %v951 = vunpack.c.h.b16 %v479
          %v952 = vunpack.c.l.b16 %v480
          %v953 = vunpack.c.h.b16 %v480
          %v954 = vunpack.c.l.b16 %v481
          %v955 = vunpack.c.h.b16 %v481
          %v956 = vunpack.c.l.b16 %v482
          %v957 = vunpack.c.h.b16 %v482
          %v958 = vunpack.c.l.b16 %v483
          %v959 = vunpack.c.h.b16 %v483
          %v960 = vpack.c.b16 %v952, %v944
          %v961 = vpack.c.b16 %v953, %v945
          %v962 = vpack.c.b16 %v954, %v946
          %v963 = vpack.c.b16 %v955, %v947
          %v964 = vpack.c.b16 %v956, %v948
          %v965 = vpack.c.b16 %v957, %v949
          %v966 = vpack.c.b16 %v958, %v950
          %v967 = vpack.c.b16 %v959, %v951
          %976 = vmatprep.subr.bf16.mxu0 %v961
          %977 = vmatpush1.bf16.msra.mxu0 %v960
          %978 = vmatprep.subr.bf16.mxu0 0
          %979 = vmatpush1.bf16.msra.mxu0 0
          %980 = vmatprep.subr.bf16.mxu0 0
          %981 = vmatpush1.bf16.msra.mxu0 0
          %982 = vmatprep.subr.bf16.mxu0 0
          %983 = vmatpush1.bf16.msra.mxu0 0
          %984 = vmatprep.subr.bf16.mxu0 0
          %985 = vmatpush1.bf16.msra.mxu0 0
          %986 = vmatprep.subr.bf16.mxu0 0
          %987 = vmatpush1.bf16.msra.mxu0 0
          %988 = vmatprep.subr.bf16.mxu0 0
          %989 = vmatpush1.bf16.msra.mxu0 0
          %990 = vmatprep.subr.bf16.mxu0 0
          %991 = vmatpush1.bf16.msra.mxu0 0
          %992 = vmatprep.subr.bf16.mxu0 0
          %993 = vmatpush1.bf16.msra.mxu0 0
          %994 = vmatprep.subr.bf16.mxu0 0
          %995 = vmatpush1.bf16.msra.mxu0 0
          %996 = vmatprep.subr.bf16.mxu0 0
          %997 = vmatpush1.bf16.msra.mxu0 0
          %998 = vmatprep.subr.bf16.mxu0 0
          %999 = vmatpush1.bf16.msra.mxu0 0
          %1000 = vmatprep.subr.bf16.mxu0 0
          %1001 = vmatpush1.bf16.msra.mxu0 0
          %1002 = vmatprep.subr.bf16.mxu0 0
          %1003 = vmatpush1.bf16.msra.mxu0 0
          %1004 = vmatprep.subr.bf16.mxu0 0
          %1005 = vmatpush1.bf16.msra.mxu0 0
          %1006 = vmatprep.subr.bf16.mxu0 0
          %1007 = vmatpush1.bf16.msra.mxu0 0
          %1008 = vmatprep.mubr.bf16.mxu0 0
          %1009 = vmatmul.mubr.bf16.gmra.mrb[0].mxu0 %v566
          %v1010 = vpop.f32.mrb[0].mxu0
          %v1011 = vadd.f32 0.0, %v1010
          %v1012 = vpop.f32.mrb[0].mxu0
          %v1013 = vadd.f32 0.0, %v1012
          %v1014 = vpop.f32.mrb[0].mxu0
          %v1015 = vpop.f32.mrb[0].mxu0
          %1016 = vdwg.mxu0
          %1017 = vmatprep.subr.bf16.mxu0 %v963
          %1018 = vmatpush1.bf16.msra.mxu0 %v962
          %1019 = vmatprep.subr.bf16.mxu0 0
          %1020 = vmatpush1.bf16.msra.mxu0 0
          %1021 = vmatprep.subr.bf16.mxu0 0
          %1022 = vmatpush1.bf16.msra.mxu0 0
          %1023 = vmatprep.subr.bf16.mxu0 0
          %1024 = vmatpush1.bf16.msra.mxu0 0
          %1025 = vmatprep.subr.bf16.mxu0 0
          %1026 = vmatpush1.bf16.msra.mxu0 0
          %1027 = vmatprep.subr.bf16.mxu0 0
          %1028 = vmatpush1.bf16.msra.mxu0 0
          %1029 = vmatprep.subr.bf16.mxu0 0
          %1030 = vmatpush1.bf16.msra.mxu0 0
          %1031 = vmatprep.subr.bf16.mxu0 0
          %1032 = vmatpush1.bf16.msra.mxu0 0
          %1033 = vmatprep.subr.bf16.mxu0 0
          %1034 = vmatpush1.bf16.msra.mxu0 0
          %1035 = vmatprep.subr.bf16.mxu0 0
          %1036 = vmatpush1.bf16.msra.mxu0 0
          %1037 = vmatprep.subr.bf16.mxu0 0
          %1038 = vmatpush1.bf16.msra.mxu0 0
          %1039 = vmatprep.subr.bf16.mxu0 0
          %1040 = vmatpush1.bf16.msra.mxu0 0
          %1041 = vmatprep.subr.bf16.mxu0 0
          %1042 = vmatpush1.bf16.msra.mxu0 0
          %1043 = vmatprep.subr.bf16.mxu0 0
          %1044 = vmatpush1.bf16.msra.mxu0 0
          %1045 = vmatprep.subr.bf16.mxu0 0
          %1046 = vmatpush1.bf16.msra.mxu0 0
          %1047 = vmatprep.subr.bf16.mxu0 0
          %1048 = vmatpush1.bf16.msra.mxu0 0
          %1049 = vmatprep.mubr.bf16.mxu0 0
          %1050 = vmatmul.mubr.bf16.gmra.mrb[0].mxu0 %v566
          %v1051 = vpop.f32.mrb[0].mxu0
          %v1052 = vadd.f32 0.0, %v1051
          %v1053 = vpop.f32.mrb[0].mxu0
          %v1054 = vadd.f32 0.0, %v1053
          %v1055 = vpop.f32.mrb[0].mxu0
          %v1056 = vpop.f32.mrb[0].mxu0
          %1057 = vdwg.mxu0
          %1058 = vmatprep.subr.bf16.mxu0 %v965
          %1059 = vmatpush1.bf16.msra.mxu0 %v964
          %1060 = vmatprep.subr.bf16.mxu0 0
          %1061 = vmatpush1.bf16.msra.mxu0 0
          %1062 = vmatprep.subr.bf16.mxu0 0
          %1063 = vmatpush1.bf16.msra.mxu0 0
          %1064 = vmatprep.subr.bf16.mxu0 0
          %1065 = vmatpush1.bf16.msra.mxu0 0
          %1066 = vmatprep.subr.bf16.mxu0 0
          %1067 = vmatpush1.bf16.msra.mxu0 0
          %1068 = vmatprep.subr.bf16.mxu0 0
          %1069 = vmatpush1.bf16.msra.mxu0 0
          %1070 = vmatprep.subr.bf16.mxu0 0
          %1071 = vmatpush1.bf16.msra.mxu0 0
          %1072 = vmatprep.subr.bf16.mxu0 0
          %1073 = vmatpush1.bf16.msra.mxu0 0
          %1074 = vmatprep.subr.bf16.mxu0 0
          %1075 = vmatpush1.bf16.msra.mxu0 0
          %1076 = vmatprep.subr.bf16.mxu0 0
          %1077 = vmatpush1.bf16.msra.mxu0 0
          %1078 = vmatprep.subr.bf16.mxu0 0
          %1079 = vmatpush1.bf16.msra.mxu0 0
          %1080 = vmatprep.subr.bf16.mxu0 0
          %1081 = vmatpush1.bf16.msra.mxu0 0
          %1082 = vmatprep.subr.bf16.mxu0 0
          %1083 = vmatpush1.bf16.msra.mxu0 0
          %1084 = vmatprep.subr.bf16.mxu0 0
          %1085 = vmatpush1.bf16.msra.mxu0 0
          %1086 = vmatprep.subr.bf16.mxu0 0
          %1087 = vmatpush1.bf16.msra.mxu0 0
          %1088 = vmatprep.subr.bf16.mxu0 0
          %1089 = vmatpush1.bf16.msra.mxu0 0
          %1090 = vmatprep.mubr.bf16.mxu0 0
          %1091 = vmatmul.mubr.bf16.gmra.mrb[0].mxu0 %v566
          %v1092 = vpop.f32.mrb[0].mxu0
          %v1093 = vadd.f32 0.0, %v1092
          %v1094 = vpop.f32.mrb[0].mxu0
          %v1095 = vadd.f32 0.0, %v1094
          %v1096 = vpop.f32.mrb[0].mxu0
          %v1097 = vpop.f32.mrb[0].mxu0
          %1098 = vdwg.mxu0
          %1099 = vmatprep.subr.bf16.mxu0 %v967
          %1100 = vmatpush1.bf16.msra.mxu0 %v966
          %1101 = vmatprep.subr.bf16.mxu0 0
          %1102 = vmatpush1.bf16.msra.mxu0 0
          %1103 = vmatprep.subr.bf16.mxu0 0
          %1104 = vmatpush1.bf16.msra.mxu0 0
          %1105 = vmatprep.subr.bf16.mxu0 0
          %1106 = vmatpush1.bf16.msra.mxu0 0
          %1107 = vmatprep.subr.bf16.mxu0 0
          %1108 = vmatpush1.bf16.msra.mxu0 0
          %1109 = vmatprep.subr.bf16.mxu0 0
          %1110 = vmatpush1.bf16.msra.mxu0 0
          %1111 = vmatprep.subr.bf16.mxu0 0
          %1112 = vmatpush1.bf16.msra.mxu0 0
          %1113 = vmatprep.subr.bf16.mxu0 0
          %1114 = vmatpush1.bf16.msra.mxu0 0
          %1115 = vmatprep.subr.bf16.mxu0 0
          %1116 = vmatpush1.bf16.msra.mxu0 0
          %1117 = vmatprep.subr.bf16.mxu0 0
          %1118 = vmatpush1.bf16.msra.mxu0 0
          %1119 = vmatprep.subr.bf16.mxu0 0
          %1120 = vmatpush1.bf16.msra.mxu0 0
          %1121 = vmatprep.subr.bf16.mxu0 0
          %1122 = vmatpush1.bf16.msra.mxu0 0
          %1123 = vmatprep.subr.bf16.mxu0 0
          %1124 = vmatpush1.bf16.msra.mxu0 0
          %1125 = vmatprep.subr.bf16.mxu0 0
          %1126 = vmatpush1.bf16.msra.mxu0 0
          %1127 = vmatprep.subr.bf16.mxu0 0
          %1128 = vmatpush1.bf16.msra.mxu0 0
          %1129 = vmatprep.subr.bf16.mxu0 0
          %1130 = vmatpush1.bf16.msra.mxu0 0
          %1131 = vmatprep.mubr.bf16.mxu0 0
          %1132 = vmatmul.mubr.bf16.gmra.mrb[0].mxu0 %v566
          %v1133 = vpop.f32.mrb[0].mxu0
          %v1134 = vadd.f32 0.0, %v1133
          %v1135 = vpop.f32.mrb[0].mxu0
          %v1136 = vadd.f32 0.0, %v1135
          %v1137 = vpop.f32.mrb[0].mxu0
          %v1138 = vpop.f32.mrb[0].mxu0
          %1139 = vdwg.mxu0
          %v1148 = vunpack.c.l.b16 %v484
          %v1149 = vunpack.c.h.b16 %v484
          %v1150 = vunpack.c.l.b16 %v485
          %v1151 = vunpack.c.h.b16 %v485
          %v1152 = vunpack.c.l.b16 %v486
          %v1153 = vunpack.c.h.b16 %v486
          %v1154 = vunpack.c.l.b16 %v487
          %v1155 = vunpack.c.h.b16 %v487
          %v1156 = vunpack.c.l.b16 %v488
          %v1157 = vunpack.c.h.b16 %v488
          %v1158 = vunpack.c.l.b16 %v489
          %v1159 = vunpack.c.h.b16 %v489
          %v1160 = vunpack.c.l.b16 %v490
          %v1161 = vunpack.c.h.b16 %v490
          %v1162 = vunpack.c.l.b16 %v491
          %v1163 = vunpack.c.h.b16 %v491
          %v1164 = vpack.c.b16 %v1156, %v1148
          %v1165 = vpack.c.b16 %v1157, %v1149
          %v1166 = vpack.c.b16 %v1158, %v1150
          %v1167 = vpack.c.b16 %v1159, %v1151
          %v1168 = vpack.c.b16 %v1160, %v1152
          %v1169 = vpack.c.b16 %v1161, %v1153
          %v1170 = vpack.c.b16 %v1162, %v1154
          %v1171 = vpack.c.b16 %v1163, %v1155
          %1180 = vmatprep.subr.bf16.mxu0 %v1165
          %1181 = vmatpush1.bf16.msra.mxu0 %v1164
          %1182 = vmatprep.subr.bf16.mxu0 0
          %1183 = vmatpush1.bf16.msra.mxu0 0
          %1184 = vmatprep.subr.bf16.mxu0 0
          %1185 = vmatpush1.bf16.msra.mxu0 0
          %1186 = vmatprep.subr.bf16.mxu0 0
          %1187 = vmatpush1.bf16.msra.mxu0 0
          %1188 = vmatprep.subr.bf16.mxu0 0
          %1189 = vmatpush1.bf16.msra.mxu0 0
          %1190 = vmatprep.subr.bf16.mxu0 0
          %1191 = vmatpush1.bf16.msra.mxu0 0
          %1192 = vmatprep.subr.bf16.mxu0 0
          %1193 = vmatpush1.bf16.msra.mxu0 0
          %1194 = vmatprep.subr.bf16.mxu0 0
          %1195 = vmatpush1.bf16.msra.mxu0 0
          %1196 = vmatprep.subr.bf16.mxu0 0
          %1197 = vmatpush1.bf16.msra.mxu0 0
          %1198 = vmatprep.subr.bf16.mxu0 0
          %1199 = vmatpush1.bf16.msra.mxu0 0
          %1200 = vmatprep.subr.bf16.mxu0 0
          %1201 = vmatpush1.bf16.msra.mxu0 0
          %1202 = vmatprep.subr.bf16.mxu0 0
          %1203 = vmatpush1.bf16.msra.mxu0 0
          %1204 = vmatprep.subr.bf16.mxu0 0
          %1205 = vmatpush1.bf16.msra.mxu0 0
          %1206 = vmatprep.subr.bf16.mxu0 0
          %1207 = vmatpush1.bf16.msra.mxu0 0
          %1208 = vmatprep.subr.bf16.mxu0 0
          %1209 = vmatpush1.bf16.msra.mxu0 0
          %1210 = vmatprep.subr.bf16.mxu0 0
          %1211 = vmatpush1.bf16.msra.mxu0 0
          %1212 = vmatprep.mubr.bf16.mxu0 0
          %1213 = vmatmul.mubr.bf16.gmra.mrb[0].mxu0 %v566
          %v1214 = vpop.f32.mrb[0].mxu0
          %v1215 = vadd.f32 0.0, %v1214
          %v1216 = vpop.f32.mrb[0].mxu0
          %v1217 = vadd.f32 0.0, %v1216
          %v1218 = vpop.f32.mrb[0].mxu0
          %v1219 = vpop.f32.mrb[0].mxu0
          %1220 = vdwg.mxu0
          %1221 = vmatprep.subr.bf16.mxu0 %v1167
          %1222 = vmatpush1.bf16.msra.mxu0 %v1166
          %1223 = vmatprep.subr.bf16.mxu0 0
          %1224 = vmatpush1.bf16.msra.mxu0 0
          %1225 = vmatprep.subr.bf16.mxu0 0
          %1226 = vmatpush1.bf16.msra.mxu0 0
          %1227 = vmatprep.subr.bf16.mxu0 0
          %1228 = vmatpush1.bf16.msra.mxu0 0
          %1229 = vmatprep.subr.bf16.mxu0 0
          %1230 = vmatpush1.bf16.msra.mxu0 0
          %1231 = vmatprep.subr.bf16.mxu0 0
          %1232 = vmatpush1.bf16.msra.mxu0 0
          %1233 = vmatprep.subr.bf16.mxu0 0
          %1234 = vmatpush1.bf16.msra.mxu0 0
          %1235 = vmatprep.subr.bf16.mxu0 0
          %1236 = vmatpush1.bf16.msra.mxu0 0
          %1237 = vmatprep.subr.bf16.mxu0 0
          %1238 = vmatpush1.bf16.msra.mxu0 0
          %1239 = vmatprep.subr.bf16.mxu0 0
          %1240 = vmatpush1.bf16.msra.mxu0 0
          %1241 = vmatprep.subr.bf16.mxu0 0
          %1242 = vmatpush1.bf16.msra.mxu0 0
          %1243 = vmatprep.subr.bf16.mxu0 0
          %1244 = vmatpush1.bf16.msra.mxu0 0
          %1245 = vmatprep.subr.bf16.mxu0 0
          %1246 = vmatpush1.bf16.msra.mxu0 0
          %1247 = vmatprep.subr.bf16.mxu0 0
          %1248 = vmatpush1.bf16.msra.mxu0 0
          %1249 = vmatprep.subr.bf16.mxu0 0
          %1250 = vmatpush1.bf16.msra.mxu0 0
          %1251 = vmatprep.subr.bf16.mxu0 0
          %1252 = vmatpush1.bf16.msra.mxu0 0
          %1253 = vmatprep.mubr.bf16.mxu0 0
          %1254 = vmatmul.mubr.bf16.gmra.mrb[0].mxu0 %v566
          %v1255 = vpop.f32.mrb[0].mxu0
          %v1256 = vadd.f32 0.0, %v1255
          %v1257 = vpop.f32.mrb[0].mxu0
          %v1258 = vadd.f32 0.0, %v1257
          %v1259 = vpop.f32.mrb[0].mxu0
          %v1260 = vpop.f32.mrb[0].mxu0
          %1261 = vdwg.mxu0
          %1262 = vmatprep.subr.bf16.mxu0 %v1169
          %1263 = vmatpush1.bf16.msra.mxu0 %v1168
          %1264 = vmatprep.subr.bf16.mxu0 0
          %1265 = vmatpush1.bf16.msra.mxu0 0
          %1266 = vmatprep.subr.bf16.mxu0 0
          %1267 = vmatpush1.bf16.msra.mxu0 0
          %1268 = vmatprep.subr.bf16.mxu0 0
          %1269 = vmatpush1.bf16.msra.mxu0 0
          %1270 = vmatprep.subr.bf16.mxu0 0
          %1271 = vmatpush1.bf16.msra.mxu0 0
          %1272 = vmatprep.subr.bf16.mxu0 0
          %1273 = vmatpush1.bf16.msra.mxu0 0
          %1274 = vmatprep.subr.bf16.mxu0 0
          %1275 = vmatpush1.bf16.msra.mxu0 0
          %1276 = vmatprep.subr.bf16.mxu0 0
          %1277 = vmatpush1.bf16.msra.mxu0 0
          %1278 = vmatprep.subr.bf16.mxu0 0
          %1279 = vmatpush1.bf16.msra.mxu0 0
          %1280 = vmatprep.subr.bf16.mxu0 0
          %1281 = vmatpush1.bf16.msra.mxu0 0
          %1282 = vmatprep.subr.bf16.mxu0 0
          %1283 = vmatpush1.bf16.msra.mxu0 0
          %1284 = vmatprep.subr.bf16.mxu0 0
          %1285 = vmatpush1.bf16.msra.mxu0 0
          %1286 = vmatprep.subr.bf16.mxu0 0
          %1287 = vmatpush1.bf16.msra.mxu0 0
          %1288 = vmatprep.subr.bf16.mxu0 0
          %1289 = vmatpush1.bf16.msra.mxu0 0
          %1290 = vmatprep.subr.bf16.mxu0 0
          %1291 = vmatpush1.bf16.msra.mxu0 0
          %1292 = vmatprep.subr.bf16.mxu0 0
          %1293 = vmatpush1.bf16.msra.mxu0 0
          %1294 = vmatprep.mubr.bf16.mxu0 0
          %1295 = vmatmul.mubr.bf16.gmra.mrb[0].mxu0 %v566
          %v1296 = vpop.f32.mrb[0].mxu0
          %v1297 = vadd.f32 0.0, %v1296
          %v1298 = vpop.f32.mrb[0].mxu0
          %v1299 = vadd.f32 0.0, %v1298
          %v1300 = vpop.f32.mrb[0].mxu0
          %v1301 = vpop.f32.mrb[0].mxu0
          %1302 = vdwg.mxu0
          %1303 = vmatprep.subr.bf16.mxu0 %v1171
          %1304 = vmatpush1.bf16.msra.mxu0 %v1170
          %1305 = vmatprep.subr.bf16.mxu0 0
          %1306 = vmatpush1.bf16.msra.mxu0 0
          %1307 = vmatprep.subr.bf16.mxu0 0
          %1308 = vmatpush1.bf16.msra.mxu0 0
          %1309 = vmatprep.subr.bf16.mxu0 0
          %1310 = vmatpush1.bf16.msra.mxu0 0
          %1311 = vmatprep.subr.bf16.mxu0 0
          %1312 = vmatpush1.bf16.msra.mxu0 0
          %1313 = vmatprep.subr.bf16.mxu0 0
          %1314 = vmatpush1.bf16.msra.mxu0 0
          %1315 = vmatprep.subr.bf16.mxu0 0
          %1316 = vmatpush1.bf16.msra.mxu0 0
          %1317 = vmatprep.subr.bf16.mxu0 0
          %1318 = vmatpush1.bf16.msra.mxu0 0
          %1319 = vmatprep.subr.bf16.mxu0 0
          %1320 = vmatpush1.bf16.msra.mxu0 0
          %1321 = vmatprep.subr.bf16.mxu0 0
          %1322 = vmatpush1.bf16.msra.mxu0 0
          %1323 = vmatprep.subr.bf16.mxu0 0
          %1324 = vmatpush1.bf16.msra.mxu0 0
          %1325 = vmatprep.subr.bf16.mxu0 0
          %1326 = vmatpush1.bf16.msra.mxu0 0
          %1327 = vmatprep.subr.bf16.mxu0 0
          %1328 = vmatpush1.bf16.msra.mxu0 0
          %1329 = vmatprep.subr.bf16.mxu0 0
          %1330 = vmatpush1.bf16.msra.mxu0 0
          %1331 = vmatprep.subr.bf16.mxu0 0
          %1332 = vmatpush1.bf16.msra.mxu0 0
          %1333 = vmatprep.subr.bf16.mxu0 0
          %1334 = vmatpush1.bf16.msra.mxu0 0
          %1335 = vmatprep.mubr.bf16.mxu0 0
          %1336 = vmatmul.mubr.bf16.gmra.mrb[0].mxu0 %v566
          %v1337 = vpop.f32.mrb[0].mxu0
          %v1338 = vadd.f32 0.0, %v1337
          %v1339 = vpop.f32.mrb[0].mxu0
          %v1340 = vadd.f32 0.0, %v1339
          %v1341 = vpop.f32.mrb[0].mxu0
          %v1342 = vpop.f32.mrb[0].mxu0
          %1343 = vdwg.mxu0
          %v1352 = vunpack.c.l.b16 %v492
          %v1353 = vunpack.c.h.b16 %v492
          %v1354 = vunpack.c.l.b16 %v493
          %v1355 = vunpack.c.h.b16 %v493
          %v1356 = vunpack.c.l.b16 %v494
          %v1357 = vunpack.c.h.b16 %v494
          %v1358 = vunpack.c.l.b16 %v495
          %v1359 = vunpack.c.h.b16 %v495
          %v1360 = vunpack.c.l.b16 %v496
          %v1361 = vunpack.c.h.b16 %v496
          %v1362 = vunpack.c.l.b16 %v497
          %v1363 = vunpack.c.h.b16 %v497
          %v1364 = vunpack.c.l.b16 %v498
          %v1365 = vunpack.c.h.b16 %v498
          %v1366 = vunpack.c.l.b16 %v499
          %v1367 = vunpack.c.h.b16 %v499
          %v1368 = vpack.c.b16 %v1360, %v1352
          %v1369 = vpack.c.b16 %v1361, %v1353
          %v1370 = vpack.c.b16 %v1362, %v1354
          %v1371 = vpack.c.b16 %v1363, %v1355
          %v1372 = vpack.c.b16 %v1364, %v1356
          %v1373 = vpack.c.b16 %v1365, %v1357
          %v1374 = vpack.c.b16 %v1366, %v1358
          %v1375 = vpack.c.b16 %v1367, %v1359
          %1384 = vmatprep.subr.bf16.mxu0 %v1369
          %1385 = vmatpush1.bf16.msra.mxu0 %v1368
          %1386 = vmatprep.subr.bf16.mxu0 0
          %1387 = vmatpush1.bf16.msra.mxu0 0
          %1388 = vmatprep.subr.bf16.mxu0 0
          %1389 = vmatpush1.bf16.msra.mxu0 0
          %1390 = vmatprep.subr.bf16.mxu0 0
          %1391 = vmatpush1.bf16.msra.mxu0 0
          %1392 = vmatprep.subr.bf16.mxu0 0
          %1393 = vmatpush1.bf16.msra.mxu0 0
          %1394 = vmatprep.subr.bf16.mxu0 0
          %1395 = vmatpush1.bf16.msra.mxu0 0
          %1396 = vmatprep.subr.bf16.mxu0 0
          %1397 = vmatpush1.bf16.msra.mxu0 0
          %1398 = vmatprep.subr.bf16.mxu0 0
          %1399 = vmatpush1.bf16.msra.mxu0 0
          %1400 = vmatprep.subr.bf16.mxu0 0
          %1401 = vmatpush1.bf16.msra.mxu0 0
          %1402 = vmatprep.subr.bf16.mxu0 0
          %1403 = vmatpush1.bf16.msra.mxu0 0
          %1404 = vmatprep.subr.bf16.mxu0 0
          %1405 = vmatpush1.bf16.msra.mxu0 0
          %1406 = vmatprep.subr.bf16.mxu0 0
          %1407 = vmatpush1.bf16.msra.mxu0 0
          %1408 = vmatprep.subr.bf16.mxu0 0
          %1409 = vmatpush1.bf16.msra.mxu0 0
          %1410 = vmatprep.subr.bf16.mxu0 0
          %1411 = vmatpush1.bf16.msra.mxu0 0
          %1412 = vmatprep.subr.bf16.mxu0 0
          %1413 = vmatpush1.bf16.msra.mxu0 0
          %1414 = vmatprep.subr.bf16.mxu0 0
          %1415 = vmatpush1.bf16.msra.mxu0 0
          %1416 = vmatprep.mubr.bf16.mxu0 0
          %1417 = vmatmul.mubr.bf16.gmra.mrb[0].mxu0 %v566
          %v1418 = vpop.f32.mrb[0].mxu0
          %v1419 = vadd.f32 0.0, %v1418
          %v1420 = vpop.f32.mrb[0].mxu0
          %v1421 = vadd.f32 0.0, %v1420
          %v1422 = vpop.f32.mrb[0].mxu0
          %v1423 = vpop.f32.mrb[0].mxu0
          %1424 = vdwg.mxu0
          %1425 = vmatprep.subr.bf16.mxu0 %v1371
          %1426 = vmatpush1.bf16.msra.mxu0 %v1370
          %1427 = vmatprep.subr.bf16.mxu0 0
          %1428 = vmatpush1.bf16.msra.mxu0 0
          %1429 = vmatprep.subr.bf16.mxu0 0
          %1430 = vmatpush1.bf16.msra.mxu0 0
          %1431 = vmatprep.subr.bf16.mxu0 0
          %1432 = vmatpush1.bf16.msra.mxu0 0
          %1433 = vmatprep.subr.bf16.mxu0 0
          %1434 = vmatpush1.bf16.msra.mxu0 0
          %1435 = vmatprep.subr.bf16.mxu0 0
          %1436 = vmatpush1.bf16.msra.mxu0 0
          %1437 = vmatprep.subr.bf16.mxu0 0
          %1438 = vmatpush1.bf16.msra.mxu0 0
          %1439 = vmatprep.subr.bf16.mxu0 0
          %1440 = vmatpush1.bf16.msra.mxu0 0
          %1441 = vmatprep.subr.bf16.mxu0 0
          %1442 = vmatpush1.bf16.msra.mxu0 0
          %1443 = vmatprep.subr.bf16.mxu0 0
          %1444 = vmatpush1.bf16.msra.mxu0 0
          %1445 = vmatprep.subr.bf16.mxu0 0
          %1446 = vmatpush1.bf16.msra.mxu0 0
          %1447 = vmatprep.subr.bf16.mxu0 0
          %1448 = vmatpush1.bf16.msra.mxu0 0
          %1449 = vmatprep.subr.bf16.mxu0 0
          %1450 = vmatpush1.bf16.msra.mxu0 0
          %1451 = vmatprep.subr.bf16.mxu0 0
          %1452 = vmatpush1.bf16.msra.mxu0 0
          %1453 = vmatprep.subr.bf16.mxu0 0
          %1454 = vmatpush1.bf16.msra.mxu0 0
          %1455 = vmatprep.subr.bf16.mxu0 0
          %1456 = vmatpush1.bf16.msra.mxu0 0
          %1457 = vmatprep.mubr.bf16.mxu0 0
          %1458 = vmatmul.mubr.bf16.gmra.mrb[0].mxu0 %v566
          %v1459 = vpop.f32.mrb[0].mxu0
          %v1460 = vadd.f32 0.0, %v1459
          %v1461 = vpop.f32.mrb[0].mxu0
          %v1462 = vadd.f32 0.0, %v1461
          %v1463 = vpop.f32.mrb[0].mxu0
          %v1464 = vpop.f32.mrb[0].mxu0
          %1465 = vdwg.mxu0
          %1466 = vmatprep.subr.bf16.mxu0 %v1373
          %1467 = vmatpush1.bf16.msra.mxu0 %v1372
          %1468 = vmatprep.subr.bf16.mxu0 0
          %1469 = vmatpush1.bf16.msra.mxu0 0
          %1470 = vmatprep.subr.bf16.mxu0 0
          %1471 = vmatpush1.bf16.msra.mxu0 0
          %1472 = vmatprep.subr.bf16.mxu0 0
          %1473 = vmatpush1.bf16.msra.mxu0 0
          %1474 = vmatprep.subr.bf16.mxu0 0
          %1475 = vmatpush1.bf16.msra.mxu0 0
          %1476 = vmatprep.subr.bf16.mxu0 0
          %1477 = vmatpush1.bf16.msra.mxu0 0
          %1478 = vmatprep.subr.bf16.mxu0 0
          %1479 = vmatpush1.bf16.msra.mxu0 0
          %1480 = vmatprep.subr.bf16.mxu0 0
          %1481 = vmatpush1.bf16.msra.mxu0 0
          %1482 = vmatprep.subr.bf16.mxu0 0
          %1483 = vmatpush1.bf16.msra.mxu0 0
          %1484 = vmatprep.subr.bf16.mxu0 0
          %1485 = vmatpush1.bf16.msra.mxu0 0
          %1486 = vmatprep.subr.bf16.mxu0 0
          %1487 = vmatpush1.bf16.msra.mxu0 0
          %1488 = vmatprep.subr.bf16.mxu0 0
          %1489 = vmatpush1.bf16.msra.mxu0 0
          %1490 = vmatprep.subr.bf16.mxu0 0
          %1491 = vmatpush1.bf16.msra.mxu0 0
          %1492 = vmatprep.subr.bf16.mxu0 0
          %1493 = vmatpush1.bf16.msra.mxu0 0
          %1494 = vmatprep.subr.bf16.mxu0 0
          %1495 = vmatpush1.bf16.msra.mxu0 0
          %1496 = vmatprep.subr.bf16.mxu0 0
          %1497 = vmatpush1.bf16.msra.mxu0 0
          %1498 = vmatprep.mubr.bf16.mxu0 0
          %1499 = vmatmul.mubr.bf16.gmra.mrb[0].mxu0 %v566
          %v1500 = vpop.f32.mrb[0].mxu0
          %v1501 = vadd.f32 0.0, %v1500
          %v1502 = vpop.f32.mrb[0].mxu0
          %v1503 = vadd.f32 0.0, %v1502
          %v1504 = vpop.f32.mrb[0].mxu0
          %v1505 = vpop.f32.mrb[0].mxu0
          %1506 = vdwg.mxu0
          %1507 = vmatprep.subr.bf16.mxu0 %v1375
          %1508 = vmatpush1.bf16.msra.mxu0 %v1374
          %1509 = vmatprep.subr.bf16.mxu0 0
          %1510 = vmatpush1.bf16.msra.mxu0 0
          %1511 = vmatprep.subr.bf16.mxu0 0
          %1512 = vmatpush1.bf16.msra.mxu0 0
          %1513 = vmatprep.subr.bf16.mxu0 0
          %1514 = vmatpush1.bf16.msra.mxu0 0
          %1515 = vmatprep.subr.bf16.mxu0 0
          %1516 = vmatpush1.bf16.msra.mxu0 0
          %1517 = vmatprep.subr.bf16.mxu0 0
          %1518 = vmatpush1.bf16.msra.mxu0 0
          %1519 = vmatprep.subr.bf16.mxu0 0
          %1520 = vmatpush1.bf16.msra.mxu0 0
          %1521 = vmatprep.subr.bf16.mxu0 0
          %1522 = vmatpush1.bf16.msra.mxu0 0
          %1523 = vmatprep.subr.bf16.mxu0 0
          %1524 = vmatpush1.bf16.msra.mxu0 0
          %1525 = vmatprep.subr.bf16.mxu0 0
          %1526 = vmatpush1.bf16.msra.mxu0 0
          %1527 = vmatprep.subr.bf16.mxu0 0
          %1528 = vmatpush1.bf16.msra.mxu0 0
          %1529 = vmatprep.subr.bf16.mxu0 0
          %1530 = vmatpush1.bf16.msra.mxu0 0
          %1531 = vmatprep.subr.bf16.mxu0 0
          %1532 = vmatpush1.bf16.msra.mxu0 0
          %1533 = vmatprep.subr.bf16.mxu0 0
          %1534 = vmatpush1.bf16.msra.mxu0 0
          %1535 = vmatprep.subr.bf16.mxu0 0
          %1536 = vmatpush1.bf16.msra.mxu0 0
          %1537 = vmatprep.subr.bf16.mxu0 0
          %1538 = vmatpush1.bf16.msra.mxu0 0
          %1539 = vmatprep.mubr.bf16.mxu0 0
          %1540 = vmatmul.mubr.bf16.gmra.mrb[0].mxu0 %v566
          %v1541 = vpop.f32.mrb[0].mxu0
          %v1542 = vadd.f32 0.0, %v1541
          %v1543 = vpop.f32.mrb[0].mxu0
          %v1544 = vadd.f32 0.0, %v1543
          %v1545 = vpop.f32.mrb[0].mxu0
          %v1546 = vpop.f32.mrb[0].mxu0
          %1547 = vdwg.mxu0
          %v1556 = vunpack.c.l.b16 %v500
          %v1557 = vunpack.c.h.b16 %v500
          %v1558 = vunpack.c.l.b16 %v501
          %v1559 = vunpack.c.h.b16 %v501
          %v1560 = vunpack.c.l.b16 %v502
          %v1561 = vunpack.c.h.b16 %v502
          %v1562 = vunpack.c.l.b16 %v503
          %v1563 = vunpack.c.h.b16 %v503
          %v1564 = vunpack.c.l.b16 %v504
          %v1565 = vunpack.c.h.b16 %v504
          %v1566 = vunpack.c.l.b16 %v505
          %v1567 = vunpack.c.h.b16 %v505
          %v1568 = vunpack.c.l.b16 %v506
          %v1569 = vunpack.c.h.b16 %v506
          %v1570 = vunpack.c.l.b16 %v507
          %v1571 = vunpack.c.h.b16 %v507
          %v1572 = vpack.c.b16 %v1564, %v1556
          %v1573 = vpack.c.b16 %v1565, %v1557
          %v1574 = vpack.c.b16 %v1566, %v1558
          %v1575 = vpack.c.b16 %v1567, %v1559
          %v1576 = vpack.c.b16 %v1568, %v1560
          %v1577 = vpack.c.b16 %v1569, %v1561
          %v1578 = vpack.c.b16 %v1570, %v1562
          %v1579 = vpack.c.b16 %v1571, %v1563
          %1588 = vmatprep.subr.bf16.mxu0 %v1573
          %1589 = vmatpush1.bf16.msra.mxu0 %v1572
          %1590 = vmatprep.subr.bf16.mxu0 0
          %1591 = vmatpush1.bf16.msra.mxu0 0
          %1592 = vmatprep.subr.bf16.mxu0 0
          %1593 = vmatpush1.bf16.msra.mxu0 0
          %1594 = vmatprep.subr.bf16.mxu0 0
          %1595 = vmatpush1.bf16.msra.mxu0 0
          %1596 = vmatprep.subr.bf16.mxu0 0
          %1597 = vmatpush1.bf16.msra.mxu0 0
          %1598 = vmatprep.subr.bf16.mxu0 0
          %1599 = vmatpush1.bf16.msra.mxu0 0
          %1600 = vmatprep.subr.bf16.mxu0 0
          %1601 = vmatpush1.bf16.msra.mxu0 0
          %1602 = vmatprep.subr.bf16.mxu0 0
          %1603 = vmatpush1.bf16.msra.mxu0 0
          %1604 = vmatprep.subr.bf16.mxu0 0
          %1605 = vmatpush1.bf16.msra.mxu0 0
          %1606 = vmatprep.subr.bf16.mxu0 0
          %1607 = vmatpush1.bf16.msra.mxu0 0
          %1608 = vmatprep.subr.bf16.mxu0 0
          %1609 = vmatpush1.bf16.msra.mxu0 0
          %1610 = vmatprep.subr.bf16.mxu0 0
          %1611 = vmatpush1.bf16.msra.mxu0 0
          %1612 = vmatprep.subr.bf16.mxu0 0
          %1613 = vmatpush1.bf16.msra.mxu0 0
          %1614 = vmatprep.subr.bf16.mxu0 0
          %1615 = vmatpush1.bf16.msra.mxu0 0
          %1616 = vmatprep.subr.bf16.mxu0 0
          %1617 = vmatpush1.bf16.msra.mxu0 0
          %1618 = vmatprep.subr.bf16.mxu0 0
          %1619 = vmatpush1.bf16.msra.mxu0 0
          %1620 = vmatprep.mubr.bf16.mxu0 0
          %1621 = vmatmul.mubr.bf16.gmra.mrb[0].mxu0 %v566
          %v1622 = vpop.f32.mrb[0].mxu0
          %v1623 = vadd.f32 0.0, %v1622
          %v1624 = vpop.f32.mrb[0].mxu0
          %v1625 = vadd.f32 0.0, %v1624
          %v1626 = vpop.f32.mrb[0].mxu0
          %v1627 = vpop.f32.mrb[0].mxu0
          %1628 = vdwg.mxu0
          %1629 = vmatprep.subr.bf16.mxu0 %v1575
          %1630 = vmatpush1.bf16.msra.mxu0 %v1574
          %1631 = vmatprep.subr.bf16.mxu0 0
          %1632 = vmatpush1.bf16.msra.mxu0 0
          %1633 = vmatprep.subr.bf16.mxu0 0
          %1634 = vmatpush1.bf16.msra.mxu0 0
          %1635 = vmatprep.subr.bf16.mxu0 0
          %1636 = vmatpush1.bf16.msra.mxu0 0
          %1637 = vmatprep.subr.bf16.mxu0 0
          %1638 = vmatpush1.bf16.msra.mxu0 0
          %1639 = vmatprep.subr.bf16.mxu0 0
          %1640 = vmatpush1.bf16.msra.mxu0 0
          %1641 = vmatprep.subr.bf16.mxu0 0
          %1642 = vmatpush1.bf16.msra.mxu0 0
          %1643 = vmatprep.subr.bf16.mxu0 0
          %1644 = vmatpush1.bf16.msra.mxu0 0
          %1645 = vmatprep.subr.bf16.mxu0 0
          %1646 = vmatpush1.bf16.msra.mxu0 0
          %1647 = vmatprep.subr.bf16.mxu0 0
          %1648 = vmatpush1.bf16.msra.mxu0 0
          %1649 = vmatprep.subr.bf16.mxu0 0
          %1650 = vmatpush1.bf16.msra.mxu0 0
          %1651 = vmatprep.subr.bf16.mxu0 0
          %1652 = vmatpush1.bf16.msra.mxu0 0
          %1653 = vmatprep.subr.bf16.mxu0 0
          %1654 = vmatpush1.bf16.msra.mxu0 0
          %1655 = vmatprep.subr.bf16.mxu0 0
          %1656 = vmatpush1.bf16.msra.mxu0 0
          %1657 = vmatprep.subr.bf16.mxu0 0
          %1658 = vmatpush1.bf16.msra.mxu0 0
          %1659 = vmatprep.subr.bf16.mxu0 0
          %1660 = vmatpush1.bf16.msra.mxu0 0
          %1661 = vmatprep.mubr.bf16.mxu0 0
          %1662 = vmatmul.mubr.bf16.gmra.mrb[0].mxu0 %v566
          %v1663 = vpop.f32.mrb[0].mxu0
          %v1664 = vadd.f32 0.0, %v1663
          %v1665 = vpop.f32.mrb[0].mxu0
          %v1666 = vadd.f32 0.0, %v1665
          %v1667 = vpop.f32.mrb[0].mxu0
          %v1668 = vpop.f32.mrb[0].mxu0
          %1669 = vdwg.mxu0
          %1670 = vmatprep.subr.bf16.mxu0 %v1577
          %1671 = vmatpush1.bf16.msra.mxu0 %v1576
          %1672 = vmatprep.subr.bf16.mxu0 0
          %1673 = vmatpush1.bf16.msra.mxu0 0
          %1674 = vmatprep.subr.bf16.mxu0 0
          %1675 = vmatpush1.bf16.msra.mxu0 0
          %1676 = vmatprep.subr.bf16.mxu0 0
          %1677 = vmatpush1.bf16.msra.mxu0 0
          %1678 = vmatprep.subr.bf16.mxu0 0
          %1679 = vmatpush1.bf16.msra.mxu0 0
          %1680 = vmatprep.subr.bf16.mxu0 0
          %1681 = vmatpush1.bf16.msra.mxu0 0
          %1682 = vmatprep.subr.bf16.mxu0 0
          %1683 = vmatpush1.bf16.msra.mxu0 0
          %1684 = vmatprep.subr.bf16.mxu0 0
          %1685 = vmatpush1.bf16.msra.mxu0 0
          %1686 = vmatprep.subr.bf16.mxu0 0
          %1687 = vmatpush1.bf16.msra.mxu0 0
          %1688 = vmatprep.subr.bf16.mxu0 0
          %1689 = vmatpush1.bf16.msra.mxu0 0
          %1690 = vmatprep.subr.bf16.mxu0 0
          %1691 = vmatpush1.bf16.msra.mxu0 0
          %1692 = vmatprep.subr.bf16.mxu0 0
          %1693 = vmatpush1.bf16.msra.mxu0 0
          %1694 = vmatprep.subr.bf16.mxu0 0
          %1695 = vmatpush1.bf16.msra.mxu0 0
          %1696 = vmatprep.subr.bf16.mxu0 0
          %1697 = vmatpush1.bf16.msra.mxu0 0
          %1698 = vmatprep.subr.bf16.mxu0 0
          %1699 = vmatpush1.bf16.msra.mxu0 0
          %1700 = vmatprep.subr.bf16.mxu0 0
          %1701 = vmatpush1.bf16.msra.mxu0 0
          %1702 = vmatprep.mubr.bf16.mxu0 0
          %1703 = vmatmul.mubr.bf16.gmra.mrb[0].mxu0 %v566
          %v1704 = vpop.f32.mrb[0].mxu0
          %v1705 = vadd.f32 0.0, %v1704
          %v1706 = vpop.f32.mrb[0].mxu0
          %v1707 = vadd.f32 0.0, %v1706
          %v1708 = vpop.f32.mrb[0].mxu0
          %v1709 = vpop.f32.mrb[0].mxu0
          %1710 = vdwg.mxu0
          %1711 = vmatprep.subr.bf16.mxu0 %v1579
          %1712 = vmatpush1.bf16.msra.mxu0 %v1578
          %1713 = vmatprep.subr.bf16.mxu0 0
          %1714 = vmatpush1.bf16.msra.mxu0 0
          %1715 = vmatprep.subr.bf16.mxu0 0
          %1716 = vmatpush1.bf16.msra.mxu0 0
          %1717 = vmatprep.subr.bf16.mxu0 0
          %1718 = vmatpush1.bf16.msra.mxu0 0
          %1719 = vmatprep.subr.bf16.mxu0 0
          %1720 = vmatpush1.bf16.msra.mxu0 0
          %1721 = vmatprep.subr.bf16.mxu0 0
          %1722 = vmatpush1.bf16.msra.mxu0 0
          %1723 = vmatprep.subr.bf16.mxu0 0
          %1724 = vmatpush1.bf16.msra.mxu0 0
          %1725 = vmatprep.subr.bf16.mxu0 0
          %1726 = vmatpush1.bf16.msra.mxu0 0
          %1727 = vmatprep.subr.bf16.mxu0 0
          %1728 = vmatpush1.bf16.msra.mxu0 0
          %1729 = vmatprep.subr.bf16.mxu0 0
          %1730 = vmatpush1.bf16.msra.mxu0 0
          %1731 = vmatprep.subr.bf16.mxu0 0
          %1732 = vmatpush1.bf16.msra.mxu0 0
          %1733 = vmatprep.subr.bf16.mxu0 0
          %1734 = vmatpush1.bf16.msra.mxu0 0
          %1735 = vmatprep.subr.bf16.mxu0 0
          %1736 = vmatpush1.bf16.msra.mxu0 0
          %1737 = vmatprep.subr.bf16.mxu0 0
          %1738 = vmatpush1.bf16.msra.mxu0 0
          %1739 = vmatprep.subr.bf16.mxu0 0
          %1740 = vmatpush1.bf16.msra.mxu0 0
          %1741 = vmatprep.subr.bf16.mxu0 0
          %1742 = vmatpush1.bf16.msra.mxu0 0
          %1743 = vmatprep.mubr.bf16.mxu0 0
          %1744 = vmatmul.mubr.bf16.gmra.mrb[0].mxu0 %v566
          %v1745 = vpop.f32.mrb[0].mxu0
          %v1746 = vadd.f32 0.0, %v1745
          %v1747 = vpop.f32.mrb[0].mxu0
          %v1748 = vadd.f32 0.0, %v1747
          %v1749 = vpop.f32.mrb[0].mxu0
          %v1750 = vpop.f32.mrb[0].mxu0
          %1751 = vdwg.mxu0
          %v1760 = vunpack.c.l.b16 %v508
          %v1761 = vunpack.c.h.b16 %v508
          %v1762 = vunpack.c.l.b16 %v509
          %v1763 = vunpack.c.h.b16 %v509
          %v1764 = vunpack.c.l.b16 %v510
          %v1765 = vunpack.c.h.b16 %v510
          %v1766 = vunpack.c.l.b16 %v511
          %v1767 = vunpack.c.h.b16 %v511
          %v1768 = vunpack.c.l.b16 %v512
          %v1769 = vunpack.c.h.b16 %v512
          %v1770 = vunpack.c.l.b16 %v513
          %v1771 = vunpack.c.h.b16 %v513
          %v1772 = vunpack.c.l.b16 %v514
          %v1773 = vunpack.c.h.b16 %v514
          %v1774 = vunpack.c.l.b16 %v515
          %v1775 = vunpack.c.h.b16 %v515
          %v1776 = vpack.c.b16 %v1768, %v1760
          %v1777 = vpack.c.b16 %v1769, %v1761
          %v1778 = vpack.c.b16 %v1770, %v1762
          %v1779 = vpack.c.b16 %v1771, %v1763
          %v1780 = vpack.c.b16 %v1772, %v1764
          %v1781 = vpack.c.b16 %v1773, %v1765
          %v1782 = vpack.c.b16 %v1774, %v1766
          %v1783 = vpack.c.b16 %v1775, %v1767
          %1792 = vmatprep.subr.bf16.mxu0 %v1777
          %1793 = vmatpush1.bf16.msra.mxu0 %v1776
          %1794 = vmatprep.subr.bf16.mxu0 0
          %1795 = vmatpush1.bf16.msra.mxu0 0
          %1796 = vmatprep.subr.bf16.mxu0 0
          %1797 = vmatpush1.bf16.msra.mxu0 0
          %1798 = vmatprep.subr.bf16.mxu0 0
          %1799 = vmatpush1.bf16.msra.mxu0 0
          %1800 = vmatprep.subr.bf16.mxu0 0
          %1801 = vmatpush1.bf16.msra.mxu0 0
          %1802 = vmatprep.subr.bf16.mxu0 0
          %1803 = vmatpush1.bf16.msra.mxu0 0
          %1804 = vmatprep.subr.bf16.mxu0 0
          %1805 = vmatpush1.bf16.msra.mxu0 0
          %1806 = vmatprep.subr.bf16.mxu0 0
          %1807 = vmatpush1.bf16.msra.mxu0 0
          %1808 = vmatprep.subr.bf16.mxu0 0
          %1809 = vmatpush1.bf16.msra.mxu0 0
          %1810 = vmatprep.subr.bf16.mxu0 0
          %1811 = vmatpush1.bf16.msra.mxu0 0
          %1812 = vmatprep.subr.bf16.mxu0 0
          %1813 = vmatpush1.bf16.msra.mxu0 0
          %1814 = vmatprep.subr.bf16.mxu0 0
          %1815 = vmatpush1.bf16.msra.mxu0 0
          %1816 = vmatprep.subr.bf16.mxu0 0
          %1817 = vmatpush1.bf16.msra.mxu0 0
          %1818 = vmatprep.subr.bf16.mxu0 0
          %1819 = vmatpush1.bf16.msra.mxu0 0
          %1820 = vmatprep.subr.bf16.mxu0 0
          %1821 = vmatpush1.bf16.msra.mxu0 0
          %1822 = vmatprep.subr.bf16.mxu0 0
          %1823 = vmatpush1.bf16.msra.mxu0 0
          %1824 = vmatprep.mubr.bf16.mxu0 0
          %1825 = vmatmul.mubr.bf16.gmra.mrb[0].mxu0 %v566
          %v1826 = vpop.f32.mrb[0].mxu0
          %v1827 = vadd.f32 0.0, %v1826
          %v1828 = vpop.f32.mrb[0].mxu0
          %v1829 = vadd.f32 0.0, %v1828
          %v1830 = vpop.f32.mrb[0].mxu0
          %v1831 = vpop.f32.mrb[0].mxu0
          %1832 = vdwg.mxu0
          %1833 = vmatprep.subr.bf16.mxu0 %v1779
          %1834 = vmatpush1.bf16.msra.mxu0 %v1778
          %1835 = vmatprep.subr.bf16.mxu0 0
          %1836 = vmatpush1.bf16.msra.mxu0 0
          %1837 = vmatprep.subr.bf16.mxu0 0
          %1838 = vmatpush1.bf16.msra.mxu0 0
          %1839 = vmatprep.subr.bf16.mxu0 0
          %1840 = vmatpush1.bf16.msra.mxu0 0
          %1841 = vmatprep.subr.bf16.mxu0 0
          %1842 = vmatpush1.bf16.msra.mxu0 0
          %1843 = vmatprep.subr.bf16.mxu0 0
          %1844 = vmatpush1.bf16.msra.mxu0 0
          %1845 = vmatprep.subr.bf16.mxu0 0
          %1846 = vmatpush1.bf16.msra.mxu0 0
          %1847 = vmatprep.subr.bf16.mxu0 0
          %1848 = vmatpush1.bf16.msra.mxu0 0
          %1849 = vmatprep.subr.bf16.mxu0 0
          %1850 = vmatpush1.bf16.msra.mxu0 0
          %1851 = vmatprep.subr.bf16.mxu0 0
          %1852 = vmatpush1.bf16.msra.mxu0 0
          %1853 = vmatprep.subr.bf16.mxu0 0
          %1854 = vmatpush1.bf16.msra.mxu0 0
          %1855 = vmatprep.subr.bf16.mxu0 0
          %1856 = vmatpush1.bf16.msra.mxu0 0
          %1857 = vmatprep.subr.bf16.mxu0 0
          %1858 = vmatpush1.bf16.msra.mxu0 0
          %1859 = vmatprep.subr.bf16.mxu0 0
          %1860 = vmatpush1.bf16.msra.mxu0 0
          %1861 = vmatprep.subr.bf16.mxu0 0
          %1862 = vmatpush1.bf16.msra.mxu0 0
          %1863 = vmatprep.subr.bf16.mxu0 0
          %1864 = vmatpush1.bf16.msra.mxu0 0
          %1865 = vmatprep.mubr.bf16.mxu0 0
          %1866 = vmatmul.mubr.bf16.gmra.mrb[0].mxu0 %v566
          %v1867 = vpop.f32.mrb[0].mxu0
          %v1868 = vadd.f32 0.0, %v1867
          %v1869 = vpop.f32.mrb[0].mxu0
          %v1870 = vadd.f32 0.0, %v1869
          %v1871 = vpop.f32.mrb[0].mxu0
          %v1872 = vpop.f32.mrb[0].mxu0
          %1873 = vdwg.mxu0
          %1874 = vmatprep.subr.bf16.mxu0 %v1781
          %1875 = vmatpush1.bf16.msra.mxu0 %v1780
          %1876 = vmatprep.subr.bf16.mxu0 0
          %1877 = vmatpush1.bf16.msra.mxu0 0
          %1878 = vmatprep.subr.bf16.mxu0 0
          %1879 = vmatpush1.bf16.msra.mxu0 0
          %1880 = vmatprep.subr.bf16.mxu0 0
          %1881 = vmatpush1.bf16.msra.mxu0 0
          %1882 = vmatprep.subr.bf16.mxu0 0
          %1883 = vmatpush1.bf16.msra.mxu0 0
          %1884 = vmatprep.subr.bf16.mxu0 0
          %1885 = vmatpush1.bf16.msra.mxu0 0
          %1886 = vmatprep.subr.bf16.mxu0 0
          %1887 = vmatpush1.bf16.msra.mxu0 0
          %1888 = vmatprep.subr.bf16.mxu0 0
          %1889 = vmatpush1.bf16.msra.mxu0 0
          %1890 = vmatprep.subr.bf16.mxu0 0
          %1891 = vmatpush1.bf16.msra.mxu0 0
          %1892 = vmatprep.subr.bf16.mxu0 0
          %1893 = vmatpush1.bf16.msra.mxu0 0
          %1894 = vmatprep.subr.bf16.mxu0 0
          %1895 = vmatpush1.bf16.msra.mxu0 0
          %1896 = vmatprep.subr.bf16.mxu0 0
          %1897 = vmatpush1.bf16.msra.mxu0 0
          %1898 = vmatprep.subr.bf16.mxu0 0
          %1899 = vmatpush1.bf16.msra.mxu0 0
          %1900 = vmatprep.subr.bf16.mxu0 0
          %1901 = vmatpush1.bf16.msra.mxu0 0
          %1902 = vmatprep.subr.bf16.mxu0 0
          %1903 = vmatpush1.bf16.msra.mxu0 0
          %1904 = vmatprep.subr.bf16.mxu0 0
          %1905 = vmatpush1.bf16.msra.mxu0 0
          %1906 = vmatprep.mubr.bf16.mxu0 0
          %1907 = vmatmul.mubr.bf16.gmra.mrb[0].mxu0 %v566
          %v1908 = vpop.f32.mrb[0].mxu0
          %v1909 = vadd.f32 0.0, %v1908
          %v1910 = vpop.f32.mrb[0].mxu0
          %v1911 = vadd.f32 0.0, %v1910
          %v1912 = vpop.f32.mrb[0].mxu0
          %v1913 = vpop.f32.mrb[0].mxu0
          %1914 = vdwg.mxu0
          %1915 = vmatprep.subr.bf16.mxu0 %v1783
          %1916 = vmatpush1.bf16.msra.mxu0 %v1782
          %1917 = vmatprep.subr.bf16.mxu0 0
          %1918 = vmatpush1.bf16.msra.mxu0 0
          %1919 = vmatprep.subr.bf16.mxu0 0
          %1920 = vmatpush1.bf16.msra.mxu0 0
          %1921 = vmatprep.subr.bf16.mxu0 0
          %1922 = vmatpush1.bf16.msra.mxu0 0
          %1923 = vmatprep.subr.bf16.mxu0 0
          %1924 = vmatpush1.bf16.msra.mxu0 0
          %1925 = vmatprep.subr.bf16.mxu0 0
          %1926 = vmatpush1.bf16.msra.mxu0 0
          %1927 = vmatprep.subr.bf16.mxu0 0
          %1928 = vmatpush1.bf16.msra.mxu0 0
          %1929 = vmatprep.subr.bf16.mxu0 0
          %1930 = vmatpush1.bf16.msra.mxu0 0
          %1931 = vmatprep.subr.bf16.mxu0 0
          %1932 = vmatpush1.bf16.msra.mxu0 0
          %1933 = vmatprep.subr.bf16.mxu0 0
          %1934 = vmatpush1.bf16.msra.mxu0 0
          %1935 = vmatprep.subr.bf16.mxu0 0
          %1936 = vmatpush1.bf16.msra.mxu0 0
          %1937 = vmatprep.subr.bf16.mxu0 0
          %1938 = vmatpush1.bf16.msra.mxu0 0
          %1939 = vmatprep.subr.bf16.mxu0 0
          %1940 = vmatpush1.bf16.msra.mxu0 0
          %1941 = vmatprep.subr.bf16.mxu0 0
          %1942 = vmatpush1.bf16.msra.mxu0 0
          %1943 = vmatprep.subr.bf16.mxu0 0
          %1944 = vmatpush1.bf16.msra.mxu0 0
          %1945 = vmatprep.subr.bf16.mxu0 0
          %1946 = vmatpush1.bf16.msra.mxu0 0
          %1947 = vmatprep.mubr.bf16.mxu0 0
          %1948 = vmatmul.mubr.bf16.gmra.mrb[0].mxu0 %v566
          %v1949 = vpop.f32.mrb[0].mxu0
          %v1950 = vadd.f32 0.0, %v1949
          %v1951 = vpop.f32.mrb[0].mxu0
          %v1952 = vadd.f32 0.0, %v1951
          %v1953 = vpop.f32.mrb[0].mxu0
          %v1954 = vpop.f32.mrb[0].mxu0
          %1955 = vdwg.mxu0
          %v1964 = vunpack.c.l.b16 %v516
          %v1965 = vunpack.c.h.b16 %v516
          %v1966 = vunpack.c.l.b16 %v517
          %v1967 = vunpack.c.h.b16 %v517
          %v1968 = vunpack.c.l.b16 %v518
          %v1969 = vunpack.c.h.b16 %v518
          %v1970 = vunpack.c.l.b16 %v519
          %v1971 = vunpack.c.h.b16 %v519
          %v1972 = vunpack.c.l.b16 %v520
          %v1973 = vunpack.c.h.b16 %v520
          %v1974 = vunpack.c.l.b16 %v521
          %v1975 = vunpack.c.h.b16 %v521
          %v1976 = vunpack.c.l.b16 %v522
          %v1977 = vunpack.c.h.b16 %v522
          %v1978 = vunpack.c.l.b16 %v523
          %v1979 = vunpack.c.h.b16 %v523
          %v1980 = vpack.c.b16 %v1972, %v1964
          %v1981 = vpack.c.b16 %v1973, %v1965
          %v1982 = vpack.c.b16 %v1974, %v1966
          %v1983 = vpack.c.b16 %v1975, %v1967
          %v1984 = vpack.c.b16 %v1976, %v1968
          %v1985 = vpack.c.b16 %v1977, %v1969
          %v1986 = vpack.c.b16 %v1978, %v1970
          %v1987 = vpack.c.b16 %v1979, %v1971
          %1996 = vmatprep.subr.bf16.mxu0 %v1981
          %1997 = vmatpush1.bf16.msra.mxu0 %v1980
          %1998 = vmatprep.subr.bf16.mxu0 0
          %1999 = vmatpush1.bf16.msra.mxu0 0
          %2000 = vmatprep.subr.bf16.mxu0 0
          %2001 = vmatpush1.bf16.msra.mxu0 0
          %2002 = vmatprep.subr.bf16.mxu0 0
          %2003 = vmatpush1.bf16.msra.mxu0 0
          %2004 = vmatprep.subr.bf16.mxu0 0
          %2005 = vmatpush1.bf16.msra.mxu0 0
          %2006 = vmatprep.subr.bf16.mxu0 0
          %2007 = vmatpush1.bf16.msra.mxu0 0
          %2008 = vmatprep.subr.bf16.mxu0 0
          %2009 = vmatpush1.bf16.msra.mxu0 0
          %2010 = vmatprep.subr.bf16.mxu0 0
          %2011 = vmatpush1.bf16.msra.mxu0 0
          %2012 = vmatprep.subr.bf16.mxu0 0
          %2013 = vmatpush1.bf16.msra.mxu0 0
          %2014 = vmatprep.subr.bf16.mxu0 0
          %2015 = vmatpush1.bf16.msra.mxu0 0
          %2016 = vmatprep.subr.bf16.mxu0 0
          %2017 = vmatpush1.bf16.msra.mxu0 0
          %2018 = vmatprep.subr.bf16.mxu0 0
          %2019 = vmatpush1.bf16.msra.mxu0 0
          %2020 = vmatprep.subr.bf16.mxu0 0
          %2021 = vmatpush1.bf16.msra.mxu0 0
          %2022 = vmatprep.subr.bf16.mxu0 0
          %2023 = vmatpush1.bf16.msra.mxu0 0
          %2024 = vmatprep.subr.bf16.mxu0 0
          %2025 = vmatpush1.bf16.msra.mxu0 0
          %2026 = vmatprep.subr.bf16.mxu0 0
          %2027 = vmatpush1.bf16.msra.mxu0 0
          %2028 = vmatprep.mubr.bf16.mxu0 0
          %2029 = vmatmul.mubr.bf16.gmra.mrb[0].mxu0 %v566
          %v2030 = vpop.f32.mrb[0].mxu0
          %v2031 = vadd.f32 0.0, %v2030
          %v2032 = vpop.f32.mrb[0].mxu0
          %v2033 = vadd.f32 0.0, %v2032
          %v2034 = vpop.f32.mrb[0].mxu0
          %v2035 = vpop.f32.mrb[0].mxu0
          %2036 = vdwg.mxu0
          %2037 = vmatprep.subr.bf16.mxu0 %v1983
          %2038 = vmatpush1.bf16.msra.mxu0 %v1982
          %2039 = vmatprep.subr.bf16.mxu0 0
          %2040 = vmatpush1.bf16.msra.mxu0 0
          %2041 = vmatprep.subr.bf16.mxu0 0
          %2042 = vmatpush1.bf16.msra.mxu0 0
          %2043 = vmatprep.subr.bf16.mxu0 0
          %2044 = vmatpush1.bf16.msra.mxu0 0
          %2045 = vmatprep.subr.bf16.mxu0 0
          %2046 = vmatpush1.bf16.msra.mxu0 0
          %2047 = vmatprep.subr.bf16.mxu0 0
          %2048 = vmatpush1.bf16.msra.mxu0 0
          %2049 = vmatprep.subr.bf16.mxu0 0
          %2050 = vmatpush1.bf16.msra.mxu0 0
          %2051 = vmatprep.subr.bf16.mxu0 0
          %2052 = vmatpush1.bf16.msra.mxu0 0
          %2053 = vmatprep.subr.bf16.mxu0 0
          %2054 = vmatpush1.bf16.msra.mxu0 0
          %2055 = vmatprep.subr.bf16.mxu0 0
          %2056 = vmatpush1.bf16.msra.mxu0 0
          %2057 = vmatprep.subr.bf16.mxu0 0
          %2058 = vmatpush1.bf16.msra.mxu0 0
          %2059 = vmatprep.subr.bf16.mxu0 0
          %2060 = vmatpush1.bf16.msra.mxu0 0
          %2061 = vmatprep.subr.bf16.mxu0 0
          %2062 = vmatpush1.bf16.msra.mxu0 0
          %2063 = vmatprep.subr.bf16.mxu0 0
          %2064 = vmatpush1.bf16.msra.mxu0 0
          %2065 = vmatprep.subr.bf16.mxu0 0
          %2066 = vmatpush1.bf16.msra.mxu0 0
          %2067 = vmatprep.subr.bf16.mxu0 0
          %2068 = vmatpush1.bf16.msra.mxu0 0
          %2069 = vmatprep.mubr.bf16.mxu0 0
          %2070 = vmatmul.mubr.bf16.gmra.mrb[0].mxu0 %v566
          %v2071 = vpop.f32.mrb[0].mxu0
          %v2072 = vadd.f32 0.0, %v2071
          %v2073 = vpop.f32.mrb[0].mxu0
          %v2074 = vadd.f32 0.0, %v2073
          %v2075 = vpop.f32.mrb[0].mxu0
          %v2076 = vpop.f32.mrb[0].mxu0
          %2077 = vdwg.mxu0
          %2078 = vmatprep.subr.bf16.mxu0 %v1985
          %2079 = vmatpush1.bf16.msra.mxu0 %v1984
          %2080 = vmatprep.subr.bf16.mxu0 0
          %2081 = vmatpush1.bf16.msra.mxu0 0
          %2082 = vmatprep.subr.bf16.mxu0 0
          %2083 = vmatpush1.bf16.msra.mxu0 0
          %2084 = vmatprep.subr.bf16.mxu0 0
          %2085 = vmatpush1.bf16.msra.mxu0 0
          %2086 = vmatprep.subr.bf16.mxu0 0
          %2087 = vmatpush1.bf16.msra.mxu0 0
          %2088 = vmatprep.subr.bf16.mxu0 0
          %2089 = vmatpush1.bf16.msra.mxu0 0
          %2090 = vmatprep.subr.bf16.mxu0 0
          %2091 = vmatpush1.bf16.msra.mxu0 0
          %2092 = vmatprep.subr.bf16.mxu0 0
          %2093 = vmatpush1.bf16.msra.mxu0 0
          %2094 = vmatprep.subr.bf16.mxu0 0
          %2095 = vmatpush1.bf16.msra.mxu0 0
          %2096 = vmatprep.subr.bf16.mxu0 0
          %2097 = vmatpush1.bf16.msra.mxu0 0
          %2098 = vmatprep.subr.bf16.mxu0 0
          %2099 = vmatpush1.bf16.msra.mxu0 0
          %2100 = vmatprep.subr.bf16.mxu0 0
          %2101 = vmatpush1.bf16.msra.mxu0 0
          %2102 = vmatprep.subr.bf16.mxu0 0
          %2103 = vmatpush1.bf16.msra.mxu0 0
          %2104 = vmatprep.subr.bf16.mxu0 0
          %2105 = vmatpush1.bf16.msra.mxu0 0
          %2106 = vmatprep.subr.bf16.mxu0 0
          %2107 = vmatpush1.bf16.msra.mxu0 0
          %2108 = vmatprep.subr.bf16.mxu0 0
          %2109 = vmatpush1.bf16.msra.mxu0 0
          %2110 = vmatprep.mubr.bf16.mxu0 0
          %2111 = vmatmul.mubr.bf16.gmra.mrb[0].mxu0 %v566
          %v2112 = vpop.f32.mrb[0].mxu0
          %v2113 = vadd.f32 0.0, %v2112
          %v2114 = vpop.f32.mrb[0].mxu0
          %v2115 = vadd.f32 0.0, %v2114
          %v2116 = vpop.f32.mrb[0].mxu0
          %v2117 = vpop.f32.mrb[0].mxu0
          %2118 = vdwg.mxu0
          %2119 = vmatprep.subr.bf16.mxu0 %v1987
          %2120 = vmatpush1.bf16.msra.mxu0 %v1986
          %2121 = vmatprep.subr.bf16.mxu0 0
          %2122 = vmatpush1.bf16.msra.mxu0 0
          %2123 = vmatprep.subr.bf16.mxu0 0
          %2124 = vmatpush1.bf16.msra.mxu0 0
          %2125 = vmatprep.subr.bf16.mxu0 0
          %2126 = vmatpush1.bf16.msra.mxu0 0
          %2127 = vmatprep.subr.bf16.mxu0 0
          %2128 = vmatpush1.bf16.msra.mxu0 0
          %2129 = vmatprep.subr.bf16.mxu0 0
          %2130 = vmatpush1.bf16.msra.mxu0 0
          %2131 = vmatprep.subr.bf16.mxu0 0
          %2132 = vmatpush1.bf16.msra.mxu0 0
          %2133 = vmatprep.subr.bf16.mxu0 0
          %2134 = vmatpush1.bf16.msra.mxu0 0
          %2135 = vmatprep.subr.bf16.mxu0 0
          %2136 = vmatpush1.bf16.msra.mxu0 0
          %2137 = vmatprep.subr.bf16.mxu0 0
          %2138 = vmatpush1.bf16.msra.mxu0 0
          %2139 = vmatprep.subr.bf16.mxu0 0
          %2140 = vmatpush1.bf16.msra.mxu0 0
          %2141 = vmatprep.subr.bf16.mxu0 0
          %2142 = vmatpush1.bf16.msra.mxu0 0
          %2143 = vmatprep.subr.bf16.mxu0 0
          %2144 = vmatpush1.bf16.msra.mxu0 0
          %2145 = vmatprep.subr.bf16.mxu0 0
          %2146 = vmatpush1.bf16.msra.mxu0 0
          %2147 = vmatprep.subr.bf16.mxu0 0
          %2148 = vmatpush1.bf16.msra.mxu0 0
          %2149 = vmatprep.subr.bf16.mxu0 0
          %2150 = vmatpush1.bf16.msra.mxu0 0
          %2151 = vmatprep.mubr.bf16.mxu0 0
          %2152 = vmatmul.mubr.bf16.gmra.mrb[0].mxu0 %v566
          %v2153 = vpop.f32.mrb[0].mxu0
          %v2154 = vadd.f32 0.0, %v2153
          %v2155 = vpop.f32.mrb[0].mxu0
          %v2156 = vadd.f32 0.0, %v2155
          %v2157 = vpop.f32.mrb[0].mxu0
          %v2158 = vpop.f32.mrb[0].mxu0
          %2159 = vdwg.mxu0
          %v2224 = vcombine.low %v603, %v605
          %v2225 = vcombine.low %v644, %v646
          %v2226 = vcombine.low %v685, %v687
          %v2227 = vcombine.low %v726, %v728
          %v2229 = vunpack.c.l.s4 1966171168
          %v2230 = vunpack.c.0.s8 %v2229
          %v2231 = vlaneseq
          %v2232 = vshrl.u32 %v2231, 7
          %v2233 = vsub.s32 %v2230, %v2232
          %v2234 = vrot.slane %v2224, %v2233
          %v2236 = vunpack.c.l.s4 1966171168
          %v2237 = vunpack.c.0.s8 %v2236
          %v2238 = vlaneseq
          %v2239 = vshrl.u32 %v2238, 7
          %v2240 = vsub.s32 %v2237, %v2239
          %v2241 = vrot.slane %v2225, %v2240
          %v2243 = vunpack.c.l.s4 1966171168
          %v2244 = vunpack.c.0.s8 %v2243
          %v2245 = vlaneseq
          %v2246 = vshrl.u32 %v2245, 7
          %v2247 = vsub.s32 %v2244, %v2246
          %v2248 = vrot.slane %v2226, %v2247
          %v2250 = vunpack.c.l.s4 1966171168
          %v2251 = vunpack.c.0.s8 %v2250
          %v2252 = vlaneseq
          %v2253 = vshrl.u32 %v2252, 7
          %v2254 = vsub.s32 %v2251, %v2253
          %v2255 = vrot.slane %v2227, %v2254
          %v2256 = vcombine.low %v2234, %v2241
          %v2257 = vcombine.low %v2248, %v2255
          %v2259 = vunpack.c.l.s4 1966171168
          %v2260 = vunpack.c.0.s8 %v2259
          %v2261 = vlaneseq
          %v2262 = vshrl.u32 %v2261, 7
          %v2263 = vsub.s32 %v2260, %v2262
          %v2264 = vrot.slane %v2256, %v2263
          %v2266 = vunpack.c.l.s4 1966171168
          %v2267 = vunpack.c.0.s8 %v2266
          %v2268 = vlaneseq
          %v2269 = vshrl.u32 %v2268, 7
          %v2270 = vsub.s32 %v2267, %v2269
          %v2271 = vrot.slane %v2257, %v2270
          %v2272 = vcombine.low %v2264, %v2271
          %v2273 = vcombine.low %v807, %v809
          %v2274 = vcombine.low %v848, %v850
          %v2275 = vcombine.low %v889, %v891
          %v2276 = vcombine.low %v930, %v932
          %v2278 = vunpack.c.l.s4 1966171168
          %v2279 = vunpack.c.0.s8 %v2278
          %v2280 = vlaneseq
          %v2281 = vshrl.u32 %v2280, 7
          %v2282 = vsub.s32 %v2279, %v2281
          %v2283 = vrot.slane %v2273, %v2282
          %v2285 = vunpack.c.l.s4 1966171168
          %v2286 = vunpack.c.0.s8 %v2285
          %v2287 = vlaneseq
          %v2288 = vshrl.u32 %v2287, 7
          %v2289 = vsub.s32 %v2286, %v2288
          %v2290 = vrot.slane %v2274, %v2289
          %v2292 = vunpack.c.l.s4 1966171168
          %v2293 = vunpack.c.0.s8 %v2292
          %v2294 = vlaneseq
          %v2295 = vshrl.u32 %v2294, 7
          %v2296 = vsub.s32 %v2293, %v2295
          %v2297 = vrot.slane %v2275, %v2296
          %v2299 = vunpack.c.l.s4 1966171168
          %v2300 = vunpack.c.0.s8 %v2299
          %v2301 = vlaneseq
          %v2302 = vshrl.u32 %v2301, 7
          %v2303 = vsub.s32 %v2300, %v2302
          %v2304 = vrot.slane %v2276, %v2303
          %v2305 = vcombine.low %v2283, %v2290
          %v2306 = vcombine.low %v2297, %v2304
          %v2308 = vunpack.c.l.s4 1966171168
          %v2309 = vunpack.c.0.s8 %v2308
          %v2310 = vlaneseq
          %v2311 = vshrl.u32 %v2310, 7
          %v2312 = vsub.s32 %v2309, %v2311
          %v2313 = vrot.slane %v2305, %v2312
          %v2315 = vunpack.c.l.s4 1966171168
          %v2316 = vunpack.c.0.s8 %v2315
          %v2317 = vlaneseq
          %v2318 = vshrl.u32 %v2317, 7
          %v2319 = vsub.s32 %v2316, %v2318
          %v2320 = vrot.slane %v2306, %v2319
          %v2321 = vcombine.low %v2313, %v2320
          %v2322 = vcombine.low %v1011, %v1013
          %v2323 = vcombine.low %v1052, %v1054
          %v2324 = vcombine.low %v1093, %v1095
          %v2325 = vcombine.low %v1134, %v1136
          %v2327 = vunpack.c.l.s4 1966171168
          %v2328 = vunpack.c.0.s8 %v2327
          %v2329 = vlaneseq
          %v2330 = vshrl.u32 %v2329, 7
          %v2331 = vsub.s32 %v2328, %v2330
          %v2332 = vrot.slane %v2322, %v2331
          %v2334 = vunpack.c.l.s4 1966171168
          %v2335 = vunpack.c.0.s8 %v2334
          %v2336 = vlaneseq
          %v2337 = vshrl.u32 %v2336, 7
          %v2338 = vsub.s32 %v2335, %v2337
          %v2339 = vrot.slane %v2323, %v2338
          %v2341 = vunpack.c.l.s4 1966171168
          %v2342 = vunpack.c.0.s8 %v2341
          %v2343 = vlaneseq
          %v2344 = vshrl.u32 %v2343, 7
          %v2345 = vsub.s32 %v2342, %v2344
          %v2346 = vrot.slane %v2324, %v2345
          %v2348 = vunpack.c.l.s4 1966171168
          %v2349 = vunpack.c.0.s8 %v2348
          %v2350 = vlaneseq
          %v2351 = vshrl.u32 %v2350, 7
          %v2352 = vsub.s32 %v2349, %v2351
          %v2353 = vrot.slane %v2325, %v2352
          %v2354 = vcombine.low %v2332, %v2339
          %v2355 = vcombine.low %v2346, %v2353
          %v2357 = vunpack.c.l.s4 1966171168
          %v2358 = vunpack.c.0.s8 %v2357
          %v2359 = vlaneseq
          %v2360 = vshrl.u32 %v2359, 7
          %v2361 = vsub.s32 %v2358, %v2360
          %v2362 = vrot.slane %v2354, %v2361
          %v2364 = vunpack.c.l.s4 1966171168
          %v2365 = vunpack.c.0.s8 %v2364
          %v2366 = vlaneseq
          %v2367 = vshrl.u32 %v2366, 7
          %v2368 = vsub.s32 %v2365, %v2367
          %v2369 = vrot.slane %v2355, %v2368
          %v2370 = vcombine.low %v2362, %v2369
          %v2371 = vcombine.low %v1215, %v1217
          %v2372 = vcombine.low %v1256, %v1258
          %v2373 = vcombine.low %v1297, %v1299
          %v2374 = vcombine.low %v1338, %v1340
          %v2376 = vunpack.c.l.s4 1966171168
          %v2377 = vunpack.c.0.s8 %v2376
          %v2378 = vlaneseq
          %v2379 = vshrl.u32 %v2378, 7
          %v2380 = vsub.s32 %v2377, %v2379
          %v2381 = vrot.slane %v2371, %v2380
          %v2383 = vunpack.c.l.s4 1966171168
          %v2384 = vunpack.c.0.s8 %v2383
          %v2385 = vlaneseq
          %v2386 = vshrl.u32 %v2385, 7
          %v2387 = vsub.s32 %v2384, %v2386
          %v2388 = vrot.slane %v2372, %v2387
          %v2390 = vunpack.c.l.s4 1966171168
          %v2391 = vunpack.c.0.s8 %v2390
          %v2392 = vlaneseq
          %v2393 = vshrl.u32 %v2392, 7
          %v2394 = vsub.s32 %v2391, %v2393
          %v2395 = vrot.slane %v2373, %v2394
          %v2397 = vunpack.c.l.s4 1966171168
          %v2398 = vunpack.c.0.s8 %v2397
          %v2399 = vlaneseq
          %v2400 = vshrl.u32 %v2399, 7
          %v2401 = vsub.s32 %v2398, %v2400
          %v2402 = vrot.slane %v2374, %v2401
          %v2403 = vcombine.low %v2381, %v2388
          %v2404 = vcombine.low %v2395, %v2402
          %v2406 = vunpack.c.l.s4 1966171168
          %v2407 = vunpack.c.0.s8 %v2406
          %v2408 = vlaneseq
          %v2409 = vshrl.u32 %v2408, 7
          %v2410 = vsub.s32 %v2407, %v2409
          %v2411 = vrot.slane %v2403, %v2410
          %v2413 = vunpack.c.l.s4 1966171168
          %v2414 = vunpack.c.0.s8 %v2413
          %v2415 = vlaneseq
          %v2416 = vshrl.u32 %v2415, 7
          %v2417 = vsub.s32 %v2414, %v2416
          %v2418 = vrot.slane %v2404, %v2417
          %v2419 = vcombine.low %v2411, %v2418
          %v2420 = vcombine.low %v1419, %v1421
          %v2421 = vcombine.low %v1460, %v1462
          %v2422 = vcombine.low %v1501, %v1503
          %v2423 = vcombine.low %v1542, %v1544
          %v2425 = vunpack.c.l.s4 1966171168
          %v2426 = vunpack.c.0.s8 %v2425
          %v2427 = vlaneseq
          %v2428 = vshrl.u32 %v2427, 7
          %v2429 = vsub.s32 %v2426, %v2428
          %v2430 = vrot.slane %v2420, %v2429
          %v2432 = vunpack.c.l.s4 1966171168
          %v2433 = vunpack.c.0.s8 %v2432
          %v2434 = vlaneseq
          %v2435 = vshrl.u32 %v2434, 7
          %v2436 = vsub.s32 %v2433, %v2435
          %v2437 = vrot.slane %v2421, %v2436
          %v2439 = vunpack.c.l.s4 1966171168
          %v2440 = vunpack.c.0.s8 %v2439
          %v2441 = vlaneseq
          %v2442 = vshrl.u32 %v2441, 7
          %v2443 = vsub.s32 %v2440, %v2442
          %v2444 = vrot.slane %v2422, %v2443
          %v2446 = vunpack.c.l.s4 1966171168
          %v2447 = vunpack.c.0.s8 %v2446
          %v2448 = vlaneseq
          %v2449 = vshrl.u32 %v2448, 7
          %v2450 = vsub.s32 %v2447, %v2449
          %v2451 = vrot.slane %v2423, %v2450
          %v2452 = vcombine.low %v2430, %v2437
          %v2453 = vcombine.low %v2444, %v2451
          %v2455 = vunpack.c.l.s4 1966171168
          %v2456 = vunpack.c.0.s8 %v2455
          %v2457 = vlaneseq
          %v2458 = vshrl.u32 %v2457, 7
          %v2459 = vsub.s32 %v2456, %v2458
          %v2460 = vrot.slane %v2452, %v2459
          %v2462 = vunpack.c.l.s4 1966171168
          %v2463 = vunpack.c.0.s8 %v2462
          %v2464 = vlaneseq
          %v2465 = vshrl.u32 %v2464, 7
          %v2466 = vsub.s32 %v2463, %v2465
          %v2467 = vrot.slane %v2453, %v2466
          %v2468 = vcombine.low %v2460, %v2467
          %v2469 = vcombine.low %v1623, %v1625
          %v2470 = vcombine.low %v1664, %v1666
          %v2471 = vcombine.low %v1705, %v1707
          %v2472 = vcombine.low %v1746, %v1748
          %v2474 = vunpack.c.l.s4 1966171168
          %v2475 = vunpack.c.0.s8 %v2474
          %v2476 = vlaneseq
          %v2477 = vshrl.u32 %v2476, 7
          %v2478 = vsub.s32 %v2475, %v2477
          %v2479 = vrot.slane %v2469, %v2478
          %v2481 = vunpack.c.l.s4 1966171168
          %v2482 = vunpack.c.0.s8 %v2481
          %v2483 = vlaneseq
          %v2484 = vshrl.u32 %v2483, 7
          %v2485 = vsub.s32 %v2482, %v2484
          %v2486 = vrot.slane %v2470, %v2485
          %v2488 = vunpack.c.l.s4 1966171168
          %v2489 = vunpack.c.0.s8 %v2488
          %v2490 = vlaneseq
          %v2491 = vshrl.u32 %v2490, 7
          %v2492 = vsub.s32 %v2489, %v2491
          %v2493 = vrot.slane %v2471, %v2492
          %v2495 = vunpack.c.l.s4 1966171168
          %v2496 = vunpack.c.0.s8 %v2495
          %v2497 = vlaneseq
          %v2498 = vshrl.u32 %v2497, 7
          %v2499 = vsub.s32 %v2496, %v2498
          %v2500 = vrot.slane %v2472, %v2499
          %v2501 = vcombine.low %v2479, %v2486
          %v2502 = vcombine.low %v2493, %v2500
          %v2504 = vunpack.c.l.s4 1966171168
          %v2505 = vunpack.c.0.s8 %v2504
          %v2506 = vlaneseq
          %v2507 = vshrl.u32 %v2506, 7
          %v2508 = vsub.s32 %v2505, %v2507
          %v2509 = vrot.slane %v2501, %v2508
          %v2511 = vunpack.c.l.s4 1966171168
          %v2512 = vunpack.c.0.s8 %v2511
          %v2513 = vlaneseq
          %v2514 = vshrl.u32 %v2513, 7
          %v2515 = vsub.s32 %v2512, %v2514
          %v2516 = vrot.slane %v2502, %v2515
          %v2517 = vcombine.low %v2509, %v2516
          %v2518 = vcombine.low %v1827, %v1829
          %v2519 = vcombine.low %v1868, %v1870
          %v2520 = vcombine.low %v1909, %v1911
          %v2521 = vcombine.low %v1950, %v1952
          %v2523 = vunpack.c.l.s4 1966171168
          %v2524 = vunpack.c.0.s8 %v2523
          %v2525 = vlaneseq
          %v2526 = vshrl.u32 %v2525, 7
          %v2527 = vsub.s32 %v2524, %v2526
          %v2528 = vrot.slane %v2518, %v2527
          %v2530 = vunpack.c.l.s4 1966171168
          %v2531 = vunpack.c.0.s8 %v2530
          %v2532 = vlaneseq
          %v2533 = vshrl.u32 %v2532, 7
          %v2534 = vsub.s32 %v2531, %v2533
          %v2535 = vrot.slane %v2519, %v2534
          %v2537 = vunpack.c.l.s4 1966171168
          %v2538 = vunpack.c.0.s8 %v2537
          %v2539 = vlaneseq
          %v2540 = vshrl.u32 %v2539, 7
          %v2541 = vsub.s32 %v2538, %v2540
          %v2542 = vrot.slane %v2520, %v2541
          %v2544 = vunpack.c.l.s4 1966171168
          %v2545 = vunpack.c.0.s8 %v2544
          %v2546 = vlaneseq
          %v2547 = vshrl.u32 %v2546, 7
          %v2548 = vsub.s32 %v2545, %v2547
          %v2549 = vrot.slane %v2521, %v2548
          %v2550 = vcombine.low %v2528, %v2535
          %v2551 = vcombine.low %v2542, %v2549
          %v2553 = vunpack.c.l.s4 1966171168
          %v2554 = vunpack.c.0.s8 %v2553
          %v2555 = vlaneseq
          %v2556 = vshrl.u32 %v2555, 7
          %v2557 = vsub.s32 %v2554, %v2556
          %v2558 = vrot.slane %v2550, %v2557
          %v2560 = vunpack.c.l.s4 1966171168
          %v2561 = vunpack.c.0.s8 %v2560
          %v2562 = vlaneseq
          %v2563 = vshrl.u32 %v2562, 7
          %v2564 = vsub.s32 %v2561, %v2563
          %v2565 = vrot.slane %v2551, %v2564
          %v2566 = vcombine.low %v2558, %v2565
          %v2567 = vcombine.low %v2031, %v2033
          %v2568 = vcombine.low %v2072, %v2074
          %v2569 = vcombine.low %v2113, %v2115
          %v2570 = vcombine.low %v2154, %v2156
          %v2572 = vunpack.c.l.s4 1966171168
          %v2573 = vunpack.c.0.s8 %v2572
          %v2574 = vlaneseq
          %v2575 = vshrl.u32 %v2574, 7
          %v2576 = vsub.s32 %v2573, %v2575
          %v2577 = vrot.slane %v2567, %v2576
          %v2579 = vunpack.c.l.s4 1966171168
          %v2580 = vunpack.c.0.s8 %v2579
          %v2581 = vlaneseq
          %v2582 = vshrl.u32 %v2581, 7
          %v2583 = vsub.s32 %v2580, %v2582
          %v2584 = vrot.slane %v2568, %v2583
          %v2586 = vunpack.c.l.s4 1966171168
          %v2587 = vunpack.c.0.s8 %v2586
          %v2588 = vlaneseq
          %v2589 = vshrl.u32 %v2588, 7
          %v2590 = vsub.s32 %v2587, %v2589
          %v2591 = vrot.slane %v2569, %v2590
          %v2593 = vunpack.c.l.s4 1966171168
          %v2594 = vunpack.c.0.s8 %v2593
          %v2595 = vlaneseq
          %v2596 = vshrl.u32 %v2595, 7
          %v2597 = vsub.s32 %v2594, %v2596
          %v2598 = vrot.slane %v2570, %v2597
          %v2599 = vcombine.low %v2577, %v2584
          %v2600 = vcombine.low %v2591, %v2598
          %v2602 = vunpack.c.l.s4 1966171168
          %v2603 = vunpack.c.0.s8 %v2602
          %v2604 = vlaneseq
          %v2605 = vshrl.u32 %v2604, 7
          %v2606 = vsub.s32 %v2603, %v2605
          %v2607 = vrot.slane %v2599, %v2606
          %v2609 = vunpack.c.l.s4 1966171168
          %v2610 = vunpack.c.0.s8 %v2609
          %v2611 = vlaneseq
          %v2612 = vshrl.u32 %v2611, 7
          %v2613 = vsub.s32 %v2610, %v2612
          %v2614 = vrot.slane %v2600, %v2613
          %v2615 = vcombine.low %v2607, %v2614
          %v2624 = vadd.f32 %v452, %v2272
          %v2625 = vadd.f32 %v453, %v2321
          %v2626 = vadd.f32 %v454, %v2370
          %v2627 = vadd.f32 %v455, %v2419
          %v2628 = vadd.f32 %v456, %v2468
          %v2629 = vadd.f32 %v457, %v2517
          %v2630 = vadd.f32 %v458, %v2566
          %v2631 = vadd.f32 %v459, %v2615
          %2632 = vst [vmem:[#allocation2] sm:$0xff] %v2624
          %2633 = vst [vmem:[#allocation2 + $0x8] sm:$0xff] %v2625
          %2634 = vst [vmem:[#allocation2 + $0x10] sm:$0xff] %v2626
          %2635 = vst [vmem:[#allocation2 + $0x18] sm:$0xff] %v2627
          %2636 = vst [vmem:[#allocation2 + $0x20] sm:$0xff] %v2628
          %2637 = vst [vmem:[#allocation2 + $0x28] sm:$0xff] %v2629
          %2638 = vst [vmem:[#allocation2 + $0x30] sm:$0xff] %v2630
          %2639 = vst [vmem:[#allocation2 + $0x38] sm:$0xff] %v2631
        $region84: #{tpu_custom_call.1} parent=47 // pred_fallthru
          _
        %p2640 = scmp.lt.s32.totalorder %s447, 16
        // Predicated region
        $region85: #{tpu_custom_call.1} parent=47 // pred_check
          %p2641 = pneg %p2640
        $region86: #{tpu_custom_call.1} parent=47 // pred_check_branch
          %2643 = sbr.rel (%p2641) target = $region88
        $region87: #{tpu_custom_call.1} parent=47 // pred_region
          %v2644 = vld [vmem:[%s374] sm:$0xff]
          %v2645 = vld [vmem:[%s374 + $0x8] sm:$0xff]
          %v2646 = vld [vmem:[%s374 + $0x10] sm:$0xff]
          %v2647 = vld [vmem:[%s374 + $0x18] sm:$0xff]
          %v2648 = vld [vmem:[%s374 + $0x20] sm:$0xff]
          %v2649 = vld [vmem:[%s374 + $0x28] sm:$0xff]
          %v2650 = vld [vmem:[%s374 + $0x30] sm:$0xff]
          %v2651 = vld [vmem:[%s374 + $0x38] sm:$0xff]
          %v2652 = vld [vmem:[%s374 + $0x40] sm:$0xff]
          %v2653 = vld [vmem:[%s374 + $0x48] sm:$0xff]
          %v2654 = vld [vmem:[%s374 + $0x50] sm:$0xff]
          %v2655 = vld [vmem:[%s374 + $0x58] sm:$0xff]
          %v2656 = vld [vmem:[%s374 + $0x60] sm:$0xff]
          %v2657 = vld [vmem:[%s374 + $0x68] sm:$0xff]
          %v2658 = vld [vmem:[%s374 + $0x70] sm:$0xff]
          %v2659 = vld [vmem:[%s374 + $0x78] sm:$0xff]
          %v2660 = vld [vmem:[%s374 + $0x80] sm:$0xff]
          %v2661 = vld [vmem:[%s374 + $0x88] sm:$0xff]
          %v2662 = vld [vmem:[%s374 + $0x90] sm:$0xff]
          %v2663 = vld [vmem:[%s374 + $0x98] sm:$0xff]
          %v2664 = vld [vmem:[%s374 + $0xa0] sm:$0xff]
          %v2665 = vld [vmem:[%s374 + $0xa8] sm:$0xff]
          %v2666 = vld [vmem:[%s374 + $0xb0] sm:$0xff]
          %v2667 = vld [vmem:[%s374 + $0xb8] sm:$0xff]
          %v2668 = vld [vmem:[%s374 + $0xc0] sm:$0xff]
          %v2669 = vld [vmem:[%s374 + $0xc8] sm:$0xff]
          %v2670 = vld [vmem:[%s374 + $0xd0] sm:$0xff]
          %v2671 = vld [vmem:[%s374 + $0xd8] sm:$0xff]
          %v2672 = vld [vmem:[%s374 + $0xe0] sm:$0xff]
          %v2673 = vld [vmem:[%s374 + $0xe8] sm:$0xff]
          %v2674 = vld [vmem:[%s374 + $0xf0] sm:$0xff]
          %v2675 = vld [vmem:[%s374 + $0xf8] sm:$0xff]
          %v2676 = vld [vmem:[%s374 + $0x100] sm:$0xff]
          %v2677 = vld [vmem:[%s374 + $0x108] sm:$0xff]
          %v2678 = vld [vmem:[%s374 + $0x110] sm:$0xff]
          %v2679 = vld [vmem:[%s374 + $0x118] sm:$0xff]
          %v2680 = vld [vmem:[%s374 + $0x120] sm:$0xff]
          %v2681 = vld [vmem:[%s374 + $0x128] sm:$0xff]
          %v2682 = vld [vmem:[%s374 + $0x130] sm:$0xff]
          %v2683 = vld [vmem:[%s374 + $0x138] sm:$0xff]
          %v2684 = vld [vmem:[%s374 + $0x140] sm:$0xff]
          %v2685 = vld [vmem:[%s374 + $0x148] sm:$0xff]
          %v2686 = vld [vmem:[%s374 + $0x150] sm:$0xff]
          %v2687 = vld [vmem:[%s374 + $0x158] sm:$0xff]
          %v2688 = vld [vmem:[%s374 + $0x160] sm:$0xff]
          %v2689 = vld [vmem:[%s374 + $0x168] sm:$0xff]
          %v2690 = vld [vmem:[%s374 + $0x170] sm:$0xff]
          %v2691 = vld [vmem:[%s374 + $0x178] sm:$0xff]
          %v2692 = vld [vmem:[%s374 + $0x180] sm:$0xff]
          %v2693 = vld [vmem:[%s374 + $0x188] sm:$0xff]
          %v2694 = vld [vmem:[%s374 + $0x190] sm:$0xff]
          %v2695 = vld [vmem:[%s374 + $0x198] sm:$0xff]
          %v2696 = vld [vmem:[%s374 + $0x1a0] sm:$0xff]
          %v2697 = vld [vmem:[%s374 + $0x1a8] sm:$0xff]
          %v2698 = vld [vmem:[%s374 + $0x1b0] sm:$0xff]
          %v2699 = vld [vmem:[%s374 + $0x1b8] sm:$0xff]
          %v2700 = vld [vmem:[%s374 + $0x1c0] sm:$0xff]
          %v2701 = vld [vmem:[%s374 + $0x1c8] sm:$0xff]
          %v2702 = vld [vmem:[%s374 + $0x1d0] sm:$0xff]
          %v2703 = vld [vmem:[%s374 + $0x1d8] sm:$0xff]
          %v2704 = vld [vmem:[%s374 + $0x1e0] sm:$0xff]
          %v2705 = vld [vmem:[%s374 + $0x1e8] sm:$0xff]
          %v2706 = vld [vmem:[%s374 + $0x1f0] sm:$0xff]
          %v2707 = vld [vmem:[%s374 + $0x1f8] sm:$0xff]
          %v2708 = vlaneseq
          %v2709 = vshrl.u32 %v2708, 7
          %v2710 = vadd.s32 %v2709, 8
          %v2711 = vstv %s447
          %vm2712 = vcmp.lt.s32.totalorder %v2709, %v2711
          %vm2713 = vcmp.lt.s32.totalorder %v2710, %v2711
          %vm2714 = vmpackc.low %vm2712, %vm2712
          %vm2715 = vmpackc.low %vm2713, %vm2713
          %v2716 = vsel %vm2714, %v2644, 0
          %v2717 = vsel %vm2714, %v2645, 0
          %v2718 = vsel %vm2714, %v2646, 0
          %v2719 = vsel %vm2714, %v2647, 0
          %v2720 = vsel %vm2715, %v2648, 0
          %v2721 = vsel %vm2715, %v2649, 0
          %v2722 = vsel %vm2715, %v2650, 0
          %v2723 = vsel %vm2715, %v2651, 0
          %v2724 = vsel %vm2714, %v2652, 0
          %v2725 = vsel %vm2714, %v2653, 0
          %v2726 = vsel %vm2714, %v2654, 0
          %v2727 = vsel %vm2714, %v2655, 0
          %v2728 = vsel %vm2715, %v2656, 0
          %v2729 = vsel %vm2715, %v2657, 0
          %v2730 = vsel %vm2715, %v2658, 0
          %v2731 = vsel %vm2715, %v2659, 0
          %v2732 = vsel %vm2714, %v2660, 0
          %v2733 = vsel %vm2714, %v2661, 0
          %v2734 = vsel %vm2714, %v2662, 0
          %v2735 = vsel %vm2714, %v2663, 0
          %v2736 = vsel %vm2715, %v2664, 0
          %v2737 = vsel %vm2715, %v2665, 0
          %v2738 = vsel %vm2715, %v2666, 0
          %v2739 = vsel %vm2715, %v2667, 0
          %v2740 = vsel %vm2714, %v2668, 0
          %v2741 = vsel %vm2714, %v2669, 0
          %v2742 = vsel %vm2714, %v2670, 0
          %v2743 = vsel %vm2714, %v2671, 0
          %v2744 = vsel %vm2715, %v2672, 0
          %v2745 = vsel %vm2715, %v2673, 0
          %v2746 = vsel %vm2715, %v2674, 0
          %v2747 = vsel %vm2715, %v2675, 0
          %v2748 = vsel %vm2714, %v2676, 0
          %v2749 = vsel %vm2714, %v2677, 0
          %v2750 = vsel %vm2714, %v2678, 0
          %v2751 = vsel %vm2714, %v2679, 0
          %v2752 = vsel %vm2715, %v2680, 0
          %v2753 = vsel %vm2715, %v2681, 0
          %v2754 = vsel %vm2715, %v2682, 0
          %v2755 = vsel %vm2715, %v2683, 0
          %v2756 = vsel %vm2714, %v2684, 0
          %v2757 = vsel %vm2714, %v2685, 0
          %v2758 = vsel %vm2714, %v2686, 0
          %v2759 = vsel %vm2714, %v2687, 0
          %v2760 = vsel %vm2715, %v2688, 0
          %v2761 = vsel %vm2715, %v2689, 0
          %v2762 = vsel %vm2715, %v2690, 0
          %v2763 = vsel %vm2715, %v2691, 0
          %v2764 = vsel %vm2714, %v2692, 0
          %v2765 = vsel %vm2714, %v2693, 0
          %v2766 = vsel %vm2714, %v2694, 0
          %v2767 = vsel %vm2714, %v2695, 0
          %v2768 = vsel %vm2715, %v2696, 0
          %v2769 = vsel %vm2715, %v2697, 0
          %v2770 = vsel %vm2715, %v2698, 0
          %v2771 = vsel %vm2715, %v2699, 0
          %v2772 = vsel %vm2714, %v2700, 0
          %v2773 = vsel %vm2714, %v2701, 0
          %v2774 = vsel %vm2714, %v2702, 0
          %v2775 = vsel %vm2714, %v2703, 0
          %v2776 = vsel %vm2715, %v2704, 0
          %v2777 = vsel %vm2715, %v2705, 0
          %v2778 = vsel %vm2715, %v2706, 0
          %v2779 = vsel %vm2715, %v2707, 0
          %v2780 = vld [vmem:[#allocation2] sm:$0xff]
          %v2781 = vld [vmem:[#allocation2 + $0x8] sm:$0xff]
          %v2782 = vld [vmem:[#allocation2 + $0x10] sm:$0xff]
          %v2783 = vld [vmem:[#allocation2 + $0x18] sm:$0xff]
          %v2784 = vld [vmem:[#allocation2 + $0x20] sm:$0xff]
          %v2785 = vld [vmem:[#allocation2 + $0x28] sm:$0xff]
          %v2786 = vld [vmem:[#allocation2 + $0x30] sm:$0xff]
          %v2787 = vld [vmem:[#allocation2 + $0x38] sm:$0xff]
          %v2796 = vunpack.c.l.b16 %v2716
          %v2797 = vunpack.c.h.b16 %v2716
          %v2798 = vunpack.c.l.b16 %v2717
          %v2799 = vunpack.c.h.b16 %v2717
          %v2800 = vunpack.c.l.b16 %v2718
          %v2801 = vunpack.c.h.b16 %v2718
          %v2802 = vunpack.c.l.b16 %v2719
          %v2803 = vunpack.c.h.b16 %v2719
          %v2804 = vunpack.c.l.b16 %v2720
          %v2805 = vunpack.c.h.b16 %v2720
          %v2806 = vunpack.c.l.b16 %v2721
          %v2807 = vunpack.c.h.b16 %v2721
          %v2808 = vunpack.c.l.b16 %v2722
          %v2809 = vunpack.c.h.b16 %v2722
          %v2810 = vunpack.c.l.b16 %v2723
          %v2811 = vunpack.c.h.b16 %v2723
          %v2812 = vpack.c.b16 %v2804, %v2796
          %v2813 = vpack.c.b16 %v2805, %v2797
          %v2814 = vpack.c.b16 %v2806, %v2798
          %v2815 = vpack.c.b16 %v2807, %v2799
          %v2816 = vpack.c.b16 %v2808, %v2800
          %v2817 = vpack.c.b16 %v2809, %v2801
          %v2818 = vpack.c.b16 %v2810, %v2802
          %v2819 = vpack.c.b16 %v2811, %v2803
          %vm2828 = vcmask 130048
          %v2830 = vsel %vm2828, 1065369472, 0
          %2832 = vmatprep.subr.bf16.mxu0 %v2813
          %2833 = vmatpush1.bf16.msra.mxu0 %v2812
          %2834 = vmatprep.subr.bf16.mxu0 0
          %2835 = vmatpush1.bf16.msra.mxu0 0
          %2836 = vmatprep.subr.bf16.mxu0 0
          %2837 = vmatpush1.bf16.msra.mxu0 0
          %2838 = vmatprep.subr.bf16.mxu0 0
          %2839 = vmatpush1.bf16.msra.mxu0 0
          %2840 = vmatprep.subr.bf16.mxu0 0
          %2841 = vmatpush1.bf16.msra.mxu0 0
          %2842 = vmatprep.subr.bf16.mxu0 0
          %2843 = vmatpush1.bf16.msra.mxu0 0
          %2844 = vmatprep.subr.bf16.mxu0 0
          %2845 = vmatpush1.bf16.msra.mxu0 0
          %2846 = vmatprep.subr.bf16.mxu0 0
          %2847 = vmatpush1.bf16.msra.mxu0 0
          %2848 = vmatprep.subr.bf16.mxu0 0
          %2849 = vmatpush1.bf16.msra.mxu0 0
          %2850 = vmatprep.subr.bf16.mxu0 0
          %2851 = vmatpush1.bf16.msra.mxu0 0
          %2852 = vmatprep.subr.bf16.mxu0 0
          %2853 = vmatpush1.bf16.msra.mxu0 0
          %2854 = vmatprep.subr.bf16.mxu0 0
          %2855 = vmatpush1.bf16.msra.mxu0 0
          %2856 = vmatprep.subr.bf16.mxu0 0
          %2857 = vmatpush1.bf16.msra.mxu0 0
          %2858 = vmatprep.subr.bf16.mxu0 0
          %2859 = vmatpush1.bf16.msra.mxu0 0
          %2860 = vmatprep.subr.bf16.mxu0 0
          %2861 = vmatpush1.bf16.msra.mxu0 0
          %2862 = vmatprep.subr.bf16.mxu0 0
          %2863 = vmatpush1.bf16.msra.mxu0 0
          %2864 = vmatprep.mubr.bf16.mxu0 0
          %2865 = vmatmul.mubr.bf16.gmra.mrb[0].mxu0 %v2830
          %v2866 = vpop.f32.mrb[0].mxu0
          %v2867 = vadd.f32 0.0, %v2866
          %v2868 = vpop.f32.mrb[0].mxu0
          %v2869 = vadd.f32 0.0, %v2868
          %v2870 = vpop.f32.mrb[0].mxu0
          %v2871 = vpop.f32.mrb[0].mxu0
          %2872 = vdwg.mxu0
          %2873 = vmatprep.subr.bf16.mxu0 %v2815
          %2874 = vmatpush1.bf16.msra.mxu0 %v2814
          %2875 = vmatprep.subr.bf16.mxu0 0
          %2876 = vmatpush1.bf16.msra.mxu0 0
          %2877 = vmatprep.subr.bf16.mxu0 0
          %2878 = vmatpush1.bf16.msra.mxu0 0
          %2879 = vmatprep.subr.bf16.mxu0 0
          %2880 = vmatpush1.bf16.msra.mxu0 0
          %2881 = vmatprep.subr.bf16.mxu0 0
          %2882 = vmatpush1.bf16.msra.mxu0 0
          %2883 = vmatprep.subr.bf16.mxu0 0
          %2884 = vmatpush1.bf16.msra.mxu0 0
          %2885 = vmatprep.subr.bf16.mxu0 0
          %2886 = vmatpush1.bf16.msra.mxu0 0
          %2887 = vmatprep.subr.bf16.mxu0 0
          %2888 = vmatpush1.bf16.msra.mxu0 0
          %2889 = vmatprep.subr.bf16.mxu0 0
          %2890 = vmatpush1.bf16.msra.mxu0 0
          %2891 = vmatprep.subr.bf16.mxu0 0
          %2892 = vmatpush1.bf16.msra.mxu0 0
          %2893 = vmatprep.subr.bf16.mxu0 0
          %2894 = vmatpush1.bf16.msra.mxu0 0
          %2895 = vmatprep.subr.bf16.mxu0 0
          %2896 = vmatpush1.bf16.msra.mxu0 0
          %2897 = vmatprep.subr.bf16.mxu0 0
          %2898 = vmatpush1.bf16.msra.mxu0 0
          %2899 = vmatprep.subr.bf16.mxu0 0
          %2900 = vmatpush1.bf16.msra.mxu0 0
          %2901 = vmatprep.subr.bf16.mxu0 0
          %2902 = vmatpush1.bf16.msra.mxu0 0
          %2903 = vmatprep.subr.bf16.mxu0 0
          %2904 = vmatpush1.bf16.msra.mxu0 0
          %2905 = vmatprep.mubr.bf16.mxu0 0
          %2906 = vmatmul.mubr.bf16.gmra.mrb[0].mxu0 %v2830
          %v2907 = vpop.f32.mrb[0].mxu0
          %v2908 = vadd.f32 0.0, %v2907
          %v2909 = vpop.f32.mrb[0].mxu0
          %v2910 = vadd.f32 0.0, %v2909
          %v2911 = vpop.f32.mrb[0].mxu0
          %v2912 = vpop.f32.mrb[0].mxu0
          %2913 = vdwg.mxu0
          %2914 = vmatprep.subr.bf16.mxu0 %v2817
          %2915 = vmatpush1.bf16.msra.mxu0 %v2816
          %2916 = vmatprep.subr.bf16.mxu0 0
          %2917 = vmatpush1.bf16.msra.mxu0 0
          %2918 = vmatprep.subr.bf16.mxu0 0
          %2919 = vmatpush1.bf16.msra.mxu0 0
          %2920 = vmatprep.subr.bf16.mxu0 0
          %2921 = vmatpush1.bf16.msra.mxu0 0
          %2922 = vmatprep.subr.bf16.mxu0 0
          %2923 = vmatpush1.bf16.msra.mxu0 0
          %2924 = vmatprep.subr.bf16.mxu0 0
          %2925 = vmatpush1.bf16.msra.mxu0 0
          %2926 = vmatprep.subr.bf16.mxu0 0
          %2927 = vmatpush1.bf16.msra.mxu0 0
          %2928 = vmatprep.subr.bf16.mxu0 0
          %2929 = vmatpush1.bf16.msra.mxu0 0
          %2930 = vmatprep.subr.bf16.mxu0 0
          %2931 = vmatpush1.bf16.msra.mxu0 0
          %2932 = vmatprep.subr.bf16.mxu0 0
          %2933 = vmatpush1.bf16.msra.mxu0 0
          %2934 = vmatprep.subr.bf16.mxu0 0
          %2935 = vmatpush1.bf16.msra.mxu0 0
          %2936 = vmatprep.subr.bf16.mxu0 0
          %2937 = vmatpush1.bf16.msra.mxu0 0
          %2938 = vmatprep.subr.bf16.mxu0 0
          %2939 = vmatpush1.bf16.msra.mxu0 0
          %2940 = vmatprep.subr.bf16.mxu0 0
          %2941 = vmatpush1.bf16.msra.mxu0 0
          %2942 = vmatprep.subr.bf16.mxu0 0
          %2943 = vmatpush1.bf16.msra.mxu0 0
          %2944 = vmatprep.subr.bf16.mxu0 0
          %2945 = vmatpush1.bf16.msra.mxu0 0
          %2946 = vmatprep.mubr.bf16.mxu0 0
          %2947 = vmatmul.mubr.bf16.gmra.mrb[0].mxu0 %v2830
          %v2948 = vpop.f32.mrb[0].mxu0
          %v2949 = vadd.f32 0.0, %v2948
          %v2950 = vpop.f32.mrb[0].mxu0
          %v2951 = vadd.f32 0.0, %v2950
          %v2952 = vpop.f32.mrb[0].mxu0
          %v2953 = vpop.f32.mrb[0].mxu0
          %2954 = vdwg.mxu0
          %2955 = vmatprep.subr.bf16.mxu0 %v2819
          %2956 = vmatpush1.bf16.msra.mxu0 %v2818
          %2957 = vmatprep.subr.bf16.mxu0 0
          %2958 = vmatpush1.bf16.msra.mxu0 0
          %2959 = vmatprep.subr.bf16.mxu0 0
          %2960 = vmatpush1.bf16.msra.mxu0 0
          %2961 = vmatprep.subr.bf16.mxu0 0
          %2962 = vmatpush1.bf16.msra.mxu0 0
          %2963 = vmatprep.subr.bf16.mxu0 0
          %2964 = vmatpush1.bf16.msra.mxu0 0
          %2965 = vmatprep.subr.bf16.mxu0 0
          %2966 = vmatpush1.bf16.msra.mxu0 0
          %2967 = vmatprep.subr.bf16.mxu0 0
          %2968 = vmatpush1.bf16.msra.mxu0 0
          %2969 = vmatprep.subr.bf16.mxu0 0
          %2970 = vmatpush1.bf16.msra.mxu0 0
          %2971 = vmatprep.subr.bf16.mxu0 0
          %2972 = vmatpush1.bf16.msra.mxu0 0
          %2973 = vmatprep.subr.bf16.mxu0 0
          %2974 = vmatpush1.bf16.msra.mxu0 0
          %2975 = vmatprep.subr.bf16.mxu0 0
          %2976 = vmatpush1.bf16.msra.mxu0 0
          %2977 = vmatprep.subr.bf16.mxu0 0
          %2978 = vmatpush1.bf16.msra.mxu0 0
          %2979 = vmatprep.subr.bf16.mxu0 0
          %2980 = vmatpush1.bf16.msra.mxu0 0
          %2981 = vmatprep.subr.bf16.mxu0 0
          %2982 = vmatpush1.bf16.msra.mxu0 0
          %2983 = vmatprep.subr.bf16.mxu0 0
          %2984 = vmatpush1.bf16.msra.mxu0 0
          %2985 = vmatprep.subr.bf16.mxu0 0
          %2986 = vmatpush1.bf16.msra.mxu0 0
          %2987 = vmatprep.mubr.bf16.mxu0 0
          %2988 = vmatmul.mubr.bf16.gmra.mrb[0].mxu0 %v2830
          %v2989 = vpop.f32.mrb[0].mxu0
          %v2990 = vadd.f32 0.0, %v2989
          %v2991 = vpop.f32.mrb[0].mxu0
          %v2992 = vadd.f32 0.0, %v2991
          %v2993 = vpop.f32.mrb[0].mxu0
          %v2994 = vpop.f32.mrb[0].mxu0
          %2995 = vdwg.mxu0
          %v3004 = vunpack.c.l.b16 %v2724
          %v3005 = vunpack.c.h.b16 %v2724
          %v3006 = vunpack.c.l.b16 %v2725
          %v3007 = vunpack.c.h.b16 %v2725
          %v3008 = vunpack.c.l.b16 %v2726
          %v3009 = vunpack.c.h.b16 %v2726
          %v3010 = vunpack.c.l.b16 %v2727
          %v3011 = vunpack.c.h.b16 %v2727
          %v3012 = vunpack.c.l.b16 %v2728
          %v3013 = vunpack.c.h.b16 %v2728
          %v3014 = vunpack.c.l.b16 %v2729
          %v3015 = vunpack.c.h.b16 %v2729
          %v3016 = vunpack.c.l.b16 %v2730
          %v3017 = vunpack.c.h.b16 %v2730
          %v3018 = vunpack.c.l.b16 %v2731
          %v3019 = vunpack.c.h.b16 %v2731
          %v3020 = vpack.c.b16 %v3012, %v3004
          %v3021 = vpack.c.b16 %v3013, %v3005
          %v3022 = vpack.c.b16 %v3014, %v3006
          %v3023 = vpack.c.b16 %v3015, %v3007
          %v3024 = vpack.c.b16 %v3016, %v3008
          %v3025 = vpack.c.b16 %v3017, %v3009
          %v3026 = vpack.c.b16 %v3018, %v3010
          %v3027 = vpack.c.b16 %v3019, %v3011
          %3036 = vmatprep.subr.bf16.mxu0 %v3021
          %3037 = vmatpush1.bf16.msra.mxu0 %v3020
          %3038 = vmatprep.subr.bf16.mxu0 0
          %3039 = vmatpush1.bf16.msra.mxu0 0
          %3040 = vmatprep.subr.bf16.mxu0 0
          %3041 = vmatpush1.bf16.msra.mxu0 0
          %3042 = vmatprep.subr.bf16.mxu0 0
          %3043 = vmatpush1.bf16.msra.mxu0 0
          %3044 = vmatprep.subr.bf16.mxu0 0
          %3045 = vmatpush1.bf16.msra.mxu0 0
          %3046 = vmatprep.subr.bf16.mxu0 0
          %3047 = vmatpush1.bf16.msra.mxu0 0
          %3048 = vmatprep.subr.bf16.mxu0 0
          %3049 = vmatpush1.bf16.msra.mxu0 0
          %3050 = vmatprep.subr.bf16.mxu0 0
          %3051 = vmatpush1.bf16.msra.mxu0 0
          %3052 = vmatprep.subr.bf16.mxu0 0
          %3053 = vmatpush1.bf16.msra.mxu0 0
          %3054 = vmatprep.subr.bf16.mxu0 0
          %3055 = vmatpush1.bf16.msra.mxu0 0
          %3056 = vmatprep.subr.bf16.mxu0 0
          %3057 = vmatpush1.bf16.msra.mxu0 0
          %3058 = vmatprep.subr.bf16.mxu0 0
          %3059 = vmatpush1.bf16.msra.mxu0 0
          %3060 = vmatprep.subr.bf16.mxu0 0
          %3061 = vmatpush1.bf16.msra.mxu0 0
          %3062 = vmatprep.subr.bf16.mxu0 0
          %3063 = vmatpush1.bf16.msra.mxu0 0
          %3064 = vmatprep.subr.bf16.mxu0 0
          %3065 = vmatpush1.bf16.msra.mxu0 0
          %3066 = vmatprep.subr.bf16.mxu0 0
          %3067 = vmatpush1.bf16.msra.mxu0 0
          %3068 = vmatprep.mubr.bf16.mxu0 0
          %3069 = vmatmul.mubr.bf16.gmra.mrb[0].mxu0 %v2830
          %v3070 = vpop.f32.mrb[0].mxu0
          %v3071 = vadd.f32 0.0, %v3070
          %v3072 = vpop.f32.mrb[0].mxu0
          %v3073 = vadd.f32 0.0, %v3072
          %v3074 = vpop.f32.mrb[0].mxu0
          %v3075 = vpop.f32.mrb[0].mxu0
          %3076 = vdwg.mxu0
          %3077 = vmatprep.subr.bf16.mxu0 %v3023
          %3078 = vmatpush1.bf16.msra.mxu0 %v3022
          %3079 = vmatprep.subr.bf16.mxu0 0
          %3080 = vmatpush1.bf16.msra.mxu0 0
          %3081 = vmatprep.subr.bf16.mxu0 0
          %3082 = vmatpush1.bf16.msra.mxu0 0
          %3083 = vmatprep.subr.bf16.mxu0 0
          %3084 = vmatpush1.bf16.msra.mxu0 0
          %3085 = vmatprep.subr.bf16.mxu0 0
          %3086 = vmatpush1.bf16.msra.mxu0 0
          %3087 = vmatprep.subr.bf16.mxu0 0
          %3088 = vmatpush1.bf16.msra.mxu0 0
          %3089 = vmatprep.subr.bf16.mxu0 0
          %3090 = vmatpush1.bf16.msra.mxu0 0
          %3091 = vmatprep.subr.bf16.mxu0 0
          %3092 = vmatpush1.bf16.msra.mxu0 0
          %3093 = vmatprep.subr.bf16.mxu0 0
          %3094 = vmatpush1.bf16.msra.mxu0 0
          %3095 = vmatprep.subr.bf16.mxu0 0
          %3096 = vmatpush1.bf16.msra.mxu0 0
          %3097 = vmatprep.subr.bf16.mxu0 0
          %3098 = vmatpush1.bf16.msra.mxu0 0
          %3099 = vmatprep.subr.bf16.mxu0 0
          %3100 = vmatpush1.bf16.msra.mxu0 0
          %3101 = vmatprep.subr.bf16.mxu0 0
          %3102 = vmatpush1.bf16.msra.mxu0 0
          %3103 = vmatprep.subr.bf16.mxu0 0
          %3104 = vmatpush1.bf16.msra.mxu0 0
          %3105 = vmatprep.subr.bf16.mxu0 0
          %3106 = vmatpush1.bf16.msra.mxu0 0
          %3107 = vmatprep.subr.bf16.mxu0 0
          %3108 = vmatpush1.bf16.msra.mxu0 0
          %3109 = vmatprep.mubr.bf16.mxu0 0
          %3110 = vmatmul.mubr.bf16.gmra.mrb[0].mxu0 %v2830
          %v3111 = vpop.f32.mrb[0].mxu0
          %v3112 = vadd.f32 0.0, %v3111
          %v3113 = vpop.f32.mrb[0].mxu0
          %v3114 = vadd.f32 0.0, %v3113
          %v3115 = vpop.f32.mrb[0].mxu0
          %v3116 = vpop.f32.mrb[0].mxu0
          %3117 = vdwg.mxu0
          %3118 = vmatprep.subr.bf16.mxu0 %v3025
          %3119 = vmatpush1.bf16.msra.mxu0 %v3024
          %3120 = vmatprep.subr.bf16.mxu0 0
          %3121 = vmatpush1.bf16.msra.mxu0 0
          %3122 = vmatprep.subr.bf16.mxu0 0
          %3123 = vmatpush1.bf16.msra.mxu0 0
          %3124 = vmatprep.subr.bf16.mxu0 0
          %3125 = vmatpush1.bf16.msra.mxu0 0
          %3126 = vmatprep.subr.bf16.mxu0 0
          %3127 = vmatpush1.bf16.msra.mxu0 0
          %3128 = vmatprep.subr.bf16.mxu0 0
          %3129 = vmatpush1.bf16.msra.mxu0 0
          %3130 = vmatprep.subr.bf16.mxu0 0
          %3131 = vmatpush1.bf16.msra.mxu0 0
          %3132 = vmatprep.subr.bf16.mxu0 0
          %3133 = vmatpush1.bf16.msra.mxu0 0
          %3134 = vmatprep.subr.bf16.mxu0 0
          %3135 = vmatpush1.bf16.msra.mxu0 0
          %3136 = vmatprep.subr.bf16.mxu0 0
          %3137 = vmatpush1.bf16.msra.mxu0 0
          %3138 = vmatprep.subr.bf16.mxu0 0
          %3139 = vmatpush1.bf16.msra.mxu0 0
          %3140 = vmatprep.subr.bf16.mxu0 0
          %3141 = vmatpush1.bf16.msra.mxu0 0
          %3142 = vmatprep.subr.bf16.mxu0 0
          %3143 = vmatpush1.bf16.msra.mxu0 0
          %3144 = vmatprep.subr.bf16.mxu0 0
          %3145 = vmatpush1.bf16.msra.mxu0 0
          %3146 = vmatprep.subr.bf16.mxu0 0
          %3147 = vmatpush1.bf16.msra.mxu0 0
          %3148 = vmatprep.subr.bf16.mxu0 0
          %3149 = vmatpush1.bf16.msra.mxu0 0
          %3150 = vmatprep.mubr.bf16.mxu0 0
          %3151 = vmatmul.mubr.bf16.gmra.mrb[0].mxu0 %v2830
          %v3152 = vpop.f32.mrb[0].mxu0
          %v3153 = vadd.f32 0.0, %v3152
          %v3154 = vpop.f32.mrb[0].mxu0
          %v3155 = vadd.f32 0.0, %v3154
          %v3156 = vpop.f32.mrb[0].mxu0
          %v3157 = vpop.f32.mrb[0].mxu0
          %3158 = vdwg.mxu0
          %3159 = vmatprep.subr.bf16.mxu0 %v3027
          %3160 = vmatpush1.bf16.msra.mxu0 %v3026
          %3161 = vmatprep.subr.bf16.mxu0 0
          %3162 = vmatpush1.bf16.msra.mxu0 0
          %3163 = vmatprep.subr.bf16.mxu0 0
          %3164 = vmatpush1.bf16.msra.mxu0 0
          %3165 = vmatprep.subr.bf16.mxu0 0
          %3166 = vmatpush1.bf16.msra.mxu0 0
          %3167 = vmatprep.subr.bf16.mxu0 0
          %3168 = vmatpush1.bf16.msra.mxu0 0
          %3169 = vmatprep.subr.bf16.mxu0 0
          %3170 = vmatpush1.bf16.msra.mxu0 0
          %3171 = vmatprep.subr.bf16.mxu0 0
          %3172 = vmatpush1.bf16.msra.mxu0 0
          %3173 = vmatprep.subr.bf16.mxu0 0
          %3174 = vmatpush1.bf16.msra.mxu0 0
          %3175 = vmatprep.subr.bf16.mxu0 0
          %3176 = vmatpush1.bf16.msra.mxu0 0
          %3177 = vmatprep.subr.bf16.mxu0 0
          %3178 = vmatpush1.bf16.msra.mxu0 0
          %3179 = vmatprep.subr.bf16.mxu0 0
          %3180 = vmatpush1.bf16.msra.mxu0 0
          %3181 = vmatprep.subr.bf16.mxu0 0
          %3182 = vmatpush1.bf16.msra.mxu0 0
          %3183 = vmatprep.subr.bf16.mxu0 0
          %3184 = vmatpush1.bf16.msra.mxu0 0
          %3185 = vmatprep.subr.bf16.mxu0 0
          %3186 = vmatpush1.bf16.msra.mxu0 0
          %3187 = vmatprep.subr.bf16.mxu0 0
          %3188 = vmatpush1.bf16.msra.mxu0 0
          %3189 = vmatprep.subr.bf16.mxu0 0
          %3190 = vmatpush1.bf16.msra.mxu0 0
          %3191 = vmatprep.mubr.bf16.mxu0 0
          %3192 = vmatmul.mubr.bf16.gmra.mrb[0].mxu0 %v2830
          %v3193 = vpop.f32.mrb[0].mxu0
          %v3194 = vadd.f32 0.0, %v3193
          %v3195 = vpop.f32.mrb[0].mxu0
          %v3196 = vadd.f32 0.0, %v3195
          %v3197 = vpop.f32.mrb[0].mxu0
          %v3198 = vpop.f32.mrb[0].mxu0
          %3199 = vdwg.mxu0
          %v3208 = vunpack.c.l.b16 %v2732
          %v3209 = vunpack.c.h.b16 %v2732
          %v3210 = vunpack.c.l.b16 %v2733
          %v3211 = vunpack.c.h.b16 %v2733
          %v3212 = vunpack.c.l.b16 %v2734
          %v3213 = vunpack.c.h.b16 %v2734
          %v3214 = vunpack.c.l.b16 %v2735
          %v3215 = vunpack.c.h.b16 %v2735
          %v3216 = vunpack.c.l.b16 %v2736
          %v3217 = vunpack.c.h.b16 %v2736
          %v3218 = vunpack.c.l.b16 %v2737
          %v3219 = vunpack.c.h.b16 %v2737
          %v3220 = vunpack.c.l.b16 %v2738
          %v3221 = vunpack.c.h.b16 %v2738
          %v3222 = vunpack.c.l.b16 %v2739
          %v3223 = vunpack.c.h.b16 %v2739
          %v3224 = vpack.c.b16 %v3216, %v3208
          %v3225 = vpack.c.b16 %v3217, %v3209
          %v3226 = vpack.c.b16 %v3218, %v3210
          %v3227 = vpack.c.b16 %v3219, %v3211
          %v3228 = vpack.c.b16 %v3220, %v3212
          %v3229 = vpack.c.b16 %v3221, %v3213
          %v3230 = vpack.c.b16 %v3222, %v3214
          %v3231 = vpack.c.b16 %v3223, %v3215
          %3240 = vmatprep.subr.bf16.mxu0 %v3225
          %3241 = vmatpush1.bf16.msra.mxu0 %v3224
          %3242 = vmatprep.subr.bf16.mxu0 0
          %3243 = vmatpush1.bf16.msra.mxu0 0
          %3244 = vmatprep.subr.bf16.mxu0 0
          %3245 = vmatpush1.bf16.msra.mxu0 0
          %3246 = vmatprep.subr.bf16.mxu0 0
          %3247 = vmatpush1.bf16.msra.mxu0 0
          %3248 = vmatprep.subr.bf16.mxu0 0
          %3249 = vmatpush1.bf16.msra.mxu0 0
          %3250 = vmatprep.subr.bf16.mxu0 0
          %3251 = vmatpush1.bf16.msra.mxu0 0
          %3252 = vmatprep.subr.bf16.mxu0 0
          %3253 = vmatpush1.bf16.msra.mxu0 0
          %3254 = vmatprep.subr.bf16.mxu0 0
          %3255 = vmatpush1.bf16.msra.mxu0 0
          %3256 = vmatprep.subr.bf16.mxu0 0
          %3257 = vmatpush1.bf16.msra.mxu0 0
          %3258 = vmatprep.subr.bf16.mxu0 0
          %3259 = vmatpush1.bf16.msra.mxu0 0
          %3260 = vmatprep.subr.bf16.mxu0 0
          %3261 = vmatpush1.bf16.msra.mxu0 0
          %3262 = vmatprep.subr.bf16.mxu0 0
          %3263 = vmatpush1.bf16.msra.mxu0 0
          %3264 = vmatprep.subr.bf16.mxu0 0
          %3265 = vmatpush1.bf16.msra.mxu0 0
          %3266 = vmatprep.subr.bf16.mxu0 0
          %3267 = vmatpush1.bf16.msra.mxu0 0
          %3268 = vmatprep.subr.bf16.mxu0 0
          %3269 = vmatpush1.bf16.msra.mxu0 0
          %3270 = vmatprep.subr.bf16.mxu0 0
          %3271 = vmatpush1.bf16.msra.mxu0 0
          %3272 = vmatprep.mubr.bf16.mxu0 0
          %3273 = vmatmul.mubr.bf16.gmra.mrb[0].mxu0 %v2830
          %v3274 = vpop.f32.mrb[0].mxu0
          %v3275 = vadd.f32 0.0, %v3274
          %v3276 = vpop.f32.mrb[0].mxu0
          %v3277 = vadd.f32 0.0, %v3276
          %v3278 = vpop.f32.mrb[0].mxu0
          %v3279 = vpop.f32.mrb[0].mxu0
          %3280 = vdwg.mxu0
          %3281 = vmatprep.subr.bf16.mxu0 %v3227
          %3282 = vmatpush1.bf16.msra.mxu0 %v3226
          %3283 = vmatprep.subr.bf16.mxu0 0
          %3284 = vmatpush1.bf16.msra.mxu0 0
          %3285 = vmatprep.subr.bf16.mxu0 0
          %3286 = vmatpush1.bf16.msra.mxu0 0
          %3287 = vmatprep.subr.bf16.mxu0 0
          %3288 = vmatpush1.bf16.msra.mxu0 0
          %3289 = vmatprep.subr.bf16.mxu0 0
          %3290 = vmatpush1.bf16.msra.mxu0 0
          %3291 = vmatprep.subr.bf16.mxu0 0
          %3292 = vmatpush1.bf16.msra.mxu0 0
          %3293 = vmatprep.subr.bf16.mxu0 0
          %3294 = vmatpush1.bf16.msra.mxu0 0
          %3295 = vmatprep.subr.bf16.mxu0 0
          %3296 = vmatpush1.bf16.msra.mxu0 0
          %3297 = vmatprep.subr.bf16.mxu0 0
          %3298 = vmatpush1.bf16.msra.mxu0 0
          %3299 = vmatprep.subr.bf16.mxu0 0
          %3300 = vmatpush1.bf16.msra.mxu0 0
          %3301 = vmatprep.subr.bf16.mxu0 0
          %3302 = vmatpush1.bf16.msra.mxu0 0
          %3303 = vmatprep.subr.bf16.mxu0 0
          %3304 = vmatpush1.bf16.msra.mxu0 0
          %3305 = vmatprep.subr.bf16.mxu0 0
          %3306 = vmatpush1.bf16.msra.mxu0 0
          %3307 = vmatprep.subr.bf16.mxu0 0
          %3308 = vmatpush1.bf16.msra.mxu0 0
          %3309 = vmatprep.subr.bf16.mxu0 0
          %3310 = vmatpush1.bf16.msra.mxu0 0
          %3311 = vmatprep.subr.bf16.mxu0 0
          %3312 = vmatpush1.bf16.msra.mxu0 0
          %3313 = vmatprep.mubr.bf16.mxu0 0
          %3314 = vmatmul.mubr.bf16.gmra.mrb[0].mxu0 %v2830
          %v3315 = vpop.f32.mrb[0].mxu0
          %v3316 = vadd.f32 0.0, %v3315
          %v3317 = vpop.f32.mrb[0].mxu0
          %v3318 = vadd.f32 0.0, %v3317
          %v3319 = vpop.f32.mrb[0].mxu0
          %v3320 = vpop.f32.mrb[0].mxu0
          %3321 = vdwg.mxu0
          %3322 = vmatprep.subr.bf16.mxu0 %v3229
          %3323 = vmatpush1.bf16.msra.mxu0 %v3228
          %3324 = vmatprep.subr.bf16.mxu0 0
          %3325 = vmatpush1.bf16.msra.mxu0 0
          %3326 = vmatprep.subr.bf16.mxu0 0
          %3327 = vmatpush1.bf16.msra.mxu0 0
          %3328 = vmatprep.subr.bf16.mxu0 0
          %3329 = vmatpush1.bf16.msra.mxu0 0
          %3330 = vmatprep.subr.bf16.mxu0 0
          %3331 = vmatpush1.bf16.msra.mxu0 0
          %3332 = vmatprep.subr.bf16.mxu0 0
          %3333 = vmatpush1.bf16.msra.mxu0 0
          %3334 = vmatprep.subr.bf16.mxu0 0
          %3335 = vmatpush1.bf16.msra.mxu0 0
          %3336 = vmatprep.subr.bf16.mxu0 0
          %3337 = vmatpush1.bf16.msra.mxu0 0
          %3338 = vmatprep.subr.bf16.mxu0 0
          %3339 = vmatpush1.bf16.msra.mxu0 0
          %3340 = vmatprep.subr.bf16.mxu0 0
          %3341 = vmatpush1.bf16.msra.mxu0 0
          %3342 = vmatprep.subr.bf16.mxu0 0
          %3343 = vmatpush1.bf16.msra.mxu0 0
          %3344 = vmatprep.subr.bf16.mxu0 0
          %3345 = vmatpush1.bf16.msra.mxu0 0
          %3346 = vmatprep.subr.bf16.mxu0 0
          %3347 = vmatpush1.bf16.msra.mxu0 0
          %3348 = vmatprep.subr.bf16.mxu0 0
          %3349 = vmatpush1.bf16.msra.mxu0 0
          %3350 = vmatprep.subr.bf16.mxu0 0
          %3351 = vmatpush1.bf16.msra.mxu0 0
          %3352 = vmatprep.subr.bf16.mxu0 0
          %3353 = vmatpush1.bf16.msra.mxu0 0
          %3354 = vmatprep.mubr.bf16.mxu0 0
          %3355 = vmatmul.mubr.bf16.gmra.mrb[0].mxu0 %v2830
          %v3356 = vpop.f32.mrb[0].mxu0
          %v3357 = vadd.f32 0.0, %v3356
          %v3358 = vpop.f32.mrb[0].mxu0
          %v3359 = vadd.f32 0.0, %v3358
          %v3360 = vpop.f32.mrb[0].mxu0
          %v3361 = vpop.f32.mrb[0].mxu0
          %3362 = vdwg.mxu0
          %3363 = vmatprep.subr.bf16.mxu0 %v3231
          %3364 = vmatpush1.bf16.msra.mxu0 %v3230
          %3365 = vmatprep.subr.bf16.mxu0 0
          %3366 = vmatpush1.bf16.msra.mxu0 0
          %3367 = vmatprep.subr.bf16.mxu0 0
          %3368 = vmatpush1.bf16.msra.mxu0 0
          %3369 = vmatprep.subr.bf16.mxu0 0
          %3370 = vmatpush1.bf16.msra.mxu0 0
          %3371 = vmatprep.subr.bf16.mxu0 0
          %3372 = vmatpush1.bf16.msra.mxu0 0
          %3373 = vmatprep.subr.bf16.mxu0 0
          %3374 = vmatpush1.bf16.msra.mxu0 0
          %3375 = vmatprep.subr.bf16.mxu0 0
          %3376 = vmatpush1.bf16.msra.mxu0 0
          %3377 = vmatprep.subr.bf16.mxu0 0
          %3378 = vmatpush1.bf16.msra.mxu0 0
          %3379 = vmatprep.subr.bf16.mxu0 0
          %3380 = vmatpush1.bf16.msra.mxu0 0
          %3381 = vmatprep.subr.bf16.mxu0 0
          %3382 = vmatpush1.bf16.msra.mxu0 0
          %3383 = vmatprep.subr.bf16.mxu0 0
          %3384 = vmatpush1.bf16.msra.mxu0 0
          %3385 = vmatprep.subr.bf16.mxu0 0
          %3386 = vmatpush1.bf16.msra.mxu0 0
          %3387 = vmatprep.subr.bf16.mxu0 0
          %3388 = vmatpush1.bf16.msra.mxu0 0
          %3389 = vmatprep.subr.bf16.mxu0 0
          %3390 = vmatpush1.bf16.msra.mxu0 0
          %3391 = vmatprep.subr.bf16.mxu0 0
          %3392 = vmatpush1.bf16.msra.mxu0 0
          %3393 = vmatprep.subr.bf16.mxu0 0
          %3394 = vmatpush1.bf16.msra.mxu0 0
          %3395 = vmatprep.mubr.bf16.mxu0 0
          %3396 = vmatmul.mubr.bf16.gmra.mrb[0].mxu0 %v2830
          %v3397 = vpop.f32.mrb[0].mxu0
          %v3398 = vadd.f32 0.0, %v3397
          %v3399 = vpop.f32.mrb[0].mxu0
          %v3400 = vadd.f32 0.0, %v3399
          %v3401 = vpop.f32.mrb[0].mxu0
          %v3402 = vpop.f32.mrb[0].mxu0
          %3403 = vdwg.mxu0
          %v3412 = vunpack.c.l.b16 %v2740
          %v3413 = vunpack.c.h.b16 %v2740
          %v3414 = vunpack.c.l.b16 %v2741
          %v3415 = vunpack.c.h.b16 %v2741
          %v3416 = vunpack.c.l.b16 %v2742
          %v3417 = vunpack.c.h.b16 %v2742
          %v3418 = vunpack.c.l.b16 %v2743
          %v3419 = vunpack.c.h.b16 %v2743
          %v3420 = vunpack.c.l.b16 %v2744
          %v3421 = vunpack.c.h.b16 %v2744
          %v3422 = vunpack.c.l.b16 %v2745
          %v3423 = vunpack.c.h.b16 %v2745
          %v3424 = vunpack.c.l.b16 %v2746
          %v3425 = vunpack.c.h.b16 %v2746
          %v3426 = vunpack.c.l.b16 %v2747
          %v3427 = vunpack.c.h.b16 %v2747
          %v3428 = vpack.c.b16 %v3420, %v3412
          %v3429 = vpack.c.b16 %v3421, %v3413
          %v3430 = vpack.c.b16 %v3422, %v3414
          %v3431 = vpack.c.b16 %v3423, %v3415
          %v3432 = vpack.c.b16 %v3424, %v3416
          %v3433 = vpack.c.b16 %v3425, %v3417
          %v3434 = vpack.c.b16 %v3426, %v3418
          %v3435 = vpack.c.b16 %v3427, %v3419
          %3444 = vmatprep.subr.bf16.mxu0 %v3429
          %3445 = vmatpush1.bf16.msra.mxu0 %v3428
          %3446 = vmatprep.subr.bf16.mxu0 0
          %3447 = vmatpush1.bf16.msra.mxu0 0
          %3448 = vmatprep.subr.bf16.mxu0 0
          %3449 = vmatpush1.bf16.msra.mxu0 0
          %3450 = vmatprep.subr.bf16.mxu0 0
          %3451 = vmatpush1.bf16.msra.mxu0 0
          %3452 = vmatprep.subr.bf16.mxu0 0
          %3453 = vmatpush1.bf16.msra.mxu0 0
          %3454 = vmatprep.subr.bf16.mxu0 0
          %3455 = vmatpush1.bf16.msra.mxu0 0
          %3456 = vmatprep.subr.bf16.mxu0 0
          %3457 = vmatpush1.bf16.msra.mxu0 0
          %3458 = vmatprep.subr.bf16.mxu0 0
          %3459 = vmatpush1.bf16.msra.mxu0 0
          %3460 = vmatprep.subr.bf16.mxu0 0
          %3461 = vmatpush1.bf16.msra.mxu0 0
          %3462 = vmatprep.subr.bf16.mxu0 0
          %3463 = vmatpush1.bf16.msra.mxu0 0
          %3464 = vmatprep.subr.bf16.mxu0 0
          %3465 = vmatpush1.bf16.msra.mxu0 0
          %3466 = vmatprep.subr.bf16.mxu0 0
          %3467 = vmatpush1.bf16.msra.mxu0 0
          %3468 = vmatprep.subr.bf16.mxu0 0
          %3469 = vmatpush1.bf16.msra.mxu0 0
          %3470 = vmatprep.subr.bf16.mxu0 0
          %3471 = vmatpush1.bf16.msra.mxu0 0
          %3472 = vmatprep.subr.bf16.mxu0 0
          %3473 = vmatpush1.bf16.msra.mxu0 0
          %3474 = vmatprep.subr.bf16.mxu0 0
          %3475 = vmatpush1.bf16.msra.mxu0 0
          %3476 = vmatprep.mubr.bf16.mxu0 0
          %3477 = vmatmul.mubr.bf16.gmra.mrb[0].mxu0 %v2830
          %v3478 = vpop.f32.mrb[0].mxu0
          %v3479 = vadd.f32 0.0, %v3478
          %v3480 = vpop.f32.mrb[0].mxu0
          %v3481 = vadd.f32 0.0, %v3480
          %v3482 = vpop.f32.mrb[0].mxu0
          %v3483 = vpop.f32.mrb[0].mxu0
          %3484 = vdwg.mxu0
          %3485 = vmatprep.subr.bf16.mxu0 %v3431
          %3486 = vmatpush1.bf16.msra.mxu0 %v3430
          %3487 = vmatprep.subr.bf16.mxu0 0
          %3488 = vmatpush1.bf16.msra.mxu0 0
          %3489 = vmatprep.subr.bf16.mxu0 0
          %3490 = vmatpush1.bf16.msra.mxu0 0
          %3491 = vmatprep.subr.bf16.mxu0 0
          %3492 = vmatpush1.bf16.msra.mxu0 0
          %3493 = vmatprep.subr.bf16.mxu0 0
          %3494 = vmatpush1.bf16.msra.mxu0 0
          %3495 = vmatprep.subr.bf16.mxu0 0
          %3496 = vmatpush1.bf16.msra.mxu0 0
          %3497 = vmatprep.subr.bf16.mxu0 0
          %3498 = vmatpush1.bf16.msra.mxu0 0
          %3499 = vmatprep.subr.bf16.mxu0 0
          %3500 = vmatpush1.bf16.msra.mxu0 0
          %3501 = vmatprep.subr.bf16.mxu0 0
          %3502 = vmatpush1.bf16.msra.mxu0 0
          %3503 = vmatprep.subr.bf16.mxu0 0
          %3504 = vmatpush1.bf16.msra.mxu0 0
          %3505 = vmatprep.subr.bf16.mxu0 0
          %3506 = vmatpush1.bf16.msra.mxu0 0
          %3507 = vmatprep.subr.bf16.mxu0 0
          %3508 = vmatpush1.bf16.msra.mxu0 0
          %3509 = vmatprep.subr.bf16.mxu0 0
          %3510 = vmatpush1.bf16.msra.mxu0 0
          %3511 = vmatprep.subr.bf16.mxu0 0
          %3512 = vmatpush1.bf16.msra.mxu0 0
          %3513 = vmatprep.subr.bf16.mxu0 0
          %3514 = vmatpush1.bf16.msra.mxu0 0
          %3515 = vmatprep.subr.bf16.mxu0 0
          %3516 = vmatpush1.bf16.msra.mxu0 0
          %3517 = vmatprep.mubr.bf16.mxu0 0
          %3518 = vmatmul.mubr.bf16.gmra.mrb[0].mxu0 %v2830
          %v3519 = vpop.f32.mrb[0].mxu0
          %v3520 = vadd.f32 0.0, %v3519
          %v3521 = vpop.f32.mrb[0].mxu0
          %v3522 = vadd.f32 0.0, %v3521
          %v3523 = vpop.f32.mrb[0].mxu0
          %v3524 = vpop.f32.mrb[0].mxu0
          %3525 = vdwg.mxu0
          %3526 = vmatprep.subr.bf16.mxu0 %v3433
          %3527 = vmatpush1.bf16.msra.mxu0 %v3432
          %3528 = vmatprep.subr.bf16.mxu0 0
          %3529 = vmatpush1.bf16.msra.mxu0 0
          %3530 = vmatprep.subr.bf16.mxu0 0
          %3531 = vmatpush1.bf16.msra.mxu0 0
          %3532 = vmatprep.subr.bf16.mxu0 0
          %3533 = vmatpush1.bf16.msra.mxu0 0
          %3534 = vmatprep.subr.bf16.mxu0 0
          %3535 = vmatpush1.bf16.msra.mxu0 0
          %3536 = vmatprep.subr.bf16.mxu0 0
          %3537 = vmatpush1.bf16.msra.mxu0 0
          %3538 = vmatprep.subr.bf16.mxu0 0
          %3539 = vmatpush1.bf16.msra.mxu0 0
          %3540 = vmatprep.subr.bf16.mxu0 0
          %3541 = vmatpush1.bf16.msra.mxu0 0
          %3542 = vmatprep.subr.bf16.mxu0 0
          %3543 = vmatpush1.bf16.msra.mxu0 0
          %3544 = vmatprep.subr.bf16.mxu0 0
          %3545 = vmatpush1.bf16.msra.mxu0 0
          %3546 = vmatprep.subr.bf16.mxu0 0
          %3547 = vmatpush1.bf16.msra.mxu0 0
          %3548 = vmatprep.subr.bf16.mxu0 0
          %3549 = vmatpush1.bf16.msra.mxu0 0
          %3550 = vmatprep.subr.bf16.mxu0 0
          %3551 = vmatpush1.bf16.msra.mxu0 0
          %3552 = vmatprep.subr.bf16.mxu0 0
          %3553 = vmatpush1.bf16.msra.mxu0 0
          %3554 = vmatprep.subr.bf16.mxu0 0
          %3555 = vmatpush1.bf16.msra.mxu0 0
          %3556 = vmatprep.subr.bf16.mxu0 0
          %3557 = vmatpush1.bf16.msra.mxu0 0
          %3558 = vmatprep.mubr.bf16.mxu0 0
          %3559 = vmatmul.mubr.bf16.gmra.mrb[0].mxu0 %v2830
          %v3560 = vpop.f32.mrb[0].mxu0
          %v3561 = vadd.f32 0.0, %v3560
          %v3562 = vpop.f32.mrb[0].mxu0
          %v3563 = vadd.f32 0.0, %v3562
          %v3564 = vpop.f32.mrb[0].mxu0
          %v3565 = vpop.f32.mrb[0].mxu0
          %3566 = vdwg.mxu0
          %3567 = vmatprep.subr.bf16.mxu0 %v3435
          %3568 = vmatpush1.bf16.msra.mxu0 %v3434
          %3569 = vmatprep.subr.bf16.mxu0 0
          %3570 = vmatpush1.bf16.msra.mxu0 0
          %3571 = vmatprep.subr.bf16.mxu0 0
          %3572 = vmatpush1.bf16.msra.mxu0 0
          %3573 = vmatprep.subr.bf16.mxu0 0
          %3574 = vmatpush1.bf16.msra.mxu0 0
          %3575 = vmatprep.subr.bf16.mxu0 0
          %3576 = vmatpush1.bf16.msra.mxu0 0
          %3577 = vmatprep.subr.bf16.mxu0 0
          %3578 = vmatpush1.bf16.msra.mxu0 0
          %3579 = vmatprep.subr.bf16.mxu0 0
          %3580 = vmatpush1.bf16.msra.mxu0 0
          %3581 = vmatprep.subr.bf16.mxu0 0
          %3582 = vmatpush1.bf16.msra.mxu0 0
          %3583 = vmatprep.subr.bf16.mxu0 0
          %3584 = vmatpush1.bf16.msra.mxu0 0
          %3585 = vmatprep.subr.bf16.mxu0 0
          %3586 = vmatpush1.bf16.msra.mxu0 0
          %3587 = vmatprep.subr.bf16.mxu0 0
          %3588 = vmatpush1.bf16.msra.mxu0 0
          %3589 = vmatprep.subr.bf16.mxu0 0
          %3590 = vmatpush1.bf16.msra.mxu0 0
          %3591 = vmatprep.subr.bf16.mxu0 0
          %3592 = vmatpush1.bf16.msra.mxu0 0
          %3593 = vmatprep.subr.bf16.mxu0 0
          %3594 = vmatpush1.bf16.msra.mxu0 0
          %3595 = vmatprep.subr.bf16.mxu0 0
          %3596 = vmatpush1.bf16.msra.mxu0 0
          %3597 = vmatprep.subr.bf16.mxu0 0
          %3598 = vmatpush1.bf16.msra.mxu0 0
          %3599 = vmatprep.mubr.bf16.mxu0 0
          %3600 = vmatmul.mubr.bf16.gmra.mrb[0].mxu0 %v2830
          %v3601 = vpop.f32.mrb[0].mxu0
          %v3602 = vadd.f32 0.0, %v3601
          %v3603 = vpop.f32.mrb[0].mxu0
          %v3604 = vadd.f32 0.0, %v3603
          %v3605 = vpop.f32.mrb[0].mxu0
          %v3606 = vpop.f32.mrb[0].mxu0
          %3607 = vdwg.mxu0
          %v3616 = vunpack.c.l.b16 %v2748
          %v3617 = vunpack.c.h.b16 %v2748
          %v3618 = vunpack.c.l.b16 %v2749
          %v3619 = vunpack.c.h.b16 %v2749
          %v3620 = vunpack.c.l.b16 %v2750
          %v3621 = vunpack.c.h.b16 %v2750
          %v3622 = vunpack.c.l.b16 %v2751
          %v3623 = vunpack.c.h.b16 %v2751
          %v3624 = vunpack.c.l.b16 %v2752
          %v3625 = vunpack.c.h.b16 %v2752
          %v3626 = vunpack.c.l.b16 %v2753
          %v3627 = vunpack.c.h.b16 %v2753
          %v3628 = vunpack.c.l.b16 %v2754
          %v3629 = vunpack.c.h.b16 %v2754
          %v3630 = vunpack.c.l.b16 %v2755
          %v3631 = vunpack.c.h.b16 %v2755
          %v3632 = vpack.c.b16 %v3624, %v3616
          %v3633 = vpack.c.b16 %v3625, %v3617
          %v3634 = vpack.c.b16 %v3626, %v3618
          %v3635 = vpack.c.b16 %v3627, %v3619
          %v3636 = vpack.c.b16 %v3628, %v3620
          %v3637 = vpack.c.b16 %v3629, %v3621
          %v3638 = vpack.c.b16 %v3630, %v3622
          %v3639 = vpack.c.b16 %v3631, %v3623
          %3648 = vmatprep.subr.bf16.mxu0 %v3633
          %3649 = vmatpush1.bf16.msra.mxu0 %v3632
          %3650 = vmatprep.subr.bf16.mxu0 0
          %3651 = vmatpush1.bf16.msra.mxu0 0
          %3652 = vmatprep.subr.bf16.mxu0 0
          %3653 = vmatpush1.bf16.msra.mxu0 0
          %3654 = vmatprep.subr.bf16.mxu0 0
          %3655 = vmatpush1.bf16.msra.mxu0 0
          %3656 = vmatprep.subr.bf16.mxu0 0
          %3657 = vmatpush1.bf16.msra.mxu0 0
          %3658 = vmatprep.subr.bf16.mxu0 0
          %3659 = vmatpush1.bf16.msra.mxu0 0
          %3660 = vmatprep.subr.bf16.mxu0 0
          %3661 = vmatpush1.bf16.msra.mxu0 0
          %3662 = vmatprep.subr.bf16.mxu0 0
          %3663 = vmatpush1.bf16.msra.mxu0 0
          %3664 = vmatprep.subr.bf16.mxu0 0
          %3665 = vmatpush1.bf16.msra.mxu0 0
          %3666 = vmatprep.subr.bf16.mxu0 0
          %3667 = vmatpush1.bf16.msra.mxu0 0
          %3668 = vmatprep.subr.bf16.mxu0 0
          %3669 = vmatpush1.bf16.msra.mxu0 0
          %3670 = vmatprep.subr.bf16.mxu0 0
          %3671 = vmatpush1.bf16.msra.mxu0 0
          %3672 = vmatprep.subr.bf16.mxu0 0
          %3673 = vmatpush1.bf16.msra.mxu0 0
          %3674 = vmatprep.subr.bf16.mxu0 0
          %3675 = vmatpush1.bf16.msra.mxu0 0
          %3676 = vmatprep.subr.bf16.mxu0 0
          %3677 = vmatpush1.bf16.msra.mxu0 0
          %3678 = vmatprep.subr.bf16.mxu0 0
          %3679 = vmatpush1.bf16.msra.mxu0 0
          %3680 = vmatprep.mubr.bf16.mxu0 0
          %3681 = vmatmul.mubr.bf16.gmra.mrb[0].mxu0 %v2830
          %v3682 = vpop.f32.mrb[0].mxu0
          %v3683 = vadd.f32 0.0, %v3682
          %v3684 = vpop.f32.mrb[0].mxu0
          %v3685 = vadd.f32 0.0, %v3684
          %v3686 = vpop.f32.mrb[0].mxu0
          %v3687 = vpop.f32.mrb[0].mxu0
          %3688 = vdwg.mxu0
          %3689 = vmatprep.subr.bf16.mxu0 %v3635
          %3690 = vmatpush1.bf16.msra.mxu0 %v3634
          %3691 = vmatprep.subr.bf16.mxu0 0
          %3692 = vmatpush1.bf16.msra.mxu0 0
          %3693 = vmatprep.subr.bf16.mxu0 0
          %3694 = vmatpush1.bf16.msra.mxu0 0
          %3695 = vmatprep.subr.bf16.mxu0 0
          %3696 = vmatpush1.bf16.msra.mxu0 0
          %3697 = vmatprep.subr.bf16.mxu0 0
          %3698 = vmatpush1.bf16.msra.mxu0 0
          %3699 = vmatprep.subr.bf16.mxu0 0
          %3700 = vmatpush1.bf16.msra.mxu0 0
          %3701 = vmatprep.subr.bf16.mxu0 0
          %3702 = vmatpush1.bf16.msra.mxu0 0
          %3703 = vmatprep.subr.bf16.mxu0 0
          %3704 = vmatpush1.bf16.msra.mxu0 0
          %3705 = vmatprep.subr.bf16.mxu0 0
          %3706 = vmatpush1.bf16.msra.mxu0 0
          %3707 = vmatprep.subr.bf16.mxu0 0
          %3708 = vmatpush1.bf16.msra.mxu0 0
          %3709 = vmatprep.subr.bf16.mxu0 0
          %3710 = vmatpush1.bf16.msra.mxu0 0
          %3711 = vmatprep.subr.bf16.mxu0 0
          %3712 = vmatpush1.bf16.msra.mxu0 0
          %3713 = vmatprep.subr.bf16.mxu0 0
          %3714 = vmatpush1.bf16.msra.mxu0 0
          %3715 = vmatprep.subr.bf16.mxu0 0
          %3716 = vmatpush1.bf16.msra.mxu0 0
          %3717 = vmatprep.subr.bf16.mxu0 0
          %3718 = vmatpush1.bf16.msra.mxu0 0
          %3719 = vmatprep.subr.bf16.mxu0 0
          %3720 = vmatpush1.bf16.msra.mxu0 0
          %3721 = vmatprep.mubr.bf16.mxu0 0
          %3722 = vmatmul.mubr.bf16.gmra.mrb[0].mxu0 %v2830
          %v3723 = vpop.f32.mrb[0].mxu0
          %v3724 = vadd.f32 0.0, %v3723
          %v3725 = vpop.f32.mrb[0].mxu0
          %v3726 = vadd.f32 0.0, %v3725
          %v3727 = vpop.f32.mrb[0].mxu0
          %v3728 = vpop.f32.mrb[0].mxu0
          %3729 = vdwg.mxu0
          %3730 = vmatprep.subr.bf16.mxu0 %v3637
          %3731 = vmatpush1.bf16.msra.mxu0 %v3636
          %3732 = vmatprep.subr.bf16.mxu0 0
          %3733 = vmatpush1.bf16.msra.mxu0 0
          %3734 = vmatprep.subr.bf16.mxu0 0
          %3735 = vmatpush1.bf16.msra.mxu0 0
          %3736 = vmatprep.subr.bf16.mxu0 0
          %3737 = vmatpush1.bf16.msra.mxu0 0
          %3738 = vmatprep.subr.bf16.mxu0 0
          %3739 = vmatpush1.bf16.msra.mxu0 0
          %3740 = vmatprep.subr.bf16.mxu0 0
          %3741 = vmatpush1.bf16.msra.mxu0 0
          %3742 = vmatprep.subr.bf16.mxu0 0
          %3743 = vmatpush1.bf16.msra.mxu0 0
          %3744 = vmatprep.subr.bf16.mxu0 0
          %3745 = vmatpush1.bf16.msra.mxu0 0
          %3746 = vmatprep.subr.bf16.mxu0 0
          %3747 = vmatpush1.bf16.msra.mxu0 0
          %3748 = vmatprep.subr.bf16.mxu0 0
          %3749 = vmatpush1.bf16.msra.mxu0 0
          %3750 = vmatprep.subr.bf16.mxu0 0
          %3751 = vmatpush1.bf16.msra.mxu0 0
          %3752 = vmatprep.subr.bf16.mxu0 0
          %3753 = vmatpush1.bf16.msra.mxu0 0
          %3754 = vmatprep.subr.bf16.mxu0 0
          %3755 = vmatpush1.bf16.msra.mxu0 0
          %3756 = vmatprep.subr.bf16.mxu0 0
          %3757 = vmatpush1.bf16.msra.mxu0 0
          %3758 = vmatprep.subr.bf16.mxu0 0
          %3759 = vmatpush1.bf16.msra.mxu0 0
          %3760 = vmatprep.subr.bf16.mxu0 0
          %3761 = vmatpush1.bf16.msra.mxu0 0
          %3762 = vmatprep.mubr.bf16.mxu0 0
          %3763 = vmatmul.mubr.bf16.gmra.mrb[0].mxu0 %v2830
          %v3764 = vpop.f32.mrb[0].mxu0
          %v3765 = vadd.f32 0.0, %v3764
          %v3766 = vpop.f32.mrb[0].mxu0
          %v3767 = vadd.f32 0.0, %v3766
          %v3768 = vpop.f32.mrb[0].mxu0
          %v3769 = vpop.f32.mrb[0].mxu0
          %3770 = vdwg.mxu0
          %3771 = vmatprep.subr.bf16.mxu0 %v3639
          %3772 = vmatpush1.bf16.msra.mxu0 %v3638
          %3773 = vmatprep.subr.bf16.mxu0 0
          %3774 = vmatpush1.bf16.msra.mxu0 0
          %3775 = vmatprep.subr.bf16.mxu0 0
          %3776 = vmatpush1.bf16.msra.mxu0 0
          %3777 = vmatprep.subr.bf16.mxu0 0
          %3778 = vmatpush1.bf16.msra.mxu0 0
          %3779 = vmatprep.subr.bf16.mxu0 0
          %3780 = vmatpush1.bf16.msra.mxu0 0
          %3781 = vmatprep.subr.bf16.mxu0 0
          %3782 = vmatpush1.bf16.msra.mxu0 0
          %3783 = vmatprep.subr.bf16.mxu0 0
          %3784 = vmatpush1.bf16.msra.mxu0 0
          %3785 = vmatprep.subr.bf16.mxu0 0
          %3786 = vmatpush1.bf16.msra.mxu0 0
          %3787 = vmatprep.subr.bf16.mxu0 0
          %3788 = vmatpush1.bf16.msra.mxu0 0
          %3789 = vmatprep.subr.bf16.mxu0 0
          %3790 = vmatpush1.bf16.msra.mxu0 0
          %3791 = vmatprep.subr.bf16.mxu0 0
          %3792 = vmatpush1.bf16.msra.mxu0 0
          %3793 = vmatprep.subr.bf16.mxu0 0
          %3794 = vmatpush1.bf16.msra.mxu0 0
          %3795 = vmatprep.subr.bf16.mxu0 0
          %3796 = vmatpush1.bf16.msra.mxu0 0
          %3797 = vmatprep.subr.bf16.mxu0 0
          %3798 = vmatpush1.bf16.msra.mxu0 0
          %3799 = vmatprep.subr.bf16.mxu0 0
          %3800 = vmatpush1.bf16.msra.mxu0 0
          %3801 = vmatprep.subr.bf16.mxu0 0
          %3802 = vmatpush1.bf16.msra.mxu0 0
          %3803 = vmatprep.mubr.bf16.mxu0 0
          %3804 = vmatmul.mubr.bf16.gmra.mrb[0].mxu0 %v2830
          %v3805 = vpop.f32.mrb[0].mxu0
          %v3806 = vadd.f32 0.0, %v3805
          %v3807 = vpop.f32.mrb[0].mxu0
          %v3808 = vadd.f32 0.0, %v3807
          %v3809 = vpop.f32.mrb[0].mxu0
          %v3810 = vpop.f32.mrb[0].mxu0
          %3811 = vdwg.mxu0
          %v3820 = vunpack.c.l.b16 %v2756
          %v3821 = vunpack.c.h.b16 %v2756
          %v3822 = vunpack.c.l.b16 %v2757
          %v3823 = vunpack.c.h.b16 %v2757
          %v3824 = vunpack.c.l.b16 %v2758
          %v3825 = vunpack.c.h.b16 %v2758
          %v3826 = vunpack.c.l.b16 %v2759
          %v3827 = vunpack.c.h.b16 %v2759
          %v3828 = vunpack.c.l.b16 %v2760
          %v3829 = vunpack.c.h.b16 %v2760
          %v3830 = vunpack.c.l.b16 %v2761
          %v3831 = vunpack.c.h.b16 %v2761
          %v3832 = vunpack.c.l.b16 %v2762
          %v3833 = vunpack.c.h.b16 %v2762
          %v3834 = vunpack.c.l.b16 %v2763
          %v3835 = vunpack.c.h.b16 %v2763
          %v3836 = vpack.c.b16 %v3828, %v3820
          %v3837 = vpack.c.b16 %v3829, %v3821
          %v3838 = vpack.c.b16 %v3830, %v3822
          %v3839 = vpack.c.b16 %v3831, %v3823
          %v3840 = vpack.c.b16 %v3832, %v3824
          %v3841 = vpack.c.b16 %v3833, %v3825
          %v3842 = vpack.c.b16 %v3834, %v3826
          %v3843 = vpack.c.b16 %v3835, %v3827
          %3852 = vmatprep.subr.bf16.mxu0 %v3837
          %3853 = vmatpush1.bf16.msra.mxu0 %v3836
          %3854 = vmatprep.subr.bf16.mxu0 0
          %3855 = vmatpush1.bf16.msra.mxu0 0
          %3856 = vmatprep.subr.bf16.mxu0 0
          %3857 = vmatpush1.bf16.msra.mxu0 0
          %3858 = vmatprep.subr.bf16.mxu0 0
          %3859 = vmatpush1.bf16.msra.mxu0 0
          %3860 = vmatprep.subr.bf16.mxu0 0
          %3861 = vmatpush1.bf16.msra.mxu0 0
          %3862 = vmatprep.subr.bf16.mxu0 0
          %3863 = vmatpush1.bf16.msra.mxu0 0
          %3864 = vmatprep.subr.bf16.mxu0 0
          %3865 = vmatpush1.bf16.msra.mxu0 0
          %3866 = vmatprep.subr.bf16.mxu0 0
          %3867 = vmatpush1.bf16.msra.mxu0 0
          %3868 = vmatprep.subr.bf16.mxu0 0
          %3869 = vmatpush1.bf16.msra.mxu0 0
          %3870 = vmatprep.subr.bf16.mxu0 0
          %3871 = vmatpush1.bf16.msra.mxu0 0
          %3872 = vmatprep.subr.bf16.mxu0 0
          %3873 = vmatpush1.bf16.msra.mxu0 0
          %3874 = vmatprep.subr.bf16.mxu0 0
          %3875 = vmatpush1.bf16.msra.mxu0 0
          %3876 = vmatprep.subr.bf16.mxu0 0
          %3877 = vmatpush1.bf16.msra.mxu0 0
          %3878 = vmatprep.subr.bf16.mxu0 0
          %3879 = vmatpush1.bf16.msra.mxu0 0
          %3880 = vmatprep.subr.bf16.mxu0 0
          %3881 = vmatpush1.bf16.msra.mxu0 0
          %3882 = vmatprep.subr.bf16.mxu0 0
          %3883 = vmatpush1.bf16.msra.mxu0 0
          %3884 = vmatprep.mubr.bf16.mxu0 0
          %3885 = vmatmul.mubr.bf16.gmra.mrb[0].mxu0 %v2830
          %v3886 = vpop.f32.mrb[0].mxu0
          %v3887 = vadd.f32 0.0, %v3886
          %v3888 = vpop.f32.mrb[0].mxu0
          %v3889 = vadd.f32 0.0, %v3888
          %v3890 = vpop.f32.mrb[0].mxu0
          %v3891 = vpop.f32.mrb[0].mxu0
          %3892 = vdwg.mxu0
          %3893 = vmatprep.subr.bf16.mxu0 %v3839
          %3894 = vmatpush1.bf16.msra.mxu0 %v3838
          %3895 = vmatprep.subr.bf16.mxu0 0
          %3896 = vmatpush1.bf16.msra.mxu0 0
          %3897 = vmatprep.subr.bf16.mxu0 0
          %3898 = vmatpush1.bf16.msra.mxu0 0
          %3899 = vmatprep.subr.bf16.mxu0 0
          %3900 = vmatpush1.bf16.msra.mxu0 0
          %3901 = vmatprep.subr.bf16.mxu0 0
          %3902 = vmatpush1.bf16.msra.mxu0 0
          %3903 = vmatprep.subr.bf16.mxu0 0
          %3904 = vmatpush1.bf16.msra.mxu0 0
          %3905 = vmatprep.subr.bf16.mxu0 0
          %3906 = vmatpush1.bf16.msra.mxu0 0
          %3907 = vmatprep.subr.bf16.mxu0 0
          %3908 = vmatpush1.bf16.msra.mxu0 0
          %3909 = vmatprep.subr.bf16.mxu0 0
          %3910 = vmatpush1.bf16.msra.mxu0 0
          %3911 = vmatprep.subr.bf16.mxu0 0
          %3912 = vmatpush1.bf16.msra.mxu0 0
          %3913 = vmatprep.subr.bf16.mxu0 0
          %3914 = vmatpush1.bf16.msra.mxu0 0
          %3915 = vmatprep.subr.bf16.mxu0 0
          %3916 = vmatpush1.bf16.msra.mxu0 0
          %3917 = vmatprep.subr.bf16.mxu0 0
          %3918 = vmatpush1.bf16.msra.mxu0 0
          %3919 = vmatprep.subr.bf16.mxu0 0
          %3920 = vmatpush1.bf16.msra.mxu0 0
          %3921 = vmatprep.subr.bf16.mxu0 0
          %3922 = vmatpush1.bf16.msra.mxu0 0
          %3923 = vmatprep.subr.bf16.mxu0 0
          %3924 = vmatpush1.bf16.msra.mxu0 0
          %3925 = vmatprep.mubr.bf16.mxu0 0
          %3926 = vmatmul.mubr.bf16.gmra.mrb[0].mxu0 %v2830
          %v3927 = vpop.f32.mrb[0].mxu0
          %v3928 = vadd.f32 0.0, %v3927
          %v3929 = vpop.f32.mrb[0].mxu0
          %v3930 = vadd.f32 0.0, %v3929
          %v3931 = vpop.f32.mrb[0].mxu0
          %v3932 = vpop.f32.mrb[0].mxu0
          %3933 = vdwg.mxu0
          %3934 = vmatprep.subr.bf16.mxu0 %v3841
          %3935 = vmatpush1.bf16.msra.mxu0 %v3840
          %3936 = vmatprep.subr.bf16.mxu0 0
          %3937 = vmatpush1.bf16.msra.mxu0 0
          %3938 = vmatprep.subr.bf16.mxu0 0
          %3939 = vmatpush1.bf16.msra.mxu0 0
          %3940 = vmatprep.subr.bf16.mxu0 0
          %3941 = vmatpush1.bf16.msra.mxu0 0
          %3942 = vmatprep.subr.bf16.mxu0 0
          %3943 = vmatpush1.bf16.msra.mxu0 0
          %3944 = vmatprep.subr.bf16.mxu0 0
          %3945 = vmatpush1.bf16.msra.mxu0 0
          %3946 = vmatprep.subr.bf16.mxu0 0
          %3947 = vmatpush1.bf16.msra.mxu0 0
          %3948 = vmatprep.subr.bf16.mxu0 0
          %3949 = vmatpush1.bf16.msra.mxu0 0
          %3950 = vmatprep.subr.bf16.mxu0 0
          %3951 = vmatpush1.bf16.msra.mxu0 0
          %3952 = vmatprep.subr.bf16.mxu0 0
          %3953 = vmatpush1.bf16.msra.mxu0 0
          %3954 = vmatprep.subr.bf16.mxu0 0
          %3955 = vmatpush1.bf16.msra.mxu0 0
          %3956 = vmatprep.subr.bf16.mxu0 0
          %3957 = vmatpush1.bf16.msra.mxu0 0
          %3958 = vmatprep.subr.bf16.mxu0 0
          %3959 = vmatpush1.bf16.msra.mxu0 0
          %3960 = vmatprep.subr.bf16.mxu0 0
          %3961 = vmatpush1.bf16.msra.mxu0 0
          %3962 = vmatprep.subr.bf16.mxu0 0
          %3963 = vmatpush1.bf16.msra.mxu0 0
          %3964 = vmatprep.subr.bf16.mxu0 0
          %3965 = vmatpush1.bf16.msra.mxu0 0
          %3966 = vmatprep.mubr.bf16.mxu0 0
          %3967 = vmatmul.mubr.bf16.gmra.mrb[0].mxu0 %v2830
          %v3968 = vpop.f32.mrb[0].mxu0
          %v3969 = vadd.f32 0.0, %v3968
          %v3970 = vpop.f32.mrb[0].mxu0
          %v3971 = vadd.f32 0.0, %v3970
          %v3972 = vpop.f32.mrb[0].mxu0
          %v3973 = vpop.f32.mrb[0].mxu0
          %3974 = vdwg.mxu0
          %3975 = vmatprep.subr.bf16.mxu0 %v3843
          %3976 = vmatpush1.bf16.msra.mxu0 %v3842
          %3977 = vmatprep.subr.bf16.mxu0 0
          %3978 = vmatpush1.bf16.msra.mxu0 0
          %3979 = vmatprep.subr.bf16.mxu0 0
          %3980 = vmatpush1.bf16.msra.mxu0 0
          %3981 = vmatprep.subr.bf16.mxu0 0
          %3982 = vmatpush1.bf16.msra.mxu0 0
          %3983 = vmatprep.subr.bf16.mxu0 0
          %3984 = vmatpush1.bf16.msra.mxu0 0
          %3985 = vmatprep.subr.bf16.mxu0 0
          %3986 = vmatpush1.bf16.msra.mxu0 0
          %3987 = vmatprep.subr.bf16.mxu0 0
          %3988 = vmatpush1.bf16.msra.mxu0 0
          %3989 = vmatprep.subr.bf16.mxu0 0
          %3990 = vmatpush1.bf16.msra.mxu0 0
          %3991 = vmatprep.subr.bf16.mxu0 0
          %3992 = vmatpush1.bf16.msra.mxu0 0
          %3993 = vmatprep.subr.bf16.mxu0 0
          %3994 = vmatpush1.bf16.msra.mxu0 0
          %3995 = vmatprep.subr.bf16.mxu0 0
          %3996 = vmatpush1.bf16.msra.mxu0 0
          %3997 = vmatprep.subr.bf16.mxu0 0
          %3998 = vmatpush1.bf16.msra.mxu0 0
          %3999 = vmatprep.subr.bf16.mxu0 0
          %4000 = vmatpush1.bf16.msra.mxu0 0
          %4001 = vmatprep.subr.bf16.mxu0 0
          %4002 = vmatpush1.bf16.msra.mxu0 0
          %4003 = vmatprep.subr.bf16.mxu0 0
          %4004 = vmatpush1.bf16.msra.mxu0 0
          %4005 = vmatprep.subr.bf16.mxu0 0
          %4006 = vmatpush1.bf16.msra.mxu0 0
          %4007 = vmatprep.mubr.bf16.mxu0 0
          %4008 = vmatmul.mubr.bf16.gmra.mrb[0].mxu0 %v2830
          %v4009 = vpop.f32.mrb[0].mxu0
          %v4010 = vadd.f32 0.0, %v4009
          %v4011 = vpop.f32.mrb[0].mxu0
          %v4012 = vadd.f32 0.0, %v4011
          %v4013 = vpop.f32.mrb[0].mxu0
          %v4014 = vpop.f32.mrb[0].mxu0
          %4015 = vdwg.mxu0
          %v4024 = vunpack.c.l.b16 %v2764
          %v4025 = vunpack.c.h.b16 %v2764
          %v4026 = vunpack.c.l.b16 %v2765
          %v4027 = vunpack.c.h.b16 %v2765
          %v4028 = vunpack.c.l.b16 %v2766
          %v4029 = vunpack.c.h.b16 %v2766
          %v4030 = vunpack.c.l.b16 %v2767
          %v4031 = vunpack.c.h.b16 %v2767
          %v4032 = vunpack.c.l.b16 %v2768
          %v4033 = vunpack.c.h.b16 %v2768
          %v4034 = vunpack.c.l.b16 %v2769
          %v4035 = vunpack.c.h.b16 %v2769
          %v4036 = vunpack.c.l.b16 %v2770
          %v4037 = vunpack.c.h.b16 %v2770
          %v4038 = vunpack.c.l.b16 %v2771
          %v4039 = vunpack.c.h.b16 %v2771
          %v4040 = vpack.c.b16 %v4032, %v4024
          %v4041 = vpack.c.b16 %v4033, %v4025
          %v4042 = vpack.c.b16 %v4034, %v4026
          %v4043 = vpack.c.b16 %v4035, %v4027
          %v4044 = vpack.c.b16 %v4036, %v4028
          %v4045 = vpack.c.b16 %v4037, %v4029
          %v4046 = vpack.c.b16 %v4038, %v4030
          %v4047 = vpack.c.b16 %v4039, %v4031
          %4056 = vmatprep.subr.bf16.mxu0 %v4041
          %4057 = vmatpush1.bf16.msra.mxu0 %v4040
          %4058 = vmatprep.subr.bf16.mxu0 0
          %4059 = vmatpush1.bf16.msra.mxu0 0
          %4060 = vmatprep.subr.bf16.mxu0 0
          %4061 = vmatpush1.bf16.msra.mxu0 0
          %4062 = vmatprep.subr.bf16.mxu0 0
          %4063 = vmatpush1.bf16.msra.mxu0 0
          %4064 = vmatprep.subr.bf16.mxu0 0
          %4065 = vmatpush1.bf16.msra.mxu0 0
          %4066 = vmatprep.subr.bf16.mxu0 0
          %4067 = vmatpush1.bf16.msra.mxu0 0
          %4068 = vmatprep.subr.bf16.mxu0 0
          %4069 = vmatpush1.bf16.msra.mxu0 0
          %4070 = vmatprep.subr.bf16.mxu0 0
          %4071 = vmatpush1.bf16.msra.mxu0 0
          %4072 = vmatprep.subr.bf16.mxu0 0
          %4073 = vmatpush1.bf16.msra.mxu0 0
          %4074 = vmatprep.subr.bf16.mxu0 0
          %4075 = vmatpush1.bf16.msra.mxu0 0
          %4076 = vmatprep.subr.bf16.mxu0 0
          %4077 = vmatpush1.bf16.msra.mxu0 0
          %4078 = vmatprep.subr.bf16.mxu0 0
          %4079 = vmatpush1.bf16.msra.mxu0 0
          %4080 = vmatprep.subr.bf16.mxu0 0
          %4081 = vmatpush1.bf16.msra.mxu0 0
          %4082 = vmatprep.subr.bf16.mxu0 0
          %4083 = vmatpush1.bf16.msra.mxu0 0
          %4084 = vmatprep.subr.bf16.mxu0 0
          %4085 = vmatpush1.bf16.msra.mxu0 0
          %4086 = vmatprep.subr.bf16.mxu0 0
          %4087 = vmatpush1.bf16.msra.mxu0 0
          %4088 = vmatprep.mubr.bf16.mxu0 0
          %4089 = vmatmul.mubr.bf16.gmra.mrb[0].mxu0 %v2830
          %v4090 = vpop.f32.mrb[0].mxu0
          %v4091 = vadd.f32 0.0, %v4090
          %v4092 = vpop.f32.mrb[0].mxu0
          %v4093 = vadd.f32 0.0, %v4092
          %v4094 = vpop.f32.mrb[0].mxu0
          %v4095 = vpop.f32.mrb[0].mxu0
          %4096 = vdwg.mxu0
          %4097 = vmatprep.subr.bf16.mxu0 %v4043
          %4098 = vmatpush1.bf16.msra.mxu0 %v4042
          %4099 = vmatprep.subr.bf16.mxu0 0
          %4100 = vmatpush1.bf16.msra.mxu0 0
          %4101 = vmatprep.subr.bf16.mxu0 0
          %4102 = vmatpush1.bf16.msra.mxu0 0
          %4103 = vmatprep.subr.bf16.mxu0 0
          %4104 = vmatpush1.bf16.msra.mxu0 0
          %4105 = vmatprep.subr.bf16.mxu0 0
          %4106 = vmatpush1.bf16.msra.mxu0 0
          %4107 = vmatprep.subr.bf16.mxu0 0
          %4108 = vmatpush1.bf16.msra.mxu0 0
          %4109 = vmatprep.subr.bf16.mxu0 0
          %4110 = vmatpush1.bf16.msra.mxu0 0
          %4111 = vmatprep.subr.bf16.mxu0 0
          %4112 = vmatpush1.bf16.msra.mxu0 0
          %4113 = vmatprep.subr.bf16.mxu0 0
          %4114 = vmatpush1.bf16.msra.mxu0 0
          %4115 = vmatprep.subr.bf16.mxu0 0
          %4116 = vmatpush1.bf16.msra.mxu0 0
          %4117 = vmatprep.subr.bf16.mxu0 0
          %4118 = vmatpush1.bf16.msra.mxu0 0
          %4119 = vmatprep.subr.bf16.mxu0 0
          %4120 = vmatpush1.bf16.msra.mxu0 0
          %4121 = vmatprep.subr.bf16.mxu0 0
          %4122 = vmatpush1.bf16.msra.mxu0 0
          %4123 = vmatprep.subr.bf16.mxu0 0
          %4124 = vmatpush1.bf16.msra.mxu0 0
          %4125 = vmatprep.subr.bf16.mxu0 0
          %4126 = vmatpush1.bf16.msra.mxu0 0
          %4127 = vmatprep.subr.bf16.mxu0 0
          %4128 = vmatpush1.bf16.msra.mxu0 0
          %4129 = vmatprep.mubr.bf16.mxu0 0
          %4130 = vmatmul.mubr.bf16.gmra.mrb[0].mxu0 %v2830
          %v4131 = vpop.f32.mrb[0].mxu0
          %v4132 = vadd.f32 0.0, %v4131
          %v4133 = vpop.f32.mrb[0].mxu0
          %v4134 = vadd.f32 0.0, %v4133
          %v4135 = vpop.f32.mrb[0].mxu0
          %v4136 = vpop.f32.mrb[0].mxu0
          %4137 = vdwg.mxu0
          %4138 = vmatprep.subr.bf16.mxu0 %v4045
          %4139 = vmatpush1.bf16.msra.mxu0 %v4044
          %4140 = vmatprep.subr.bf16.mxu0 0
          %4141 = vmatpush1.bf16.msra.mxu0 0
          %4142 = vmatprep.subr.bf16.mxu0 0
          %4143 = vmatpush1.bf16.msra.mxu0 0
          %4144 = vmatprep.subr.bf16.mxu0 0
          %4145 = vmatpush1.bf16.msra.mxu0 0
          %4146 = vmatprep.subr.bf16.mxu0 0
          %4147 = vmatpush1.bf16.msra.mxu0 0
          %4148 = vmatprep.subr.bf16.mxu0 0
          %4149 = vmatpush1.bf16.msra.mxu0 0
          %4150 = vmatprep.subr.bf16.mxu0 0
          %4151 = vmatpush1.bf16.msra.mxu0 0
          %4152 = vmatprep.subr.bf16.mxu0 0
          %4153 = vmatpush1.bf16.msra.mxu0 0
          %4154 = vmatprep.subr.bf16.mxu0 0
          %4155 = vmatpush1.bf16.msra.mxu0 0
          %4156 = vmatprep.subr.bf16.mxu0 0
          %4157 = vmatpush1.bf16.msra.mxu0 0
          %4158 = vmatprep.subr.bf16.mxu0 0
          %4159 = vmatpush1.bf16.msra.mxu0 0
          %4160 = vmatprep.subr.bf16.mxu0 0
          %4161 = vmatpush1.bf16.msra.mxu0 0
          %4162 = vmatprep.subr.bf16.mxu0 0
          %4163 = vmatpush1.bf16.msra.mxu0 0
          %4164 = vmatprep.subr.bf16.mxu0 0
          %4165 = vmatpush1.bf16.msra.mxu0 0
          %4166 = vmatprep.subr.bf16.mxu0 0
          %4167 = vmatpush1.bf16.msra.mxu0 0
          %4168 = vmatprep.subr.bf16.mxu0 0
          %4169 = vmatpush1.bf16.msra.mxu0 0
          %4170 = vmatprep.mubr.bf16.mxu0 0
          %4171 = vmatmul.mubr.bf16.gmra.mrb[0].mxu0 %v2830
          %v4172 = vpop.f32.mrb[0].mxu0
          %v4173 = vadd.f32 0.0, %v4172
          %v4174 = vpop.f32.mrb[0].mxu0
          %v4175 = vadd.f32 0.0, %v4174
          %v4176 = vpop.f32.mrb[0].mxu0
          %v4177 = vpop.f32.mrb[0].mxu0
          %4178 = vdwg.mxu0
          %4179 = vmatprep.subr.bf16.mxu0 %v4047
          %4180 = vmatpush1.bf16.msra.mxu0 %v4046
          %4181 = vmatprep.subr.bf16.mxu0 0
          %4182 = vmatpush1.bf16.msra.mxu0 0
          %4183 = vmatprep.subr.bf16.mxu0 0
          %4184 = vmatpush1.bf16.msra.mxu0 0
          %4185 = vmatprep.subr.bf16.mxu0 0
          %4186 = vmatpush1.bf16.msra.mxu0 0
          %4187 = vmatprep.subr.bf16.mxu0 0
          %4188 = vmatpush1.bf16.msra.mxu0 0
          %4189 = vmatprep.subr.bf16.mxu0 0
          %4190 = vmatpush1.bf16.msra.mxu0 0
          %4191 = vmatprep.subr.bf16.mxu0 0
          %4192 = vmatpush1.bf16.msra.mxu0 0
          %4193 = vmatprep.subr.bf16.mxu0 0
          %4194 = vmatpush1.bf16.msra.mxu0 0
          %4195 = vmatprep.subr.bf16.mxu0 0
          %4196 = vmatpush1.bf16.msra.mxu0 0
          %4197 = vmatprep.subr.bf16.mxu0 0
          %4198 = vmatpush1.bf16.msra.mxu0 0
          %4199 = vmatprep.subr.bf16.mxu0 0
          %4200 = vmatpush1.bf16.msra.mxu0 0
          %4201 = vmatprep.subr.bf16.mxu0 0
          %4202 = vmatpush1.bf16.msra.mxu0 0
          %4203 = vmatprep.subr.bf16.mxu0 0
          %4204 = vmatpush1.bf16.msra.mxu0 0
          %4205 = vmatprep.subr.bf16.mxu0 0
          %4206 = vmatpush1.bf16.msra.mxu0 0
          %4207 = vmatprep.subr.bf16.mxu0 0
          %4208 = vmatpush1.bf16.msra.mxu0 0
          %4209 = vmatprep.subr.bf16.mxu0 0
          %4210 = vmatpush1.bf16.msra.mxu0 0
          %4211 = vmatprep.mubr.bf16.mxu0 0
          %4212 = vmatmul.mubr.bf16.gmra.mrb[0].mxu0 %v2830
          %v4213 = vpop.f32.mrb[0].mxu0
          %v4214 = vadd.f32 0.0, %v4213
          %v4215 = vpop.f32.mrb[0].mxu0
          %v4216 = vadd.f32 0.0, %v4215
          %v4217 = vpop.f32.mrb[0].mxu0
          %v4218 = vpop.f32.mrb[0].mxu0
          %4219 = vdwg.mxu0
          %v4228 = vunpack.c.l.b16 %v2772
          %v4229 = vunpack.c.h.b16 %v2772
          %v4230 = vunpack.c.l.b16 %v2773
          %v4231 = vunpack.c.h.b16 %v2773
          %v4232 = vunpack.c.l.b16 %v2774
          %v4233 = vunpack.c.h.b16 %v2774
          %v4234 = vunpack.c.l.b16 %v2775
          %v4235 = vunpack.c.h.b16 %v2775
          %v4236 = vunpack.c.l.b16 %v2776
          %v4237 = vunpack.c.h.b16 %v2776
          %v4238 = vunpack.c.l.b16 %v2777
          %v4239 = vunpack.c.h.b16 %v2777
          %v4240 = vunpack.c.l.b16 %v2778
          %v4241 = vunpack.c.h.b16 %v2778
          %v4242 = vunpack.c.l.b16 %v2779
          %v4243 = vunpack.c.h.b16 %v2779
          %v4244 = vpack.c.b16 %v4236, %v4228
          %v4245 = vpack.c.b16 %v4237, %v4229
          %v4246 = vpack.c.b16 %v4238, %v4230
          %v4247 = vpack.c.b16 %v4239, %v4231
          %v4248 = vpack.c.b16 %v4240, %v4232
          %v4249 = vpack.c.b16 %v4241, %v4233
          %v4250 = vpack.c.b16 %v4242, %v4234
          %v4251 = vpack.c.b16 %v4243, %v4235
          %4260 = vmatprep.subr.bf16.mxu0 %v4245
          %4261 = vmatpush1.bf16.msra.mxu0 %v4244
          %4262 = vmatprep.subr.bf16.mxu0 0
          %4263 = vmatpush1.bf16.msra.mxu0 0
          %4264 = vmatprep.subr.bf16.mxu0 0
          %4265 = vmatpush1.bf16.msra.mxu0 0
          %4266 = vmatprep.subr.bf16.mxu0 0
          %4267 = vmatpush1.bf16.msra.mxu0 0
          %4268 = vmatprep.subr.bf16.mxu0 0
          %4269 = vmatpush1.bf16.msra.mxu0 0
          %4270 = vmatprep.subr.bf16.mxu0 0
          %4271 = vmatpush1.bf16.msra.mxu0 0
          %4272 = vmatprep.subr.bf16.mxu0 0
          %4273 = vmatpush1.bf16.msra.mxu0 0
          %4274 = vmatprep.subr.bf16.mxu0 0
          %4275 = vmatpush1.bf16.msra.mxu0 0
          %4276 = vmatprep.subr.bf16.mxu0 0
          %4277 = vmatpush1.bf16.msra.mxu0 0
          %4278 = vmatprep.subr.bf16.mxu0 0
          %4279 = vmatpush1.bf16.msra.mxu0 0
          %4280 = vmatprep.subr.bf16.mxu0 0
          %4281 = vmatpush1.bf16.msra.mxu0 0
          %4282 = vmatprep.subr.bf16.mxu0 0
          %4283 = vmatpush1.bf16.msra.mxu0 0
          %4284 = vmatprep.subr.bf16.mxu0 0
          %4285 = vmatpush1.bf16.msra.mxu0 0
          %4286 = vmatprep.subr.bf16.mxu0 0
          %4287 = vmatpush1.bf16.msra.mxu0 0
          %4288 = vmatprep.subr.bf16.mxu0 0
          %4289 = vmatpush1.bf16.msra.mxu0 0
          %4290 = vmatprep.subr.bf16.mxu0 0
          %4291 = vmatpush1.bf16.msra.mxu0 0
          %4292 = vmatprep.mubr.bf16.mxu0 0
          %4293 = vmatmul.mubr.bf16.gmra.mrb[0].mxu0 %v2830
          %v4294 = vpop.f32.mrb[0].mxu0
          %v4295 = vadd.f32 0.0, %v4294
          %v4296 = vpop.f32.mrb[0].mxu0
          %v4297 = vadd.f32 0.0, %v4296
          %v4298 = vpop.f32.mrb[0].mxu0
          %v4299 = vpop.f32.mrb[0].mxu0
          %4300 = vdwg.mxu0
          %4301 = vmatprep.subr.bf16.mxu0 %v4247
          %4302 = vmatpush1.bf16.msra.mxu0 %v4246
          %4303 = vmatprep.subr.bf16.mxu0 0
          %4304 = vmatpush1.bf16.msra.mxu0 0
          %4305 = vmatprep.subr.bf16.mxu0 0
          %4306 = vmatpush1.bf16.msra.mxu0 0
          %4307 = vmatprep.subr.bf16.mxu0 0
          %4308 = vmatpush1.bf16.msra.mxu0 0
          %4309 = vmatprep.subr.bf16.mxu0 0
          %4310 = vmatpush1.bf16.msra.mxu0 0
          %4311 = vmatprep.subr.bf16.mxu0 0
          %4312 = vmatpush1.bf16.msra.mxu0 0
          %4313 = vmatprep.subr.bf16.mxu0 0
          %4314 = vmatpush1.bf16.msra.mxu0 0
          %4315 = vmatprep.subr.bf16.mxu0 0
          %4316 = vmatpush1.bf16.msra.mxu0 0
          %4317 = vmatprep.subr.bf16.mxu0 0
          %4318 = vmatpush1.bf16.msra.mxu0 0
          %4319 = vmatprep.subr.bf16.mxu0 0
          %4320 = vmatpush1.bf16.msra.mxu0 0
          %4321 = vmatprep.subr.bf16.mxu0 0
          %4322 = vmatpush1.bf16.msra.mxu0 0
          %4323 = vmatprep.subr.bf16.mxu0 0
          %4324 = vmatpush1.bf16.msra.mxu0 0
          %4325 = vmatprep.subr.bf16.mxu0 0
          %4326 = vmatpush1.bf16.msra.mxu0 0
          %4327 = vmatprep.subr.bf16.mxu0 0
          %4328 = vmatpush1.bf16.msra.mxu0 0
          %4329 = vmatprep.subr.bf16.mxu0 0
          %4330 = vmatpush1.bf16.msra.mxu0 0
          %4331 = vmatprep.subr.bf16.mxu0 0
          %4332 = vmatpush1.bf16.msra.mxu0 0
          %4333 = vmatprep.mubr.bf16.mxu0 0
          %4334 = vmatmul.mubr.bf16.gmra.mrb[0].mxu0 %v2830
          %v4335 = vpop.f32.mrb[0].mxu0
          %v4336 = vadd.f32 0.0, %v4335
          %v4337 = vpop.f32.mrb[0].mxu0
          %v4338 = vadd.f32 0.0, %v4337
          %v4339 = vpop.f32.mrb[0].mxu0
          %v4340 = vpop.f32.mrb[0].mxu0
          %4341 = vdwg.mxu0
          %4342 = vmatprep.subr.bf16.mxu0 %v4249
          %4343 = vmatpush1.bf16.msra.mxu0 %v4248
          %4344 = vmatprep.subr.bf16.mxu0 0
          %4345 = vmatpush1.bf16.msra.mxu0 0
          %4346 = vmatprep.subr.bf16.mxu0 0
          %4347 = vmatpush1.bf16.msra.mxu0 0
          %4348 = vmatprep.subr.bf16.mxu0 0
          %4349 = vmatpush1.bf16.msra.mxu0 0
          %4350 = vmatprep.subr.bf16.mxu0 0
          %4351 = vmatpush1.bf16.msra.mxu0 0
          %4352 = vmatprep.subr.bf16.mxu0 0
          %4353 = vmatpush1.bf16.msra.mxu0 0
          %4354 = vmatprep.subr.bf16.mxu0 0
          %4355 = vmatpush1.bf16.msra.mxu0 0
          %4356 = vmatprep.subr.bf16.mxu0 0
          %4357 = vmatpush1.bf16.msra.mxu0 0
          %4358 = vmatprep.subr.bf16.mxu0 0
          %4359 = vmatpush1.bf16.msra.mxu0 0
          %4360 = vmatprep.subr.bf16.mxu0 0
          %4361 = vmatpush1.bf16.msra.mxu0 0
          %4362 = vmatprep.subr.bf16.mxu0 0
          %4363 = vmatpush1.bf16.msra.mxu0 0
          %4364 = vmatprep.subr.bf16.mxu0 0
          %4365 = vmatpush1.bf16.msra.mxu0 0
          %4366 = vmatprep.subr.bf16.mxu0 0
          %4367 = vmatpush1.bf16.msra.mxu0 0
          %4368 = vmatprep.subr.bf16.mxu0 0
          %4369 = vmatpush1.bf16.msra.mxu0 0
          %4370 = vmatprep.subr.bf16.mxu0 0
          %4371 = vmatpush1.bf16.msra.mxu0 0
          %4372 = vmatprep.subr.bf16.mxu0 0
          %4373 = vmatpush1.bf16.msra.mxu0 0
          %4374 = vmatprep.mubr.bf16.mxu0 0
          %4375 = vmatmul.mubr.bf16.gmra.mrb[0].mxu0 %v2830
          %v4376 = vpop.f32.mrb[0].mxu0
          %v4377 = vadd.f32 0.0, %v4376
          %v4378 = vpop.f32.mrb[0].mxu0
          %v4379 = vadd.f32 0.0, %v4378
          %v4380 = vpop.f32.mrb[0].mxu0
          %v4381 = vpop.f32.mrb[0].mxu0
          %4382 = vdwg.mxu0
          %4383 = vmatprep.subr.bf16.mxu0 %v4251
          %4384 = vmatpush1.bf16.msra.mxu0 %v4250
          %4385 = vmatprep.subr.bf16.mxu0 0
          %4386 = vmatpush1.bf16.msra.mxu0 0
          %4387 = vmatprep.subr.bf16.mxu0 0
          %4388 = vmatpush1.bf16.msra.mxu0 0
          %4389 = vmatprep.subr.bf16.mxu0 0
          %4390 = vmatpush1.bf16.msra.mxu0 0
          %4391 = vmatprep.subr.bf16.mxu0 0
          %4392 = vmatpush1.bf16.msra.mxu0 0
          %4393 = vmatprep.subr.bf16.mxu0 0
          %4394 = vmatpush1.bf16.msra.mxu0 0
          %4395 = vmatprep.subr.bf16.mxu0 0
          %4396 = vmatpush1.bf16.msra.mxu0 0
          %4397 = vmatprep.subr.bf16.mxu0 0
          %4398 = vmatpush1.bf16.msra.mxu0 0
          %4399 = vmatprep.subr.bf16.mxu0 0
          %4400 = vmatpush1.bf16.msra.mxu0 0
          %4401 = vmatprep.subr.bf16.mxu0 0
          %4402 = vmatpush1.bf16.msra.mxu0 0
          %4403 = vmatprep.subr.bf16.mxu0 0
          %4404 = vmatpush1.bf16.msra.mxu0 0
          %4405 = vmatprep.subr.bf16.mxu0 0
          %4406 = vmatpush1.bf16.msra.mxu0 0
          %4407 = vmatprep.subr.bf16.mxu0 0
          %4408 = vmatpush1.bf16.msra.mxu0 0
          %4409 = vmatprep.subr.bf16.mxu0 0
          %4410 = vmatpush1.bf16.msra.mxu0 0
          %4411 = vmatprep.subr.bf16.mxu0 0
          %4412 = vmatpush1.bf16.msra.mxu0 0
          %4413 = vmatprep.subr.bf16.mxu0 0
          %4414 = vmatpush1.bf16.msra.mxu0 0
          %4415 = vmatprep.mubr.bf16.mxu0 0
          %4416 = vmatmul.mubr.bf16.gmra.mrb[0].mxu0 %v2830
          %v4417 = vpop.f32.mrb[0].mxu0
          %v4418 = vadd.f32 0.0, %v4417
          %v4419 = vpop.f32.mrb[0].mxu0
          %v4420 = vadd.f32 0.0, %v4419
          %v4421 = vpop.f32.mrb[0].mxu0
          %v4422 = vpop.f32.mrb[0].mxu0
          %4423 = vdwg.mxu0
          %v4488 = vcombine.low %v2867, %v2869
          %v4489 = vcombine.low %v2908, %v2910
          %v4490 = vcombine.low %v2949, %v2951
          %v4491 = vcombine.low %v2990, %v2992
          %v4493 = vunpack.c.l.s4 1966171168
          %v4494 = vunpack.c.0.s8 %v4493
          %v4495 = vlaneseq
          %v4496 = vshrl.u32 %v4495, 7
          %v4497 = vsub.s32 %v4494, %v4496
          %v4498 = vrot.slane %v4488, %v4497
          %v4500 = vunpack.c.l.s4 1966171168
          %v4501 = vunpack.c.0.s8 %v4500
          %v4502 = vlaneseq
          %v4503 = vshrl.u32 %v4502, 7
          %v4504 = vsub.s32 %v4501, %v4503
          %v4505 = vrot.slane %v4489, %v4504
          %v4507 = vunpack.c.l.s4 1966171168
          %v4508 = vunpack.c.0.s8 %v4507
          %v4509 = vlaneseq
          %v4510 = vshrl.u32 %v4509, 7
          %v4511 = vsub.s32 %v4508, %v4510
          %v4512 = vrot.slane %v4490, %v4511
          %v4514 = vunpack.c.l.s4 1966171168
          %v4515 = vunpack.c.0.s8 %v4514
          %v4516 = vlaneseq
          %v4517 = vshrl.u32 %v4516, 7
          %v4518 = vsub.s32 %v4515, %v4517
          %v4519 = vrot.slane %v4491, %v4518
          %v4520 = vcombine.low %v4498, %v4505
          %v4521 = vcombine.low %v4512, %v4519
          %v4523 = vunpack.c.l.s4 1966171168
          %v4524 = vunpack.c.0.s8 %v4523
          %v4525 = vlaneseq
          %v4526 = vshrl.u32 %v4525, 7
          %v4527 = vsub.s32 %v4524, %v4526
          %v4528 = vrot.slane %v4520, %v4527
          %v4530 = vunpack.c.l.s4 1966171168
          %v4531 = vunpack.c.0.s8 %v4530
          %v4532 = vlaneseq
          %v4533 = vshrl.u32 %v4532, 7
          %v4534 = vsub.s32 %v4531, %v4533
          %v4535 = vrot.slane %v4521, %v4534
          %v4536 = vcombine.low %v4528, %v4535
          %v4537 = vcombine.low %v3071, %v3073
          %v4538 = vcombine.low %v3112, %v3114
          %v4539 = vcombine.low %v3153, %v3155
          %v4540 = vcombine.low %v3194, %v3196
          %v4542 = vunpack.c.l.s4 1966171168
          %v4543 = vunpack.c.0.s8 %v4542
          %v4544 = vlaneseq
          %v4545 = vshrl.u32 %v4544, 7
          %v4546 = vsub.s32 %v4543, %v4545
          %v4547 = vrot.slane %v4537, %v4546
          %v4549 = vunpack.c.l.s4 1966171168
          %v4550 = vunpack.c.0.s8 %v4549
          %v4551 = vlaneseq
          %v4552 = vshrl.u32 %v4551, 7
          %v4553 = vsub.s32 %v4550, %v4552
          %v4554 = vrot.slane %v4538, %v4553
          %v4556 = vunpack.c.l.s4 1966171168
          %v4557 = vunpack.c.0.s8 %v4556
          %v4558 = vlaneseq
          %v4559 = vshrl.u32 %v4558, 7
          %v4560 = vsub.s32 %v4557, %v4559
          %v4561 = vrot.slane %v4539, %v4560
          %v4563 = vunpack.c.l.s4 1966171168
          %v4564 = vunpack.c.0.s8 %v4563
          %v4565 = vlaneseq
          %v4566 = vshrl.u32 %v4565, 7
          %v4567 = vsub.s32 %v4564, %v4566
          %v4568 = vrot.slane %v4540, %v4567
          %v4569 = vcombine.low %v4547, %v4554
          %v4570 = vcombine.low %v4561, %v4568
          %v4572 = vunpack.c.l.s4 1966171168
          %v4573 = vunpack.c.0.s8 %v4572
          %v4574 = vlaneseq
          %v4575 = vshrl.u32 %v4574, 7
          %v4576 = vsub.s32 %v4573, %v4575
          %v4577 = vrot.slane %v4569, %v4576
          %v4579 = vunpack.c.l.s4 1966171168
          %v4580 = vunpack.c.0.s8 %v4579
          %v4581 = vlaneseq
          %v4582 = vshrl.u32 %v4581, 7
          %v4583 = vsub.s32 %v4580, %v4582
          %v4584 = vrot.slane %v4570, %v4583
          %v4585 = vcombine.low %v4577, %v4584
          %v4586 = vcombine.low %v3275, %v3277
          %v4587 = vcombine.low %v3316, %v3318
          %v4588 = vcombine.low %v3357, %v3359
          %v4589 = vcombine.low %v3398, %v3400
          %v4591 = vunpack.c.l.s4 1966171168
          %v4592 = vunpack.c.0.s8 %v4591
          %v4593 = vlaneseq
          %v4594 = vshrl.u32 %v4593, 7
          %v4595 = vsub.s32 %v4592, %v4594
          %v4596 = vrot.slane %v4586, %v4595
          %v4598 = vunpack.c.l.s4 1966171168
          %v4599 = vunpack.c.0.s8 %v4598
          %v4600 = vlaneseq
          %v4601 = vshrl.u32 %v4600, 7
          %v4602 = vsub.s32 %v4599, %v4601
          %v4603 = vrot.slane %v4587, %v4602
          %v4605 = vunpack.c.l.s4 1966171168
          %v4606 = vunpack.c.0.s8 %v4605
          %v4607 = vlaneseq
          %v4608 = vshrl.u32 %v4607, 7
          %v4609 = vsub.s32 %v4606, %v4608
          %v4610 = vrot.slane %v4588, %v4609
          %v4612 = vunpack.c.l.s4 1966171168
          %v4613 = vunpack.c.0.s8 %v4612
          %v4614 = vlaneseq
          %v4615 = vshrl.u32 %v4614, 7
          %v4616 = vsub.s32 %v4613, %v4615
          %v4617 = vrot.slane %v4589, %v4616
          %v4618 = vcombine.low %v4596, %v4603
          %v4619 = vcombine.low %v4610, %v4617
          %v4621 = vunpack.c.l.s4 1966171168
          %v4622 = vunpack.c.0.s8 %v4621
          %v4623 = vlaneseq
          %v4624 = vshrl.u32 %v4623, 7
          %v4625 = vsub.s32 %v4622, %v4624
          %v4626 = vrot.slane %v4618, %v4625
          %v4628 = vunpack.c.l.s4 1966171168
          %v4629 = vunpack.c.0.s8 %v4628
          %v4630 = vlaneseq
          %v4631 = vshrl.u32 %v4630, 7
          %v4632 = vsub.s32 %v4629, %v4631
          %v4633 = vrot.slane %v4619, %v4632
          %v4634 = vcombine.low %v4626, %v4633
          %v4635 = vcombine.low %v3479, %v3481
          %v4636 = vcombine.low %v3520, %v3522
          %v4637 = vcombine.low %v3561, %v3563
          %v4638 = vcombine.low %v3602, %v3604
          %v4640 = vunpack.c.l.s4 1966171168
          %v4641 = vunpack.c.0.s8 %v4640
          %v4642 = vlaneseq
          %v4643 = vshrl.u32 %v4642, 7
          %v4644 = vsub.s32 %v4641, %v4643
          %v4645 = vrot.slane %v4635, %v4644
          %v4647 = vunpack.c.l.s4 1966171168
          %v4648 = vunpack.c.0.s8 %v4647
          %v4649 = vlaneseq
          %v4650 = vshrl.u32 %v4649, 7
          %v4651 = vsub.s32 %v4648, %v4650
          %v4652 = vrot.slane %v4636, %v4651
          %v4654 = vunpack.c.l.s4 1966171168
          %v4655 = vunpack.c.0.s8 %v4654
          %v4656 = vlaneseq
          %v4657 = vshrl.u32 %v4656, 7
          %v4658 = vsub.s32 %v4655, %v4657
          %v4659 = vrot.slane %v4637, %v4658
          %v4661 = vunpack.c.l.s4 1966171168
          %v4662 = vunpack.c.0.s8 %v4661
          %v4663 = vlaneseq
          %v4664 = vshrl.u32 %v4663, 7
          %v4665 = vsub.s32 %v4662, %v4664
          %v4666 = vrot.slane %v4638, %v4665
          %v4667 = vcombine.low %v4645, %v4652
          %v4668 = vcombine.low %v4659, %v4666
          %v4670 = vunpack.c.l.s4 1966171168
          %v4671 = vunpack.c.0.s8 %v4670
          %v4672 = vlaneseq
          %v4673 = vshrl.u32 %v4672, 7
          %v4674 = vsub.s32 %v4671, %v4673
          %v4675 = vrot.slane %v4667, %v4674
          %v4677 = vunpack.c.l.s4 1966171168
          %v4678 = vunpack.c.0.s8 %v4677
          %v4679 = vlaneseq
          %v4680 = vshrl.u32 %v4679, 7
          %v4681 = vsub.s32 %v4678, %v4680
          %v4682 = vrot.slane %v4668, %v4681
          %v4683 = vcombine.low %v4675, %v4682
          %v4684 = vcombine.low %v3683, %v3685
          %v4685 = vcombine.low %v3724, %v3726
          %v4686 = vcombine.low %v3765, %v3767
          %v4687 = vcombine.low %v3806, %v3808
          %v4689 = vunpack.c.l.s4 1966171168
          %v4690 = vunpack.c.0.s8 %v4689
          %v4691 = vlaneseq
          %v4692 = vshrl.u32 %v4691, 7
          %v4693 = vsub.s32 %v4690, %v4692
          %v4694 = vrot.slane %v4684, %v4693
          %v4696 = vunpack.c.l.s4 1966171168
          %v4697 = vunpack.c.0.s8 %v4696
          %v4698 = vlaneseq
          %v4699 = vshrl.u32 %v4698, 7
          %v4700 = vsub.s32 %v4697, %v4699
          %v4701 = vrot.slane %v4685, %v4700
          %v4703 = vunpack.c.l.s4 1966171168
          %v4704 = vunpack.c.0.s8 %v4703
          %v4705 = vlaneseq
          %v4706 = vshrl.u32 %v4705, 7
          %v4707 = vsub.s32 %v4704, %v4706
          %v4708 = vrot.slane %v4686, %v4707
          %v4710 = vunpack.c.l.s4 1966171168
          %v4711 = vunpack.c.0.s8 %v4710
          %v4712 = vlaneseq
          %v4713 = vshrl.u32 %v4712, 7
          %v4714 = vsub.s32 %v4711, %v4713
          %v4715 = vrot.slane %v4687, %v4714
          %v4716 = vcombine.low %v4694, %v4701
          %v4717 = vcombine.low %v4708, %v4715
          %v4719 = vunpack.c.l.s4 1966171168
          %v4720 = vunpack.c.0.s8 %v4719
          %v4721 = vlaneseq
          %v4722 = vshrl.u32 %v4721, 7
          %v4723 = vsub.s32 %v4720, %v4722
          %v4724 = vrot.slane %v4716, %v4723
          %v4726 = vunpack.c.l.s4 1966171168
          %v4727 = vunpack.c.0.s8 %v4726
          %v4728 = vlaneseq
          %v4729 = vshrl.u32 %v4728, 7
          %v4730 = vsub.s32 %v4727, %v4729
          %v4731 = vrot.slane %v4717, %v4730
          %v4732 = vcombine.low %v4724, %v4731
          %v4733 = vcombine.low %v3887, %v3889
          %v4734 = vcombine.low %v3928, %v3930
          %v4735 = vcombine.low %v3969, %v3971
          %v4736 = vcombine.low %v4010, %v4012
          %v4738 = vunpack.c.l.s4 1966171168
          %v4739 = vunpack.c.0.s8 %v4738
          %v4740 = vlaneseq
          %v4741 = vshrl.u32 %v4740, 7
          %v4742 = vsub.s32 %v4739, %v4741
          %v4743 = vrot.slane %v4733, %v4742
          %v4745 = vunpack.c.l.s4 1966171168
          %v4746 = vunpack.c.0.s8 %v4745
          %v4747 = vlaneseq
          %v4748 = vshrl.u32 %v4747, 7
          %v4749 = vsub.s32 %v4746, %v4748
          %v4750 = vrot.slane %v4734, %v4749
          %v4752 = vunpack.c.l.s4 1966171168
          %v4753 = vunpack.c.0.s8 %v4752
          %v4754 = vlaneseq
          %v4755 = vshrl.u32 %v4754, 7
          %v4756 = vsub.s32 %v4753, %v4755
          %v4757 = vrot.slane %v4735, %v4756
          %v4759 = vunpack.c.l.s4 1966171168
          %v4760 = vunpack.c.0.s8 %v4759
          %v4761 = vlaneseq
          %v4762 = vshrl.u32 %v4761, 7
          %v4763 = vsub.s32 %v4760, %v4762
          %v4764 = vrot.slane %v4736, %v4763
          %v4765 = vcombine.low %v4743, %v4750
          %v4766 = vcombine.low %v4757, %v4764
          %v4768 = vunpack.c.l.s4 1966171168
          %v4769 = vunpack.c.0.s8 %v4768
          %v4770 = vlaneseq
          %v4771 = vshrl.u32 %v4770, 7
          %v4772 = vsub.s32 %v4769, %v4771
          %v4773 = vrot.slane %v4765, %v4772
          %v4775 = vunpack.c.l.s4 1966171168
          %v4776 = vunpack.c.0.s8 %v4775
          %v4777 = vlaneseq
          %v4778 = vshrl.u32 %v4777, 7
          %v4779 = vsub.s32 %v4776, %v4778
          %v4780 = vrot.slane %v4766, %v4779
          %v4781 = vcombine.low %v4773, %v4780
          %v4782 = vcombine.low %v4091, %v4093
          %v4783 = vcombine.low %v4132, %v4134
          %v4784 = vcombine.low %v4173, %v4175
          %v4785 = vcombine.low %v4214, %v4216
          %v4787 = vunpack.c.l.s4 1966171168
          %v4788 = vunpack.c.0.s8 %v4787
          %v4789 = vlaneseq
          %v4790 = vshrl.u32 %v4789, 7
          %v4791 = vsub.s32 %v4788, %v4790
          %v4792 = vrot.slane %v4782, %v4791
          %v4794 = vunpack.c.l.s4 1966171168
          %v4795 = vunpack.c.0.s8 %v4794
          %v4796 = vlaneseq
          %v4797 = vshrl.u32 %v4796, 7
          %v4798 = vsub.s32 %v4795, %v4797
          %v4799 = vrot.slane %v4783, %v4798
          %v4801 = vunpack.c.l.s4 1966171168
          %v4802 = vunpack.c.0.s8 %v4801
          %v4803 = vlaneseq
          %v4804 = vshrl.u32 %v4803, 7
          %v4805 = vsub.s32 %v4802, %v4804
          %v4806 = vrot.slane %v4784, %v4805
          %v4808 = vunpack.c.l.s4 1966171168
          %v4809 = vunpack.c.0.s8 %v4808
          %v4810 = vlaneseq
          %v4811 = vshrl.u32 %v4810, 7
          %v4812 = vsub.s32 %v4809, %v4811
          %v4813 = vrot.slane %v4785, %v4812
          %v4814 = vcombine.low %v4792, %v4799
          %v4815 = vcombine.low %v4806, %v4813
          %v4817 = vunpack.c.l.s4 1966171168
          %v4818 = vunpack.c.0.s8 %v4817
          %v4819 = vlaneseq
          %v4820 = vshrl.u32 %v4819, 7
          %v4821 = vsub.s32 %v4818, %v4820
          %v4822 = vrot.slane %v4814, %v4821
          %v4824 = vunpack.c.l.s4 1966171168
          %v4825 = vunpack.c.0.s8 %v4824
          %v4826 = vlaneseq
          %v4827 = vshrl.u32 %v4826, 7
          %v4828 = vsub.s32 %v4825, %v4827
          %v4829 = vrot.slane %v4815, %v4828
          %v4830 = vcombine.low %v4822, %v4829
          %v4831 = vcombine.low %v4295, %v4297
          %v4832 = vcombine.low %v4336, %v4338
          %v4833 = vcombine.low %v4377, %v4379
          %v4834 = vcombine.low %v4418, %v4420
          %v4836 = vunpack.c.l.s4 1966171168
          %v4837 = vunpack.c.0.s8 %v4836
          %v4838 = vlaneseq
          %v4839 = vshrl.u32 %v4838, 7
          %v4840 = vsub.s32 %v4837, %v4839
          %v4841 = vrot.slane %v4831, %v4840
          %v4843 = vunpack.c.l.s4 1966171168
          %v4844 = vunpack.c.0.s8 %v4843
          %v4845 = vlaneseq
          %v4846 = vshrl.u32 %v4845, 7
          %v4847 = vsub.s32 %v4844, %v4846
          %v4848 = vrot.slane %v4832, %v4847
          %v4850 = vunpack.c.l.s4 1966171168
          %v4851 = vunpack.c.0.s8 %v4850
          %v4852 = vlaneseq
          %v4853 = vshrl.u32 %v4852, 7
          %v4854 = vsub.s32 %v4851, %v4853
          %v4855 = vrot.slane %v4833, %v4854
          %v4857 = vunpack.c.l.s4 1966171168
          %v4858 = vunpack.c.0.s8 %v4857
          %v4859 = vlaneseq
          %v4860 = vshrl.u32 %v4859, 7
          %v4861 = vsub.s32 %v4858, %v4860
          %v4862 = vrot.slane %v4834, %v4861
          %v4863 = vcombine.low %v4841, %v4848
          %v4864 = vcombine.low %v4855, %v4862
          %v4866 = vunpack.c.l.s4 1966171168
          %v4867 = vunpack.c.0.s8 %v4866
          %v4868 = vlaneseq
          %v4869 = vshrl.u32 %v4868, 7
          %v4870 = vsub.s32 %v4867, %v4869
          %v4871 = vrot.slane %v4863, %v4870
          %v4873 = vunpack.c.l.s4 1966171168
          %v4874 = vunpack.c.0.s8 %v4873
          %v4875 = vlaneseq
          %v4876 = vshrl.u32 %v4875, 7
          %v4877 = vsub.s32 %v4874, %v4876
          %v4878 = vrot.slane %v4864, %v4877
          %v4879 = vcombine.low %v4871, %v4878
          %v4888 = vadd.f32 %v2780, %v4536
          %v4889 = vadd.f32 %v2781, %v4585
          %v4890 = vadd.f32 %v2782, %v4634
          %v4891 = vadd.f32 %v2783, %v4683
          %v4892 = vadd.f32 %v2784, %v4732
          %v4893 = vadd.f32 %v2785, %v4781
          %v4894 = vadd.f32 %v2786, %v4830
          %v4895 = vadd.f32 %v2787, %v4879
          %4896 = vst [vmem:[#allocation2] sm:$0xff] %v4888
          %4897 = vst [vmem:[#allocation2 + $0x8] sm:$0xff] %v4889
          %4898 = vst [vmem:[#allocation2 + $0x10] sm:$0xff] %v4890
          %4899 = vst [vmem:[#allocation2 + $0x18] sm:$0xff] %v4891
          %4900 = vst [vmem:[#allocation2 + $0x20] sm:$0xff] %v4892
          %4901 = vst [vmem:[#allocation2 + $0x28] sm:$0xff] %v4893
          %4902 = vst [vmem:[#allocation2 + $0x30] sm:$0xff] %v4894
          %4903 = vst [vmem:[#allocation2 + $0x38] sm:$0xff] %v4895
        $region88: #{tpu_custom_call.1} parent=47 // pred_fallthru
          _
        %p4904 = scmp.eq.s32.totalorder %s32, 2
        // Predicated region
        $region89: #{tpu_custom_call.1} parent=47 // pred_check
          %p4905 = pneg %p4904
        $region90: #{tpu_custom_call.1} parent=47 // pred_check_branch
          %4907 = sbr.rel (%p4905) target = $region92
        $region91: #{tpu_custom_call.1} parent=47 // pred_region
          %s4908 = scvt.s32.f32 %s445
          %v4909 = vstv %s4908
          %v4910 = vrcp.pop %v4909
          %s4911 = vtos %v4910
          %v4912 = vld [vmem:[#allocation2] sm:$0xff]
          %v4913 = vld [vmem:[#allocation2 + $0x8] sm:$0xff]
          %v4914 = vld [vmem:[#allocation2 + $0x10] sm:$0xff]
          %v4915 = vld [vmem:[#allocation2 + $0x18] sm:$0xff]
          %v4916 = vld [vmem:[#allocation2 + $0x20] sm:$0xff]
          %v4917 = vld [vmem:[#allocation2 + $0x28] sm:$0xff]
          %v4918 = vld [vmem:[#allocation2 + $0x30] sm:$0xff]
          %v4919 = vld [vmem:[#allocation2 + $0x38] sm:$0xff]
          %v4920 = vstv %s4911
          %v4921 = vmul.f32 %v4912, %v4920
          %v4922 = vmul.f32 %v4913, %v4920
          %v4923 = vmul.f32 %v4914, %v4920
          %v4924 = vmul.f32 %v4915, %v4920
          %v4925 = vmul.f32 %v4916, %v4920
          %v4926 = vmul.f32 %v4917, %v4920
          %v4927 = vmul.f32 %v4918, %v4920
          %v4928 = vmul.f32 %v4919, %v4920
          %v4929 = vld [vmem:[#allocation8] sm:$0xff]
          %v4930 = vld [vmem:[#allocation8 + $0x8] sm:$0xff]
          %v4931 = vld [vmem:[#allocation8 + $0x10] sm:$0xff]
          %v4932 = vld [vmem:[#allocation8 + $0x18] sm:$0xff]
          %v4933 = vld [vmem:[#allocation8 + $0x20] sm:$0xff]
          %v4934 = vld [vmem:[#allocation8 + $0x28] sm:$0xff]
          %v4935 = vld [vmem:[#allocation8 + $0x30] sm:$0xff]
          %v4936 = vld [vmem:[#allocation8 + $0x38] sm:$0xff]
          %v4937 = vld [vmem:[#allocation8 + $0x40] sm:$0xff]
          %v4938 = vld [vmem:[#allocation8 + $0x48] sm:$0xff]
          %v4939 = vld [vmem:[#allocation8 + $0x50] sm:$0xff]
          %v4940 = vld [vmem:[#allocation8 + $0x58] sm:$0xff]
          %v4941 = vld [vmem:[#allocation8 + $0x60] sm:$0xff]
          %v4942 = vld [vmem:[#allocation8 + $0x68] sm:$0xff]
          %v4943 = vld [vmem:[#allocation8 + $0x70] sm:$0xff]
          %v4944 = vld [vmem:[#allocation8 + $0x78] sm:$0xff]
          %v4945 = vld [vmem:[#allocation8 + $0x80] sm:$0xff]
          %v4946 = vld [vmem:[#allocation8 + $0x88] sm:$0xff]
          %v4947 = vld [vmem:[#allocation8 + $0x90] sm:$0xff]
          %v4948 = vld [vmem:[#allocation8 + $0x98] sm:$0xff]
          %v4949 = vld [vmem:[#allocation8 + $0xa0] sm:$0xff]
          %v4950 = vld [vmem:[#allocation8 + $0xa8] sm:$0xff]
          %v4951 = vld [vmem:[#allocation8 + $0xb0] sm:$0xff]
          %v4952 = vld [vmem:[#allocation8 + $0xb8] sm:$0xff]
          %v4953 = vld [vmem:[#allocation8 + $0xc0] sm:$0xff]
          %v4954 = vld [vmem:[#allocation8 + $0xc8] sm:$0xff]
          %v4955 = vld [vmem:[#allocation8 + $0xd0] sm:$0xff]
          %v4956 = vld [vmem:[#allocation8 + $0xd8] sm:$0xff]
          %v4957 = vld [vmem:[#allocation8 + $0xe0] sm:$0xff]
          %v4958 = vld [vmem:[#allocation8 + $0xe8] sm:$0xff]
          %v4959 = vld [vmem:[#allocation8 + $0xf0] sm:$0xff]
          %v4960 = vld [vmem:[#allocation8 + $0xf8] sm:$0xff]
          %v4961 = vld [vmem:[#allocation8 + $0x100] sm:$0xff]
          %v4962 = vld [vmem:[#allocation8 + $0x108] sm:$0xff]
          %v4963 = vld [vmem:[#allocation8 + $0x110] sm:$0xff]
          %v4964 = vld [vmem:[#allocation8 + $0x118] sm:$0xff]
          %v4965 = vld [vmem:[#allocation8 + $0x120] sm:$0xff]
          %v4966 = vld [vmem:[#allocation8 + $0x128] sm:$0xff]
          %v4967 = vld [vmem:[#allocation8 + $0x130] sm:$0xff]
          %v4968 = vld [vmem:[#allocation8 + $0x138] sm:$0xff]
          %v4969 = vld [vmem:[#allocation8 + $0x140] sm:$0xff]
          %v4970 = vld [vmem:[#allocation8 + $0x148] sm:$0xff]
          %v4971 = vld [vmem:[#allocation8 + $0x150] sm:$0xff]
          %v4972 = vld [vmem:[#allocation8 + $0x158] sm:$0xff]
          %v4973 = vld [vmem:[#allocation8 + $0x160] sm:$0xff]
          %v4974 = vld [vmem:[#allocation8 + $0x168] sm:$0xff]
          %v4975 = vld [vmem:[#allocation8 + $0x170] sm:$0xff]
          %v4976 = vld [vmem:[#allocation8 + $0x178] sm:$0xff]
          %v4977 = vld [vmem:[#allocation8 + $0x180] sm:$0xff]
          %v4978 = vld [vmem:[#allocation8 + $0x188] sm:$0xff]
          %v4979 = vld [vmem:[#allocation8 + $0x190] sm:$0xff]
          %v4980 = vld [vmem:[#allocation8 + $0x198] sm:$0xff]
          %v4981 = vld [vmem:[#allocation8 + $0x1a0] sm:$0xff]
          %v4982 = vld [vmem:[#allocation8 + $0x1a8] sm:$0xff]
          %v4983 = vld [vmem:[#allocation8 + $0x1b0] sm:$0xff]
          %v4984 = vld [vmem:[#allocation8 + $0x1b8] sm:$0xff]
          %v4985 = vld [vmem:[#allocation8 + $0x1c0] sm:$0xff]
          %v4986 = vld [vmem:[#allocation8 + $0x1c8] sm:$0xff]
          %v4987 = vld [vmem:[#allocation8 + $0x1d0] sm:$0xff]
          %v4988 = vld [vmem:[#allocation8 + $0x1d8] sm:$0xff]
          %v4989 = vld [vmem:[#allocation8 + $0x1e0] sm:$0xff]
          %v4990 = vld [vmem:[#allocation8 + $0x1e8] sm:$0xff]
          %v4991 = vld [vmem:[#allocation8 + $0x1f0] sm:$0xff]
          %v4992 = vld [vmem:[#allocation8 + $0x1f8] sm:$0xff]
          %v4993 = vld [vmem:[#allocation8 + $0x200] sm:$0xff]
          %v4994 = vld [vmem:[#allocation8 + $0x208] sm:$0xff]
          %v4995 = vld [vmem:[#allocation8 + $0x210] sm:$0xff]
          %v4996 = vld [vmem:[#allocation8 + $0x218] sm:$0xff]
          %v4997 = vld [vmem:[#allocation8 + $0x220] sm:$0xff]
          %v4998 = vld [vmem:[#allocation8 + $0x228] sm:$0xff]
          %v4999 = vld [vmem:[#allocation8 + $0x230] sm:$0xff]
          %v5000 = vld [vmem:[#allocation8 + $0x238] sm:$0xff]
          %v5001 = vld [vmem:[#allocation8 + $0x240] sm:$0xff]
          %v5002 = vld [vmem:[#allocation8 + $0x248] sm:$0xff]
          %v5003 = vld [vmem:[#allocation8 + $0x250] sm:$0xff]
          %v5004 = vld [vmem:[#allocation8 + $0x258] sm:$0xff]
          %v5005 = vld [vmem:[#allocation8 + $0x260] sm:$0xff]
          %v5006 = vld [vmem:[#allocation8 + $0x268] sm:$0xff]
          %v5007 = vld [vmem:[#allocation8 + $0x270] sm:$0xff]
          %v5008 = vld [vmem:[#allocation8 + $0x278] sm:$0xff]
          %v5009 = vld [vmem:[#allocation8 + $0x280] sm:$0xff]
          %v5010 = vld [vmem:[#allocation8 + $0x288] sm:$0xff]
          %v5011 = vld [vmem:[#allocation8 + $0x290] sm:$0xff]
          %v5012 = vld [vmem:[#allocation8 + $0x298] sm:$0xff]
          %v5013 = vld [vmem:[#allocation8 + $0x2a0] sm:$0xff]
          %v5014 = vld [vmem:[#allocation8 + $0x2a8] sm:$0xff]
          %v5015 = vld [vmem:[#allocation8 + $0x2b0] sm:$0xff]
          %v5016 = vld [vmem:[#allocation8 + $0x2b8] sm:$0xff]
          %v5017 = vld [vmem:[#allocation8 + $0x2c0] sm:$0xff]
          %v5018 = vld [vmem:[#allocation8 + $0x2c8] sm:$0xff]
          %v5019 = vld [vmem:[#allocation8 + $0x2d0] sm:$0xff]
          %v5020 = vld [vmem:[#allocation8 + $0x2d8] sm:$0xff]
          %v5021 = vld [vmem:[#allocation8 + $0x2e0] sm:$0xff]
          %v5022 = vld [vmem:[#allocation8 + $0x2e8] sm:$0xff]
          %v5023 = vld [vmem:[#allocation8 + $0x2f0] sm:$0xff]
          %v5024 = vld [vmem:[#allocation8 + $0x2f8] sm:$0xff]
          %v5025 = vld [vmem:[#allocation8 + $0x300] sm:$0xff]
          %v5026 = vld [vmem:[#allocation8 + $0x308] sm:$0xff]
          %v5027 = vld [vmem:[#allocation8 + $0x310] sm:$0xff]
          %v5028 = vld [vmem:[#allocation8 + $0x318] sm:$0xff]
          %v5029 = vld [vmem:[#allocation8 + $0x320] sm:$0xff]
          %v5030 = vld [vmem:[#allocation8 + $0x328] sm:$0xff]
          %v5031 = vld [vmem:[#allocation8 + $0x330] sm:$0xff]
          %v5032 = vld [vmem:[#allocation8 + $0x338] sm:$0xff]
          %v5033 = vld [vmem:[#allocation8 + $0x340] sm:$0xff]
          %v5034 = vld [vmem:[#allocation8 + $0x348] sm:$0xff]
          %v5035 = vld [vmem:[#allocation8 + $0x350] sm:$0xff]
          %v5036 = vld [vmem:[#allocation8 + $0x358] sm:$0xff]
          %v5037 = vld [vmem:[#allocation8 + $0x360] sm:$0xff]
          %v5038 = vld [vmem:[#allocation8 + $0x368] sm:$0xff]
          %v5039 = vld [vmem:[#allocation8 + $0x370] sm:$0xff]
          %v5040 = vld [vmem:[#allocation8 + $0x378] sm:$0xff]
          %v5041 = vld [vmem:[#allocation8 + $0x380] sm:$0xff]
          %v5042 = vld [vmem:[#allocation8 + $0x388] sm:$0xff]
          %v5043 = vld [vmem:[#allocation8 + $0x390] sm:$0xff]
          %v5044 = vld [vmem:[#allocation8 + $0x398] sm:$0xff]
          %v5045 = vld [vmem:[#allocation8 + $0x3a0] sm:$0xff]
          %v5046 = vld [vmem:[#allocation8 + $0x3a8] sm:$0xff]
          %v5047 = vld [vmem:[#allocation8 + $0x3b0] sm:$0xff]
          %v5048 = vld [vmem:[#allocation8 + $0x3b8] sm:$0xff]
          %v5049 = vld [vmem:[#allocation8 + $0x3c0] sm:$0xff]
          %v5050 = vld [vmem:[#allocation8 + $0x3c8] sm:$0xff]
          %v5051 = vld [vmem:[#allocation8 + $0x3d0] sm:$0xff]
          %v5052 = vld [vmem:[#allocation8 + $0x3d8] sm:$0xff]
          %v5053 = vld [vmem:[#allocation8 + $0x3e0] sm:$0xff]
          %v5054 = vld [vmem:[#allocation8 + $0x3e8] sm:$0xff]
          %v5055 = vld [vmem:[#allocation8 + $0x3f0] sm:$0xff]
          %v5056 = vld [vmem:[#allocation8 + $0x3f8] sm:$0xff]
          %v5057 = vld [vmem:[#allocation8 + $0x400] sm:$0xff]
          %v5058 = vld [vmem:[#allocation8 + $0x408] sm:$0xff]
          %v5059 = vld [vmem:[#allocation8 + $0x410] sm:$0xff]
          %v5060 = vld [vmem:[#allocation8 + $0x418] sm:$0xff]
          %v5061 = vld [vmem:[#allocation8 + $0x420] sm:$0xff]
          %v5062 = vld [vmem:[#allocation8 + $0x428] sm:$0xff]
          %v5063 = vld [vmem:[#allocation8 + $0x430] sm:$0xff]
          %v5064 = vld [vmem:[#allocation8 + $0x438] sm:$0xff]
          %v5065 = vld [vmem:[#allocation8 + $0x440] sm:$0xff]
          %v5066 = vld [vmem:[#allocation8 + $0x448] sm:$0xff]
          %v5067 = vld [vmem:[#allocation8 + $0x450] sm:$0xff]
          %v5068 = vld [vmem:[#allocation8 + $0x458] sm:$0xff]
          %v5069 = vld [vmem:[#allocation8 + $0x460] sm:$0xff]
          %v5070 = vld [vmem:[#allocation8 + $0x468] sm:$0xff]
          %v5071 = vld [vmem:[#allocation8 + $0x470] sm:$0xff]
          %v5072 = vld [vmem:[#allocation8 + $0x478] sm:$0xff]
          %v5073 = vld [vmem:[#allocation8 + $0x480] sm:$0xff]
          %v5074 = vld [vmem:[#allocation8 + $0x488] sm:$0xff]
          %v5075 = vld [vmem:[#allocation8 + $0x490] sm:$0xff]
          %v5076 = vld [vmem:[#allocation8 + $0x498] sm:$0xff]
          %v5077 = vld [vmem:[#allocation8 + $0x4a0] sm:$0xff]
          %v5078 = vld [vmem:[#allocation8 + $0x4a8] sm:$0xff]
          %v5079 = vld [vmem:[#allocation8 + $0x4b0] sm:$0xff]
          %v5080 = vld [vmem:[#allocation8 + $0x4b8] sm:$0xff]
          %v5081 = vld [vmem:[#allocation8 + $0x4c0] sm:$0xff]
          %v5082 = vld [vmem:[#allocation8 + $0x4c8] sm:$0xff]
          %v5083 = vld [vmem:[#allocation8 + $0x4d0] sm:$0xff]
          %v5084 = vld [vmem:[#allocation8 + $0x4d8] sm:$0xff]
          %v5085 = vld [vmem:[#allocation8 + $0x4e0] sm:$0xff]
          %v5086 = vld [vmem:[#allocation8 + $0x4e8] sm:$0xff]
          %v5087 = vld [vmem:[#allocation8 + $0x4f0] sm:$0xff]
          %v5088 = vld [vmem:[#allocation8 + $0x4f8] sm:$0xff]
          %v5089 = vld [vmem:[#allocation8 + $0x500] sm:$0xff]
          %v5090 = vld [vmem:[#allocation8 + $0x508] sm:$0xff]
          %v5091 = vld [vmem:[#allocation8 + $0x510] sm:$0xff]
          %v5092 = vld [vmem:[#allocation8 + $0x518] sm:$0xff]
          %v5093 = vld [vmem:[#allocation8 + $0x520] sm:$0xff]
          %v5094 = vld [vmem:[#allocation8 + $0x528] sm:$0xff]
          %v5095 = vld [vmem:[#allocation8 + $0x530] sm:$0xff]
          %v5096 = vld [vmem:[#allocation8 + $0x538] sm:$0xff]
          %v5097 = vld [vmem:[#allocation8 + $0x540] sm:$0xff]
          %v5098 = vld [vmem:[#allocation8 + $0x548] sm:$0xff]
          %v5099 = vld [vmem:[#allocation8 + $0x550] sm:$0xff]
          %v5100 = vld [vmem:[#allocation8 + $0x558] sm:$0xff]
          %v5101 = vld [vmem:[#allocation8 + $0x560] sm:$0xff]
          %v5102 = vld [vmem:[#allocation8 + $0x568] sm:$0xff]
          %v5103 = vld [vmem:[#allocation8 + $0x570] sm:$0xff]
          %v5104 = vld [vmem:[#allocation8 + $0x578] sm:$0xff]
          %v5105 = vld [vmem:[#allocation8 + $0x580] sm:$0xff]
          %v5106 = vld [vmem:[#allocation8 + $0x588] sm:$0xff]
          %v5107 = vld [vmem:[#allocation8 + $0x590] sm:$0xff]
          %v5108 = vld [vmem:[#allocation8 + $0x598] sm:$0xff]
          %v5109 = vld [vmem:[#allocation8 + $0x5a0] sm:$0xff]
          %v5110 = vld [vmem:[#allocation8 + $0x5a8] sm:$0xff]
          %v5111 = vld [vmem:[#allocation8 + $0x5b0] sm:$0xff]
          %v5112 = vld [vmem:[#allocation8 + $0x5b8] sm:$0xff]
          %v5113 = vld [vmem:[#allocation8 + $0x5c0] sm:$0xff]
          %v5114 = vld [vmem:[#allocation8 + $0x5c8] sm:$0xff]
          %v5115 = vld [vmem:[#allocation8 + $0x5d0] sm:$0xff]
          %v5116 = vld [vmem:[#allocation8 + $0x5d8] sm:$0xff]
          %v5117 = vld [vmem:[#allocation8 + $0x5e0] sm:$0xff]
          %v5118 = vld [vmem:[#allocation8 + $0x5e8] sm:$0xff]
          %v5119 = vld [vmem:[#allocation8 + $0x5f0] sm:$0xff]
          %v5120 = vld [vmem:[#allocation8 + $0x5f8] sm:$0xff]
          %v5121 = vld [vmem:[#allocation8 + $0x600] sm:$0xff]
          %v5122 = vld [vmem:[#allocation8 + $0x608] sm:$0xff]
          %v5123 = vld [vmem:[#allocation8 + $0x610] sm:$0xff]
          %v5124 = vld [vmem:[#allocation8 + $0x618] sm:$0xff]
          %v5125 = vld [vmem:[#allocation8 + $0x620] sm:$0xff]
          %v5126 = vld [vmem:[#allocation8 + $0x628] sm:$0xff]
          %v5127 = vld [vmem:[#allocation8 + $0x630] sm:$0xff]
          %v5128 = vld [vmem:[#allocation8 + $0x638] sm:$0xff]
          %v5129 = vld [vmem:[#allocation8 + $0x640] sm:$0xff]
          %v5130 = vld [vmem:[#allocation8 + $0x648] sm:$0xff]
          %v5131 = vld [vmem:[#allocation8 + $0x650] sm:$0xff]
          %v5132 = vld [vmem:[#allocation8 + $0x658] sm:$0xff]
          %v5133 = vld [vmem:[#allocation8 + $0x660] sm:$0xff]
          %v5134 = vld [vmem:[#allocation8 + $0x668] sm:$0xff]
          %v5135 = vld [vmem:[#allocation8 + $0x670] sm:$0xff]
          %v5136 = vld [vmem:[#allocation8 + $0x678] sm:$0xff]
          %v5137 = vld [vmem:[#allocation8 + $0x680] sm:$0xff]
          %v5138 = vld [vmem:[#allocation8 + $0x688] sm:$0xff]
          %v5139 = vld [vmem:[#allocation8 + $0x690] sm:$0xff]
          %v5140 = vld [vmem:[#allocation8 + $0x698] sm:$0xff]
          %v5141 = vld [vmem:[#allocation8 + $0x6a0] sm:$0xff]
          %v5142 = vld [vmem:[#allocation8 + $0x6a8] sm:$0xff]
          %v5143 = vld [vmem:[#allocation8 + $0x6b0] sm:$0xff]
          %v5144 = vld [vmem:[#allocation8 + $0x6b8] sm:$0xff]
          %v5145 = vld [vmem:[#allocation8 + $0x6c0] sm:$0xff]
          %v5146 = vld [vmem:[#allocation8 + $0x6c8] sm:$0xff]
          %v5147 = vld [vmem:[#allocation8 + $0x6d0] sm:$0xff]
          %v5148 = vld [vmem:[#allocation8 + $0x6d8] sm:$0xff]
          %v5149 = vld [vmem:[#allocation8 + $0x6e0] sm:$0xff]
          %v5150 = vld [vmem:[#allocation8 + $0x6e8] sm:$0xff]
          %v5151 = vld [vmem:[#allocation8 + $0x6f0] sm:$0xff]
          %v5152 = vld [vmem:[#allocation8 + $0x6f8] sm:$0xff]
          %v5153 = vld [vmem:[#allocation8 + $0x700] sm:$0xff]
          %v5154 = vld [vmem:[#allocation8 + $0x708] sm:$0xff]
          %v5155 = vld [vmem:[#allocation8 + $0x710] sm:$0xff]
          %v5156 = vld [vmem:[#allocation8 + $0x718] sm:$0xff]
          %v5157 = vld [vmem:[#allocation8 + $0x720] sm:$0xff]
          %v5158 = vld [vmem:[#allocation8 + $0x728] sm:$0xff]
          %v5159 = vld [vmem:[#allocation8 + $0x730] sm:$0xff]
          %v5160 = vld [vmem:[#allocation8 + $0x738] sm:$0xff]
          %v5161 = vld [vmem:[#allocation8 + $0x740] sm:$0xff]
          %v5162 = vld [vmem:[#allocation8 + $0x748] sm:$0xff]
          %v5163 = vld [vmem:[#allocation8 + $0x750] sm:$0xff]
          %v5164 = vld [vmem:[#allocation8 + $0x758] sm:$0xff]
          %v5165 = vld [vmem:[#allocation8 + $0x760] sm:$0xff]
          %v5166 = vld [vmem:[#allocation8 + $0x768] sm:$0xff]
          %v5167 = vld [vmem:[#allocation8 + $0x770] sm:$0xff]
          %v5168 = vld [vmem:[#allocation8 + $0x778] sm:$0xff]
          %v5169 = vld [vmem:[#allocation8 + $0x780] sm:$0xff]
          %v5170 = vld [vmem:[#allocation8 + $0x788] sm:$0xff]
          %v5171 = vld [vmem:[#allocation8 + $0x790] sm:$0xff]
          %v5172 = vld [vmem:[#allocation8 + $0x798] sm:$0xff]
          %v5173 = vld [vmem:[#allocation8 + $0x7a0] sm:$0xff]
          %v5174 = vld [vmem:[#allocation8 + $0x7a8] sm:$0xff]
          %v5175 = vld [vmem:[#allocation8 + $0x7b0] sm:$0xff]
          %v5176 = vld [vmem:[#allocation8 + $0x7b8] sm:$0xff]
          %v5177 = vld [vmem:[#allocation8 + $0x7c0] sm:$0xff]
          %v5178 = vld [vmem:[#allocation8 + $0x7c8] sm:$0xff]
          %v5179 = vld [vmem:[#allocation8 + $0x7d0] sm:$0xff]
          %v5180 = vld [vmem:[#allocation8 + $0x7d8] sm:$0xff]
          %v5181 = vld [vmem:[#allocation8 + $0x7e0] sm:$0xff]
          %v5182 = vld [vmem:[#allocation8 + $0x7e8] sm:$0xff]
          %v5183 = vld [vmem:[#allocation8 + $0x7f0] sm:$0xff]
          %v5184 = vld [vmem:[#allocation8 + $0x7f8] sm:$0xff]
          %v5185 = vld [vmem:[#allocation8 + $0x800] sm:$0xff]
          %v5186 = vld [vmem:[#allocation8 + $0x808] sm:$0xff]
          %v5187 = vld [vmem:[#allocation8 + $0x810] sm:$0xff]
          %v5188 = vld [vmem:[#allocation8 + $0x818] sm:$0xff]
          %v5189 = vld [vmem:[#allocation8 + $0x820] sm:$0xff]
          %v5190 = vld [vmem:[#allocation8 + $0x828] sm:$0xff]
          %v5191 = vld [vmem:[#allocation8 + $0x830] sm:$0xff]
          %v5192 = vld [vmem:[#allocation8 + $0x838] sm:$0xff]
          %v5193 = vld [vmem:[#allocation8 + $0x840] sm:$0xff]
          %v5194 = vld [vmem:[#allocation8 + $0x848] sm:$0xff]
          %v5195 = vld [vmem:[#allocation8 + $0x850] sm:$0xff]
          %v5196 = vld [vmem:[#allocation8 + $0x858] sm:$0xff]
          %v5197 = vld [vmem:[#allocation8 + $0x860] sm:$0xff]
          %v5198 = vld [vmem:[#allocation8 + $0x868] sm:$0xff]
          %v5199 = vld [vmem:[#allocation8 + $0x870] sm:$0xff]
          %v5200 = vld [vmem:[#allocation8 + $0x878] sm:$0xff]
          %v5201 = vld [vmem:[#allocation8 + $0x880] sm:$0xff]
          %v5202 = vld [vmem:[#allocation8 + $0x888] sm:$0xff]
          %v5203 = vld [vmem:[#allocation8 + $0x890] sm:$0xff]
          %v5204 = vld [vmem:[#allocation8 + $0x898] sm:$0xff]
          %v5205 = vld [vmem:[#allocation8 + $0x8a0] sm:$0xff]
          %v5206 = vld [vmem:[#allocation8 + $0x8a8] sm:$0xff]
          %v5207 = vld [vmem:[#allocation8 + $0x8b0] sm:$0xff]
          %v5208 = vld [vmem:[#allocation8 + $0x8b8] sm:$0xff]
          %v5209 = vld [vmem:[#allocation8 + $0x8c0] sm:$0xff]
          %v5210 = vld [vmem:[#allocation8 + $0x8c8] sm:$0xff]
          %v5211 = vld [vmem:[#allocation8 + $0x8d0] sm:$0xff]
          %v5212 = vld [vmem:[#allocation8 + $0x8d8] sm:$0xff]
          %v5213 = vld [vmem:[#allocation8 + $0x8e0] sm:$0xff]
          %v5214 = vld [vmem:[#allocation8 + $0x8e8] sm:$0xff]
          %v5215 = vld [vmem:[#allocation8 + $0x8f0] sm:$0xff]
          %v5216 = vld [vmem:[#allocation8 + $0x8f8] sm:$0xff]
          %v5217 = vld [vmem:[#allocation8 + $0x900] sm:$0xff]
          %v5218 = vld [vmem:[#allocation8 + $0x908] sm:$0xff]
          %v5219 = vld [vmem:[#allocation8 + $0x910] sm:$0xff]
          %v5220 = vld [vmem:[#allocation8 + $0x918] sm:$0xff]
          %v5221 = vld [vmem:[#allocation8 + $0x920] sm:$0xff]
          %v5222 = vld [vmem:[#allocation8 + $0x928] sm:$0xff]
          %v5223 = vld [vmem:[#allocation8 + $0x930] sm:$0xff]
          %v5224 = vld [vmem:[#allocation8 + $0x938] sm:$0xff]
          %v5225 = vld [vmem:[#allocation8 + $0x940] sm:$0xff]
          %v5226 = vld [vmem:[#allocation8 + $0x948] sm:$0xff]
          %v5227 = vld [vmem:[#allocation8 + $0x950] sm:$0xff]
          %v5228 = vld [vmem:[#allocation8 + $0x958] sm:$0xff]
          %v5229 = vld [vmem:[#allocation8 + $0x960] sm:$0xff]
          %v5230 = vld [vmem:[#allocation8 + $0x968] sm:$0xff]
          %v5231 = vld [vmem:[#allocation8 + $0x970] sm:$0xff]
          %v5232 = vld [vmem:[#allocation8 + $0x978] sm:$0xff]
          %v5233 = vld [vmem:[#allocation8 + $0x980] sm:$0xff]
          %v5234 = vld [vmem:[#allocation8 + $0x988] sm:$0xff]
          %v5235 = vld [vmem:[#allocation8 + $0x990] sm:$0xff]
          %v5236 = vld [vmem:[#allocation8 + $0x998] sm:$0xff]
          %v5237 = vld [vmem:[#allocation8 + $0x9a0] sm:$0xff]
          %v5238 = vld [vmem:[#allocation8 + $0x9a8] sm:$0xff]
          %v5239 = vld [vmem:[#allocation8 + $0x9b0] sm:$0xff]
          %v5240 = vld [vmem:[#allocation8 + $0x9b8] sm:$0xff]
          %v5241 = vld [vmem:[#allocation8 + $0x9c0] sm:$0xff]
          %v5242 = vld [vmem:[#allocation8 + $0x9c8] sm:$0xff]
          %v5243 = vld [vmem:[#allocation8 + $0x9d0] sm:$0xff]
          %v5244 = vld [vmem:[#allocation8 + $0x9d8] sm:$0xff]
          %v5245 = vld [vmem:[#allocation8 + $0x9e0] sm:$0xff]
          %v5246 = vld [vmem:[#allocation8 + $0x9e8] sm:$0xff]
          %v5247 = vld [vmem:[#allocation8 + $0x9f0] sm:$0xff]
          %v5248 = vld [vmem:[#allocation8 + $0x9f8] sm:$0xff]
          %v5249 = vld [vmem:[#allocation8 + $0xa00] sm:$0xff]
          %v5250 = vld [vmem:[#allocation8 + $0xa08] sm:$0xff]
          %v5251 = vld [vmem:[#allocation8 + $0xa10] sm:$0xff]
          %v5252 = vld [vmem:[#allocation8 + $0xa18] sm:$0xff]
          %v5253 = vld [vmem:[#allocation8 + $0xa20] sm:$0xff]
          %v5254 = vld [vmem:[#allocation8 + $0xa28] sm:$0xff]
          %v5255 = vld [vmem:[#allocation8 + $0xa30] sm:$0xff]
          %v5256 = vld [vmem:[#allocation8 + $0xa38] sm:$0xff]
          %v5257 = vld [vmem:[#allocation8 + $0xa40] sm:$0xff]
          %v5258 = vld [vmem:[#allocation8 + $0xa48] sm:$0xff]
          %v5259 = vld [vmem:[#allocation8 + $0xa50] sm:$0xff]
          %v5260 = vld [vmem:[#allocation8 + $0xa58] sm:$0xff]
          %v5261 = vld [vmem:[#allocation8 + $0xa60] sm:$0xff]
          %v5262 = vld [vmem:[#allocation8 + $0xa68] sm:$0xff]
          %v5263 = vld [vmem:[#allocation8 + $0xa70] sm:$0xff]
          %v5264 = vld [vmem:[#allocation8 + $0xa78] sm:$0xff]
          %v5265 = vld [vmem:[#allocation8 + $0xa80] sm:$0xff]
          %v5266 = vld [vmem:[#allocation8 + $0xa88] sm:$0xff]
          %v5267 = vld [vmem:[#allocation8 + $0xa90] sm:$0xff]
          %v5268 = vld [vmem:[#allocation8 + $0xa98] sm:$0xff]
          %v5269 = vld [vmem:[#allocation8 + $0xaa0] sm:$0xff]
          %v5270 = vld [vmem:[#allocation8 + $0xaa8] sm:$0xff]
          %v5271 = vld [vmem:[#allocation8 + $0xab0] sm:$0xff]
          %v5272 = vld [vmem:[#allocation8 + $0xab8] sm:$0xff]
          %v5273 = vld [vmem:[#allocation8 + $0xac0] sm:$0xff]
          %v5274 = vld [vmem:[#allocation8 + $0xac8] sm:$0xff]
          %v5275 = vld [vmem:[#allocation8 + $0xad0] sm:$0xff]
          %v5276 = vld [vmem:[#allocation8 + $0xad8] sm:$0xff]
          %v5277 = vld [vmem:[#allocation8 + $0xae0] sm:$0xff]
          %v5278 = vld [vmem:[#allocation8 + $0xae8] sm:$0xff]
          %v5279 = vld [vmem:[#allocation8 + $0xaf0] sm:$0xff]
          %v5280 = vld [vmem:[#allocation8 + $0xaf8] sm:$0xff]
          %v5281 = vld [vmem:[#allocation8 + $0xb00] sm:$0xff]
          %v5282 = vld [vmem:[#allocation8 + $0xb08] sm:$0xff]
          %v5283 = vld [vmem:[#allocation8 + $0xb10] sm:$0xff]
          %v5284 = vld [vmem:[#allocation8 + $0xb18] sm:$0xff]
          %v5285 = vld [vmem:[#allocation8 + $0xb20] sm:$0xff]
          %v5286 = vld [vmem:[#allocation8 + $0xb28] sm:$0xff]
          %v5287 = vld [vmem:[#allocation8 + $0xb30] sm:$0xff]
          %v5288 = vld [vmem:[#allocation8 + $0xb38] sm:$0xff]
          %v5289 = vld [vmem:[#allocation8 + $0xb40] sm:$0xff]
          %v5290 = vld [vmem:[#allocation8 + $0xb48] sm:$0xff]
          %v5291 = vld [vmem:[#allocation8 + $0xb50] sm:$0xff]
          %v5292 = vld [vmem:[#allocation8 + $0xb58] sm:$0xff]
          %v5293 = vld [vmem:[#allocation8 + $0xb60] sm:$0xff]
          %v5294 = vld [vmem:[#allocation8 + $0xb68] sm:$0xff]
          %v5295 = vld [vmem:[#allocation8 + $0xb70] sm:$0xff]
          %v5296 = vld [vmem:[#allocation8 + $0xb78] sm:$0xff]
          %v5297 = vld [vmem:[#allocation8 + $0xb80] sm:$0xff]
          %v5298 = vld [vmem:[#allocation8 + $0xb88] sm:$0xff]
          %v5299 = vld [vmem:[#allocation8 + $0xb90] sm:$0xff]
          %v5300 = vld [vmem:[#allocation8 + $0xb98] sm:$0xff]
          %v5301 = vld [vmem:[#allocation8 + $0xba0] sm:$0xff]
          %v5302 = vld [vmem:[#allocation8 + $0xba8] sm:$0xff]
          %v5303 = vld [vmem:[#allocation8 + $0xbb0] sm:$0xff]
          %v5304 = vld [vmem:[#allocation8 + $0xbb8] sm:$0xff]
          %v5305 = vld [vmem:[#allocation8 + $0xbc0] sm:$0xff]
          %v5306 = vld [vmem:[#allocation8 + $0xbc8] sm:$0xff]
          %v5307 = vld [vmem:[#allocation8 + $0xbd0] sm:$0xff]
          %v5308 = vld [vmem:[#allocation8 + $0xbd8] sm:$0xff]
          %v5309 = vld [vmem:[#allocation8 + $0xbe0] sm:$0xff]
          %v5310 = vld [vmem:[#allocation8 + $0xbe8] sm:$0xff]
          %v5311 = vld [vmem:[#allocation8 + $0xbf0] sm:$0xff]
          %v5312 = vld [vmem:[#allocation8 + $0xbf8] sm:$0xff]
          %v5313 = vld [vmem:[#allocation8 + $0xc00] sm:$0xff]
          %v5314 = vld [vmem:[#allocation8 + $0xc08] sm:$0xff]
          %v5315 = vld [vmem:[#allocation8 + $0xc10] sm:$0xff]
          %v5316 = vld [vmem:[#allocation8 + $0xc18] sm:$0xff]
          %v5317 = vld [vmem:[#allocation8 + $0xc20] sm:$0xff]
          %v5318 = vld [vmem:[#allocation8 + $0xc28] sm:$0xff]
          %v5319 = vld [vmem:[#allocation8 + $0xc30] sm:$0xff]
          %v5320 = vld [vmem:[#allocation8 + $0xc38] sm:$0xff]
          %v5321 = vld [vmem:[#allocation8 + $0xc40] sm:$0xff]
          %v5322 = vld [vmem:[#allocation8 + $0xc48] sm:$0xff]
          %v5323 = vld [vmem:[#allocation8 + $0xc50] sm:$0xff]
          %v5324 = vld [vmem:[#allocation8 + $0xc58] sm:$0xff]
          %v5325 = vld [vmem:[#allocation8 + $0xc60] sm:$0xff]
          %v5326 = vld [vmem:[#allocation8 + $0xc68] sm:$0xff]
          %v5327 = vld [vmem:[#allocation8 + $0xc70] sm:$0xff]
          %v5328 = vld [vmem:[#allocation8 + $0xc78] sm:$0xff]
          %v5329 = vld [vmem:[#allocation8 + $0xc80] sm:$0xff]
          %v5330 = vld [vmem:[#allocation8 + $0xc88] sm:$0xff]
          %v5331 = vld [vmem:[#allocation8 + $0xc90] sm:$0xff]
          %v5332 = vld [vmem:[#allocation8 + $0xc98] sm:$0xff]
          %v5333 = vld [vmem:[#allocation8 + $0xca0] sm:$0xff]
          %v5334 = vld [vmem:[#allocation8 + $0xca8] sm:$0xff]
          %v5335 = vld [vmem:[#allocation8 + $0xcb0] sm:$0xff]
          %v5336 = vld [vmem:[#allocation8 + $0xcb8] sm:$0xff]
          %v5337 = vld [vmem:[#allocation8 + $0xcc0] sm:$0xff]
          %v5338 = vld [vmem:[#allocation8 + $0xcc8] sm:$0xff]
          %v5339 = vld [vmem:[#allocation8 + $0xcd0] sm:$0xff]
          %v5340 = vld [vmem:[#allocation8 + $0xcd8] sm:$0xff]
          %v5341 = vld [vmem:[#allocation8 + $0xce0] sm:$0xff]
          %v5342 = vld [vmem:[#allocation8 + $0xce8] sm:$0xff]
          %v5343 = vld [vmem:[#allocation8 + $0xcf0] sm:$0xff]
          %v5344 = vld [vmem:[#allocation8 + $0xcf8] sm:$0xff]
          %v5345 = vld [vmem:[#allocation8 + $0xd00] sm:$0xff]
          %v5346 = vld [vmem:[#allocation8 + $0xd08] sm:$0xff]
          %v5347 = vld [vmem:[#allocation8 + $0xd10] sm:$0xff]
          %v5348 = vld [vmem:[#allocation8 + $0xd18] sm:$0xff]
          %v5349 = vld [vmem:[#allocation8 + $0xd20] sm:$0xff]
          %v5350 = vld [vmem:[#allocation8 + $0xd28] sm:$0xff]
          %v5351 = vld [vmem:[#allocation8 + $0xd30] sm:$0xff]
          %v5352 = vld [vmem:[#allocation8 + $0xd38] sm:$0xff]
          %v5353 = vld [vmem:[#allocation8 + $0xd40] sm:$0xff]
          %v5354 = vld [vmem:[#allocation8 + $0xd48] sm:$0xff]
          %v5355 = vld [vmem:[#allocation8 + $0xd50] sm:$0xff]
          %v5356 = vld [vmem:[#allocation8 + $0xd58] sm:$0xff]
          %v5357 = vld [vmem:[#allocation8 + $0xd60] sm:$0xff]
          %v5358 = vld [vmem:[#allocation8 + $0xd68] sm:$0xff]
          %v5359 = vld [vmem:[#allocation8 + $0xd70] sm:$0xff]
          %v5360 = vld [vmem:[#allocation8 + $0xd78] sm:$0xff]
          %v5361 = vld [vmem:[#allocation8 + $0xd80] sm:$0xff]
          %v5362 = vld [vmem:[#allocation8 + $0xd88] sm:$0xff]
          %v5363 = vld [vmem:[#allocation8 + $0xd90] sm:$0xff]
          %v5364 = vld [vmem:[#allocation8 + $0xd98] sm:$0xff]
          %v5365 = vld [vmem:[#allocation8 + $0xda0] sm:$0xff]
          %v5366 = vld [vmem:[#allocation8 + $0xda8] sm:$0xff]
          %v5367 = vld [vmem:[#allocation8 + $0xdb0] sm:$0xff]
          %v5368 = vld [vmem:[#allocation8 + $0xdb8] sm:$0xff]
          %v5369 = vld [vmem:[#allocation8 + $0xdc0] sm:$0xff]
          %v5370 = vld [vmem:[#allocation8 + $0xdc8] sm:$0xff]
          %v5371 = vld [vmem:[#allocation8 + $0xdd0] sm:$0xff]
          %v5372 = vld [vmem:[#allocation8 + $0xdd8] sm:$0xff]
          %v5373 = vld [vmem:[#allocation8 + $0xde0] sm:$0xff]
          %v5374 = vld [vmem:[#allocation8 + $0xde8] sm:$0xff]
          %v5375 = vld [vmem:[#allocation8 + $0xdf0] sm:$0xff]
          %v5376 = vld [vmem:[#allocation8 + $0xdf8] sm:$0xff]
          %v5377 = vld [vmem:[#allocation8 + $0xe00] sm:$0xff]
          %v5378 = vld [vmem:[#allocation8 + $0xe08] sm:$0xff]
          %v5379 = vld [vmem:[#allocation8 + $0xe10] sm:$0xff]
          %v5380 = vld [vmem:[#allocation8 + $0xe18] sm:$0xff]
          %v5381 = vld [vmem:[#allocation8 + $0xe20] sm:$0xff]
          %v5382 = vld [vmem:[#allocation8 + $0xe28] sm:$0xff]
          %v5383 = vld [vmem:[#allocation8 + $0xe30] sm:$0xff]
          %v5384 = vld [vmem:[#allocation8 + $0xe38] sm:$0xff]
          %v5385 = vld [vmem:[#allocation8 + $0xe40] sm:$0xff]
          %v5386 = vld [vmem:[#allocation8 + $0xe48] sm:$0xff]
          %v5387 = vld [vmem:[#allocation8 + $0xe50] sm:$0xff]
          %v5388 = vld [vmem:[#allocation8 + $0xe58] sm:$0xff]
          %v5389 = vld [vmem:[#allocation8 + $0xe60] sm:$0xff]
          %v5390 = vld [vmem:[#allocation8 + $0xe68] sm:$0xff]
          %v5391 = vld [vmem:[#allocation8 + $0xe70] sm:$0xff]
          %v5392 = vld [vmem:[#allocation8 + $0xe78] sm:$0xff]
          %v5393 = vld [vmem:[#allocation8 + $0xe80] sm:$0xff]
          %v5394 = vld [vmem:[#allocation8 + $0xe88] sm:$0xff]
          %v5395 = vld [vmem:[#allocation8 + $0xe90] sm:$0xff]
          %v5396 = vld [vmem:[#allocation8 + $0xe98] sm:$0xff]
          %v5397 = vld [vmem:[#allocation8 + $0xea0] sm:$0xff]
          %v5398 = vld [vmem:[#allocation8 + $0xea8] sm:$0xff]
          %v5399 = vld [vmem:[#allocation8 + $0xeb0] sm:$0xff]
          %v5400 = vld [vmem:[#allocation8 + $0xeb8] sm:$0xff]
          %v5401 = vld [vmem:[#allocation8 + $0xec0] sm:$0xff]
          %v5402 = vld [vmem:[#allocation8 + $0xec8] sm:$0xff]
          %v5403 = vld [vmem:[#allocation8 + $0xed0] sm:$0xff]
          %v5404 = vld [vmem:[#allocation8 + $0xed8] sm:$0xff]
          %v5405 = vld [vmem:[#allocation8 + $0xee0] sm:$0xff]
          %v5406 = vld [vmem:[#allocation8 + $0xee8] sm:$0xff]
          %v5407 = vld [vmem:[#allocation8 + $0xef0] sm:$0xff]
          %v5408 = vld [vmem:[#allocation8 + $0xef8] sm:$0xff]
          %v5409 = vld [vmem:[#allocation8 + $0xf00] sm:$0xff]
          %v5410 = vld [vmem:[#allocation8 + $0xf08] sm:$0xff]
          %v5411 = vld [vmem:[#allocation8 + $0xf10] sm:$0xff]
          %v5412 = vld [vmem:[#allocation8 + $0xf18] sm:$0xff]
          %v5413 = vld [vmem:[#allocation8 + $0xf20] sm:$0xff]
          %v5414 = vld [vmem:[#allocation8 + $0xf28] sm:$0xff]
          %v5415 = vld [vmem:[#allocation8 + $0xf30] sm:$0xff]
          %v5416 = vld [vmem:[#allocation8 + $0xf38] sm:$0xff]
          %v5417 = vld [vmem:[#allocation8 + $0xf40] sm:$0xff]
          %v5418 = vld [vmem:[#allocation8 + $0xf48] sm:$0xff]
          %v5419 = vld [vmem:[#allocation8 + $0xf50] sm:$0xff]
          %v5420 = vld [vmem:[#allocation8 + $0xf58] sm:$0xff]
          %v5421 = vld [vmem:[#allocation8 + $0xf60] sm:$0xff]
          %v5422 = vld [vmem:[#allocation8 + $0xf68] sm:$0xff]
          %v5423 = vld [vmem:[#allocation8 + $0xf70] sm:$0xff]
          %v5424 = vld [vmem:[#allocation8 + $0xf78] sm:$0xff]
          %v5425 = vld [vmem:[#allocation8 + $0xf80] sm:$0xff]
          %v5426 = vld [vmem:[#allocation8 + $0xf88] sm:$0xff]
          %v5427 = vld [vmem:[#allocation8 + $0xf90] sm:$0xff]
          %v5428 = vld [vmem:[#allocation8 + $0xf98] sm:$0xff]
          %v5429 = vld [vmem:[#allocation8 + $0xfa0] sm:$0xff]
          %v5430 = vld [vmem:[#allocation8 + $0xfa8] sm:$0xff]
          %v5431 = vld [vmem:[#allocation8 + $0xfb0] sm:$0xff]
          %v5432 = vld [vmem:[#allocation8 + $0xfb8] sm:$0xff]
          %v5433 = vld [vmem:[#allocation8 + $0xfc0] sm:$0xff]
          %v5434 = vld [vmem:[#allocation8 + $0xfc8] sm:$0xff]
          %v5435 = vld [vmem:[#allocation8 + $0xfd0] sm:$0xff]
          %v5436 = vld [vmem:[#allocation8 + $0xfd8] sm:$0xff]
          %v5437 = vld [vmem:[#allocation8 + $0xfe0] sm:$0xff]
          %v5438 = vld [vmem:[#allocation8 + $0xfe8] sm:$0xff]
          %v5439 = vld [vmem:[#allocation8 + $0xff0] sm:$0xff]
          %v5440 = vld [vmem:[#allocation8 + $0xff8] sm:$0xff]
          %v5441 = vld [vmem:[#allocation10] sm:$0xf]
          %v5443 = vlaneseq
          %v5444 = vshrl.u32 %v5443, 7
          %v5445 = vsub.s32 0, %v5444
          %v5446 = vrot.slane %v5441, %v5445
          %v5447 = vlaneseq
          %v5448 = vshrl.u32 %v5447, 7
          %v5449 = vsub.s32 1, %v5448
          %v5450 = vrot.slane %v5441, %v5449
          %v5451 = vlaneseq
          %v5452 = vshrl.u32 %v5451, 7
          %v5453 = vsub.s32 2, %v5452
          %v5454 = vrot.slane %v5441, %v5453
          %v5455 = vlaneseq
          %v5456 = vshrl.u32 %v5455, 7
          %v5457 = vsub.s32 3, %v5456
          %v5458 = vrot.slane %v5441, %v5457
          %v5471 = vcombine.low %v4921, %v4922
          %v5472 = vcombine.high %v4921, %v4922
          %v5473 = vcombine.low %v4923, %v4924
          %v5474 = vcombine.high %v4923, %v4924
          %v5475 = vcombine.low %v4925, %v4926
          %v5476 = vcombine.high %v4925, %v4926
          %v5477 = vcombine.low %v4927, %v4928
          %v5478 = vcombine.high %v4927, %v4928
          %v5480 = vunpack.c.l.s4 1966171168
          %v5481 = vunpack.c.0.s8 %v5480
          %v5482 = vlaneseq
          %v5483 = vshrl.u32 %v5482, 7
          %v5484 = vsub.s32 %v5481, %v5483
          %v5485 = vrot.slane %v5471, %v5484
          %v5487 = vunpack.c.l.s4 1966171168
          %v5488 = vunpack.c.0.s8 %v5487
          %v5489 = vlaneseq
          %v5490 = vshrl.u32 %v5489, 7
          %v5491 = vsub.s32 %v5488, %v5490
          %v5492 = vrot.slane %v5472, %v5491
          %v5494 = vunpack.c.l.s4 1966171168
          %v5495 = vunpack.c.0.s8 %v5494
          %v5496 = vlaneseq
          %v5497 = vshrl.u32 %v5496, 7
          %v5498 = vsub.s32 %v5495, %v5497
          %v5499 = vrot.slane %v5473, %v5498
          %v5501 = vunpack.c.l.s4 1966171168
          %v5502 = vunpack.c.0.s8 %v5501
          %v5503 = vlaneseq
          %v5504 = vshrl.u32 %v5503, 7
          %v5505 = vsub.s32 %v5502, %v5504
          %v5506 = vrot.slane %v5474, %v5505
          %v5508 = vunpack.c.l.s4 1966171168
          %v5509 = vunpack.c.0.s8 %v5508
          %v5510 = vlaneseq
          %v5511 = vshrl.u32 %v5510, 7
          %v5512 = vsub.s32 %v5509, %v5511
          %v5513 = vrot.slane %v5475, %v5512
          %v5515 = vunpack.c.l.s4 1966171168
          %v5516 = vunpack.c.0.s8 %v5515
          %v5517 = vlaneseq
          %v5518 = vshrl.u32 %v5517, 7
          %v5519 = vsub.s32 %v5516, %v5518
          %v5520 = vrot.slane %v5476, %v5519
          %v5522 = vunpack.c.l.s4 1966171168
          %v5523 = vunpack.c.0.s8 %v5522
          %v5524 = vlaneseq
          %v5525 = vshrl.u32 %v5524, 7
          %v5526 = vsub.s32 %v5523, %v5525
          %v5527 = vrot.slane %v5477, %v5526
          %v5529 = vunpack.c.l.s4 1966171168
          %v5530 = vunpack.c.0.s8 %v5529
          %v5531 = vlaneseq
          %v5532 = vshrl.u32 %v5531, 7
          %v5533 = vsub.s32 %v5530, %v5532
          %v5534 = vrot.slane %v5478, %v5533
          %v5535 = vcombine.low %v5485, %v5499
          %v5536 = vcombine.high %v5485, %v5499
          %v5537 = vcombine.low %v5492, %v5506
          %v5538 = vcombine.high %v5492, %v5506
          %v5539 = vcombine.low %v5513, %v5527
          %v5540 = vcombine.high %v5513, %v5527
          %v5541 = vcombine.low %v5520, %v5534
          %v5542 = vcombine.high %v5520, %v5534
          %v5544 = vunpack.c.l.s4 1966171168
          %v5545 = vunpack.c.0.s8 %v5544
          %v5546 = vlaneseq
          %v5547 = vshrl.u32 %v5546, 7
          %v5548 = vsub.s32 %v5545, %v5547
          %v5549 = vrot.slane %v5535, %v5548
          %v5551 = vunpack.c.l.s4 1966171168
          %v5552 = vunpack.c.0.s8 %v5551
          %v5553 = vlaneseq
          %v5554 = vshrl.u32 %v5553, 7
          %v5555 = vsub.s32 %v5552, %v5554
          %v5556 = vrot.slane %v5537, %v5555
          %v5558 = vunpack.c.l.s4 1966171168
          %v5559 = vunpack.c.0.s8 %v5558
          %v5560 = vlaneseq
          %v5561 = vshrl.u32 %v5560, 7
          %v5562 = vsub.s32 %v5559, %v5561
          %v5563 = vrot.slane %v5536, %v5562
          %v5565 = vunpack.c.l.s4 1966171168
          %v5566 = vunpack.c.0.s8 %v5565
          %v5567 = vlaneseq
          %v5568 = vshrl.u32 %v5567, 7
          %v5569 = vsub.s32 %v5566, %v5568
          %v5570 = vrot.slane %v5538, %v5569
          %v5572 = vunpack.c.l.s4 1966171168
          %v5573 = vunpack.c.0.s8 %v5572
          %v5574 = vlaneseq
          %v5575 = vshrl.u32 %v5574, 7
          %v5576 = vsub.s32 %v5573, %v5575
          %v5577 = vrot.slane %v5539, %v5576
          %v5579 = vunpack.c.l.s4 1966171168
          %v5580 = vunpack.c.0.s8 %v5579
          %v5581 = vlaneseq
          %v5582 = vshrl.u32 %v5581, 7
          %v5583 = vsub.s32 %v5580, %v5582
          %v5584 = vrot.slane %v5541, %v5583
          %v5586 = vunpack.c.l.s4 1966171168
          %v5587 = vunpack.c.0.s8 %v5586
          %v5588 = vlaneseq
          %v5589 = vshrl.u32 %v5588, 7
          %v5590 = vsub.s32 %v5587, %v5589
          %v5591 = vrot.slane %v5540, %v5590
          %v5593 = vunpack.c.l.s4 1966171168
          %v5594 = vunpack.c.0.s8 %v5593
          %v5595 = vlaneseq
          %v5596 = vshrl.u32 %v5595, 7
          %v5597 = vsub.s32 %v5594, %v5596
          %v5598 = vrot.slane %v5542, %v5597
          %v5599 = vcombine.low %v5549, %v5577
          %v5600 = vcombine.high %v5549, %v5577
          %v5601 = vcombine.low %v5556, %v5584
          %v5602 = vcombine.high %v5556, %v5584
          %v5603 = vcombine.low %v5563, %v5591
          %v5604 = vcombine.high %v5563, %v5591
          %v5605 = vcombine.low %v5570, %v5598
          %v5606 = vcombine.high %v5570, %v5598
          %5615 = vmatprep.subr.mxu0 %v4930
          %5616 = vmatpush1.msra.mxu0 %v4929
          %5617 = vmatprep.subr.mxu0 %v4934
          %5618 = vmatpush1.msra.mxu0 %v4933
          %5619 = vmatprep.subr.mxu0 %v4938
          %5620 = vmatpush1.msra.mxu0 %v4937
          %5621 = vmatprep.subr.mxu0 %v4942
          %5622 = vmatpush1.msra.mxu0 %v4941
          %5623 = vmatprep.subr.mxu0 %v4946
          %5624 = vmatpush1.msra.mxu0 %v4945
          %5625 = vmatprep.subr.mxu0 %v4950
          %5626 = vmatpush1.msra.mxu0 %v4949
          %5627 = vmatprep.subr.mxu0 %v4954
          %5628 = vmatpush1.msra.mxu0 %v4953
          %5629 = vmatprep.subr.mxu0 %v4958
          %5630 = vmatpush1.msra.mxu0 %v4957
          %5631 = vmatprep.subr.mxu0 %v4962
          %5632 = vmatpush1.msra.mxu0 %v4961
          %5633 = vmatprep.subr.mxu0 %v4966
          %5634 = vmatpush1.msra.mxu0 %v4965
          %5635 = vmatprep.subr.mxu0 %v4970
          %5636 = vmatpush1.msra.mxu0 %v4969
          %5637 = vmatprep.subr.mxu0 %v4974
          %5638 = vmatpush1.msra.mxu0 %v4973
          %5639 = vmatprep.subr.mxu0 %v4978
          %5640 = vmatpush1.msra.mxu0 %v4977
          %5641 = vmatprep.subr.mxu0 %v4982
          %5642 = vmatpush1.msra.mxu0 %v4981
          %5643 = vmatprep.subr.mxu0 %v4986
          %5644 = vmatpush1.msra.mxu0 %v4985
          %5645 = vmatprep.subr.mxu0 %v4990
          %5646 = vmatpush1.msra.mxu0 %v4989
          %5647 = vmatprep.subr.mxu0 %v4994
          %5648 = vmatpush1.msra.mxu0 %v4993
          %5649 = vmatprep.subr.mxu0 %v4998
          %5650 = vmatpush1.msra.mxu0 %v4997
          %5651 = vmatprep.subr.mxu0 %v5002
          %5652 = vmatpush1.msra.mxu0 %v5001
          %5653 = vmatprep.subr.mxu0 %v5006
          %5654 = vmatpush1.msra.mxu0 %v5005
          %5655 = vmatprep.subr.mxu0 %v5010
          %5656 = vmatpush1.msra.mxu0 %v5009
          %5657 = vmatprep.subr.mxu0 %v5014
          %5658 = vmatpush1.msra.mxu0 %v5013
          %5659 = vmatprep.subr.mxu0 %v5018
          %5660 = vmatpush1.msra.mxu0 %v5017
          %5661 = vmatprep.subr.mxu0 %v5022
          %5662 = vmatpush1.msra.mxu0 %v5021
          %5663 = vmatprep.subr.mxu0 %v5026
          %5664 = vmatpush1.msra.mxu0 %v5025
          %5665 = vmatprep.subr.mxu0 %v5030
          %5666 = vmatpush1.msra.mxu0 %v5029
          %5667 = vmatprep.subr.mxu0 %v5034
          %5668 = vmatpush1.msra.mxu0 %v5033
          %5669 = vmatprep.subr.mxu0 %v5038
          %5670 = vmatpush1.msra.mxu0 %v5037
          %5671 = vmatprep.subr.mxu0 %v5042
          %5672 = vmatpush1.msra.mxu0 %v5041
          %5673 = vmatprep.subr.mxu0 %v5046
          %5674 = vmatpush1.msra.mxu0 %v5045
          %5675 = vmatprep.subr.mxu0 %v5050
          %5676 = vmatpush1.msra.mxu0 %v5049
          %5677 = vmatprep.subr.mxu0 %v5054
          %5678 = vmatpush1.msra.mxu0 %v5053
          %5679 = vmatprep.mubr.f32.mxu0 %v5603
          %5680 = vmatmul.mubr.f32.gmra.mrb[0].mxu0 %v5599
          %v5681 = vpop.f32.mrb[0].mxu0
          %v5682 = vadd.f32 %v5446, %v5681
          %v5683 = vpop.f32.mrb[0].mxu0
          %v5684 = vadd.f32 %v5450, %v5683
          %5685 = vdwg.mxu0
          %5686 = vmatprep.subr.mxu0 %v5058
          %5687 = vmatpush1.msra.mxu0 %v5057
          %5688 = vmatprep.subr.mxu0 %v5062
          %5689 = vmatpush1.msra.mxu0 %v5061
          %5690 = vmatprep.subr.mxu0 %v5066
          %5691 = vmatpush1.msra.mxu0 %v5065
          %5692 = vmatprep.subr.mxu0 %v5070
          %5693 = vmatpush1.msra.mxu0 %v5069
          %5694 = vmatprep.subr.mxu0 %v5074
          %5695 = vmatpush1.msra.mxu0 %v5073
          %5696 = vmatprep.subr.mxu0 %v5078
          %5697 = vmatpush1.msra.mxu0 %v5077
          %5698 = vmatprep.subr.mxu0 %v5082
          %5699 = vmatpush1.msra.mxu0 %v5081
          %5700 = vmatprep.subr.mxu0 %v5086
          %5701 = vmatpush1.msra.mxu0 %v5085
          %5702 = vmatprep.subr.mxu0 %v5090
          %5703 = vmatpush1.msra.mxu0 %v5089
          %5704 = vmatprep.subr.mxu0 %v5094
          %5705 = vmatpush1.msra.mxu0 %v5093
          %5706 = vmatprep.subr.mxu0 %v5098
          %5707 = vmatpush1.msra.mxu0 %v5097
          %5708 = vmatprep.subr.mxu0 %v5102
          %5709 = vmatpush1.msra.mxu0 %v5101
          %5710 = vmatprep.subr.mxu0 %v5106
          %5711 = vmatpush1.msra.mxu0 %v5105
          %5712 = vmatprep.subr.mxu0 %v5110
          %5713 = vmatpush1.msra.mxu0 %v5109
          %5714 = vmatprep.subr.mxu0 %v5114
          %5715 = vmatpush1.msra.mxu0 %v5113
          %5716 = vmatprep.subr.mxu0 %v5118
          %5717 = vmatpush1.msra.mxu0 %v5117
          %5718 = vmatprep.subr.mxu0 %v5122
          %5719 = vmatpush1.msra.mxu0 %v5121
          %5720 = vmatprep.subr.mxu0 %v5126
          %5721 = vmatpush1.msra.mxu0 %v5125
          %5722 = vmatprep.subr.mxu0 %v5130
          %5723 = vmatpush1.msra.mxu0 %v5129
          %5724 = vmatprep.subr.mxu0 %v5134
          %5725 = vmatpush1.msra.mxu0 %v5133
          %5726 = vmatprep.subr.mxu0 %v5138
          %5727 = vmatpush1.msra.mxu0 %v5137
          %5728 = vmatprep.subr.mxu0 %v5142
          %5729 = vmatpush1.msra.mxu0 %v5141
          %5730 = vmatprep.subr.mxu0 %v5146
          %5731 = vmatpush1.msra.mxu0 %v5145
          %5732 = vmatprep.subr.mxu0 %v5150
          %5733 = vmatpush1.msra.mxu0 %v5149
          %5734 = vmatprep.subr.mxu0 %v5154
          %5735 = vmatpush1.msra.mxu0 %v5153
          %5736 = vmatprep.subr.mxu0 %v5158
          %5737 = vmatpush1.msra.mxu0 %v5157
          %5738 = vmatprep.subr.mxu0 %v5162
          %5739 = vmatpush1.msra.mxu0 %v5161
          %5740 = vmatprep.subr.mxu0 %v5166
          %5741 = vmatpush1.msra.mxu0 %v5165
          %5742 = vmatprep.subr.mxu0 %v5170
          %5743 = vmatpush1.msra.mxu0 %v5169
          %5744 = vmatprep.subr.mxu0 %v5174
          %5745 = vmatpush1.msra.mxu0 %v5173
          %5746 = vmatprep.subr.mxu0 %v5178
          %5747 = vmatpush1.msra.mxu0 %v5177
          %5748 = vmatprep.subr.mxu0 %v5182
          %5749 = vmatpush1.msra.mxu0 %v5181
          %5750 = vmatprep.mubr.f32.mxu0 %v5604
          %5751 = vmatmul.mubr.f32.gmra.mrb[0].mxu0 %v5600
          %v5752 = vpop.f32.mrb[0].mxu0
          %v5753 = vadd.f32 %v5682, %v5752
          %v5754 = vpop.f32.mrb[0].mxu0
          %v5755 = vadd.f32 %v5684, %v5754
          %5756 = vdwg.mxu0
          %5757 = vmatprep.subr.mxu0 %v5186
          %5758 = vmatpush1.msra.mxu0 %v5185
          %5759 = vmatprep.subr.mxu0 %v5190
          %5760 = vmatpush1.msra.mxu0 %v5189
          %5761 = vmatprep.subr.mxu0 %v5194
          %5762 = vmatpush1.msra.mxu0 %v5193
          %5763 = vmatprep.subr.mxu0 %v5198
          %5764 = vmatpush1.msra.mxu0 %v5197
          %5765 = vmatprep.subr.mxu0 %v5202
          %5766 = vmatpush1.msra.mxu0 %v5201
          %5767 = vmatprep.subr.mxu0 %v5206
          %5768 = vmatpush1.msra.mxu0 %v5205
          %5769 = vmatprep.subr.mxu0 %v5210
          %5770 = vmatpush1.msra.mxu0 %v5209
          %5771 = vmatprep.subr.mxu0 %v5214
          %5772 = vmatpush1.msra.mxu0 %v5213
          %5773 = vmatprep.subr.mxu0 %v5218
          %5774 = vmatpush1.msra.mxu0 %v5217
          %5775 = vmatprep.subr.mxu0 %v5222
          %5776 = vmatpush1.msra.mxu0 %v5221
          %5777 = vmatprep.subr.mxu0 %v5226
          %5778 = vmatpush1.msra.mxu0 %v5225
          %5779 = vmatprep.subr.mxu0 %v5230
          %5780 = vmatpush1.msra.mxu0 %v5229
          %5781 = vmatprep.subr.mxu0 %v5234
          %5782 = vmatpush1.msra.mxu0 %v5233
          %5783 = vmatprep.subr.mxu0 %v5238
          %5784 = vmatpush1.msra.mxu0 %v5237
          %5785 = vmatprep.subr.mxu0 %v5242
          %5786 = vmatpush1.msra.mxu0 %v5241
          %5787 = vmatprep.subr.mxu0 %v5246
          %5788 = vmatpush1.msra.mxu0 %v5245
          %5789 = vmatprep.subr.mxu0 %v5250
          %5790 = vmatpush1.msra.mxu0 %v5249
          %5791 = vmatprep.subr.mxu0 %v5254
          %5792 = vmatpush1.msra.mxu0 %v5253
          %5793 = vmatprep.subr.mxu0 %v5258
          %5794 = vmatpush1.msra.mxu0 %v5257
          %5795 = vmatprep.subr.mxu0 %v5262
          %5796 = vmatpush1.msra.mxu0 %v5261
          %5797 = vmatprep.subr.mxu0 %v5266
          %5798 = vmatpush1.msra.mxu0 %v5265
          %5799 = vmatprep.subr.mxu0 %v5270
          %5800 = vmatpush1.msra.mxu0 %v5269
          %5801 = vmatprep.subr.mxu0 %v5274
          %5802 = vmatpush1.msra.mxu0 %v5273
          %5803 = vmatprep.subr.mxu0 %v5278
          %5804 = vmatpush1.msra.mxu0 %v5277
          %5805 = vmatprep.subr.mxu0 %v5282
          %5806 = vmatpush1.msra.mxu0 %v5281
          %5807 = vmatprep.subr.mxu0 %v5286
          %5808 = vmatpush1.msra.mxu0 %v5285
          %5809 = vmatprep.subr.mxu0 %v5290
          %5810 = vmatpush1.msra.mxu0 %v5289
          %5811 = vmatprep.subr.mxu0 %v5294
          %5812 = vmatpush1.msra.mxu0 %v5293
          %5813 = vmatprep.subr.mxu0 %v5298
          %5814 = vmatpush1.msra.mxu0 %v5297
          %5815 = vmatprep.subr.mxu0 %v5302
          %5816 = vmatpush1.msra.mxu0 %v5301
          %5817 = vmatprep.subr.mxu0 %v5306
          %5818 = vmatpush1.msra.mxu0 %v5305
          %5819 = vmatprep.subr.mxu0 %v5310
          %5820 = vmatpush1.msra.mxu0 %v5309
          %5821 = vmatprep.mubr.f32.mxu0 %v5605
          %5822 = vmatmul.mubr.f32.gmra.mrb[0].mxu0 %v5601
          %v5823 = vpop.f32.mrb[0].mxu0
          %v5824 = vadd.f32 %v5753, %v5823
          %v5825 = vpop.f32.mrb[0].mxu0
          %v5826 = vadd.f32 %v5755, %v5825
          %5827 = vdwg.mxu0
          %5828 = vmatprep.subr.mxu0 %v5314
          %5829 = vmatpush1.msra.mxu0 %v5313
          %5830 = vmatprep.subr.mxu0 %v5318
          %5831 = vmatpush1.msra.mxu0 %v5317
          %5832 = vmatprep.subr.mxu0 %v5322
          %5833 = vmatpush1.msra.mxu0 %v5321
          %5834 = vmatprep.subr.mxu0 %v5326
          %5835 = vmatpush1.msra.mxu0 %v5325
          %5836 = vmatprep.subr.mxu0 %v5330
          %5837 = vmatpush1.msra.mxu0 %v5329
          %5838 = vmatprep.subr.mxu0 %v5334
          %5839 = vmatpush1.msra.mxu0 %v5333
          %5840 = vmatprep.subr.mxu0 %v5338
          %5841 = vmatpush1.msra.mxu0 %v5337
          %5842 = vmatprep.subr.mxu0 %v5342
          %5843 = vmatpush1.msra.mxu0 %v5341
          %5844 = vmatprep.subr.mxu0 %v5346
          %5845 = vmatpush1.msra.mxu0 %v5345
          %5846 = vmatprep.subr.mxu0 %v5350
          %5847 = vmatpush1.msra.mxu0 %v5349
          %5848 = vmatprep.subr.mxu0 %v5354
          %5849 = vmatpush1.msra.mxu0 %v5353
          %5850 = vmatprep.subr.mxu0 %v5358
          %5851 = vmatpush1.msra.mxu0 %v5357
          %5852 = vmatprep.subr.mxu0 %v5362
          %5853 = vmatpush1.msra.mxu0 %v5361
          %5854 = vmatprep.subr.mxu0 %v5366
          %5855 = vmatpush1.msra.mxu0 %v5365
          %5856 = vmatprep.subr.mxu0 %v5370
          %5857 = vmatpush1.msra.mxu0 %v5369
          %5858 = vmatprep.subr.mxu0 %v5374
          %5859 = vmatpush1.msra.mxu0 %v5373
          %5860 = vmatprep.subr.mxu0 %v5378
          %5861 = vmatpush1.msra.mxu0 %v5377
          %5862 = vmatprep.subr.mxu0 %v5382
          %5863 = vmatpush1.msra.mxu0 %v5381
          %5864 = vmatprep.subr.mxu0 %v5386
          %5865 = vmatpush1.msra.mxu0 %v5385
          %5866 = vmatprep.subr.mxu0 %v5390
          %5867 = vmatpush1.msra.mxu0 %v5389
          %5868 = vmatprep.subr.mxu0 %v5394
          %5869 = vmatpush1.msra.mxu0 %v5393
          %5870 = vmatprep.subr.mxu0 %v5398
          %5871 = vmatpush1.msra.mxu0 %v5397
          %5872 = vmatprep.subr.mxu0 %v5402
          %5873 = vmatpush1.msra.mxu0 %v5401
          %5874 = vmatprep.subr.mxu0 %v5406
          %5875 = vmatpush1.msra.mxu0 %v5405
          %5876 = vmatprep.subr.mxu0 %v5410
          %5877 = vmatpush1.msra.mxu0 %v5409
          %5878 = vmatprep.subr.mxu0 %v5414
          %5879 = vmatpush1.msra.mxu0 %v5413
          %5880 = vmatprep.subr.mxu0 %v5418
          %5881 = vmatpush1.msra.mxu0 %v5417
          %5882 = vmatprep.subr.mxu0 %v5422
          %5883 = vmatpush1.msra.mxu0 %v5421
          %5884 = vmatprep.subr.mxu0 %v5426
          %5885 = vmatpush1.msra.mxu0 %v5425
          %5886 = vmatprep.subr.mxu0 %v5430
          %5887 = vmatpush1.msra.mxu0 %v5429
          %5888 = vmatprep.subr.mxu0 %v5434
          %5889 = vmatpush1.msra.mxu0 %v5433
          %5890 = vmatprep.subr.mxu0 %v5438
          %5891 = vmatpush1.msra.mxu0 %v5437
          %5892 = vmatprep.mubr.f32.mxu0 %v5606
          %5893 = vmatmul.mubr.f32.gmra.mrb[0].mxu0 %v5602
          %v5894 = vpop.f32.mrb[0].mxu0
          %v5895 = vadd.f32 %v5824, %v5894
          %v5896 = vpop.f32.mrb[0].mxu0
          %v5897 = vadd.f32 %v5826, %v5896
          %5898 = vdwg.mxu0
          %5899 = vmatprep.subr.mxu0 %v4932
          %5900 = vmatpush1.msra.mxu0 %v4931
          %5901 = vmatprep.subr.mxu0 %v4936
          %5902 = vmatpush1.msra.mxu0 %v4935
          %5903 = vmatprep.subr.mxu0 %v4940
          %5904 = vmatpush1.msra.mxu0 %v4939
          %5905 = vmatprep.subr.mxu0 %v4944
          %5906 = vmatpush1.msra.mxu0 %v4943
          %5907 = vmatprep.subr.mxu0 %v4948
          %5908 = vmatpush1.msra.mxu0 %v4947
          %5909 = vmatprep.subr.mxu0 %v4952
          %5910 = vmatpush1.msra.mxu0 %v4951
          %5911 = vmatprep.subr.mxu0 %v4956
          %5912 = vmatpush1.msra.mxu0 %v4955
          %5913 = vmatprep.subr.mxu0 %v4960
          %5914 = vmatpush1.msra.mxu0 %v4959
          %5915 = vmatprep.subr.mxu0 %v4964
          %5916 = vmatpush1.msra.mxu0 %v4963
          %5917 = vmatprep.subr.mxu0 %v4968
          %5918 = vmatpush1.msra.mxu0 %v4967
          %5919 = vmatprep.subr.mxu0 %v4972
          %5920 = vmatpush1.msra.mxu0 %v4971
          %5921 = vmatprep.subr.mxu0 %v4976
          %5922 = vmatpush1.msra.mxu0 %v4975
          %5923 = vmatprep.subr.mxu0 %v4980
          %5924 = vmatpush1.msra.mxu0 %v4979
          %5925 = vmatprep.subr.mxu0 %v4984
          %5926 = vmatpush1.msra.mxu0 %v4983
          %5927 = vmatprep.subr.mxu0 %v4988
          %5928 = vmatpush1.msra.mxu0 %v4987
          %5929 = vmatprep.subr.mxu0 %v4992
          %5930 = vmatpush1.msra.mxu0 %v4991
          %5931 = vmatprep.subr.mxu0 %v4996
          %5932 = vmatpush1.msra.mxu0 %v4995
          %5933 = vmatprep.subr.mxu0 %v5000
          %5934 = vmatpush1.msra.mxu0 %v4999
          %5935 = vmatprep.subr.mxu0 %v5004
          %5936 = vmatpush1.msra.mxu0 %v5003
          %5937 = vmatprep.subr.mxu0 %v5008
          %5938 = vmatpush1.msra.mxu0 %v5007
          %5939 = vmatprep.subr.mxu0 %v5012
          %5940 = vmatpush1.msra.mxu0 %v5011
          %5941 = vmatprep.subr.mxu0 %v5016
          %5942 = vmatpush1.msra.mxu0 %v5015
          %5943 = vmatprep.subr.mxu0 %v5020
          %5944 = vmatpush1.msra.mxu0 %v5019
          %5945 = vmatprep.subr.mxu0 %v5024
          %5946 = vmatpush1.msra.mxu0 %v5023
          %5947 = vmatprep.subr.mxu0 %v5028
          %5948 = vmatpush1.msra.mxu0 %v5027
          %5949 = vmatprep.subr.mxu0 %v5032
          %5950 = vmatpush1.msra.mxu0 %v5031
          %5951 = vmatprep.subr.mxu0 %v5036
          %5952 = vmatpush1.msra.mxu0 %v5035
          %5953 = vmatprep.subr.mxu0 %v5040
          %5954 = vmatpush1.msra.mxu0 %v5039
          %5955 = vmatprep.subr.mxu0 %v5044
          %5956 = vmatpush1.msra.mxu0 %v5043
          %5957 = vmatprep.subr.mxu0 %v5048
          %5958 = vmatpush1.msra.mxu0 %v5047
          %5959 = vmatprep.subr.mxu0 %v5052
          %5960 = vmatpush1.msra.mxu0 %v5051
          %5961 = vmatprep.subr.mxu0 %v5056
          %5962 = vmatpush1.msra.mxu0 %v5055
          %5963 = vmatprep.mubr.f32.mxu0 %v5603
          %5964 = vmatmul.mubr.f32.gmra.mrb[0].mxu0 %v5599
          %v5965 = vpop.f32.mrb[0].mxu0
          %v5966 = vadd.f32 %v5454, %v5965
          %v5967 = vpop.f32.mrb[0].mxu0
          %v5968 = vadd.f32 %v5458, %v5967
          %5969 = vdwg.mxu0
          %5970 = vmatprep.subr.mxu0 %v5060
          %5971 = vmatpush1.msra.mxu0 %v5059
          %5972 = vmatprep.subr.mxu0 %v5064
          %5973 = vmatpush1.msra.mxu0 %v5063
          %5974 = vmatprep.subr.mxu0 %v5068
          %5975 = vmatpush1.msra.mxu0 %v5067
          %5976 = vmatprep.subr.mxu0 %v5072
          %5977 = vmatpush1.msra.mxu0 %v5071
          %5978 = vmatprep.subr.mxu0 %v5076
          %5979 = vmatpush1.msra.mxu0 %v5075
          %5980 = vmatprep.subr.mxu0 %v5080
          %5981 = vmatpush1.msra.mxu0 %v5079
          %5982 = vmatprep.subr.mxu0 %v5084
          %5983 = vmatpush1.msra.mxu0 %v5083
          %5984 = vmatprep.subr.mxu0 %v5088
          %5985 = vmatpush1.msra.mxu0 %v5087
          %5986 = vmatprep.subr.mxu0 %v5092
          %5987 = vmatpush1.msra.mxu0 %v5091
          %5988 = vmatprep.subr.mxu0 %v5096
          %5989 = vmatpush1.msra.mxu0 %v5095
          %5990 = vmatprep.subr.mxu0 %v5100
          %5991 = vmatpush1.msra.mxu0 %v5099
          %5992 = vmatprep.subr.mxu0 %v5104
          %5993 = vmatpush1.msra.mxu0 %v5103
          %5994 = vmatprep.subr.mxu0 %v5108
          %5995 = vmatpush1.msra.mxu0 %v5107
          %5996 = vmatprep.subr.mxu0 %v5112
          %5997 = vmatpush1.msra.mxu0 %v5111
          %5998 = vmatprep.subr.mxu0 %v5116
          %5999 = vmatpush1.msra.mxu0 %v5115
          %6000 = vmatprep.subr.mxu0 %v5120
          %6001 = vmatpush1.msra.mxu0 %v5119
          %6002 = vmatprep.subr.mxu0 %v5124
          %6003 = vmatpush1.msra.mxu0 %v5123
          %6004 = vmatprep.subr.mxu0 %v5128
          %6005 = vmatpush1.msra.mxu0 %v5127
          %6006 = vmatprep.subr.mxu0 %v5132
          %6007 = vmatpush1.msra.mxu0 %v5131
          %6008 = vmatprep.subr.mxu0 %v5136
          %6009 = vmatpush1.msra.mxu0 %v5135
          %6010 = vmatprep.subr.mxu0 %v5140
          %6011 = vmatpush1.msra.mxu0 %v5139
          %6012 = vmatprep.subr.mxu0 %v5144
          %6013 = vmatpush1.msra.mxu0 %v5143
          %6014 = vmatprep.subr.mxu0 %v5148
          %6015 = vmatpush1.msra.mxu0 %v5147
          %6016 = vmatprep.subr.mxu0 %v5152
          %6017 = vmatpush1.msra.mxu0 %v5151
          %6018 = vmatprep.subr.mxu0 %v5156
          %6019 = vmatpush1.msra.mxu0 %v5155
          %6020 = vmatprep.subr.mxu0 %v5160
          %6021 = vmatpush1.msra.mxu0 %v5159
          %6022 = vmatprep.subr.mxu0 %v5164
          %6023 = vmatpush1.msra.mxu0 %v5163
          %6024 = vmatprep.subr.mxu0 %v5168
          %6025 = vmatpush1.msra.mxu0 %v5167
          %6026 = vmatprep.subr.mxu0 %v5172
          %6027 = vmatpush1.msra.mxu0 %v5171
          %6028 = vmatprep.subr.mxu0 %v5176
          %6029 = vmatpush1.msra.mxu0 %v5175
          %6030 = vmatprep.subr.mxu0 %v5180
          %6031 = vmatpush1.msra.mxu0 %v5179
          %6032 = vmatprep.subr.mxu0 %v5184
          %6033 = vmatpush1.msra.mxu0 %v5183
          %6034 = vmatprep.mubr.f32.mxu0 %v5604
          %6035 = vmatmul.mubr.f32.gmra.mrb[0].mxu0 %v5600
          %v6036 = vpop.f32.mrb[0].mxu0
          %v6037 = vadd.f32 %v5966, %v6036
          %v6038 = vpop.f32.mrb[0].mxu0
          %v6039 = vadd.f32 %v5968, %v6038
          %6040 = vdwg.mxu0
          %6041 = vmatprep.subr.mxu0 %v5188
          %6042 = vmatpush1.msra.mxu0 %v5187
          %6043 = vmatprep.subr.mxu0 %v5192
          %6044 = vmatpush1.msra.mxu0 %v5191
          %6045 = vmatprep.subr.mxu0 %v5196
          %6046 = vmatpush1.msra.mxu0 %v5195
          %6047 = vmatprep.subr.mxu0 %v5200
          %6048 = vmatpush1.msra.mxu0 %v5199
          %6049 = vmatprep.subr.mxu0 %v5204
          %6050 = vmatpush1.msra.mxu0 %v5203
          %6051 = vmatprep.subr.mxu0 %v5208
          %6052 = vmatpush1.msra.mxu0 %v5207
          %6053 = vmatprep.subr.mxu0 %v5212
          %6054 = vmatpush1.msra.mxu0 %v5211
          %6055 = vmatprep.subr.mxu0 %v5216
          %6056 = vmatpush1.msra.mxu0 %v5215
          %6057 = vmatprep.subr.mxu0 %v5220
          %6058 = vmatpush1.msra.mxu0 %v5219
          %6059 = vmatprep.subr.mxu0 %v5224
          %6060 = vmatpush1.msra.mxu0 %v5223
          %6061 = vmatprep.subr.mxu0 %v5228
          %6062 = vmatpush1.msra.mxu0 %v5227
          %6063 = vmatprep.subr.mxu0 %v5232
          %6064 = vmatpush1.msra.mxu0 %v5231
          %6065 = vmatprep.subr.mxu0 %v5236
          %6066 = vmatpush1.msra.mxu0 %v5235
          %6067 = vmatprep.subr.mxu0 %v5240
          %6068 = vmatpush1.msra.mxu0 %v5239
          %6069 = vmatprep.subr.mxu0 %v5244
          %6070 = vmatpush1.msra.mxu0 %v5243
          %6071 = vmatprep.subr.mxu0 %v5248
          %6072 = vmatpush1.msra.mxu0 %v5247
          %6073 = vmatprep.subr.mxu0 %v5252
          %6074 = vmatpush1.msra.mxu0 %v5251
          %6075 = vmatprep.subr.mxu0 %v5256
          %6076 = vmatpush1.msra.mxu0 %v5255
          %6077 = vmatprep.subr.mxu0 %v5260
          %6078 = vmatpush1.msra.mxu0 %v5259
          %6079 = vmatprep.subr.mxu0 %v5264
          %6080 = vmatpush1.msra.mxu0 %v5263
          %6081 = vmatprep.subr.mxu0 %v5268
          %6082 = vmatpush1.msra.mxu0 %v5267
          %6083 = vmatprep.subr.mxu0 %v5272
          %6084 = vmatpush1.msra.mxu0 %v5271
          %6085 = vmatprep.subr.mxu0 %v5276
          %6086 = vmatpush1.msra.mxu0 %v5275
          %6087 = vmatprep.subr.mxu0 %v5280
          %6088 = vmatpush1.msra.mxu0 %v5279
          %6089 = vmatprep.subr.mxu0 %v5284
          %6090 = vmatpush1.msra.mxu0 %v5283
          %6091 = vmatprep.subr.mxu0 %v5288
          %6092 = vmatpush1.msra.mxu0 %v5287
          %6093 = vmatprep.subr.mxu0 %v5292
          %6094 = vmatpush1.msra.mxu0 %v5291
          %6095 = vmatprep.subr.mxu0 %v5296
          %6096 = vmatpush1.msra.mxu0 %v5295
          %6097 = vmatprep.subr.mxu0 %v5300
          %6098 = vmatpush1.msra.mxu0 %v5299
          %6099 = vmatprep.subr.mxu0 %v5304
          %6100 = vmatpush1.msra.mxu0 %v5303
          %6101 = vmatprep.subr.mxu0 %v5308
          %6102 = vmatpush1.msra.mxu0 %v5307
          %6103 = vmatprep.subr.mxu0 %v5312
          %6104 = vmatpush1.msra.mxu0 %v5311
          %6105 = vmatprep.mubr.f32.mxu0 %v5605
          %6106 = vmatmul.mubr.f32.gmra.mrb[0].mxu0 %v5601
          %v6107 = vpop.f32.mrb[0].mxu0
          %v6108 = vadd.f32 %v6037, %v6107
          %v6109 = vpop.f32.mrb[0].mxu0
          %v6110 = vadd.f32 %v6039, %v6109
          %6111 = vdwg.mxu0
          %6112 = vmatprep.subr.mxu0 %v5316
          %6113 = vmatpush1.msra.mxu0 %v5315
          %6114 = vmatprep.subr.mxu0 %v5320
          %6115 = vmatpush1.msra.mxu0 %v5319
          %6116 = vmatprep.subr.mxu0 %v5324
          %6117 = vmatpush1.msra.mxu0 %v5323
          %6118 = vmatprep.subr.mxu0 %v5328
          %6119 = vmatpush1.msra.mxu0 %v5327
          %6120 = vmatprep.subr.mxu0 %v5332
          %6121 = vmatpush1.msra.mxu0 %v5331
          %6122 = vmatprep.subr.mxu0 %v5336
          %6123 = vmatpush1.msra.mxu0 %v5335
          %6124 = vmatprep.subr.mxu0 %v5340
          %6125 = vmatpush1.msra.mxu0 %v5339
          %6126 = vmatprep.subr.mxu0 %v5344
          %6127 = vmatpush1.msra.mxu0 %v5343
          %6128 = vmatprep.subr.mxu0 %v5348
          %6129 = vmatpush1.msra.mxu0 %v5347
          %6130 = vmatprep.subr.mxu0 %v5352
          %6131 = vmatpush1.msra.mxu0 %v5351
          %6132 = vmatprep.subr.mxu0 %v5356
          %6133 = vmatpush1.msra.mxu0 %v5355
          %6134 = vmatprep.subr.mxu0 %v5360
          %6135 = vmatpush1.msra.mxu0 %v5359
          %6136 = vmatprep.subr.mxu0 %v5364
          %6137 = vmatpush1.msra.mxu0 %v5363
          %6138 = vmatprep.subr.mxu0 %v5368
          %6139 = vmatpush1.msra.mxu0 %v5367
          %6140 = vmatprep.subr.mxu0 %v5372
          %6141 = vmatpush1.msra.mxu0 %v5371
          %6142 = vmatprep.subr.mxu0 %v5376
          %6143 = vmatpush1.msra.mxu0 %v5375
          %6144 = vmatprep.subr.mxu0 %v5380
          %6145 = vmatpush1.msra.mxu0 %v5379
          %6146 = vmatprep.subr.mxu0 %v5384
          %6147 = vmatpush1.msra.mxu0 %v5383
          %6148 = vmatprep.subr.mxu0 %v5388
          %6149 = vmatpush1.msra.mxu0 %v5387
          %6150 = vmatprep.subr.mxu0 %v5392
          %6151 = vmatpush1.msra.mxu0 %v5391
          %6152 = vmatprep.subr.mxu0 %v5396
          %6153 = vmatpush1.msra.mxu0 %v5395
          %6154 = vmatprep.subr.mxu0 %v5400
          %6155 = vmatpush1.msra.mxu0 %v5399
          %6156 = vmatprep.subr.mxu0 %v5404
          %6157 = vmatpush1.msra.mxu0 %v5403
          %6158 = vmatprep.subr.mxu0 %v5408
          %6159 = vmatpush1.msra.mxu0 %v5407
          %6160 = vmatprep.subr.mxu0 %v5412
          %6161 = vmatpush1.msra.mxu0 %v5411
          %6162 = vmatprep.subr.mxu0 %v5416
          %6163 = vmatpush1.msra.mxu0 %v5415
          %6164 = vmatprep.subr.mxu0 %v5420
          %6165 = vmatpush1.msra.mxu0 %v5419
          %6166 = vmatprep.subr.mxu0 %v5424
          %6167 = vmatpush1.msra.mxu0 %v5423
          %6168 = vmatprep.subr.mxu0 %v5428
          %6169 = vmatpush1.msra.mxu0 %v5427
          %6170 = vmatprep.subr.mxu0 %v5432
          %6171 = vmatpush1.msra.mxu0 %v5431
          %6172 = vmatprep.subr.mxu0 %v5436
          %6173 = vmatpush1.msra.mxu0 %v5435
          %6174 = vmatprep.subr.mxu0 %v5440
          %6175 = vmatpush1.msra.mxu0 %v5439
          %6176 = vmatprep.mubr.f32.mxu0 %v5606
          %6177 = vmatmul.mubr.f32.gmra.mrb[0].mxu0 %v5602
          %v6178 = vpop.f32.mrb[0].mxu0
          %v6179 = vadd.f32 %v6108, %v6178
          %v6180 = vpop.f32.mrb[0].mxu0
          %v6181 = vadd.f32 %v6110, %v6180
          %6182 = vdwg.mxu0
          %v6183 = vmax.f32 %v5895, 0.0
          %v6184 = vmax.f32 %v5897, 0.0
          %v6185 = vmax.f32 %v6179, 0.0
          %v6186 = vmax.f32 %v6181, 0.0
          %v6187 = vld [vmem:[#allocation11] sm:$0xff]
          %v6188 = vld [vmem:[#allocation11 + $0x8] sm:$0xff]
          %v6189 = vld [vmem:[#allocation11 + $0x10] sm:$0xff]
          %v6190 = vld [vmem:[#allocation11 + $0x18] sm:$0xff]
          %v6191 = vld [vmem:[#allocation11 + $0x20] sm:$0xff]
          %v6192 = vld [vmem:[#allocation11 + $0x28] sm:$0xff]
          %v6193 = vld [vmem:[#allocation11 + $0x30] sm:$0xff]
          %v6194 = vld [vmem:[#allocation11 + $0x38] sm:$0xff]
          %v6195 = vld [vmem:[#allocation11 + $0x40] sm:$0xff]
          %v6196 = vld [vmem:[#allocation11 + $0x48] sm:$0xff]
          %v6197 = vld [vmem:[#allocation11 + $0x50] sm:$0xff]
          %v6198 = vld [vmem:[#allocation11 + $0x58] sm:$0xff]
          %v6199 = vld [vmem:[#allocation11 + $0x60] sm:$0xff]
          %v6200 = vld [vmem:[#allocation11 + $0x68] sm:$0xff]
          %v6201 = vld [vmem:[#allocation11 + $0x70] sm:$0xff]
          %v6202 = vld [vmem:[#allocation11 + $0x78] sm:$0xff]
          %v6203 = vld [vmem:[#allocation11 + $0x80] sm:$0xff]
          %v6204 = vld [vmem:[#allocation11 + $0x88] sm:$0xff]
          %v6205 = vld [vmem:[#allocation11 + $0x90] sm:$0xff]
          %v6206 = vld [vmem:[#allocation11 + $0x98] sm:$0xff]
          %v6207 = vld [vmem:[#allocation11 + $0xa0] sm:$0xff]
          %v6208 = vld [vmem:[#allocation11 + $0xa8] sm:$0xff]
          %v6209 = vld [vmem:[#allocation11 + $0xb0] sm:$0xff]
          %v6210 = vld [vmem:[#allocation11 + $0xb8] sm:$0xff]
          %v6211 = vld [vmem:[#allocation11 + $0xc0] sm:$0xff]
          %v6212 = vld [vmem:[#allocation11 + $0xc8] sm:$0xff]
          %v6213 = vld [vmem:[#allocation11 + $0xd0] sm:$0xff]
          %v6214 = vld [vmem:[#allocation11 + $0xd8] sm:$0xff]
          %v6215 = vld [vmem:[#allocation11 + $0xe0] sm:$0xff]
          %v6216 = vld [vmem:[#allocation11 + $0xe8] sm:$0xff]
          %v6217 = vld [vmem:[#allocation11 + $0xf0] sm:$0xff]
          %v6218 = vld [vmem:[#allocation11 + $0xf8] sm:$0xff]
          %v6219 = vld [vmem:[#allocation11 + $0x100] sm:$0xff]
          %v6220 = vld [vmem:[#allocation11 + $0x108] sm:$0xff]
          %v6221 = vld [vmem:[#allocation11 + $0x110] sm:$0xff]
          %v6222 = vld [vmem:[#allocation11 + $0x118] sm:$0xff]
          %v6223 = vld [vmem:[#allocation11 + $0x120] sm:$0xff]
          %v6224 = vld [vmem:[#allocation11 + $0x128] sm:$0xff]
          %v6225 = vld [vmem:[#allocation11 + $0x130] sm:$0xff]
          %v6226 = vld [vmem:[#allocation11 + $0x138] sm:$0xff]
          %v6227 = vld [vmem:[#allocation11 + $0x140] sm:$0xff]
          %v6228 = vld [vmem:[#allocation11 + $0x148] sm:$0xff]
          %v6229 = vld [vmem:[#allocation11 + $0x150] sm:$0xff]
          %v6230 = vld [vmem:[#allocation11 + $0x158] sm:$0xff]
          %v6231 = vld [vmem:[#allocation11 + $0x160] sm:$0xff]
          %v6232 = vld [vmem:[#allocation11 + $0x168] sm:$0xff]
          %v6233 = vld [vmem:[#allocation11 + $0x170] sm:$0xff]
          %v6234 = vld [vmem:[#allocation11 + $0x178] sm:$0xff]
          %v6235 = vld [vmem:[#allocation11 + $0x180] sm:$0xff]
          %v6236 = vld [vmem:[#allocation11 + $0x188] sm:$0xff]
          %v6237 = vld [vmem:[#allocation11 + $0x190] sm:$0xff]
          %v6238 = vld [vmem:[#allocation11 + $0x198] sm:$0xff]
          %v6239 = vld [vmem:[#allocation11 + $0x1a0] sm:$0xff]
          %v6240 = vld [vmem:[#allocation11 + $0x1a8] sm:$0xff]
          %v6241 = vld [vmem:[#allocation11 + $0x1b0] sm:$0xff]
          %v6242 = vld [vmem:[#allocation11 + $0x1b8] sm:$0xff]
          %v6243 = vld [vmem:[#allocation11 + $0x1c0] sm:$0xff]
          %v6244 = vld [vmem:[#allocation11 + $0x1c8] sm:$0xff]
          %v6245 = vld [vmem:[#allocation11 + $0x1d0] sm:$0xff]
          %v6246 = vld [vmem:[#allocation11 + $0x1d8] sm:$0xff]
          %v6247 = vld [vmem:[#allocation11 + $0x1e0] sm:$0xff]
          %v6248 = vld [vmem:[#allocation11 + $0x1e8] sm:$0xff]
          %v6249 = vld [vmem:[#allocation11 + $0x1f0] sm:$0xff]
          %v6250 = vld [vmem:[#allocation11 + $0x1f8] sm:$0xff]
          %v6251 = vld [vmem:[#allocation11 + $0x200] sm:$0xff]
          %v6252 = vld [vmem:[#allocation11 + $0x208] sm:$0xff]
          %v6253 = vld [vmem:[#allocation11 + $0x210] sm:$0xff]
          %v6254 = vld [vmem:[#allocation11 + $0x218] sm:$0xff]
          %v6255 = vld [vmem:[#allocation11 + $0x220] sm:$0xff]
          %v6256 = vld [vmem:[#allocation11 + $0x228] sm:$0xff]
          %v6257 = vld [vmem:[#allocation11 + $0x230] sm:$0xff]
          %v6258 = vld [vmem:[#allocation11 + $0x238] sm:$0xff]
          %v6259 = vld [vmem:[#allocation11 + $0x240] sm:$0xff]
          %v6260 = vld [vmem:[#allocation11 + $0x248] sm:$0xff]
          %v6261 = vld [vmem:[#allocation11 + $0x250] sm:$0xff]
          %v6262 = vld [vmem:[#allocation11 + $0x258] sm:$0xff]
          %v6263 = vld [vmem:[#allocation11 + $0x260] sm:$0xff]
          %v6264 = vld [vmem:[#allocation11 + $0x268] sm:$0xff]
          %v6265 = vld [vmem:[#allocation11 + $0x270] sm:$0xff]
          %v6266 = vld [vmem:[#allocation11 + $0x278] sm:$0xff]
          %v6267 = vld [vmem:[#allocation11 + $0x280] sm:$0xff]
          %v6268 = vld [vmem:[#allocation11 + $0x288] sm:$0xff]
          %v6269 = vld [vmem:[#allocation11 + $0x290] sm:$0xff]
          %v6270 = vld [vmem:[#allocation11 + $0x298] sm:$0xff]
          %v6271 = vld [vmem:[#allocation11 + $0x2a0] sm:$0xff]
          %v6272 = vld [vmem:[#allocation11 + $0x2a8] sm:$0xff]
          %v6273 = vld [vmem:[#allocation11 + $0x2b0] sm:$0xff]
          %v6274 = vld [vmem:[#allocation11 + $0x2b8] sm:$0xff]
          %v6275 = vld [vmem:[#allocation11 + $0x2c0] sm:$0xff]
          %v6276 = vld [vmem:[#allocation11 + $0x2c8] sm:$0xff]
          %v6277 = vld [vmem:[#allocation11 + $0x2d0] sm:$0xff]
          %v6278 = vld [vmem:[#allocation11 + $0x2d8] sm:$0xff]
          %v6279 = vld [vmem:[#allocation11 + $0x2e0] sm:$0xff]
          %v6280 = vld [vmem:[#allocation11 + $0x2e8] sm:$0xff]
          %v6281 = vld [vmem:[#allocation11 + $0x2f0] sm:$0xff]
          %v6282 = vld [vmem:[#allocation11 + $0x2f8] sm:$0xff]
          %v6283 = vld [vmem:[#allocation11 + $0x300] sm:$0xff]
          %v6284 = vld [vmem:[#allocation11 + $0x308] sm:$0xff]
          %v6285 = vld [vmem:[#allocation11 + $0x310] sm:$0xff]
          %v6286 = vld [vmem:[#allocation11 + $0x318] sm:$0xff]
          %v6287 = vld [vmem:[#allocation11 + $0x320] sm:$0xff]
          %v6288 = vld [vmem:[#allocation11 + $0x328] sm:$0xff]
          %v6289 = vld [vmem:[#allocation11 + $0x330] sm:$0xff]
          %v6290 = vld [vmem:[#allocation11 + $0x338] sm:$0xff]
          %v6291 = vld [vmem:[#allocation11 + $0x340] sm:$0xff]
          %v6292 = vld [vmem:[#allocation11 + $0x348] sm:$0xff]
          %v6293 = vld [vmem:[#allocation11 + $0x350] sm:$0xff]
          %v6294 = vld [vmem:[#allocation11 + $0x358] sm:$0xff]
          %v6295 = vld [vmem:[#allocation11 + $0x360] sm:$0xff]
          %v6296 = vld [vmem:[#allocation11 + $0x368] sm:$0xff]
          %v6297 = vld [vmem:[#allocation11 + $0x370] sm:$0xff]
          %v6298 = vld [vmem:[#allocation11 + $0x378] sm:$0xff]
          %v6299 = vld [vmem:[#allocation11 + $0x380] sm:$0xff]
          %v6300 = vld [vmem:[#allocation11 + $0x388] sm:$0xff]
          %v6301 = vld [vmem:[#allocation11 + $0x390] sm:$0xff]
          %v6302 = vld [vmem:[#allocation11 + $0x398] sm:$0xff]
          %v6303 = vld [vmem:[#allocation11 + $0x3a0] sm:$0xff]
          %v6304 = vld [vmem:[#allocation11 + $0x3a8] sm:$0xff]
          %v6305 = vld [vmem:[#allocation11 + $0x3b0] sm:$0xff]
          %v6306 = vld [vmem:[#allocation11 + $0x3b8] sm:$0xff]
          %v6307 = vld [vmem:[#allocation11 + $0x3c0] sm:$0xff]
          %v6308 = vld [vmem:[#allocation11 + $0x3c8] sm:$0xff]
          %v6309 = vld [vmem:[#allocation11 + $0x3d0] sm:$0xff]
          %v6310 = vld [vmem:[#allocation11 + $0x3d8] sm:$0xff]
          %v6311 = vld [vmem:[#allocation11 + $0x3e0] sm:$0xff]
          %v6312 = vld [vmem:[#allocation11 + $0x3e8] sm:$0xff]
          %v6313 = vld [vmem:[#allocation11 + $0x3f0] sm:$0xff]
          %v6314 = vld [vmem:[#allocation11 + $0x3f8] sm:$0xff]
          %v6315 = vld [vmem:[#allocation13] sm:$0x3]
          %v6317 = vlaneseq
          %v6318 = vshrl.u32 %v6317, 7
          %v6319 = vsub.s32 0, %v6318
          %v6320 = vrot.slane %v6315, %v6319
          %v6321 = vlaneseq
          %v6322 = vshrl.u32 %v6321, 7
          %v6323 = vsub.s32 1, %v6322
          %v6324 = vrot.slane %v6315, %v6323
          %6327 = vmatprep.subr.mxu0 %v6188
          %6328 = vmatpush1.msra.mxu0 %v6187
          %6329 = vmatprep.subr.mxu0 %v6190
          %6330 = vmatpush1.msra.mxu0 %v6189
          %6331 = vmatprep.subr.mxu0 %v6192
          %6332 = vmatpush1.msra.mxu0 %v6191
          %6333 = vmatprep.subr.mxu0 %v6194
          %6334 = vmatpush1.msra.mxu0 %v6193
          %6335 = vmatprep.subr.mxu0 %v6196
          %6336 = vmatpush1.msra.mxu0 %v6195
          %6337 = vmatprep.subr.mxu0 %v6198
          %6338 = vmatpush1.msra.mxu0 %v6197
          %6339 = vmatprep.subr.mxu0 %v6200
          %6340 = vmatpush1.msra.mxu0 %v6199
          %6341 = vmatprep.subr.mxu0 %v6202
          %6342 = vmatpush1.msra.mxu0 %v6201
          %6343 = vmatprep.subr.mxu0 %v6204
          %6344 = vmatpush1.msra.mxu0 %v6203
          %6345 = vmatprep.subr.mxu0 %v6206
          %6346 = vmatpush1.msra.mxu0 %v6205
          %6347 = vmatprep.subr.mxu0 %v6208
          %6348 = vmatpush1.msra.mxu0 %v6207
          %6349 = vmatprep.subr.mxu0 %v6210
          %6350 = vmatpush1.msra.mxu0 %v6209
          %6351 = vmatprep.subr.mxu0 %v6212
          %6352 = vmatpush1.msra.mxu0 %v6211
          %6353 = vmatprep.subr.mxu0 %v6214
          %6354 = vmatpush1.msra.mxu0 %v6213
          %6355 = vmatprep.subr.mxu0 %v6216
          %6356 = vmatpush1.msra.mxu0 %v6215
          %6357 = vmatprep.subr.mxu0 %v6218
          %6358 = vmatpush1.msra.mxu0 %v6217
          %6359 = vmatprep.subr.mxu0 %v6220
          %6360 = vmatpush1.msra.mxu0 %v6219
          %6361 = vmatprep.subr.mxu0 %v6222
          %6362 = vmatpush1.msra.mxu0 %v6221
          %6363 = vmatprep.subr.mxu0 %v6224
          %6364 = vmatpush1.msra.mxu0 %v6223
          %6365 = vmatprep.subr.mxu0 %v6226
          %6366 = vmatpush1.msra.mxu0 %v6225
          %6367 = vmatprep.subr.mxu0 %v6228
          %6368 = vmatpush1.msra.mxu0 %v6227
          %6369 = vmatprep.subr.mxu0 %v6230
          %6370 = vmatpush1.msra.mxu0 %v6229
          %6371 = vmatprep.subr.mxu0 %v6232
          %6372 = vmatpush1.msra.mxu0 %v6231
          %6373 = vmatprep.subr.mxu0 %v6234
          %6374 = vmatpush1.msra.mxu0 %v6233
          %6375 = vmatprep.subr.mxu0 %v6236
          %6376 = vmatpush1.msra.mxu0 %v6235
          %6377 = vmatprep.subr.mxu0 %v6238
          %6378 = vmatpush1.msra.mxu0 %v6237
          %6379 = vmatprep.subr.mxu0 %v6240
          %6380 = vmatpush1.msra.mxu0 %v6239
          %6381 = vmatprep.subr.mxu0 %v6242
          %6382 = vmatpush1.msra.mxu0 %v6241
          %6383 = vmatprep.subr.mxu0 %v6244
          %6384 = vmatpush1.msra.mxu0 %v6243
          %6385 = vmatprep.subr.mxu0 %v6246
          %6386 = vmatpush1.msra.mxu0 %v6245
          %6387 = vmatprep.subr.mxu0 %v6248
          %6388 = vmatpush1.msra.mxu0 %v6247
          %6389 = vmatprep.subr.mxu0 %v6250
          %6390 = vmatpush1.msra.mxu0 %v6249
          %6391 = vmatprep.mubr.f32.mxu0 %v6184
          %6392 = vmatmul.mubr.f32.gmra.mrb[0].mxu0 %v6183
          %v6393 = vpop.f32.mrb[0].mxu0
          %v6394 = vadd.f32 %v6320, %v6393
          %v6395 = vpop.f32.mrb[0].mxu0
          %v6396 = vadd.f32 %v6324, %v6395
          %6397 = vdwg.mxu0
          %6398 = vmatprep.subr.mxu0 %v6252
          %6399 = vmatpush1.msra.mxu0 %v6251
          %6400 = vmatprep.subr.mxu0 %v6254
          %6401 = vmatpush1.msra.mxu0 %v6253
          %6402 = vmatprep.subr.mxu0 %v6256
          %6403 = vmatpush1.msra.mxu0 %v6255
          %6404 = vmatprep.subr.mxu0 %v6258
          %6405 = vmatpush1.msra.mxu0 %v6257
          %6406 = vmatprep.subr.mxu0 %v6260
          %6407 = vmatpush1.msra.mxu0 %v6259
          %6408 = vmatprep.subr.mxu0 %v6262
          %6409 = vmatpush1.msra.mxu0 %v6261
          %6410 = vmatprep.subr.mxu0 %v6264
          %6411 = vmatpush1.msra.mxu0 %v6263
          %6412 = vmatprep.subr.mxu0 %v6266
          %6413 = vmatpush1.msra.mxu0 %v6265
          %6414 = vmatprep.subr.mxu0 %v6268
          %6415 = vmatpush1.msra.mxu0 %v6267
          %6416 = vmatprep.subr.mxu0 %v6270
          %6417 = vmatpush1.msra.mxu0 %v6269
          %6418 = vmatprep.subr.mxu0 %v6272
          %6419 = vmatpush1.msra.mxu0 %v6271
          %6420 = vmatprep.subr.mxu0 %v6274
          %6421 = vmatpush1.msra.mxu0 %v6273
          %6422 = vmatprep.subr.mxu0 %v6276
          %6423 = vmatpush1.msra.mxu0 %v6275
          %6424 = vmatprep.subr.mxu0 %v6278
          %6425 = vmatpush1.msra.mxu0 %v6277
          %6426 = vmatprep.subr.mxu0 %v6280
          %6427 = vmatpush1.msra.mxu0 %v6279
          %6428 = vmatprep.subr.mxu0 %v6282
          %6429 = vmatpush1.msra.mxu0 %v6281
          %6430 = vmatprep.subr.mxu0 %v6284
          %6431 = vmatpush1.msra.mxu0 %v6283
          %6432 = vmatprep.subr.mxu0 %v6286
          %6433 = vmatpush1.msra.mxu0 %v6285
          %6434 = vmatprep.subr.mxu0 %v6288
          %6435 = vmatpush1.msra.mxu0 %v6287
          %6436 = vmatprep.subr.mxu0 %v6290
          %6437 = vmatpush1.msra.mxu0 %v6289
          %6438 = vmatprep.subr.mxu0 %v6292
          %6439 = vmatpush1.msra.mxu0 %v6291
          %6440 = vmatprep.subr.mxu0 %v6294
          %6441 = vmatpush1.msra.mxu0 %v6293
          %6442 = vmatprep.subr.mxu0 %v6296
          %6443 = vmatpush1.msra.mxu0 %v6295
          %6444 = vmatprep.subr.mxu0 %v6298
          %6445 = vmatpush1.msra.mxu0 %v6297
          %6446 = vmatprep.subr.mxu0 %v6300
          %6447 = vmatpush1.msra.mxu0 %v6299
          %6448 = vmatprep.subr.mxu0 %v6302
          %6449 = vmatpush1.msra.mxu0 %v6301
          %6450 = vmatprep.subr.mxu0 %v6304
          %6451 = vmatpush1.msra.mxu0 %v6303
          %6452 = vmatprep.subr.mxu0 %v6306
          %6453 = vmatpush1.msra.mxu0 %v6305
          %6454 = vmatprep.subr.mxu0 %v6308
          %6455 = vmatpush1.msra.mxu0 %v6307
          %6456 = vmatprep.subr.mxu0 %v6310
          %6457 = vmatpush1.msra.mxu0 %v6309
          %6458 = vmatprep.subr.mxu0 %v6312
          %6459 = vmatpush1.msra.mxu0 %v6311
          %6460 = vmatprep.subr.mxu0 %v6314
          %6461 = vmatpush1.msra.mxu0 %v6313
          %6462 = vmatprep.mubr.f32.mxu0 %v6186
          %6463 = vmatmul.mubr.f32.gmra.mrb[0].mxu0 %v6185
          %v6464 = vpop.f32.mrb[0].mxu0
          %v6465 = vadd.f32 %v6394, %v6464
          %v6466 = vpop.f32.mrb[0].mxu0
          %v6467 = vadd.f32 %v6396, %v6466
          %6468 = vdwg.mxu0
          %v6469 = vmax.f32 %v6465, 0.0
          %v6470 = vmax.f32 %v6467, 0.0
          %v6471 = vld [vmem:[#allocation14] sm:$0xff]
          %v6472 = vld [vmem:[#allocation14 + $0x8] sm:$0xff]
          %v6473 = vld [vmem:[#allocation14 + $0x10] sm:$0xff]
          %v6474 = vld [vmem:[#allocation14 + $0x18] sm:$0xff]
          %v6475 = vld [vmem:[#allocation14 + $0x20] sm:$0xff]
          %v6476 = vld [vmem:[#allocation14 + $0x28] sm:$0xff]
          %v6477 = vld [vmem:[#allocation14 + $0x30] sm:$0xff]
          %v6478 = vld [vmem:[#allocation14 + $0x38] sm:$0xff]
          %v6479 = vld [vmem:[#allocation14 + $0x40] sm:$0xff]
          %v6480 = vld [vmem:[#allocation14 + $0x48] sm:$0xff]
          %v6481 = vld [vmem:[#allocation14 + $0x50] sm:$0xff]
          %v6482 = vld [vmem:[#allocation14 + $0x58] sm:$0xff]
          %v6483 = vld [vmem:[#allocation14 + $0x60] sm:$0xff]
          %v6484 = vld [vmem:[#allocation14 + $0x68] sm:$0xff]
          %v6485 = vld [vmem:[#allocation14 + $0x70] sm:$0xff]
          %v6486 = vld [vmem:[#allocation14 + $0x78] sm:$0xff]
          %v6487 = vld [vmem:[#allocation14 + $0x80] sm:$0xff]
          %v6488 = vld [vmem:[#allocation14 + $0x88] sm:$0xff]
          %v6489 = vld [vmem:[#allocation14 + $0x90] sm:$0xff]
          %v6490 = vld [vmem:[#allocation14 + $0x98] sm:$0xff]
          %v6491 = vld [vmem:[#allocation14 + $0xa0] sm:$0xff]
          %v6492 = vld [vmem:[#allocation14 + $0xa8] sm:$0xff]
          %v6493 = vld [vmem:[#allocation14 + $0xb0] sm:$0xff]
          %v6494 = vld [vmem:[#allocation14 + $0xb8] sm:$0xff]
          %v6495 = vld [vmem:[#allocation14 + $0xc0] sm:$0xff]
          %v6496 = vld [vmem:[#allocation14 + $0xc8] sm:$0xff]
          %v6497 = vld [vmem:[#allocation14 + $0xd0] sm:$0xff]
          %v6498 = vld [vmem:[#allocation14 + $0xd8] sm:$0xff]
          %v6499 = vld [vmem:[#allocation14 + $0xe0] sm:$0xff]
          %v6500 = vld [vmem:[#allocation14 + $0xe8] sm:$0xff]
          %v6501 = vld [vmem:[#allocation14 + $0xf0] sm:$0xff]
          %v6502 = vld [vmem:[#allocation14 + $0xf8] sm:$0xff]
          %v6503 = vld [vmem:[#allocation16] sm:$0x1]
          %v6505 = vlaneseq
          %v6506 = vshrl.u32 %v6505, 7
          %v6507 = vsub.s32 0, %v6506
          %v6508 = vrot.slane %v6503, %v6507
          %6510 = vmatprep.subr.mxu0 0.0
          %6511 = vmatpush1.msra.mxu0 %v6471
          %6512 = vmatprep.subr.mxu0 0.0
          %6513 = vmatpush1.msra.mxu0 %v6472
          %6514 = vmatprep.subr.mxu0 0.0
          %6515 = vmatpush1.msra.mxu0 %v6473
          %6516 = vmatprep.subr.mxu0 0.0
          %6517 = vmatpush1.msra.mxu0 %v6474
          %6518 = vmatprep.subr.mxu0 0.0
          %6519 = vmatpush1.msra.mxu0 %v6475
          %6520 = vmatprep.subr.mxu0 0.0
          %6521 = vmatpush1.msra.mxu0 %v6476
          %6522 = vmatprep.subr.mxu0 0.0
          %6523 = vmatpush1.msra.mxu0 %v6477
          %6524 = vmatprep.subr.mxu0 0.0
          %6525 = vmatpush1.msra.mxu0 %v6478
          %6526 = vmatprep.subr.mxu0 0.0
          %6527 = vmatpush1.msra.mxu0 %v6479
          %6528 = vmatprep.subr.mxu0 0.0
          %6529 = vmatpush1.msra.mxu0 %v6480
          %6530 = vmatprep.subr.mxu0 0.0
          %6531 = vmatpush1.msra.mxu0 %v6481
          %6532 = vmatprep.subr.mxu0 0.0
          %6533 = vmatpush1.msra.mxu0 %v6482
          %6534 = vmatprep.subr.mxu0 0.0
          %6535 = vmatpush1.msra.mxu0 %v6483
          %6536 = vmatprep.subr.mxu0 0.0
          %6537 = vmatpush1.msra.mxu0 %v6484
          %6538 = vmatprep.subr.mxu0 0.0
          %6539 = vmatpush1.msra.mxu0 %v6485
          %6540 = vmatprep.subr.mxu0 0.0
          %6541 = vmatpush1.msra.mxu0 %v6486
          %6542 = vmatprep.subr.mxu0 0.0
          %6543 = vmatpush1.msra.mxu0 %v6487
          %6544 = vmatprep.subr.mxu0 0.0
          %6545 = vmatpush1.msra.mxu0 %v6488
          %6546 = vmatprep.subr.mxu0 0.0
          %6547 = vmatpush1.msra.mxu0 %v6489
          %6548 = vmatprep.subr.mxu0 0.0
          %6549 = vmatpush1.msra.mxu0 %v6490
          %6550 = vmatprep.subr.mxu0 0.0
          %6551 = vmatpush1.msra.mxu0 %v6491
          %6552 = vmatprep.subr.mxu0 0.0
          %6553 = vmatpush1.msra.mxu0 %v6492
          %6554 = vmatprep.subr.mxu0 0.0
          %6555 = vmatpush1.msra.mxu0 %v6493
          %6556 = vmatprep.subr.mxu0 0.0
          %6557 = vmatpush1.msra.mxu0 %v6494
          %6558 = vmatprep.subr.mxu0 0.0
          %6559 = vmatpush1.msra.mxu0 %v6495
          %6560 = vmatprep.subr.mxu0 0.0
          %6561 = vmatpush1.msra.mxu0 %v6496
          %6562 = vmatprep.subr.mxu0 0.0
          %6563 = vmatpush1.msra.mxu0 %v6497
          %6564 = vmatprep.subr.mxu0 0.0
          %6565 = vmatpush1.msra.mxu0 %v6498
          %6566 = vmatprep.subr.mxu0 0.0
          %6567 = vmatpush1.msra.mxu0 %v6499
          %6568 = vmatprep.subr.mxu0 0.0
          %6569 = vmatpush1.msra.mxu0 %v6500
          %6570 = vmatprep.subr.mxu0 0.0
          %6571 = vmatpush1.msra.mxu0 %v6501
          %6572 = vmatprep.subr.mxu0 0.0
          %6573 = vmatpush1.msra.mxu0 %v6502
          %6574 = vmatprep.mubr.f32.mxu0 %v6470
          %6575 = vmatmul.mubr.f32.gmra.mrb[0].mxu0 %v6469
          %v6576 = vpop.f32.mrb[0].mxu0
          %v6577 = vadd.f32 %v6508, %v6576
          %v6578 = vpop.f32.mrb[0].mxu0
          %6579 = vdwg.mxu0
          %6580 = vst [vmem:[#allocation17] sm:$0xff] %v6577
        $region92: #{tpu_custom_call.1} parent=47 // pred_fallthru
          _
        // Predicated region
        $region93: #{tpu_custom_call.1} parent=47 // pred_check
          %p6581 = pneg %p211
        $region94: #{tpu_custom_call.1} parent=47 // pred_check_branch
          %6583 = sbr.rel (%p6581) target = $region96
        $region95: #{tpu_custom_call.1} parent=47 // pred_region
          %s6585 = ssub.s32 128, 128
          %6586 = vsyncadd [#allocation7], %s6585
          %s6587 = smul.addr %s31, 128
          %s6588 = scalar_lea.hbm %s8, %s6587
          %s6590 = sshll.u32 [#allocation17], 4
          %s6591 = int_to_ptr.vmem [resolvable:$true] %s6590
          %6593 = dma.vmem_to_hbm [thread:$0]  %s6591, 128, %s6588, [#allocation7]
        $region96: #{tpu_custom_call.1} parent=47 // pred_fallthru
          _
        // Predicated region
        $region97: #{tpu_custom_call.1} parent=47 // pred_check
          %p6594 = pneg %p211
        $region98: #{tpu_custom_call.1} parent=47 // pred_check_branch
          %6596 = sbr.rel (%p6594) target = $region100
        $region99: #{tpu_custom_call.1} parent=47 // pred_region
          %6597 = dma.done [#allocation7], 128
        $region100: #{tpu_custom_call.1} parent=47 // pred_fallthru
          _
      $region48: #{tpu_custom_call.1} parent=5 // pred_fallthru
        _
      %p6598 = scmp.le.s32.totalorder 2, %s22
      // Predicated region
      $region101: #{tpu_custom_call.1} parent=5 // pred_check
        %p6599 = pneg %p6598
      $region102: #{tpu_custom_call.1} parent=5 // pred_check_branch
        %6601 = sbr.rel (%p6599) target = $region104
      $region103: #{tpu_custom_call.1} parent=5 // pred_region
        %s6602 = ssub.s32 %s22, 2
      $region104: #{tpu_custom_call.1} parent=5 // pred_fallthru
        _
    $region6: #{tpu_custom_call.1} parent=1 // loop_footer
      %s26 = sadd.s32 1, %s22
    $region7: #{tpu_custom_call.1} parent=1 // loop_footer_branch
      %21 = sbr.rel target = $region3
    $region8: #{tpu_custom_call.1} parent=1 // loop_exit
      _
    %6603 = vsyncpa [#allocation6], 1
    %s6604 = scalar_lea.sflag [#allocation6], 1
    %6605 = vsyncpa %s6604, 1
    %6606 = vsyncpa [#allocation9], 1
    %6607 = vsyncpa [#allocation12], 1
    %6608 = vsyncpa [#allocation15], 1
    %6609 = vsyncpa [#allocation7], 1
    %s6610 = scalar_lea.sflag [#allocation7], 1
    %6611 = vsyncpa %s6610, 1

</llo_original>
